<compile_context>
chip_gen: v7x
topology: tpu7x:2x2x1
jax: 0.10.0
libtpu: 0.0.40
codegen_flags: <defaults>
</compile_context>

<pallas_src>
import functools
import math

import jax
import jax.numpy as jnp
import numpy as np
from jax import lax
from jax.experimental import pallas as pl
from jax.experimental.pallas import tpu as pltpu

_LANE = 128      # TPU lane width (channel padding target)
_SUBLANE = 16    # bf16 packed sublane tile (width alignment target)

_vmem_cache = []
_roll_sign_cache = []


def _round_up(x, m):
    return ((x + m - 1) // m) * m


def _vmem_limit_bytes():
    """Generation-aware scoped-VMEM budget (v5e/v6e: ~96 MiB, v7x: ~48 MiB)."""
    if not _vmem_cache:
        cap = 64 * 1024 * 1024
        try:
            info = pltpu.get_tpu_info()
            cap = int(getattr(info, "vmem_capacity_bytes", cap))
        except Exception:
            pass
        _vmem_cache.append(int(min(3 * cap // 4, 96 * 1024 * 1024)))
    return _vmem_cache[0]


def _probe_roll_sign():
    """Pin down pltpu.roll direction with a tiny probe kernel.

    Returns +1 if pltpu.roll matches jnp.roll semantics, -1 if it is the
    opposite convention, 0 if pltpu.roll is unusable (fall back to jnp.roll).
    """
    try:
        def kern(o_ref):
            x = lax.broadcasted_iota(jnp.int32, (8, 128), 0)
            o_ref[...] = pltpu.roll(x, shift=1, axis=0)

        out = pl.pallas_call(
            kern, out_shape=jax.ShapeDtypeStruct((8, 128), jnp.int32))()
        out = np.asarray(jax.block_until_ready(out))
        if out[1, 0] == 0 and out[0, 0] == 7:
            return 1
        if out[0, 0] == 1 and out[7, 0] == 0:
            return -1
    except Exception:
        pass
    return 0


def _roll_sign():
    if not _roll_sign_cache:
        _roll_sign_cache.append(_probe_roll_sign())
    return _roll_sign_cache[0]


# ----------------------------------------------------------------------------
# Pallas conv kernel: stride-1 "same" NHWC conv on a spatially padded,
# channel-padded bf16 canvas, with optional fused residual / 1x1 skip
# projection, bias and ReLU.  Output is the next layer's canvas (zero margins).
# ----------------------------------------------------------------------------
def _make_conv_kernel(KH, KW, T, Wc, CPin, CPout, M, Hv, Wv, relu, res_mode,
                      fuse_kw, roll_sign):
    p = (KH - 1) // 2
    L = (T + 2 * p) * Wc          # flattened window rows

    def shift_rows(flat, amount):
        # result[i] = flat[(i + amount) % L]; wrap junk only reaches masked cols
        amount %= L
        if amount == 0:
            return flat
        if roll_sign == 0:
            return jnp.roll(flat, -amount, axis=0)
        return pltpu.roll(flat, shift=(-amount * roll_sign) % L, axis=0)

    def kernel(*refs):
        it = iter(refs)
        x_ref = next(it)
        top_ref = next(it) if p else None
        bot_ref = next(it) if p else None
        w_ref = next(it)
        b_ref = next(it)
        r_ref = next(it) if res_mode else None
        ws_ref = next(it) if res_mode == 2 else None
        bs_ref = next(it) if res_mode == 2 else None
        o_ref = next(it)

        # Input-row window for this output tile (top halo + tile + bottom halo)
        if p:
            win = jnp.concatenate([top_ref[0], x_ref[0], bot_ref[0]], axis=0)
        else:
            win = x_ref[0]
        flat = win.reshape(L, CPin)

        # One shifted copy per kw tap (XLU roll); all later slices are aligned.
        shifted = [shift_rows(flat, kw - p) for kw in range(KW)]

        # Tap matmuls accumulated in a loop-carried f32 value (no VMEM `+=`).
        acc = None
        if fuse_kw:
            big = shifted[0] if KW == 1 else jnp.concatenate(shifted, axis=-1)
            for kh in range(KH):
                lhs = big[kh * Wc:kh * Wc + T * Wc, :]
                tap = jnp.dot(lhs, w_ref[kh],
                              preferred_element_type=jnp.float32)
                acc = tap if acc is None else acc + tap
        else:
            for kh in range(KH):
                for kw in range(KW):
                    lhs = shifted[kw][kh * Wc:kh * Wc + T * Wc, :]
                    tap = jnp.dot(lhs, w_ref[kh, kw],
                                  preferred_element_type=jnp.float32)
                    acc = tap if acc is None else acc + tap

        out = acc.reshape(T, Wc, CPout) + b_ref[...]

        if res_mode == 1:                 # identity residual
            out = out + r_ref[0].astype(jnp.float32)
        elif res_mode == 2:               # fused 1x1 projection residual
            skip = jnp.dot(r_ref[0].reshape(T * Wc, -1), ws_ref[...],
                           preferred_element_type=jnp.float32)
            out = out + skip.reshape(T, Wc, CPout) + bs_ref[...]
        if relu:
            out = jnp.maximum(out, 0.0)

        # Zero the margins: keeps the canvas pre-padded for the next conv and
        # kills halo-clamp / roll-wrap junk outside the valid region.
        row = lax.broadcasted_iota(jnp.int32, (T, Wc, CPout), 0) \
            + pl.program_id(1) * T
        col = lax.broadcasted_iota(jnp.int32, (T, Wc, CPout), 1)
        valid = (row >= M) & (row < M + Hv) & (col >= M) & (col < M + Wv)
        o_ref[0] = jnp.where(valid, out, 0.0).astype(o_ref.dtype)

    return kernel


def conv2d_canvas(x, w, b, geom, *, relu=False, residual=None,
                  skip_w=None, skip_b=None):
    """Stride-1 'same' conv on a spatially / channel-padded bf16 canvas.

    x        : (N, Hc, Wc, CPin) bf16 canvas (zero margins, zero pad channels).
    w        : (K, K, Cin, Cout) f32 raw weights; b: (Cout,) f32 raw bias.
    residual : optional (N, Hc, Wc, CPres) canvas added before the final ReLU;
               skip_w/skip_b optionally apply a fused 1x1 projection to it.
    Returns the next canvas (N, Hc, Wc, round_up(Cout,128)) bf16.
    """
    N, Hc, Wc, CPin = x.shape
    KH, KW, Cin, Cout = w.shape
    assert KH == KW, "square kernels assumed"
    p = (KH - 1) // 2
    assert KH == 2 * p + 1, "only odd 'same' kernels supported"
    assert Cin <= CPin and CPin % _LANE == 0
    CPout = _round_up(Cout, _LANE)

    M, Hv, Wv, T = geom["M"], geom["H"], geom["W"], geom["T"]
    assert Hc == geom["Hc"] and Wc == geom["Wc"]
    assert M >= p, "canvas margin must cover this conv's padding"
    assert Wc >= M + Wv + p and Hc >= M + Hv + p   # roll-wrap / clamp safety
    assert Hc % T == 0 and (p == 0 or T % p == 0)
    n_t = Hc // T

    fuse_kw = (KW > 1) and (CPin < 2 * _LANE)   # reach K >= 256 on the MXU
    rs = _roll_sign() if KW > 1 else 0

    # ---- bf16 padded weights / f32 padded bias ------------------------------
    w_p = jnp.pad(w, ((0, 0), (0, 0), (0, CPin - Cin),
                      (0, CPout - Cout))).astype(jnp.bfloat16)
    if fuse_kw:
        w_p = w_p.reshape(KH, KW * CPin, CPout)     # kw folded into contraction
    b_p = jnp.pad(b, (0, CPout - Cout)).reshape(1, CPout).astype(jnp.float32)

    in_specs = [pl.BlockSpec((1, T, Wc, CPin), lambda n, j: (n, j, 0, 0))]
    args = [x]
    if p:
        hs = T // p
        max_blk = Hc // p - 1
        in_specs.append(pl.BlockSpec(
            (1, p, Wc, CPin),
            lambda n, j: (n, jnp.maximum(j * hs - 1, 0), 0, 0)))
        in_specs.append(pl.BlockSpec(
            (1, p, Wc, CPin),
            lambda n, j: (n, jnp.minimum((j + 1) * hs, max_blk), 0, 0)))
        args += [x, x]

    if fuse_kw:
        in_specs.append(pl.BlockSpec((KH, KW * CPin, CPout),
                                     lambda n, j: (0, 0, 0)))
    else:
        in_specs.append(pl.BlockSpec((KH, KW, CPin, CPout),
                                     lambda n, j: (0, 0, 0, 0)))
    in_specs.append(pl.BlockSpec((1, CPout), lambda n, j: (0, 0)))
    args += [w_p, b_p]

    res_mode = 0
    if residual is not None:
        assert residual.shape[:3] == (N, Hc, Wc), \
            "residual must share the canvas geometry"
        CPres = residual.shape[3]
        res_mode = 2 if skip_w is not None else 1
        if res_mode == 1:
            assert CPres == CPout, "identity residual needs matching channels"
        in_specs.append(pl.BlockSpec((1, T, Wc, CPres),
                                     lambda n, j: (n, j, 0, 0)))
        args.append(residual)
        if res_mode == 2:
            cin_s, cout_s = skip_w.shape
            ws_p = jnp.pad(skip_w, ((0, CPres - cin_s),
                                    (0, CPout - cout_s))).astype(jnp.bfloat16)
            bs_p = jnp.pad(skip_b, (0, CPout - cout_s)).reshape(1, CPout)
            bs_p = bs_p.astype(jnp.float32)
            in_specs += [pl.BlockSpec((CPres, CPout), lambda n, j: (0, 0)),
                         pl.BlockSpec((1, CPout), lambda n, j: (0, 0))]
            args += [ws_p, bs_p]

    kernel = _make_conv_kernel(KH, KW, T, Wc, CPin, CPout, M, Hv, Wv,
                               relu, res_mode, fuse_kw, rs)

    return pl.pallas_call(
        kernel,
        out_shape=jax.ShapeDtypeStruct((N, Hc, Wc, CPout), jnp.bfloat16),
        grid=(N, n_t),
        in_specs=in_specs,
        out_specs=pl.BlockSpec((1, T, Wc, CPout), lambda n, j: (n, j, 0, 0)),
        compiler_params=pltpu.CompilerParams(
            dimension_semantics=("parallel", "parallel"),
            vmem_limit_bytes=_vmem_limit_bytes()),
    )(*args)


# ----------------------------------------------------------------------------
# Geometry / tile selection with explicit VMEM byte accounting.
# ----------------------------------------------------------------------------
def _conv_step_bytes(T, p, Wc, CPin, CPout, CPres, KH, KW, fuse_kw):
    bf = 2
    win = (T + 2 * p) * Wc
    byt = 2 * T * Wc * CPin * bf                    # main input (2 buffers)
    byt += (4 * p * Wc * CPin * bf) if p else 0     # 2 halos (2 buffers each)
    byt += 2 * T * Wc * CPout * bf                  # output block (2 buffers)
    byt += 2 * T * Wc * CPres * bf                  # residual block (2 buffers)
    byt += 2 * KH * KW * CPin * CPout * bf          # weights (2 buffers)
    byt += win * CPin * bf                          # window concat value
    byt += max(KW - 1, 0) * win * CPin * bf         # kw-shifted copies
    if fuse_kw:
        byt += win * KW * CPin * bf                 # lane-stacked lhs
    byt += 2 * T * Wc * CPout * 4                   # f32 accumulator + epilogue
    return byt


def _build_geometry(N, H, W, conv_descs, tile_h=None):
    pads = [d["p"] for d in conv_descs]
    M = max(pads)
    lcm_p = 1
    for pp in pads:
        if pp > 0:
            lcm_p = lcm_p * pp // math.gcd(lcm_p, pp)
    Wc = _round_up(2 * M + W, _SUBLANE)
    Hvalid = 2 * M + H
    budget = int(0.55 * _vmem_limit_bytes())

    def fits(T):
        worst = 0
        for d in conv_descs:
            fuse = d["KW"] > 1 and d["CPin"] < 2 * _LANE
            worst = max(worst, _conv_step_bytes(
                T, d["p"], Wc, d["CPin"], d["CPout"], d["CPres"],
                d["KH"], d["KW"], fuse))
        return worst <= budget

    if tile_h is not None:
        T = max(lcm_p, _round_up(int(tile_h), lcm_p))
        T = min(T, _round_up(Hvalid, lcm_p))
    else:
        T = _round_up(Hvalid, lcm_p)
        while T > lcm_p and not fits(T):
            T -= lcm_p
        # Keep >= 4 grid steps in flight so a 2-TensorCore chip (v7x) is busy.
        while N * pl.cdiv(Hvalid, T) < 4 and T > lcm_p:
            new_t = _round_up(pl.cdiv(T, 2), lcm_p)
            if new_t >= T:
                new_t = T - lcm_p
            T = max(lcm_p, new_t)
    Hc = pl.cdiv(Hvalid, T) * T
    return {"M": M, "H": H, "W": W, "Hc": Hc, "Wc": Wc, "T": T}


# ----------------------------------------------------------------------------
# Parameters (deterministic synthetic weights, raw f32 HWIO layout).
# ----------------------------------------------------------------------------
def _conv_params(key, cin, cout, ksize):
    kw, kb = jax.random.split(key)
    scale = 1.0 / np.sqrt(cin * ksize * ksize)
    w = jax.random.uniform(kw, (ksize, ksize, cin, cout), jnp.float32,
                           minval=-scale, maxval=scale)
    b = jax.random.uniform(kb, (cout,), jnp.float32, minval=-scale, maxval=scale)
    return {"w": w, "b": b}


def build_encoder_params(key, in_channels, num_blocks, base_channels=32,
                         channel_multiplier=1, in_ksize=3, block_ksize=3,
                         block_ksize_increment=0, block_mid_channel_multiplier=1):
    channel_list = [base_channels * channel_multiplier ** i
                    for i in range(num_blocks + 1)]
    block_ksize_list = [block_ksize + block_ksize_increment * i
                        for i in range(num_blocks)]
    params = {}
    keys = jax.random.split(key, 1 + num_blocks)
    params["encoder_block_0"] = _conv_params(keys[0], in_channels,
                                             base_channels, in_ksize)
    for i in range(num_blocks):
        cin, cout = channel_list[i], channel_list[i + 1]
        mid = cout * block_mid_channel_multiplier
        ks = block_ksize_list[i]
        bk = jax.random.split(keys[1 + i], 3)
        blk = {"conv1": _conv_params(bk[0], cin, mid, ks),
               "conv2": _conv_params(bk[1], mid, cout, ks)}
        if cin != cout:
            blk["skip"] = _conv_params(bk[2], cin, cout, 1)
        params[f"encoder_block_{i + 1}"] = blk
    return params


# ----------------------------------------------------------------------------
# Forward pass (Pallas kernels for every conv; skip / residual / ReLU fused).
# ----------------------------------------------------------------------------
def res_unet_2d_encoder(x_nchw, params, *, num_blocks, in_padding=1,
                        block_padding=1, block_ksize_increment=0, tile_h=None,
                        features_nchw=True):
    assert block_ksize_increment % 2 == 0
    N, Cin, H, W = x_nchw.shape

    def cp(c):
        return _round_up(int(c), _LANE)

    # Per-conv descriptors (for geometry / explicit VMEM accounting).
    descs = []
    w0 = params["encoder_block_0"]["w"]
    k0 = int(w0.shape[0])
    assert in_padding == (k0 - 1) // 2, \
        "only stride-1 'same' convolutions supported"   # TODO(synk): strides
    descs.append(dict(p=in_padding, CPin=cp(w0.shape[2]), CPout=cp(w0.shape[3]),
                      CPres=0, KH=k0, KW=int(w0.shape[1])))
    for i in range(num_blocks):
        blk = params[f"encoder_block_{i + 1}"]
        k_i = int(blk["conv1"]["w"].shape[0])
        pad_i = (block_padding if block_ksize_increment == 0
                 else block_padding + block_ksize_increment * i // 2)
        assert pad_i == (k_i - 1) // 2, \
            "only stride-1 'same' convolutions supported"
        cin_i = int(blk["conv1"]["w"].shape[2])
        mid_i = int(blk["conv1"]["w"].shape[3])
        cout_i = int(blk["conv2"]["w"].shape[3])
        descs.append(dict(p=pad_i, CPin=cp(cin_i), CPout=cp(mid_i), CPres=0,
                          KH=k_i, KW=k_i))
        descs.append(dict(p=pad_i, CPin=cp(mid_i), CPout=cp(cout_i),
                          CPres=cp(cin_i), KH=k_i, KW=k_i))

    geom = _build_geometry(N, H, W, descs, tile_h=tile_h)
    M, Hc, Wc = geom["M"], geom["Hc"], geom["Wc"]

    # Single API-boundary conversion: NCHW f32 -> padded NHWC bf16 canvas.
    x = jnp.transpose(x_nchw, (0, 2, 3, 1)).astype(jnp.bfloat16)
    x = jnp.pad(x, ((0, 0), (M, Hc - M - H), (M, Wc - M - W),
                    (0, cp(Cin) - Cin)))

    def extract(t, c):       # canvas -> feature map at the API boundary
        t = t[:, M:M + H, M:M + W, :c]
        if features_nchw:    # PyTorch-compatible NCHW f32 features
            return jnp.transpose(t, (0, 3, 1, 2)).astype(jnp.float32)
        return t             # cheaper NHWC bf16 if the caller allows

    enc_features = {}
    p0 = params["encoder_block_0"]
    x = conv2d_canvas(x, p0["w"], p0["b"], geom)
    enc_features["encoder_block_0"] = extract(x, p0["w"].shape[-1])

    for i in range(num_blocks):
        blk = params[f"encoder_block_{i + 1}"]
        h = conv2d_canvas(x, blk["conv1"]["w"], blk["conv1"]["b"], geom,
                          relu=True)
        skip_w = skip_b = None
        if "skip" in blk:
            skip_w = blk["skip"]["w"][0, 0]       # (Cin, Cout)
            skip_b = blk["skip"]["b"]
        x = conv2d_canvas(h, blk["conv2"]["w"], blk["conv2"]["b"], geom,
                          relu=True, residual=x, skip_w=skip_w, skip_b=skip_b)
        enc_features[f"encoder_block_{i + 1}"] = extract(
            x, blk["conv2"]["w"].shape[-1])

    return enc_features[f"encoder_block_{num_blocks}"], enc_features


# ----------------------------------------------------------------------------
# Pure-JAX reference (lax.conv) with the same bf16 rounding points.
# ----------------------------------------------------------------------------
def _ref_conv(x, w, b, padding):
    y = lax.conv_general_dilated(
        x.astype(jnp.bfloat16), w.astype(jnp.bfloat16),
        window_strides=(1, 1),
        padding=((padding, padding), (padding, padding)),
        dimension_numbers=("NHWC", "HWIO", "NHWC"),
        preferred_element_type=jnp.float32)
    return y + b.reshape(1, 1, 1, -1).astype(jnp.float32)


def _ref_encoder(x_nchw, params, num_blocks, in_padding=1, block_padding=1,
                 block_ksize_increment=0):
    x = jnp.transpose(x_nchw, (0, 2, 3, 1)).astype(jnp.bfloat16)
    feats = {}
    p0 = params["encoder_block_0"]
    x = _ref_conv(x, p0["w"], p0["b"], in_padding).astype(jnp.bfloat16)
    feats["encoder_block_0"] = jnp.transpose(x.astype(jnp.float32), (0, 3, 1, 2))
    for i in range(num_blocks):
        pad_i = (block_padding if block_ksize_increment == 0
                 else block_padding + block_ksize_increment * i // 2)
        blk = params[f"encoder_block_{i + 1}"]
        if "skip" in blk:
            skip = _ref_conv(x, blk["skip"]["w"], blk["skip"]["b"], 0)
        else:
            skip = x.astype(jnp.float32)
        h = jnp.maximum(_ref_conv(x, blk["conv1"]["w"], blk["conv1"]["b"],
                                  pad_i), 0.0).astype(jnp.bfloat16)
        main = _ref_conv(h, blk["conv2"]["w"], blk["conv2"]["b"], pad_i)
        x = jnp.maximum(main + skip, 0.0).astype(jnp.bfloat16)
        feats[f"encoder_block_{i + 1}"] = jnp.transpose(
            x.astype(jnp.float32), (0, 3, 1, 2))
    return feats[f"encoder_block_{num_blocks}"], feats


# ----------------------------------------------------------------------------
if __name__ == "__main__":
    key = jax.random.PRNGKey(0)
    kx, kp = jax.random.split(key)

    N, Cin, H, W = 2, 4, 16, 16
    x = jax.random.normal(kx, (N, Cin, H, W), jnp.float32)

    configs = [
        dict(num_blocks=2, base_channels=8, channel_multiplier=2),  # 1x1 skips
        dict(num_blocks=2, base_channels=8, channel_multiplier=1),  # identity
    ]

    for cfg in configs:
        params = build_encoder_params(kp, Cin, cfg["num_blocks"],
                                      base_channels=cfg["base_channels"],
                                      channel_multiplier=cfg["channel_multiplier"])
        fwd = jax.jit(functools.partial(res_unet_2d_encoder,
                                        num_blocks=cfg["num_blocks"]))
        out, feats = fwd(x, params)
        out = jax.block_until_ready(out)

        out_channels = (cfg["base_channels"]
                        * cfg["channel_multiplier"] ** cfg["num_blocks"])
        assert out.shape == (N, out_channels, H, W)
        assert feats["encoder_block_0"].shape == (N, cfg["base_channels"], H, W)
        assert feats[f"encoder_block_{cfg['num_blocks']}"].shape == \
            (N, out_channels, H, W)

        ref_out, ref_feats = _ref_encoder(x, params, cfg["num_blocks"])
        for name in feats:
            np.testing.assert_allclose(np.asarray(feats[name]),
                                       np.asarray(ref_feats[name]),
                                       rtol=2e-2, atol=2e-2)
        np.testing.assert_allclose(np.asarray(out), np.asarray(ref_out),
                                   rtol=2e-2, atol=2e-2)

    print("KERNEL_OK")
</pallas_src>

<mosaic_0001>
module attributes {stable_mosaic.version = 11 : i64} {
  func.func @kernel(%arg0: i32, %arg1: i32, %arg2: memref<1x9x32x128xbf16, #tpu.memory_space<vmem>>, %arg3: memref<1x1x32x128xbf16, #tpu.memory_space<vmem>>, %arg4: memref<1x1x32x128xbf16, #tpu.memory_space<vmem>>, %arg5: memref<3x384x128xbf16, #tpu.memory_space<vmem>>, %arg6: memref<1x128xf32, #tpu.memory_space<vmem>>, %arg7: memref<1x9x32x128xbf16, #tpu.memory_space<vmem>>) attributes {dimension_semantics = [#tpu.dimension_semantics<parallel>, #tpu.dimension_semantics<parallel>], iteration_bounds = array<i64: 2, 2>, scalar_prefetch = 0 : i64, scratch_operands = 0 : i64, tpu.core_type = #tpu.core_type<tc>, window_params = [{transform_indices = @transform_0, window_bounds = array<i64: 1, 9, 32, 128>}, {transform_indices = @transform_1, window_bounds = array<i64: 1, 1, 32, 128>}, {transform_indices = @transform_2, window_bounds = array<i64: 1, 1, 32, 128>}, {pipeline_mode = #tpu.pipeline_mode<synchronous>, transform_indices = @transform_3, window_bounds = array<i64: 3, 384, 128>}, {pipeline_mode = #tpu.pipeline_mode<synchronous>, transform_indices = @transform_4, window_bounds = array<i64: 1, 128>}, {transform_indices = @transform_5, window_bounds = array<i64: 1, 9, 32, 128>}]} {
    %c0 = arith.constant 0 : index
    %c0_0 = arith.constant 0 : index
    %c0_1 = arith.constant 0 : index
    %c0_2 = arith.constant 0 : index
    %0 = vector.load %arg3[%c0, %c0_0, %c0_1, %c0_2] : memref<1x1x32x128xbf16, #tpu.memory_space<vmem>>, vector<1x1x32x128xbf16>
    %1 = vector.shape_cast %0 : vector<1x1x32x128xbf16> to vector<1x32x128xbf16>
    %c0_3 = arith.constant 0 : index
    %c0_4 = arith.constant 0 : index
    %c0_5 = arith.constant 0 : index
    %c0_6 = arith.constant 0 : index
    %2 = vector.load %arg2[%c0_3, %c0_4, %c0_5, %c0_6] : memref<1x9x32x128xbf16, #tpu.memory_space<vmem>>, vector<1x9x32x128xbf16>
    %3 = vector.shape_cast %2 : vector<1x9x32x128xbf16> to vector<9x32x128xbf16>
    %c0_7 = arith.constant 0 : index
    %c0_8 = arith.constant 0 : index
    %c0_9 = arith.constant 0 : index
    %c0_10 = arith.constant 0 : index
    %4 = vector.load %arg4[%c0_7, %c0_8, %c0_9, %c0_10] : memref<1x1x32x128xbf16, #tpu.memory_space<vmem>>, vector<1x1x32x128xbf16>
    %5 = vector.shape_cast %4 : vector<1x1x32x128xbf16> to vector<1x32x128xbf16>
    %6 = tpu.concatenate %1, %3, %5 in 0 : vector<1x32x128xbf16>, vector<9x32x128xbf16>, vector<1x32x128xbf16> -> vector<11x32x128xbf16>
    %7 = vector.shape_cast %6 : vector<11x32x128xbf16> to vector<352x128xbf16>
    %8 = vector.extract_strided_slice %7 {offsets = [351, 0], sizes = [1, 128], strides = [1, 1]} : vector<352x128xbf16> to vector<1x128xbf16>
    %9 = vector.extract_strided_slice %7 {offsets = [0, 0], sizes = [351, 128], strides = [1, 1]} : vector<352x128xbf16> to vector<351x128xbf16>
    %10 = tpu.concatenate %8, %9 in 0 : vector<1x128xbf16>, vector<351x128xbf16> -> vector<352x128xbf16>
    %11 = vector.extract_strided_slice %7 {offsets = [1, 0], sizes = [351, 128], strides = [1, 1]} : vector<352x128xbf16> to vector<351x128xbf16>
    %12 = vector.extract_strided_slice %7 {offsets = [0, 0], sizes = [1, 128], strides = [1, 1]} : vector<352x128xbf16> to vector<1x128xbf16>
    %13 = tpu.concatenate %11, %12 in 0 : vector<351x128xbf16>, vector<1x128xbf16> -> vector<352x128xbf16>
    %14 = tpu.concatenate %10, %7, %13 in 1 : vector<352x128xbf16>, vector<352x128xbf16>, vector<352x128xbf16> -> vector<352x384xbf16>
    %15 = vector.extract_strided_slice %14 {offsets = [0, 0], sizes = [288, 384], strides = [1, 1]} : vector<352x384xbf16> to vector<288x384xbf16>
    %c0_11 = arith.constant 0 : index
    %c0_12 = arith.constant 0 : index
    %c0_13 = arith.constant 0 : index
    %16 = vector.load %arg5[%c0_11, %c0_12, %c0_13] : memref<3x384x128xbf16, #tpu.memory_space<vmem>>, vector<1x384x128xbf16>
    %17 = vector.shape_cast %16 : vector<1x384x128xbf16> to vector<384x128xbf16>
    %cst = arith.constant dense<0.000000e+00> : vector<288x128xf32>
    %18 = tpu.matmul %15, %17, %cst {dimension_numbers = #tpu.dot_dimension_numbers<[1], [0], [0], [1], [0, 0, 1, 1], [], []>} : vector<288x384xbf16>, vector<384x128xbf16>, vector<288x128xf32> -> vector<288x128xf32>
    %19 = vector.extract_strided_slice %14 {offsets = [32, 0], sizes = [288, 384], strides = [1, 1]} : vector<352x384xbf16> to vector<288x384xbf16>
    %c1 = arith.constant 1 : index
    %c0_14 = arith.constant 0 : index
    %c0_15 = arith.constant 0 : index
    %20 = vector.load %arg5[%c1, %c0_14, %c0_15] : memref<3x384x128xbf16, #tpu.memory_space<vmem>>, vector<1x384x128xbf16>
    %21 = vector.shape_cast %20 : vector<1x384x128xbf16> to vector<384x128xbf16>
    %cst_16 = arith.constant dense<0.000000e+00> : vector<288x128xf32>
    %22 = tpu.matmul %19, %21, %cst_16 {dimension_numbers = #tpu.dot_dimension_numbers<[1], [0], [0], [1], [0, 0, 1, 1], [], []>} : vector<288x384xbf16>, vector<384x128xbf16>, vector<288x128xf32> -> vector<288x128xf32>
    %23 = arith.addf %18, %22 : vector<288x128xf32>
    %24 = vector.extract_strided_slice %14 {offsets = [64, 0], sizes = [288, 384], strides = [1, 1]} : vector<352x384xbf16> to vector<288x384xbf16>
    %c2 = arith.constant 2 : index
    %c0_17 = arith.constant 0 : index
    %c0_18 = arith.constant 0 : index
    %25 = vector.load %arg5[%c2, %c0_17, %c0_18] : memref<3x384x128xbf16, #tpu.memory_space<vmem>>, vector<1x384x128xbf16>
    %26 = vector.shape_cast %25 : vector<1x384x128xbf16> to vector<384x128xbf16>
    %cst_19 = arith.constant dense<0.000000e+00> : vector<288x128xf32>
    %27 = tpu.matmul %24, %26, %cst_19 {dimension_numbers = #tpu.dot_dimension_numbers<[1], [0], [0], [1], [0, 0, 1, 1], [], []>} : vector<288x384xbf16>, vector<384x128xbf16>, vector<288x128xf32> -> vector<288x128xf32>
    %28 = arith.addf %23, %27 : vector<288x128xf32>
    %29 = vector.shape_cast %28 : vector<288x128xf32> to vector<9x32x128xf32>
    %c0_20 = arith.constant 0 : index
    %c0_21 = arith.constant 0 : index
    %30 = vector.load %arg6[%c0_20, %c0_21] : memref<1x128xf32, #tpu.memory_space<vmem>>, vector<1x128xf32>
    %31 = vector.shape_cast %30 : vector<1x128xf32> to vector<1x1x128xf32>
    %32 = vector.broadcast %31 : vector<1x1x128xf32> to vector<9x32x128xf32>
    %33 = arith.addf %29, %32 : vector<9x32x128xf32>
    %34 = tpu.iota {dimensions = array<i32: 0>} : vector<9x32x128xi32>
    %c9_i32 = arith.constant 9 : i32
    %35 = arith.muli %arg1, %c9_i32 : i32
    %36 = vector.broadcast %35 : i32 to vector<9x32x128xi32>
    %37 = arith.addi %34, %36 : vector<9x32x128xi32>
    %38 = tpu.iota {dimensions = array<i32: 1>} : vector<9x32x128xi32>
    %c1_i32 = arith.constant 1 : i32
    %39 = vector.broadcast %c1_i32 : i32 to vector<9x32x128xi32>
    %40 = arith.cmpi sge, %37, %39 : vector<9x32x128xi32>
    %c17_i32 = arith.constant 17 : i32
    %41 = vector.broadcast %c17_i32 : i32 to vector<9x32x128xi32>
    %42 = arith.cmpi slt, %37, %41 : vector<9x32x128xi32>
    %43 = arith.andi %40, %42 : vector<9x32x128xi1>
    %c1_i32_22 = arith.constant 1 : i32
    %44 = vector.broadcast %c1_i32_22 : i32 to vector<9x32x128xi32>
    %45 = arith.cmpi sge, %38, %44 : vector<9x32x128xi32>
    %46 = arith.andi %43, %45 : vector<9x32x128xi1>
    %c17_i32_23 = arith.constant 17 : i32
    %47 = vector.broadcast %c17_i32_23 : i32 to vector<9x32x128xi32>
    %48 = arith.cmpi slt, %38, %47 : vector<9x32x128xi32>
    %49 = arith.andi %46, %48 : vector<9x32x128xi1>
    %cst_24 = arith.constant 0.000000e+00 : f32
    %50 = vector.broadcast %cst_24 : f32 to vector<9x32x128xf32>
    %51 = arith.select %49, %33, %50 : vector<9x32x128xi1>, vector<9x32x128xf32>
    %52 = arith.truncf %51 : vector<9x32x128xf32> to vector<9x32x128xbf16>
    %c0_25 = arith.constant 0 : index
    %c0_26 = arith.constant 0 : index
    %c0_27 = arith.constant 0 : index
    %c0_28 = arith.constant 0 : index
    %53 = vector.load %arg7[%c0_25, %c0_26, %c0_27, %c0_28] : memref<1x9x32x128xbf16, #tpu.memory_space<vmem>>, vector<1x9x32x128xbf16>
    %54 = vector.shape_cast %53 : vector<1x9x32x128xbf16> to vector<9x32x128xbf16>
    %55 = vector.shape_cast %52 : vector<9x32x128xbf16> to vector<1x9x32x128xbf16>
    tpu.vector_store %arg7[%c0_25, %c0_26, %c0_27, %c0_28], %55 {strides = array<i32>} : memref<1x9x32x128xbf16, #tpu.memory_space<vmem>>, vector<1x9x32x128xbf16>,
    return
  }
  func.func @transform_0(%arg0: i32, %arg1: i32) -> (i32, i32, i32, i32) {
    %c0_i32 = arith.constant 0 : i32
    %c0_i32_0 = arith.constant 0 : i32
    %c0_i32_1 = arith.constant 0 : i32
    return %arg0, %arg1, %c0_i32, %c0_i32_0 : i32, i32, i32, i32
  }
  func.func @transform_1(%arg0: i32, %arg1: i32) -> (i32, i32, i32, i32) {
    %c9_i32 = arith.constant 9 : i32
    %0 = arith.muli %arg1, %c9_i32 : i32
    %c1_i32 = arith.constant 1 : i32
    %1 = arith.subi %0, %c1_i32 : i32
    %c0_i32 = arith.constant 0 : i32
    %2 = arith.maxsi %1, %c0_i32 : i32
    %c0_i32_0 = arith.constant 0 : i32
    %c0_i32_1 = arith.constant 0 : i32
    %c0_i32_2 = arith.constant 0 : i32
    return %arg0, %2, %c0_i32_0, %c0_i32_1 : i32, i32, i32, i32
  }
  func.func @transform_2(%arg0: i32, %arg1: i32) -> (i32, i32, i32, i32) {
    %c1_i32 = arith.constant 1 : i32
    %0 = arith.addi %arg1, %c1_i32 : i32
    %c9_i32 = arith.constant 9 : i32
    %1 = arith.muli %0, %c9_i32 : i32
    %c17_i32 = arith.constant 17 : i32
    %2 = arith.minsi %1, %c17_i32 : i32
    %c0_i32 = arith.constant 0 : i32
    %c0_i32_0 = arith.constant 0 : i32
    %c0_i32_1 = arith.constant 0 : i32
    return %arg0, %2, %c0_i32, %c0_i32_0 : i32, i32, i32, i32
  }
  func.func @transform_3(%arg0: i32, %arg1: i32) -> (i32, i32, i32) {
    %c0_i32 = arith.constant 0 : i32
    %c0_i32_0 = arith.constant 0 : i32
    %c0_i32_1 = arith.constant 0 : i32
    %c0_i32_2 = arith.constant 0 : i32
    return %c0_i32, %c0_i32_0, %c0_i32_1 : i32, i32, i32
  }
  func.func @transform_4(%arg0: i32, %arg1: i32) -> (i32, i32) {
    %c0_i32 = arith.constant 0 : i32
    %c0_i32_0 = arith.constant 0 : i32
    %c0_i32_1 = arith.constant 0 : i32
    return %c0_i32, %c0_i32_0 : i32, i32
  }
  func.func @transform_5(%arg0: i32, %arg1: i32) -> (i32, i32, i32, i32) {
    %c0_i32 = arith.constant 0 : i32
    %c0_i32_0 = arith.constant 0 : i32
    %c0_i32_1 = arith.constant 0 : i32
    return %arg0, %arg1, %c0_i32, %c0_i32_0 : i32, i32, i32, i32
  }
}

module attributes {stable_mosaic.version = 11 : i64} {
  func.func @kernel(%arg0: i32, %arg1: i32, %arg2: memref<1x9x32x128xbf16, #tpu.memory_space<vmem>>, %arg3: memref<1x1x32x128xbf16, #tpu.memory_space<vmem>>, %arg4: memref<1x1x32x128xbf16, #tpu.memory_space<vmem>>, %arg5: memref<3x384x128xbf16, #tpu.memory_space<vmem>>, %arg6: memref<1x128xf32, #tpu.memory_space<vmem>>, %arg7: memref<1x9x32x128xbf16, #tpu.memory_space<vmem>>) attributes {dimension_semantics = [#tpu.dimension_semantics<parallel>, #tpu.dimension_semantics<parallel>], iteration_bounds = array<i64: 2, 2>, scalar_prefetch = 0 : i64, scratch_operands = 0 : i64, tpu.core_type = #tpu.core_type<tc>, window_params = [{transform_indices = @transform_0, window_bounds = array<i64: 1, 9, 32, 128>}, {transform_indices = @transform_1, window_bounds = array<i64: 1, 1, 32, 128>}, {transform_indices = @transform_2, window_bounds = array<i64: 1, 1, 32, 128>}, {pipeline_mode = #tpu.pipeline_mode<synchronous>, transform_indices = @transform_3, window_bounds = array<i64: 3, 384, 128>}, {pipeline_mode = #tpu.pipeline_mode<synchronous>, transform_indices = @transform_4, window_bounds = array<i64: 1, 128>}, {transform_indices = @transform_5, window_bounds = array<i64: 1, 9, 32, 128>}]} {
    %c0 = arith.constant 0 : index
    %c0_0 = arith.constant 0 : index
    %c0_1 = arith.constant 0 : index
    %c0_2 = arith.constant 0 : index
    %0 = vector.load %arg3[%c0, %c0_0, %c0_1, %c0_2] : memref<1x1x32x128xbf16, #tpu.memory_space<vmem>>, vector<1x1x32x128xbf16>
    %1 = vector.shape_cast %0 : vector<1x1x32x128xbf16> to vector<1x32x128xbf16>
    %c0_3 = arith.constant 0 : index
    %c0_4 = arith.constant 0 : index
    %c0_5 = arith.constant 0 : index
    %c0_6 = arith.constant 0 : index
    %2 = vector.load %arg2[%c0_3, %c0_4, %c0_5, %c0_6] : memref<1x9x32x128xbf16, #tpu.memory_space<vmem>>, vector<1x9x32x128xbf16>
    %3 = vector.shape_cast %2 : vector<1x9x32x128xbf16> to vector<9x32x128xbf16>
    %c0_7 = arith.constant 0 : index
    %c0_8 = arith.constant 0 : index
    %c0_9 = arith.constant 0 : index
    %c0_10 = arith.constant 0 : index
    %4 = vector.load %arg4[%c0_7, %c0_8, %c0_9, %c0_10] : memref<1x1x32x128xbf16, #tpu.memory_space<vmem>>, vector<1x1x32x128xbf16>
    %5 = vector.shape_cast %4 : vector<1x1x32x128xbf16> to vector<1x32x128xbf16>
    %6 = tpu.concatenate %1, %3, %5 in 0 : vector<1x32x128xbf16>, vector<9x32x128xbf16>, vector<1x32x128xbf16> -> vector<11x32x128xbf16>
    %7 = vector.shape_cast %6 : vector<11x32x128xbf16> to vector<352x128xbf16>
    %8 = vector.extract_strided_slice %7 {offsets = [351, 0], sizes = [1, 128], strides = [1, 1]} : vector<352x128xbf16> to vector<1x128xbf16>
    %9 = vector.extract_strided_slice %7 {offsets = [0, 0], sizes = [351, 128], strides = [1, 1]} : vector<352x128xbf16> to vector<351x128xbf16>
    %10 = tpu.concatenate %8, %9 in 0 : vector<1x128xbf16>, vector<351x128xbf16> -> vector<352x128xbf16>
    %11 = vector.extract_strided_slice %7 {offsets = [1, 0], sizes = [351, 128], strides = [1, 1]} : vector<352x128xbf16> to vector<351x128xbf16>
    %12 = vector.extract_strided_slice %7 {offsets = [0, 0], sizes = [1, 128], strides = [1, 1]} : vector<352x128xbf16> to vector<1x128xbf16>
    %13 = tpu.concatenate %11, %12 in 0 : vector<351x128xbf16>, vector<1x128xbf16> -> vector<352x128xbf16>
    %14 = tpu.concatenate %10, %7, %13 in 1 : vector<352x128xbf16>, vector<352x128xbf16>, vector<352x128xbf16> -> vector<352x384xbf16>
    %15 = vector.extract_strided_slice %14 {offsets = [0, 0], sizes = [288, 384], strides = [1, 1]} : vector<352x384xbf16> to vector<288x384xbf16>
    %c0_11 = arith.constant 0 : index
    %c0_12 = arith.constant 0 : index
    %c0_13 = arith.constant 0 : index
    %16 = vector.load %arg5[%c0_11, %c0_12, %c0_13] : memref<3x384x128xbf16, #tpu.memory_space<vmem>>, vector<1x384x128xbf16>
    %17 = vector.shape_cast %16 : vector<1x384x128xbf16> to vector<384x128xbf16>
    %cst = arith.constant dense<0.000000e+00> : vector<288x128xf32>
    %18 = tpu.matmul %15, %17, %cst {dimension_numbers = #tpu.dot_dimension_numbers<[1], [0], [0], [1], [0, 0, 1, 1], [], []>} : vector<288x384xbf16>, vector<384x128xbf16>, vector<288x128xf32> -> vector<288x128xf32>
    %19 = vector.extract_strided_slice %14 {offsets = [32, 0], sizes = [288, 384], strides = [1, 1]} : vector<352x384xbf16> to vector<288x384xbf16>
    %c1 = arith.constant 1 : index
    %c0_14 = arith.constant 0 : index
    %c0_15 = arith.constant 0 : index
    %20 = vector.load %arg5[%c1, %c0_14, %c0_15] : memref<3x384x128xbf16, #tpu.memory_space<vmem>>, vector<1x384x128xbf16>
    %21 = vector.shape_cast %20 : vector<1x384x128xbf16> to vector<384x128xbf16>
    %cst_16 = arith.constant dense<0.000000e+00> : vector<288x128xf32>
    %22 = tpu.matmul %19, %21, %cst_16 {dimension_numbers = #tpu.dot_dimension_numbers<[1], [0], [0], [1], [0, 0, 1, 1], [], []>} : vector<288x384xbf16>, vector<384x128xbf16>, vector<288x128xf32> -> vector<288x128xf32>
    %23 = arith.addf %18, %22 : vector<288x128xf32>
    %24 = vector.extract_strided_slice %14 {offsets = [64, 0], sizes = [288, 384], strides = [1, 1]} : vector<352x384xbf16> to vector<288x384xbf16>
    %c2 = arith.constant 2 : index
    %c0_17 = arith.constant 0 : index
    %c0_18 = arith.constant 0 : index
    %25 = vector.load %arg5[%c2, %c0_17, %c0_18] : memref<3x384x128xbf16, #tpu.memory_space<vmem>>, vector<1x384x128xbf16>
    %26 = vector.shape_cast %25 : vector<1x384x128xbf16> to vector<384x128xbf16>
    %cst_19 = arith.constant dense<0.000000e+00> : vector<288x128xf32>
    %27 = tpu.matmul %24, %26, %cst_19 {dimension_numbers = #tpu.dot_dimension_numbers<[1], [0], [0], [1], [0, 0, 1, 1], [], []>} : vector<288x384xbf16>, vector<384x128xbf16>, vector<288x128xf32> -> vector<288x128xf32>
    %28 = arith.addf %23, %27 : vector<288x128xf32>
    %29 = vector.shape_cast %28 : vector<288x128xf32> to vector<9x32x128xf32>
    %c0_20 = arith.constant 0 : index
    %c0_21 = arith.constant 0 : index
    %30 = vector.load %arg6[%c0_20, %c0_21] : memref<1x128xf32, #tpu.memory_space<vmem>>, vector<1x128xf32>
    %31 = vector.shape_cast %30 : vector<1x128xf32> to vector<1x1x128xf32>
    %32 = vector.broadcast %31 : vector<1x1x128xf32> to vector<9x32x128xf32>
    %33 = arith.addf %29, %32 : vector<9x32x128xf32>
    %cst_22 = arith.constant 0.000000e+00 : f32
    %34 = vector.broadcast %cst_22 : f32 to vector<9x32x128xf32>
    %35 = arith.maximumf %33, %34 : vector<9x32x128xf32>
    %36 = tpu.iota {dimensions = array<i32: 0>} : vector<9x32x128xi32>
    %c9_i32 = arith.constant 9 : i32
    %37 = arith.muli %arg1, %c9_i32 : i32
    %38 = vector.broadcast %37 : i32 to vector<9x32x128xi32>
    %39 = arith.addi %36, %38 : vector<9x32x128xi32>
    %40 = tpu.iota {dimensions = array<i32: 1>} : vector<9x32x128xi32>
    %c1_i32 = arith.constant 1 : i32
    %41 = vector.broadcast %c1_i32 : i32 to vector<9x32x128xi32>
    %42 = arith.cmpi sge, %39, %41 : vector<9x32x128xi32>
    %c17_i32 = arith.constant 17 : i32
    %43 = vector.broadcast %c17_i32 : i32 to vector<9x32x128xi32>
    %44 = arith.cmpi slt, %39, %43 : vector<9x32x128xi32>
    %45 = arith.andi %42, %44 : vector<9x32x128xi1>
    %c1_i32_23 = arith.constant 1 : i32
    %46 = vector.broadcast %c1_i32_23 : i32 to vector<9x32x128xi32>
    %47 = arith.cmpi sge, %40, %46 : vector<9x32x128xi32>
    %48 = arith.andi %45, %47 : vector<9x32x128xi1>
    %c17_i32_24 = arith.constant 17 : i32
    %49 = vector.broadcast %c17_i32_24 : i32 to vector<9x32x128xi32>
    %50 = arith.cmpi slt, %40, %49 : vector<9x32x128xi32>
    %51 = arith.andi %48, %50 : vector<9x32x128xi1>
    %cst_25 = arith.constant 0.000000e+00 : f32
    %52 = vector.broadcast %cst_25 : f32 to vector<9x32x128xf32>
    %53 = arith.select %51, %35, %52 : vector<9x32x128xi1>, vector<9x32x128xf32>
    %54 = arith.truncf %53 : vector<9x32x128xf32> to vector<9x32x128xbf16>
    %c0_26 = arith.constant 0 : index
    %c0_27 = arith.constant 0 : index
    %c0_28 = arith.constant 0 : index
    %c0_29 = arith.constant 0 : index
    %55 = vector.load %arg7[%c0_26, %c0_27, %c0_28, %c0_29] : memref<1x9x32x128xbf16, #tpu.memory_space<vmem>>, vector<1x9x32x128xbf16>
    %56 = vector.shape_cast %55 : vector<1x9x32x128xbf16> to vector<9x32x128xbf16>
    %57 = vector.shape_cast %54 : vector<9x32x128xbf16> to vector<1x9x32x128xbf16>
    tpu.vector_store %arg7[%c0_26, %c0_27, %c0_28, %c0_29], %57 {strides = array<i32>} : memref<1x9x32x128xbf16, #tpu.memory_space<vmem>>, vector<1x9x32x128xbf16>,
    return
  }
  func.func @transform_0(%arg0: i32, %arg1: i32) -> (i32, i32, i32, i32) {
    %c0_i32 = arith.constant 0 : i32
    %c0_i32_0 = arith.constant 0 : i32
    %c0_i32_1 = arith.constant 0 : i32
    return %arg0, %arg1, %c0_i32, %c0_i32_0 : i32, i32, i32, i32
  }
  func.func @transform_1(%arg0: i32, %arg1: i32) -> (i32, i32, i32, i32) {
    %c9_i32 = arith.constant 9 : i32
    %0 = arith.muli %arg1, %c9_i32 : i32
    %c1_i32 = arith.constant 1 : i32
    %1 = arith.subi %0, %c1_i32 : i32
    %c0_i32 = arith.constant 0 : i32
    %2 = arith.maxsi %1, %c0_i32 : i32
    %c0_i32_0 = arith.constant 0 : i32
    %c0_i32_1 = arith.constant 0 : i32
    %c0_i32_2 = arith.constant 0 : i32
    return %arg0, %2, %c0_i32_0, %c0_i32_1 : i32, i32, i32, i32
  }
  func.func @transform_2(%arg0: i32, %arg1: i32) -> (i32, i32, i32, i32) {
    %c1_i32 = arith.constant 1 : i32
    %0 = arith.addi %arg1, %c1_i32 : i32
    %c9_i32 = arith.constant 9 : i32
    %1 = arith.muli %0, %c9_i32 : i32
    %c17_i32 = arith.constant 17 : i32
    %2 = arith.minsi %1, %c17_i32 : i32
    %c0_i32 = arith.constant 0 : i32
    %c0_i32_0 = arith.constant 0 : i32
    %c0_i32_1 = arith.constant 0 : i32
    return %arg0, %2, %c0_i32, %c0_i32_0 : i32, i32, i32, i32
  }
  func.func @transform_3(%arg0: i32, %arg1: i32) -> (i32, i32, i32) {
    %c0_i32 = arith.constant 0 : i32
    %c0_i32_0 = arith.constant 0 : i32
    %c0_i32_1 = arith.constant 0 : i32
    %c0_i32_2 = arith.constant 0 : i32
    return %c0_i32, %c0_i32_0, %c0_i32_1 : i32, i32, i32
  }
  func.func @transform_4(%arg0: i32, %arg1: i32) -> (i32, i32) {
    %c0_i32 = arith.constant 0 : i32
    %c0_i32_0 = arith.constant 0 : i32
    %c0_i32_1 = arith.constant 0 : i32
    return %c0_i32, %c0_i32_0 : i32, i32
  }
  func.func @transform_5(%arg0: i32, %arg1: i32) -> (i32, i32, i32, i32) {
    %c0_i32 = arith.constant 0 : i32
    %c0_i32_0 = arith.constant 0 : i32
    %c0_i32_1 = arith.constant 0 : i32
    return %arg0, %arg1, %c0_i32, %c0_i32_0 : i32, i32, i32, i32
  }
}

module attributes {stable_mosaic.version = 11 : i64} {
  func.func @kernel(%arg0: i32, %arg1: i32, %arg2: memref<1x9x32x128xbf16, #tpu.memory_space<vmem>>, %arg3: memref<1x1x32x128xbf16, #tpu.memory_space<vmem>>, %arg4: memref<1x1x32x128xbf16, #tpu.memory_space<vmem>>, %arg5: memref<3x384x128xbf16, #tpu.memory_space<vmem>>, %arg6: memref<1x128xf32, #tpu.memory_space<vmem>>, %arg7: memref<1x9x32x128xbf16, #tpu.memory_space<vmem>>, %arg8: memref<128x128xbf16, #tpu.memory_space<vmem>>, %arg9: memref<1x128xf32, #tpu.memory_space<vmem>>, %arg10: memref<1x9x32x128xbf16, #tpu.memory_space<vmem>>) attributes {dimension_semantics = [#tpu.dimension_semantics<parallel>, #tpu.dimension_semantics<parallel>], iteration_bounds = array<i64: 2, 2>, scalar_prefetch = 0 : i64, scratch_operands = 0 : i64, tpu.core_type = #tpu.core_type<tc>, window_params = [{transform_indices = @transform_0, window_bounds = array<i64: 1, 9, 32, 128>}, {transform_indices = @transform_1, window_bounds = array<i64: 1, 1, 32, 128>}, {transform_indices = @transform_2, window_bounds = array<i64: 1, 1, 32, 128>}, {pipeline_mode = #tpu.pipeline_mode<synchronous>, transform_indices = @transform_3, window_bounds = array<i64: 3, 384, 128>}, {pipeline_mode = #tpu.pipeline_mode<synchronous>, transform_indices = @transform_4, window_bounds = array<i64: 1, 128>}, {transform_indices = @transform_5, window_bounds = array<i64: 1, 9, 32, 128>}, {pipeline_mode = #tpu.pipeline_mode<synchronous>, transform_indices = @transform_6, window_bounds = array<i64: 128, 128>}, {pipeline_mode = #tpu.pipeline_mode<synchronous>, transform_indices = @transform_7, window_bounds = array<i64: 1, 128>}, {transform_indices = @transform_8, window_bounds = array<i64: 1, 9, 32, 128>}]} {
    %c0 = arith.constant 0 : index
    %c0_0 = arith.constant 0 : index
    %c0_1 = arith.constant 0 : index
    %c0_2 = arith.constant 0 : index
    %0 = vector.load %arg3[%c0, %c0_0, %c0_1, %c0_2] : memref<1x1x32x128xbf16, #tpu.memory_space<vmem>>, vector<1x1x32x128xbf16>
    %1 = vector.shape_cast %0 : vector<1x1x32x128xbf16> to vector<1x32x128xbf16>
    %c0_3 = arith.constant 0 : index
    %c0_4 = arith.constant 0 : index
    %c0_5 = arith.constant 0 : index
    %c0_6 = arith.constant 0 : index
    %2 = vector.load %arg2[%c0_3, %c0_4, %c0_5, %c0_6] : memref<1x9x32x128xbf16, #tpu.memory_space<vmem>>, vector<1x9x32x128xbf16>
    %3 = vector.shape_cast %2 : vector<1x9x32x128xbf16> to vector<9x32x128xbf16>
    %c0_7 = arith.constant 0 : index
    %c0_8 = arith.constant 0 : index
    %c0_9 = arith.constant 0 : index
    %c0_10 = arith.constant 0 : index
    %4 = vector.load %arg4[%c0_7, %c0_8, %c0_9, %c0_10] : memref<1x1x32x128xbf16, #tpu.memory_space<vmem>>, vector<1x1x32x128xbf16>
    %5 = vector.shape_cast %4 : vector<1x1x32x128xbf16> to vector<1x32x128xbf16>
    %6 = tpu.concatenate %1, %3, %5 in 0 : vector<1x32x128xbf16>, vector<9x32x128xbf16>, vector<1x32x128xbf16> -> vector<11x32x128xbf16>
    %7 = vector.shape_cast %6 : vector<11x32x128xbf16> to vector<352x128xbf16>
    %8 = vector.extract_strided_slice %7 {offsets = [351, 0], sizes = [1, 128], strides = [1, 1]} : vector<352x128xbf16> to vector<1x128xbf16>
    %9 = vector.extract_strided_slice %7 {offsets = [0, 0], sizes = [351, 128], strides = [1, 1]} : vector<352x128xbf16> to vector<351x128xbf16>
    %10 = tpu.concatenate %8, %9 in 0 : vector<1x128xbf16>, vector<351x128xbf16> -> vector<352x128xbf16>
    %11 = vector.extract_strided_slice %7 {offsets = [1, 0], sizes = [351, 128], strides = [1, 1]} : vector<352x128xbf16> to vector<351x128xbf16>
    %12 = vector.extract_strided_slice %7 {offsets = [0, 0], sizes = [1, 128], strides = [1, 1]} : vector<352x128xbf16> to vector<1x128xbf16>
    %13 = tpu.concatenate %11, %12 in 0 : vector<351x128xbf16>, vector<1x128xbf16> -> vector<352x128xbf16>
    %14 = tpu.concatenate %10, %7, %13 in 1 : vector<352x128xbf16>, vector<352x128xbf16>, vector<352x128xbf16> -> vector<352x384xbf16>
    %15 = vector.extract_strided_slice %14 {offsets = [0, 0], sizes = [288, 384], strides = [1, 1]} : vector<352x384xbf16> to vector<288x384xbf16>
    %c0_11 = arith.constant 0 : index
    %c0_12 = arith.constant 0 : index
    %c0_13 = arith.constant 0 : index
    %16 = vector.load %arg5[%c0_11, %c0_12, %c0_13] : memref<3x384x128xbf16, #tpu.memory_space<vmem>>, vector<1x384x128xbf16>
    %17 = vector.shape_cast %16 : vector<1x384x128xbf16> to vector<384x128xbf16>
    %cst = arith.constant dense<0.000000e+00> : vector<288x128xf32>
    %18 = tpu.matmul %15, %17, %cst {dimension_numbers = #tpu.dot_dimension_numbers<[1], [0], [0], [1], [0, 0, 1, 1], [], []>} : vector<288x384xbf16>, vector<384x128xbf16>, vector<288x128xf32> -> vector<288x128xf32>
    %19 = vector.extract_strided_slice %14 {offsets = [32, 0], sizes = [288, 384], strides = [1, 1]} : vector<352x384xbf16> to vector<288x384xbf16>
    %c1 = arith.constant 1 : index
    %c0_14 = arith.constant 0 : index
    %c0_15 = arith.constant 0 : index
    %20 = vector.load %arg5[%c1, %c0_14, %c0_15] : memref<3x384x128xbf16, #tpu.memory_space<vmem>>, vector<1x384x128xbf16>
    %21 = vector.shape_cast %20 : vector<1x384x128xbf16> to vector<384x128xbf16>
    %cst_16 = arith.constant dense<0.000000e+00> : vector<288x128xf32>
    %22 = tpu.matmul %19, %21, %cst_16 {dimension_numbers = #tpu.dot_dimension_numbers<[1], [0], [0], [1], [0, 0, 1, 1], [], []>} : vector<288x384xbf16>, vector<384x128xbf16>, vector<288x128xf32> -> vector<288x128xf32>
    %23 = arith.addf %18, %22 : vector<288x128xf32>
    %24 = vector.extract_strided_slice %14 {offsets = [64, 0], sizes = [288, 384], strides = [1, 1]} : vector<352x384xbf16> to vector<288x384xbf16>
    %c2 = arith.constant 2 : index
    %c0_17 = arith.constant 0 : index
    %c0_18 = arith.constant 0 : index
    %25 = vector.load %arg5[%c2, %c0_17, %c0_18] : memref<3x384x128xbf16, #tpu.memory_space<vmem>>, vector<1x384x128xbf16>
    %26 = vector.shape_cast %25 : vector<1x384x128xbf16> to vector<384x128xbf16>
    %cst_19 = arith.constant dense<0.000000e+00> : vector<288x128xf32>
    %27 = tpu.matmul %24, %26, %cst_19 {dimension_numbers = #tpu.dot_dimension_numbers<[1], [0], [0], [1], [0, 0, 1, 1], [], []>} : vector<288x384xbf16>, vector<384x128xbf16>, vector<288x128xf32> -> vector<288x128xf32>
    %28 = arith.addf %23, %27 : vector<288x128xf32>
    %29 = vector.shape_cast %28 : vector<288x128xf32> to vector<9x32x128xf32>
    %c0_20 = arith.constant 0 : index
    %c0_21 = arith.constant 0 : index
    %30 = vector.load %arg6[%c0_20, %c0_21] : memref<1x128xf32, #tpu.memory_space<vmem>>, vector<1x128xf32>
    %31 = vector.shape_cast %30 : vector<1x128xf32> to vector<1x1x128xf32>
    %32 = vector.broadcast %31 : vector<1x1x128xf32> to vector<9x32x128xf32>
    %33 = arith.addf %29, %32 : vector<9x32x128xf32>
    %c0_22 = arith.constant 0 : index
    %c0_23 = arith.constant 0 : index
    %c0_24 = arith.constant 0 : index
    %c0_25 = arith.constant 0 : index
    %34 = vector.load %arg7[%c0_22, %c0_23, %c0_24, %c0_25] : memref<1x9x32x128xbf16, #tpu.memory_space<vmem>>, vector<1x9x32x128xbf16>
    %35 = vector.shape_cast %34 : vector<1x9x32x128xbf16> to vector<9x32x128xbf16>
    %36 = vector.shape_cast %35 : vector<9x32x128xbf16> to vector<288x128xbf16>
    %c0_26 = arith.constant 0 : index
    %c0_27 = arith.constant 0 : index
    %37 = vector.load %arg8[%c0_26, %c0_27] : memref<128x128xbf16, #tpu.memory_space<vmem>>, vector<128x128xbf16>
    %cst_28 = arith.constant dense<0.000000e+00> : vector<288x128xf32>
    %38 = tpu.matmul %36, %37, %cst_28 {dimension_numbers = #tpu.dot_dimension_numbers<[1], [0], [0], [1], [0, 0, 1, 1], [], []>} : vector<288x128xbf16>, vector<128x128xbf16>, vector<288x128xf32> -> vector<288x128xf32>
    %39 = vector.shape_cast %38 : vector<288x128xf32> to vector<9x32x128xf32>
    %40 = arith.addf %33, %39 : vector<9x32x128xf32>
    %c0_29 = arith.constant 0 : index
    %c0_30 = arith.constant 0 : index
    %41 = vector.load %arg9[%c0_29, %c0_30] : memref<1x128xf32, #tpu.memory_space<vmem>>, vector<1x128xf32>
    %42 = vector.shape_cast %41 : vector<1x128xf32> to vector<1x1x128xf32>
    %43 = vector.broadcast %42 : vector<1x1x128xf32> to vector<9x32x128xf32>
    %44 = arith.addf %40, %43 : vector<9x32x128xf32>
    %cst_31 = arith.constant 0.000000e+00 : f32
    %45 = vector.broadcast %cst_31 : f32 to vector<9x32x128xf32>
    %46 = arith.maximumf %44, %45 : vector<9x32x128xf32>
    %47 = tpu.iota {dimensions = array<i32: 0>} : vector<9x32x128xi32>
    %c9_i32 = arith.constant 9 : i32
    %48 = arith.muli %arg1, %c9_i32 : i32
    %49 = vector.broadcast %48 : i32 to vector<9x32x128xi32>
    %50 = arith.addi %47, %49 : vector<9x32x128xi32>
    %51 = tpu.iota {dimensions = array<i32: 1>} : vector<9x32x128xi32>
    %c1_i32 = arith.constant 1 : i32
    %52 = vector.broadcast %c1_i32 : i32 to vector<9x32x128xi32>
    %53 = arith.cmpi sge, %50, %52 : vector<9x32x128xi32>
    %c17_i32 = arith.constant 17 : i32
    %54 = vector.broadcast %c17_i32 : i32 to vector<9x32x128xi32>
    %55 = arith.cmpi slt, %50, %54 : vector<9x32x128xi32>
    %56 = arith.andi %53, %55 : vector<9x32x128xi1>
    %c1_i32_32 = arith.constant 1 : i32
    %57 = vector.broadcast %c1_i32_32 : i32 to vector<9x32x128xi32>
    %58 = arith.cmpi sge, %51, %57 : vector<9x32x128xi32>
    %59 = arith.andi %56, %58 : vector<9x32x128xi1>
    %c17_i32_33 = arith.constant 17 : i32
    %60 = vector.broadcast %c17_i32_33 : i32 to vector<9x32x128xi32>
    %61 = arith.cmpi slt, %51, %60 : vector<9x32x128xi32>
    %62 = arith.andi %59, %61 : vector<9x32x128xi1>
    %cst_34 = arith.constant 0.000000e+00 : f32
    %63 = vector.broadcast %cst_34 : f32 to vector<9x32x128xf32>
    %64 = arith.select %62, %46, %63 : vector<9x32x128xi1>, vector<9x32x128xf32>
    %65 = arith.truncf %64 : vector<9x32x128xf32> to vector<9x32x128xbf16>
    %c0_35 = arith.constant 0 : index
    %c0_36 = arith.constant 0 : index
    %c0_37 = arith.constant 0 : index
    %c0_38 = arith.constant 0 : index
    %66 = vector.load %arg10[%c0_35, %c0_36, %c0_37, %c0_38] : memref<1x9x32x128xbf16, #tpu.memory_space<vmem>>, vector<1x9x32x128xbf16>
    %67 = vector.shape_cast %66 : vector<1x9x32x128xbf16> to vector<9x32x128xbf16>
    %68 = vector.shape_cast %65 : vector<9x32x128xbf16> to vector<1x9x32x128xbf16>
    tpu.vector_store %arg10[%c0_35, %c0_36, %c0_37, %c0_38], %68 {strides = array<i32>} : memref<1x9x32x128xbf16, #tpu.memory_space<vmem>>, vector<1x9x32x128xbf16>,
    return
  }
  func.func @transform_0(%arg0: i32, %arg1: i32) -> (i32, i32, i32, i32) {
    %c0_i32 = arith.constant 0 : i32
    %c0_i32_0 = arith.constant 0 : i32
    %c0_i32_1 = arith.constant 0 : i32
    return %arg0, %arg1, %c0_i32, %c0_i32_0 : i32, i32, i32, i32
  }
  func.func @transform_1(%arg0: i32, %arg1: i32) -> (i32, i32, i32, i32) {
    %c9_i32 = arith.constant 9 : i32
    %0 = arith.muli %arg1, %c9_i32 : i32
    %c1_i32 = arith.constant 1 : i32
    %1 = arith.subi %0, %c1_i32 : i32
    %c0_i32 = arith.constant 0 : i32
    %2 = arith.maxsi %1, %c0_i32 : i32
    %c0_i32_0 = arith.constant 0 : i32
    %c0_i32_1 = arith.constant 0 : i32
    %c0_i32_2 = arith.constant 0 : i32
    return %arg0, %2, %c0_i32_0, %c0_i32_1 : i32, i32, i32, i32
  }
  func.func @transform_2(%arg0: i32, %arg1: i32) -> (i32, i32, i32, i32) {
    %c1_i32 = arith.constant 1 : i32
    %0 = arith.addi %arg1, %c1_i32 : i32
    %c9_i32 = arith.constant 9 : i32
    %1 = arith.muli %0, %c9_i32 : i32
    %c17_i32 = arith.constant 17 : i32
    %2 = arith.minsi %1, %c17_i32 : i32
    %c0_i32 = arith.constant 0 : i32
    %c0_i32_0 = arith.constant 0 : i32
    %c0_i32_1 = arith.constant 0 : i32
    return %arg0, %2, %c0_i32, %c0_i32_0 : i32, i32, i32, i32
  }
  func.func @transform_3(%arg0: i32, %arg1: i32) -> (i32, i32, i32) {
    %c0_i32 = arith.constant 0 : i32
    %c0_i32_0 = arith.constant 0 : i32
    %c0_i32_1 = arith.constant 0 : i32
    %c0_i32_2 = arith.constant 0 : i32
    return %c0_i32, %c0_i32_0, %c0_i32_1 : i32, i32, i32
  }
  func.func @transform_4(%arg0: i32, %arg1: i32) -> (i32, i32) {
    %c0_i32 = arith.constant 0 : i32
    %c0_i32_0 = arith.constant 0 : i32
    %c0_i32_1 = arith.constant 0 : i32
    return %c0_i32, %c0_i32_0 : i32, i32
  }
  func.func @transform_5(%arg0: i32, %arg1: i32) -> (i32, i32, i32, i32) {
    %c0_i32 = arith.constant 0 : i32
    %c0_i32_0 = arith.constant 0 : i32
    %c0_i32_1 = arith.constant 0 : i32
    return %arg0, %arg1, %c0_i32, %c0_i32_0 : i32, i32, i32, i32
  }
  func.func @transform_6(%arg0: i32, %arg1: i32) -> (i32, i32) {
    %c0_i32 = arith.constant 0 : i32
    %c0_i32_0 = arith.constant 0 : i32
    %c0_i32_1 = arith.constant 0 : i32
    return %c0_i32, %c0_i32_0 : i32, i32
  }
  func.func @transform_7(%arg0: i32, %arg1: i32) -> (i32, i32) {
    %c0_i32 = arith.constant 0 : i32
    %c0_i32_0 = arith.constant 0 : i32
    %c0_i32_1 = arith.constant 0 : i32
    return %c0_i32, %c0_i32_0 : i32, i32
  }
  func.func @transform_8(%arg0: i32, %arg1: i32) -> (i32, i32, i32, i32) {
    %c0_i32 = arith.constant 0 : i32
    %c0_i32_0 = arith.constant 0 : i32
    %c0_i32_1 = arith.constant 0 : i32
    return %arg0, %arg1, %c0_i32, %c0_i32_0 : i32, i32, i32, i32
  }
}

</mosaic_0001>

<llo_original>
// kernel: res_unet_2d_encoder.6
$region0: #{res_unet_2d_encoder.6}
  #allocation0 [shape = 'u32[]', space=smem, size = 0x4, offset = 0x4, fixed_abs, tag = 'smem constant byte address 0x4 - core index']
  #allocation1 [shape = 'u32[144,128]{1,0:T(1,128)}', space=vmem, size = 0x12000, scoped, tag = 'internal scratch']
  %s0 = inlined_call_operand.vmem [shape: bf16[2,18,32,128], index: 0, kind: input, shape index: {}, may-alias: {0,1,2}]
  %s1 = inlined_call_operand.vmem [shape: bf16[2,18,32,128], index: 1, kind: input, shape index: {}, may-alias: {0,1,2}]
  %s2 = inlined_call_operand.vmem [shape: bf16[2,18,32,128], index: 2, kind: input, shape index: {}, may-alias: {0,1,2}]
  %s3 = inlined_call_operand.vmem [shape: bf16[3,384,128], index: 3, kind: input, shape index: {}]
  %s4 = inlined_call_operand.vmem [shape: f32[1,128], index: 4, kind: input, shape index: {}]
  %s5 = inlined_call_operand.vmem [shape: bf16[2,18,32,128], index: 5, kind: output, shape index: {}]
  %s6 = sld [smem:[#allocation0]]
  $region53: #{res_unet_2d_encoder.6} parent=0
    _
  %s8 = ssub.s32 1, %s6
  %s9 = scalar_select 0, %s8, %s6
  loop: start=0, step=1, limit=6
  $region2: #{res_unet_2d_encoder.6} parent=0 // loop_pre_header
    _
  $region3: #{res_unet_2d_encoder.6} parent=0 // loop_header
    %s11 = sphi 0, %s15
    %p12 = scmp.ge.s32.totalorder %s11, 6
    %s18 = sphi 0, %s30
    %s19 = sphi 0, %s26
    %s20 = sphi 0, %s18
    %s21 = sphi 0, %s19
    %s22 = sphi 0, %s20
    %s23 = sphi 0, %s21
    %s35 = sphi 0, %s37
    %s38 = sphi 0, %s35
    %s39 = sphi 0, %s38
    %s55 = sphi 0, %s39
    %s71 = sphi 0, %s73
    %s74 = sphi 0, %s71
    %s75 = sphi 0, %s74
    %s91 = sphi 0, %s75
    %s107 = sphi 0, %s109
    %s110 = sphi 0, %s107
    %s111 = sphi 0, %s110
    %s127 = sphi 0, %s111
    %s131 = sphi 0, %s131
    %s133 = sphi 0, %s131
    %s134 = sphi 0, %s133
    %s148 = sphi 0, %s134
    %s152 = sphi 0, %s152
    %s154 = sphi 0, %s152
    %s155 = sphi 0, %s154
    %s169 = sphi 0, %s155
    %s177 = sphi 0, %s179
    %s180 = sphi 0, %s177
    %s181 = sphi 0, %s180
    %s197 = sphi 0, %s181
  $region4: #{res_unet_2d_encoder.6} parent=0 // loop_header_branch
    %14 = sbr.rel (%p12) target = $region8
  $region5: #{res_unet_2d_encoder.6} parent=0 // loop_body
    %s16 = ssub.s32 %s11, 1
    %s17 = ssub.s32 %s11, 2
    %s24 = sadd.s32 1, %s19
    %p25 = scmp.ge.s32.totalorder %s24, 2
    %s26 = scalar_select %p25, 0, %s24
    %s27 = sadd.s32 1, %s18
    %s28 = scalar_select %p25, %s27, %s18
    %p29 = scmp.ge.s32.totalorder %s28, 2
    %s30 = scalar_select %p29, 0, %s28
    %s31 = ssub.s32 %s18, %s30
    %s32 = ssub.s32 %s19, %s26
    %s33 = sor.u32 %s31, %s32
    %p34 = scmp.eq.s32.totalorder %s33, 0
    %s36 = sadd.s32 %s35, 1
    %s37 = scalar_select %p34, %s35, %s36
    %p40 = pneg %p34
    %p41 = scmp.eq.s32.totalorder %s11, 3
    %p42 = por %p40, %p41
    %p43 = scmp.ne.s32.totalorder %s35, %s38
    %p44 = scmp.eq.s32.totalorder %s11, 0
    %p45 = por %p43, %p44
    %p46 = scmp.ne.s32.totalorder %s35, %s38
    %p47 = scmp.eq.s32.totalorder %s16, 3
    %p48 = por %p46, %p47
    %p49 = scmp.ne.s32.totalorder %s38, %s39
    %p50 = scmp.eq.s32.totalorder %s16, 0
    %p51 = por %p49, %p50
    %p52 = scmp.ne.s32.totalorder %s38, %s39
    %p53 = scmp.eq.s32.totalorder %s17, 3
    %p54 = por %p52, %p53
    %p56 = scmp.ne.s32.totalorder %s39, %s55
    %p57 = scmp.eq.s32.totalorder %s17, 0
    %p58 = por %p56, %p57
    %s59 = smul.u32 %s19, 9
    %s60 = ssub.s32 %s59, 1
    %p61 = scmp.gt.s32.totalorder %s60, 0
    %s62 = scalar_select %p61, %s60, 0
    %s63 = smul.u32 %s26, 9
    %s64 = ssub.s32 %s63, 1
    %p65 = scmp.gt.s32.totalorder %s64, 0
    %s66 = scalar_select %p65, %s64, 0
    %s67 = ssub.s32 %s18, %s30
    %s68 = ssub.s32 %s62, %s66
    %s69 = sor.u32 %s67, %s68
    %p70 = scmp.eq.s32.totalorder %s69, 0
    %s72 = sadd.s32 %s71, 1
    %s73 = scalar_select %p70, %s71, %s72
    %p76 = pneg %p70
    %p77 = scmp.eq.s32.totalorder %s11, 3
    %p78 = por %p76, %p77
    %p79 = scmp.ne.s32.totalorder %s71, %s74
    %p80 = scmp.eq.s32.totalorder %s11, 0
    %p81 = por %p79, %p80
    %p82 = scmp.ne.s32.totalorder %s71, %s74
    %p83 = scmp.eq.s32.totalorder %s16, 3
    %p84 = por %p82, %p83
    %p85 = scmp.ne.s32.totalorder %s74, %s75
    %p86 = scmp.eq.s32.totalorder %s16, 0
    %p87 = por %p85, %p86
    %p88 = scmp.ne.s32.totalorder %s74, %s75
    %p89 = scmp.eq.s32.totalorder %s17, 3
    %p90 = por %p88, %p89
    %p92 = scmp.ne.s32.totalorder %s75, %s91
    %p93 = scmp.eq.s32.totalorder %s17, 0
    %p94 = por %p92, %p93
    %s95 = sadd.s32 %s19, 1
    %s96 = smul.u32 %s95, 9
    %p97 = scmp.lt.s32.totalorder %s96, 17
    %s98 = scalar_select %p97, %s96, 17
    %s99 = sadd.s32 %s26, 1
    %s100 = smul.u32 %s99, 9
    %p101 = scmp.lt.s32.totalorder %s100, 17
    %s102 = scalar_select %p101, %s100, 17
    %s103 = ssub.s32 %s18, %s30
    %s104 = ssub.s32 %s98, %s102
    %s105 = sor.u32 %s103, %s104
    %p106 = scmp.eq.s32.totalorder %s105, 0
    %s108 = sadd.s32 %s107, 1
    %s109 = scalar_select %p106, %s107, %s108
    %p112 = pneg %p106
    %p113 = scmp.eq.s32.totalorder %s11, 3
    %p114 = por %p112, %p113
    %p115 = scmp.ne.s32.totalorder %s107, %s110
    %p116 = scmp.eq.s32.totalorder %s11, 0
    %p117 = por %p115, %p116
    %p118 = scmp.ne.s32.totalorder %s107, %s110
    %p119 = scmp.eq.s32.totalorder %s16, 3
    %p120 = por %p118, %p119
    %p121 = scmp.ne.s32.totalorder %s110, %s111
    %p122 = scmp.eq.s32.totalorder %s16, 0
    %p123 = por %p121, %p122
    %p124 = scmp.ne.s32.totalorder %s110, %s111
    %p125 = scmp.eq.s32.totalorder %s17, 3
    %p126 = por %p124, %p125
    %p128 = scmp.ne.s32.totalorder %s111, %s127
    %p129 = scmp.eq.s32.totalorder %s17, 0
    %p130 = por %p128, %p129
    %s132 = sadd.s32 %s131, 1
    %p135 = scmp.eq.s32.totalorder %s11, 3
    %p136 = scmp.ne.s32.totalorder %s131, %s133
    %p137 = scmp.eq.s32.totalorder %s11, 0
    %p138 = por %p136, %p137
    %p139 = scmp.ne.s32.totalorder %s131, %s133
    %p140 = scmp.eq.s32.totalorder %s16, 3
    %p141 = por %p139, %p140
    %p142 = scmp.ne.s32.totalorder %s133, %s134
    %p143 = scmp.eq.s32.totalorder %s16, 0
    %p144 = por %p142, %p143
    %p145 = scmp.ne.s32.totalorder %s133, %s134
    %p146 = scmp.eq.s32.totalorder %s17, 3
    %p147 = por %p145, %p146
    %p149 = scmp.ne.s32.totalorder %s134, %s148
    %p150 = scmp.eq.s32.totalorder %s17, 0
    %p151 = por %p149, %p150
    %s153 = sadd.s32 %s152, 1
    %p156 = scmp.eq.s32.totalorder %s11, 3
    %p157 = scmp.ne.s32.totalorder %s152, %s154
    %p158 = scmp.eq.s32.totalorder %s11, 0
    %p159 = por %p157, %p158
    %p160 = scmp.ne.s32.totalorder %s152, %s154
    %p161 = scmp.eq.s32.totalorder %s16, 3
    %p162 = por %p160, %p161
    %p163 = scmp.ne.s32.totalorder %s154, %s155
    %p164 = scmp.eq.s32.totalorder %s16, 0
    %p165 = por %p163, %p164
    %p166 = scmp.ne.s32.totalorder %s154, %s155
    %p167 = scmp.eq.s32.totalorder %s17, 3
    %p168 = por %p166, %p167
    %p170 = scmp.ne.s32.totalorder %s155, %s169
    %p171 = scmp.eq.s32.totalorder %s17, 0
    %p172 = por %p170, %p171
    %s173 = ssub.s32 %s18, %s30
    %s174 = ssub.s32 %s19, %s26
    %s175 = sor.u32 %s173, %s174
    %p176 = scmp.eq.s32.totalorder %s175, 0
    %s178 = sadd.s32 %s177, 1
    %s179 = scalar_select %p176, %s177, %s178
    %p182 = pneg %p176
    %p183 = scmp.eq.s32.totalorder %s11, 3
    %p184 = por %p182, %p183
    %p185 = scmp.ne.s32.totalorder %s177, %s180
    %p186 = scmp.eq.s32.totalorder %s11, 0
    %p187 = por %p185, %p186
    %p188 = scmp.ne.s32.totalorder %s177, %s180
    %p189 = scmp.eq.s32.totalorder %s16, 3
    %p190 = por %p188, %p189
    %p191 = scmp.ne.s32.totalorder %s180, %s181
    %p192 = scmp.eq.s32.totalorder %s16, 0
    %p193 = por %p191, %p192
    %p194 = scmp.ne.s32.totalorder %s180, %s181
    %p195 = scmp.eq.s32.totalorder %s17, 3
    %p196 = por %p194, %p195
    %p198 = scmp.ne.s32.totalorder %s181, %s197
    %p199 = scmp.eq.s32.totalorder %s17, 0
    %p200 = por %p198, %p199
    %p201 = scmp.le.s32.totalorder 1, %s11
    %p202 = scmp.lt.s32.totalorder %s11, 5
    %p203 = pnand %p201, %p202
    %p204 = pneg %p203
    // Predicated region
    $region9: #{res_unet_2d_encoder.6} parent=5 // pred_check
      _
    $region10: #{res_unet_2d_encoder.6} parent=5 // pred_check_branch
      %206 = sbr.rel (%p203) target = $region12
    $region11: #{res_unet_2d_encoder.6} parent=5 // pred_region
      %s207 = ssub.s32 %s11, 1
      // Predicated region
      $region13: #{res_unet_2d_encoder.6} parent=11 // pred_check
        %p208 = pneg %p144
      $region14: #{res_unet_2d_encoder.6} parent=11 // pred_check_branch
        %210 = sbr.rel (%p208) target = $region16
      $region15: #{res_unet_2d_encoder.6} parent=11 // pred_region
        _
      $region16: #{res_unet_2d_encoder.6} parent=11 // pred_fallthru
        _
      // Predicated region
      $region17: #{res_unet_2d_encoder.6} parent=11 // pred_check
        %p211 = pneg %p165
      $region18: #{res_unet_2d_encoder.6} parent=11 // pred_check_branch
        %213 = sbr.rel (%p211) target = $region20
      $region19: #{res_unet_2d_encoder.6} parent=11 // pred_region
        _
      $region20: #{res_unet_2d_encoder.6} parent=11 // pred_fallthru
        _
    $region12: #{res_unet_2d_encoder.6} parent=5 // pred_fallthru
      _
    %p214 = scmp.lt.s32.totalorder %s11, 4
    // Predicated region
    $region21: #{res_unet_2d_encoder.6} parent=5 // pred_check
      %p215 = pneg %p214
    $region22: #{res_unet_2d_encoder.6} parent=5 // pred_check_branch
      %217 = sbr.rel (%p215) target = $region24
    $region23: #{res_unet_2d_encoder.6} parent=5 // pred_region
      // Predicated region
      $region25: #{res_unet_2d_encoder.6} parent=23 // pred_check
        %p218 = pneg %p45
      $region26: #{res_unet_2d_encoder.6} parent=23 // pred_check_branch
        %220 = sbr.rel (%p218) target = $region28
      $region27: #{res_unet_2d_encoder.6} parent=23 // pred_region
        %s221 = smul.u32 9, %s19
        %p222 = scmp.lt.s32.totalorder %s18, 1
        %s223 = scalar_select %p222, %s18, 1
        %p224 = scmp.lt.s32.totalorder %s221, 17
        %s225 = scalar_select %p224, %s221, 17
        %s226 = smul.addr %s225, 4
        %s227 = smul.addr %s223, 72
        %s228 = sadd.s32 %s226, %s227
        %s229 = smul.addr %s228, 4
        %s230 = scalar_lea.vmem %s0, %s229
        %s231 = smul.u32 9, %s19
      $region28: #{res_unet_2d_encoder.6} parent=23 // pred_fallthru
        _
      // Predicated region
      $region29: #{res_unet_2d_encoder.6} parent=23 // pred_check
        %p232 = pneg %p81
      $region30: #{res_unet_2d_encoder.6} parent=23 // pred_check_branch
        %234 = sbr.rel (%p232) target = $region32
      $region31: #{res_unet_2d_encoder.6} parent=23 // pred_region
        %s235 = smul.u32 %s19, 9
        %s236 = ssub.s32 %s235, 1
        %p237 = scmp.gt.s32.totalorder %s236, 0
        %s238 = scalar_select %p237, %s236, 0
        %p239 = scmp.lt.s32.totalorder %s18, 1
        %s240 = scalar_select %p239, %s18, 1
        %p241 = scmp.lt.s32.totalorder %s238, 17
        %s242 = scalar_select %p241, %s238, 17
        %s243 = smul.addr %s242, 4
        %s244 = smul.addr %s240, 72
        %s245 = sadd.s32 %s243, %s244
        %s246 = smul.addr %s245, 4
        %s247 = scalar_lea.vmem %s1, %s246
        %s248 = smul.u32 %s19, 9
        %s249 = ssub.s32 %s248, 1
        %p250 = scmp.gt.s32.totalorder %s249, 0
        %s251 = scalar_select %p250, %s249, 0
      $region32: #{res_unet_2d_encoder.6} parent=23 // pred_fallthru
        _
      // Predicated region
      $region33: #{res_unet_2d_encoder.6} parent=23 // pred_check
        %p252 = pneg %p117
      $region34: #{res_unet_2d_encoder.6} parent=23 // pred_check_branch
        %254 = sbr.rel (%p252) target = $region36
      $region35: #{res_unet_2d_encoder.6} parent=23 // pred_region
        %s255 = sadd.s32 %s19, 1
        %s256 = smul.u32 %s255, 9
        %p257 = scmp.lt.s32.totalorder %s256, 17
        %s258 = scalar_select %p257, %s256, 17
        %p259 = scmp.lt.s32.totalorder %s18, 1
        %s260 = scalar_select %p259, %s18, 1
        %p261 = scmp.lt.s32.totalorder %s258, 17
        %s262 = scalar_select %p261, %s258, 17
        %s263 = smul.addr %s262, 4
        %s264 = smul.addr %s260, 72
        %s265 = sadd.s32 %s263, %s264
        %s266 = smul.addr %s265, 4
        %s267 = scalar_lea.vmem %s2, %s266
        %s268 = sadd.s32 %s19, 1
        %s269 = smul.u32 %s268, 9
        %p270 = scmp.lt.s32.totalorder %s269, 17
        %s271 = scalar_select %p270, %s269, 17
      $region36: #{res_unet_2d_encoder.6} parent=23 // pred_fallthru
        _
    $region24: #{res_unet_2d_encoder.6} parent=5 // pred_fallthru
      _
    %p272 = scmp.le.s32.totalorder 1, %s11
    %p273 = scmp.lt.s32.totalorder %s11, 5
    %p274 = pnand %p272, %p273
    %p275 = pneg %p274
    // Predicated region
    $region37: #{res_unet_2d_encoder.6} parent=5 // pred_check
      _
    $region38: #{res_unet_2d_encoder.6} parent=5 // pred_check_branch
      %277 = sbr.rel (%p274) target = $region40
    $region39: #{res_unet_2d_encoder.6} parent=5 // pred_region
      %s278 = ssub.s32 %s11, 1
      %s279 = smul.u32 9, %s21
      %p280 = scmp.lt.s32.totalorder %s20, 1
      %s281 = scalar_select %p280, %s20, 1
      %p282 = scmp.lt.s32.totalorder %s279, 17
      %s283 = scalar_select %p282, %s279, 17
      %s284 = smul.addr %s283, 4
      %s285 = smul.addr %s281, 72
      %s286 = sadd.s32 %s284, %s285
      %s287 = smul.addr %s286, 4
      %s288 = scalar_lea.vmem %s0, %s287
      %p289 = pneg %p51
      %p290 = pneg %p48
      %s291 = smul.u32 %s21, 9
      %s292 = ssub.s32 %s291, 1
      %p293 = scmp.gt.s32.totalorder %s292, 0
      %s294 = scalar_select %p293, %s292, 0
      %p295 = scmp.lt.s32.totalorder %s20, 1
      %s296 = scalar_select %p295, %s20, 1
      %p297 = scmp.lt.s32.totalorder %s294, 17
      %s298 = scalar_select %p297, %s294, 17
      %s299 = smul.addr %s298, 4
      %s300 = smul.addr %s296, 72
      %s301 = sadd.s32 %s299, %s300
      %s302 = smul.addr %s301, 4
      %s303 = scalar_lea.vmem %s1, %s302
      %p304 = pneg %p87
      %p305 = pneg %p84
      %s306 = sadd.s32 %s21, 1
      %s307 = smul.u32 %s306, 9
      %p308 = scmp.lt.s32.totalorder %s307, 17
      %s309 = scalar_select %p308, %s307, 17
      %p310 = scmp.lt.s32.totalorder %s20, 1
      %s311 = scalar_select %p310, %s20, 1
      %p312 = scmp.lt.s32.totalorder %s309, 17
      %s313 = scalar_select %p312, %s309, 17
      %s314 = smul.addr %s313, 4
      %s315 = smul.addr %s311, 72
      %s316 = sadd.s32 %s314, %s315
      %s317 = smul.addr %s316, 4
      %s318 = scalar_lea.vmem %s2, %s317
      %p319 = pneg %p123
      %p320 = pneg %p120
      %p321 = pneg %p144
      %p322 = pneg %p141
      %p323 = pneg %p165
      %p324 = pneg %p162
      %p325 = pneg %p193
      %p326 = pneg %p190
      %s327 = smul.u32 9, %s21
      %p328 = scmp.lt.s32.totalorder %s20, 1
      %s329 = scalar_select %p328, %s20, 1
      %p330 = scmp.lt.s32.totalorder %s327, 17
      %s331 = scalar_select %p330, %s327, 17
      %s332 = smul.addr %s331, 4
      %s333 = smul.addr %s329, 72
      %s334 = sadd.s32 %s332, %s333
      %s335 = smul.addr %s334, 4
      %s336 = scalar_lea.vmem %s5, %s335
      %s337 = smul.u32 9, %s21
      %p338 = scmp.lt.s32.totalorder %s20, 1
      %s339 = scalar_select %p338, %s20, 1
      %p340 = scmp.lt.s32.totalorder %s337, 17
      %s341 = scalar_select %p340, %s337, 17
      %s342 = smul.addr %s341, 4
      %s343 = smul.addr %s339, 72
      %s344 = sadd.s32 %s342, %s343
      %s345 = smul.addr %s344, 4
      %s346 = scalar_lea.vmem %s0, %s345
      %s347 = smul.u32 9, %s21
      %s348 = smul.u32 %s21, 9
      %s349 = ssub.s32 %s348, 1
      %p350 = scmp.gt.s32.totalorder %s349, 0
      %s351 = scalar_select %p350, %s349, 0
      %p352 = scmp.lt.s32.totalorder %s20, 1
      %s353 = scalar_select %p352, %s20, 1
      %p354 = scmp.lt.s32.totalorder %s351, 17
      %s355 = scalar_select %p354, %s351, 17
      %s356 = smul.addr %s355, 4
      %s357 = smul.addr %s353, 72
      %s358 = sadd.s32 %s356, %s357
      %s359 = smul.addr %s358, 4
      %s360 = scalar_lea.vmem %s1, %s359
      %s361 = smul.u32 %s21, 9
      %s362 = ssub.s32 %s361, 1
      %p363 = scmp.gt.s32.totalorder %s362, 0
      %s364 = scalar_select %p363, %s362, 0
      %s365 = sadd.s32 %s21, 1
      %s366 = smul.u32 %s365, 9
      %p367 = scmp.lt.s32.totalorder %s366, 17
      %s368 = scalar_select %p367, %s366, 17
      %p369 = scmp.lt.s32.totalorder %s20, 1
      %s370 = scalar_select %p369, %s20, 1
      %p371 = scmp.lt.s32.totalorder %s368, 17
      %s372 = scalar_select %p371, %s368, 17
      %s373 = smul.addr %s372, 4
      %s374 = smul.addr %s370, 72
      %s375 = sadd.s32 %s373, %s374
      %s376 = smul.addr %s375, 4
      %s377 = scalar_lea.vmem %s2, %s376
      %s378 = sadd.s32 %s21, 1
      %s379 = smul.u32 %s378, 9
      %p380 = scmp.lt.s32.totalorder %s379, 17
      %s381 = scalar_select %p380, %s379, 17
      %s382 = smul.u32 9, %s21
      %p383 = scmp.lt.s32.totalorder %s20, 1
      %s384 = scalar_select %p383, %s20, 1
      %p385 = scmp.lt.s32.totalorder %s382, 17
      %s386 = scalar_select %p385, %s382, 17
      %s387 = smul.addr %s386, 4
      %s388 = smul.addr %s384, 72
      %s389 = sadd.s32 %s387, %s388
      %s390 = smul.addr %s389, 4
      %s391 = scalar_lea.vmem %s5, %s390
      %s392 = smul.u32 9, %s21
      %v394 = vld [vmem:[%s360] sm:$0xf]
      %v395 = vld [vmem:[%s360 + $0x4] sm:$0xf]
      %v396 = vld [vmem:[%s360 + $0x8] sm:$0xf]
      %v397 = vld [vmem:[%s360 + $0xc] sm:$0xf]
      %v398 = vld [vmem:[%s346] sm:$0xf]
      %v399 = vld [vmem:[%s346 + $0x4] sm:$0xf]
      %v400 = vld [vmem:[%s346 + $0x8] sm:$0xf]
      %v401 = vld [vmem:[%s346 + $0xc] sm:$0xf]
      %v402 = vld [vmem:[%s346 + $0x10] sm:$0xf]
      %v403 = vld [vmem:[%s346 + $0x14] sm:$0xf]
      %v404 = vld [vmem:[%s346 + $0x18] sm:$0xf]
      %v405 = vld [vmem:[%s346 + $0x1c] sm:$0xf]
      %v406 = vld [vmem:[%s346 + $0x20] sm:$0xf]
      %v407 = vld [vmem:[%s346 + $0x24] sm:$0xf]
      %v408 = vld [vmem:[%s346 + $0x28] sm:$0xf]
      %v409 = vld [vmem:[%s346 + $0x2c] sm:$0xf]
      %v410 = vld [vmem:[%s346 + $0x30] sm:$0xf]
      %v411 = vld [vmem:[%s346 + $0x34] sm:$0xf]
      %v412 = vld [vmem:[%s346 + $0x38] sm:$0xf]
      %v413 = vld [vmem:[%s346 + $0x3c] sm:$0xf]
      %v414 = vld [vmem:[%s346 + $0x40] sm:$0xf]
      %v415 = vld [vmem:[%s346 + $0x44] sm:$0xf]
      %v416 = vld [vmem:[%s346 + $0x48] sm:$0xf]
      %v417 = vld [vmem:[%s346 + $0x4c] sm:$0xf]
      %v418 = vld [vmem:[%s346 + $0x50] sm:$0xf]
      %v419 = vld [vmem:[%s346 + $0x54] sm:$0xf]
      %v420 = vld [vmem:[%s346 + $0x58] sm:$0xf]
      %v421 = vld [vmem:[%s346 + $0x5c] sm:$0xf]
      %v422 = vld [vmem:[%s346 + $0x60] sm:$0xf]
      %v423 = vld [vmem:[%s346 + $0x64] sm:$0xf]
      %v424 = vld [vmem:[%s346 + $0x68] sm:$0xf]
      %v425 = vld [vmem:[%s346 + $0x6c] sm:$0xf]
      %v426 = vld [vmem:[%s346 + $0x70] sm:$0xf]
      %v427 = vld [vmem:[%s346 + $0x74] sm:$0xf]
      %v428 = vld [vmem:[%s346 + $0x78] sm:$0xf]
      %v429 = vld [vmem:[%s346 + $0x7c] sm:$0xf]
      %v430 = vld [vmem:[%s346 + $0x80] sm:$0xf]
      %v431 = vld [vmem:[%s346 + $0x84] sm:$0xf]
      %v432 = vld [vmem:[%s346 + $0x88] sm:$0xf]
      %v433 = vld [vmem:[%s346 + $0x8c] sm:$0xf]
      %v434 = vld [vmem:[%s377] sm:$0xf]
      %v435 = vld [vmem:[%s377 + $0x4] sm:$0xf]
      %v436 = vld [vmem:[%s377 + $0x8] sm:$0xf]
      %v437 = vld [vmem:[%s377 + $0xc] sm:$0xf]
      %v439 = vunpack.c.l.b16 %v437
      %v440 = vpack.c.b16 %v439, %v439
      %v442 = vshrl.u32 %v440, 16
      %v444 = vrot.slane %v442, 3
      %v489 = vunpack.c.l.b16 %v394
      %v490 = vunpack.c.l.b16 %v395
      %v491 = vunpack.c.l.b16 %v396
      %v492 = vunpack.c.l.b16 %v397
      %v493 = vunpack.c.l.b16 %v398
      %v494 = vunpack.c.l.b16 %v399
      %v495 = vunpack.c.l.b16 %v400
      %v496 = vunpack.c.l.b16 %v401
      %v497 = vunpack.c.l.b16 %v402
      %v498 = vunpack.c.l.b16 %v403
      %v499 = vunpack.c.l.b16 %v404
      %v500 = vunpack.c.l.b16 %v405
      %v501 = vunpack.c.l.b16 %v406
      %v502 = vunpack.c.l.b16 %v407
      %v503 = vunpack.c.l.b16 %v408
      %v504 = vunpack.c.l.b16 %v409
      %v505 = vunpack.c.l.b16 %v410
      %v506 = vunpack.c.l.b16 %v411
      %v507 = vunpack.c.l.b16 %v412
      %v508 = vunpack.c.l.b16 %v413
      %v509 = vunpack.c.l.b16 %v414
      %v510 = vunpack.c.l.b16 %v415
      %v511 = vunpack.c.l.b16 %v416
      %v512 = vunpack.c.l.b16 %v417
      %v513 = vunpack.c.l.b16 %v418
      %v514 = vunpack.c.l.b16 %v419
      %v515 = vunpack.c.l.b16 %v420
      %v516 = vunpack.c.l.b16 %v421
      %v517 = vunpack.c.l.b16 %v422
      %v518 = vunpack.c.l.b16 %v423
      %v519 = vunpack.c.l.b16 %v424
      %v520 = vunpack.c.l.b16 %v425
      %v521 = vunpack.c.l.b16 %v426
      %v522 = vunpack.c.l.b16 %v427
      %v523 = vunpack.c.l.b16 %v428
      %v524 = vunpack.c.l.b16 %v429
      %v525 = vunpack.c.l.b16 %v430
      %v526 = vunpack.c.l.b16 %v431
      %v527 = vunpack.c.l.b16 %v432
      %v528 = vunpack.c.l.b16 %v433
      %v529 = vunpack.c.l.b16 %v434
      %v530 = vunpack.c.l.b16 %v435
      %v531 = vunpack.c.l.b16 %v436
      %v532 = vpack.c.b16 %v490, %v489
      %v533 = vpack.c.b16 %v492, %v491
      %v534 = vpack.c.b16 %v494, %v493
      %v535 = vpack.c.b16 %v496, %v495
      %v536 = vpack.c.b16 %v498, %v497
      %v537 = vpack.c.b16 %v500, %v499
      %v538 = vpack.c.b16 %v502, %v501
      %v539 = vpack.c.b16 %v504, %v503
      %v540 = vpack.c.b16 %v506, %v505
      %v541 = vpack.c.b16 %v508, %v507
      %v542 = vpack.c.b16 %v510, %v509
      %v543 = vpack.c.b16 %v512, %v511
      %v544 = vpack.c.b16 %v514, %v513
      %v545 = vpack.c.b16 %v516, %v515
      %v546 = vpack.c.b16 %v518, %v517
      %v547 = vpack.c.b16 %v520, %v519
      %v548 = vpack.c.b16 %v522, %v521
      %v549 = vpack.c.b16 %v524, %v523
      %v550 = vpack.c.b16 %v526, %v525
      %v551 = vpack.c.b16 %v528, %v527
      %v552 = vpack.c.b16 %v530, %v529
      %v553 = vpack.c.b16 %v439, %v531
      %vm554 = vsmask.f32 256
      %v556 = vshrl.u32 %v532, 16
      %v558 = vrot.slane %v556, 7
      %v559 = vshll.u32 %v532, 16
      %v561 = vor.u32 %v558, %v559
      %v563 = vshrl.u32 %v533, 16
      %v565 = vrot.slane %v563, 7
      %v566 = vshll.u32 %v533, 16
      %v568 = vor.u32 %v565, %v566
      %v569 = vsel %vm554, %v558, %v568
      %v571 = vshrl.u32 %v534, 16
      %v573 = vrot.slane %v571, 7
      %v574 = vshll.u32 %v534, 16
      %v576 = vor.u32 %v573, %v574
      %v577 = vsel %vm554, %v565, %v576
      %v579 = vshrl.u32 %v535, 16
      %v581 = vrot.slane %v579, 7
      %v582 = vshll.u32 %v535, 16
      %v584 = vor.u32 %v581, %v582
      %v585 = vsel %vm554, %v573, %v584
      %v587 = vshrl.u32 %v536, 16
      %v589 = vrot.slane %v587, 7
      %v590 = vshll.u32 %v536, 16
      %v592 = vor.u32 %v589, %v590
      %v593 = vsel %vm554, %v581, %v592
      %v595 = vshrl.u32 %v537, 16
      %v597 = vrot.slane %v595, 7
      %v598 = vshll.u32 %v537, 16
      %v600 = vor.u32 %v597, %v598
      %v601 = vsel %vm554, %v589, %v600
      %v603 = vshrl.u32 %v538, 16
      %v605 = vrot.slane %v603, 7
      %v606 = vshll.u32 %v538, 16
      %v608 = vor.u32 %v605, %v606
      %v609 = vsel %vm554, %v597, %v608
      %v611 = vshrl.u32 %v539, 16
      %v613 = vrot.slane %v611, 7
      %v614 = vshll.u32 %v539, 16
      %v616 = vor.u32 %v613, %v614
      %v617 = vsel %vm554, %v605, %v616
      %v619 = vshrl.u32 %v540, 16
      %v621 = vrot.slane %v619, 7
      %v622 = vshll.u32 %v540, 16
      %v624 = vor.u32 %v621, %v622
      %v625 = vsel %vm554, %v613, %v624
      %v627 = vshrl.u32 %v541, 16
      %v629 = vrot.slane %v627, 7
      %v630 = vshll.u32 %v541, 16
      %v632 = vor.u32 %v629, %v630
      %v633 = vsel %vm554, %v621, %v632
      %v635 = vshrl.u32 %v542, 16
      %v637 = vrot.slane %v635, 7
      %v638 = vshll.u32 %v542, 16
      %v640 = vor.u32 %v637, %v638
      %v641 = vsel %vm554, %v629, %v640
      %v643 = vshrl.u32 %v543, 16
      %v645 = vrot.slane %v643, 7
      %v646 = vshll.u32 %v543, 16
      %v648 = vor.u32 %v645, %v646
      %v649 = vsel %vm554, %v637, %v648
      %v651 = vshrl.u32 %v544, 16
      %v653 = vrot.slane %v651, 7
      %v654 = vshll.u32 %v544, 16
      %v656 = vor.u32 %v653, %v654
      %v657 = vsel %vm554, %v645, %v656
      %v659 = vshrl.u32 %v545, 16
      %v661 = vrot.slane %v659, 7
      %v662 = vshll.u32 %v545, 16
      %v664 = vor.u32 %v661, %v662
      %v665 = vsel %vm554, %v653, %v664
      %v667 = vshrl.u32 %v546, 16
      %v669 = vrot.slane %v667, 7
      %v670 = vshll.u32 %v546, 16
      %v672 = vor.u32 %v669, %v670
      %v673 = vsel %vm554, %v661, %v672
      %v675 = vshrl.u32 %v547, 16
      %v677 = vrot.slane %v675, 7
      %v678 = vshll.u32 %v547, 16
      %v680 = vor.u32 %v677, %v678
      %v681 = vsel %vm554, %v669, %v680
      %v683 = vshrl.u32 %v548, 16
      %v685 = vrot.slane %v683, 7
      %v686 = vshll.u32 %v548, 16
      %v688 = vor.u32 %v685, %v686
      %v689 = vsel %vm554, %v677, %v688
      %v691 = vshrl.u32 %v549, 16
      %v693 = vrot.slane %v691, 7
      %v694 = vshll.u32 %v549, 16
      %v696 = vor.u32 %v693, %v694
      %v697 = vsel %vm554, %v685, %v696
      %v699 = vshrl.u32 %v550, 16
      %v701 = vrot.slane %v699, 7
      %v702 = vshll.u32 %v550, 16
      %v704 = vor.u32 %v701, %v702
      %v705 = vsel %vm554, %v693, %v704
      %v707 = vshrl.u32 %v551, 16
      %v709 = vrot.slane %v707, 7
      %v710 = vshll.u32 %v551, 16
      %v712 = vor.u32 %v709, %v710
      %v713 = vsel %vm554, %v701, %v712
      %v715 = vshrl.u32 %v552, 16
      %v717 = vrot.slane %v715, 7
      %v718 = vshll.u32 %v552, 16
      %v720 = vor.u32 %v717, %v718
      %v721 = vsel %vm554, %v709, %v720
      %v723 = vshrl.u32 %v553, 16
      %v725 = vrot.slane %v723, 7
      %v726 = vshll.u32 %v553, 16
      %v728 = vor.u32 %v725, %v726
      %v729 = vsel %vm554, %v717, %v728
      %vm752 = vcmask 1040384
      %vm753 = vmand %vm752, %vm554
      %v754 = vsel %vm753, %v444, %v561
      %vm755 = vsmask.f32 7424
      %v756 = vrot.slane %v559, 1
      %v757 = vor.u32 %v556, %v756
      %v758 = vrot.slane %v566, 1
      %v759 = vsel %vm755, %v757, %v758
      %v760 = vor.u32 %v563, %v758
      %v761 = vrot.slane %v574, 1
      %v762 = vsel %vm755, %v760, %v761
      %v763 = vor.u32 %v571, %v761
      %v764 = vrot.slane %v582, 1
      %v765 = vsel %vm755, %v763, %v764
      %v766 = vor.u32 %v579, %v764
      %v767 = vrot.slane %v590, 1
      %v768 = vsel %vm755, %v766, %v767
      %v769 = vor.u32 %v587, %v767
      %v770 = vrot.slane %v598, 1
      %v771 = vsel %vm755, %v769, %v770
      %v772 = vor.u32 %v595, %v770
      %v773 = vrot.slane %v606, 1
      %v774 = vsel %vm755, %v772, %v773
      %v775 = vor.u32 %v603, %v773
      %v776 = vrot.slane %v614, 1
      %v777 = vsel %vm755, %v775, %v776
      %v778 = vor.u32 %v611, %v776
      %v779 = vrot.slane %v622, 1
      %v780 = vsel %vm755, %v778, %v779
      %v781 = vor.u32 %v619, %v779
      %v782 = vrot.slane %v630, 1
      %v783 = vsel %vm755, %v781, %v782
      %v784 = vor.u32 %v627, %v782
      %v785 = vrot.slane %v638, 1
      %v786 = vsel %vm755, %v784, %v785
      %v787 = vor.u32 %v635, %v785
      %v788 = vrot.slane %v646, 1
      %v789 = vsel %vm755, %v787, %v788
      %v790 = vor.u32 %v643, %v788
      %v791 = vrot.slane %v654, 1
      %v792 = vsel %vm755, %v790, %v791
      %v793 = vor.u32 %v651, %v791
      %v794 = vrot.slane %v662, 1
      %v795 = vsel %vm755, %v793, %v794
      %v796 = vor.u32 %v659, %v794
      %v797 = vrot.slane %v670, 1
      %v798 = vsel %vm755, %v796, %v797
      %v799 = vor.u32 %v667, %v797
      %v800 = vrot.slane %v678, 1
      %v801 = vsel %vm755, %v799, %v800
      %v802 = vor.u32 %v675, %v800
      %v803 = vrot.slane %v686, 1
      %v804 = vsel %vm755, %v802, %v803
      %v805 = vor.u32 %v683, %v803
      %v806 = vrot.slane %v694, 1
      %v807 = vsel %vm755, %v805, %v806
      %v808 = vor.u32 %v691, %v806
      %v809 = vrot.slane %v702, 1
      %v810 = vsel %vm755, %v808, %v809
      %v811 = vor.u32 %v699, %v809
      %v812 = vrot.slane %v710, 1
      %v813 = vsel %vm755, %v811, %v812
      %v814 = vor.u32 %v707, %v812
      %v815 = vrot.slane %v718, 1
      %v816 = vsel %vm755, %v814, %v815
      %v817 = vor.u32 %v715, %v815
      %v818 = vrot.slane %v726, 1
      %v819 = vsel %vm755, %v817, %v818
      %v820 = vor.u32 %v723, %v818
      %v843 = vpack.c.b16 %v489, %v489
      %v845 = vshll.u32 %v843, 16
      %v847 = vrot.slane %v845, 1
      %vm849 = vcmask 1047552
      %vm850 = vmand %vm849, %vm755
      %v851 = vsel %vm850, %v820, %v847
      %v874 = vld [vmem:[%s3] sm:$0xf]
      %v875 = vld [vmem:[%s3 + $0x4] sm:$0xf]
      %v876 = vld [vmem:[%s3 + $0x8] sm:$0xf]
      %v877 = vld [vmem:[%s3 + $0xc] sm:$0xf]
      %v878 = vld [vmem:[%s3 + $0x10] sm:$0xf]
      %v879 = vld [vmem:[%s3 + $0x14] sm:$0xf]
      %v880 = vld [vmem:[%s3 + $0x18] sm:$0xf]
      %v881 = vld [vmem:[%s3 + $0x1c] sm:$0xf]
      %v882 = vld [vmem:[%s3 + $0x20] sm:$0xf]
      %v883 = vld [vmem:[%s3 + $0x24] sm:$0xf]
      %v884 = vld [vmem:[%s3 + $0x28] sm:$0xf]
      %v885 = vld [vmem:[%s3 + $0x2c] sm:$0xf]
      %v886 = vld [vmem:[%s3 + $0x30] sm:$0xf]
      %v887 = vld [vmem:[%s3 + $0x34] sm:$0xf]
      %v888 = vld [vmem:[%s3 + $0x38] sm:$0xf]
      %v889 = vld [vmem:[%s3 + $0x3c] sm:$0xf]
      %v890 = vld [vmem:[%s3 + $0x40] sm:$0xf]
      %v891 = vld [vmem:[%s3 + $0x44] sm:$0xf]
      %v892 = vld [vmem:[%s3 + $0x48] sm:$0xf]
      %v893 = vld [vmem:[%s3 + $0x4c] sm:$0xf]
      %v894 = vld [vmem:[%s3 + $0x50] sm:$0xf]
      %v895 = vld [vmem:[%s3 + $0x54] sm:$0xf]
      %v896 = vld [vmem:[%s3 + $0x58] sm:$0xf]
      %v897 = vld [vmem:[%s3 + $0x5c] sm:$0xf]
      %v898 = vld [vmem:[%s3 + $0x60] sm:$0xf]
      %v899 = vld [vmem:[%s3 + $0x64] sm:$0xf]
      %v900 = vld [vmem:[%s3 + $0x68] sm:$0xf]
      %v901 = vld [vmem:[%s3 + $0x6c] sm:$0xf]
      %v902 = vld [vmem:[%s3 + $0x70] sm:$0xf]
      %v903 = vld [vmem:[%s3 + $0x74] sm:$0xf]
      %v904 = vld [vmem:[%s3 + $0x78] sm:$0xf]
      %v905 = vld [vmem:[%s3 + $0x7c] sm:$0xf]
      %v906 = vld [vmem:[%s3 + $0x80] sm:$0xf]
      %v907 = vld [vmem:[%s3 + $0x84] sm:$0xf]
      %v908 = vld [vmem:[%s3 + $0x88] sm:$0xf]
      %v909 = vld [vmem:[%s3 + $0x8c] sm:$0xf]
      %v910 = vld [vmem:[%s3 + $0x90] sm:$0xf]
      %v911 = vld [vmem:[%s3 + $0x94] sm:$0xf]
      %v912 = vld [vmem:[%s3 + $0x98] sm:$0xf]
      %v913 = vld [vmem:[%s3 + $0x9c] sm:$0xf]
      %v914 = vld [vmem:[%s3 + $0xa0] sm:$0xf]
      %v915 = vld [vmem:[%s3 + $0xa4] sm:$0xf]
      %v916 = vld [vmem:[%s3 + $0xa8] sm:$0xf]
      %v917 = vld [vmem:[%s3 + $0xac] sm:$0xf]
      %v918 = vld [vmem:[%s3 + $0xb0] sm:$0xf]
      %v919 = vld [vmem:[%s3 + $0xb4] sm:$0xf]
      %v920 = vld [vmem:[%s3 + $0xb8] sm:$0xf]
      %v921 = vld [vmem:[%s3 + $0xbc] sm:$0xf]
      %s922 = scalar_lea.vmem %s3, 192
      %v923 = vld [vmem:[%s922] sm:$0xf]
      %v924 = vld [vmem:[%s922 + $0x4] sm:$0xf]
      %v925 = vld [vmem:[%s922 + $0x8] sm:$0xf]
      %v926 = vld [vmem:[%s922 + $0xc] sm:$0xf]
      %v927 = vld [vmem:[%s922 + $0x10] sm:$0xf]
      %v928 = vld [vmem:[%s922 + $0x14] sm:$0xf]
      %v929 = vld [vmem:[%s922 + $0x18] sm:$0xf]
      %v930 = vld [vmem:[%s922 + $0x1c] sm:$0xf]
      %v931 = vld [vmem:[%s922 + $0x20] sm:$0xf]
      %v932 = vld [vmem:[%s922 + $0x24] sm:$0xf]
      %v933 = vld [vmem:[%s922 + $0x28] sm:$0xf]
      %v934 = vld [vmem:[%s922 + $0x2c] sm:$0xf]
      %v935 = vld [vmem:[%s922 + $0x30] sm:$0xf]
      %v936 = vld [vmem:[%s922 + $0x34] sm:$0xf]
      %v937 = vld [vmem:[%s922 + $0x38] sm:$0xf]
      %v938 = vld [vmem:[%s922 + $0x3c] sm:$0xf]
      %v939 = vld [vmem:[%s922 + $0x40] sm:$0xf]
      %v940 = vld [vmem:[%s922 + $0x44] sm:$0xf]
      %v941 = vld [vmem:[%s922 + $0x48] sm:$0xf]
      %v942 = vld [vmem:[%s922 + $0x4c] sm:$0xf]
      %v943 = vld [vmem:[%s922 + $0x50] sm:$0xf]
      %v944 = vld [vmem:[%s922 + $0x54] sm:$0xf]
      %v945 = vld [vmem:[%s922 + $0x58] sm:$0xf]
      %v946 = vld [vmem:[%s922 + $0x5c] sm:$0xf]
      %v947 = vld [vmem:[%s922 + $0x60] sm:$0xf]
      %v948 = vld [vmem:[%s922 + $0x64] sm:$0xf]
      %v949 = vld [vmem:[%s922 + $0x68] sm:$0xf]
      %v950 = vld [vmem:[%s922 + $0x6c] sm:$0xf]
      %v951 = vld [vmem:[%s922 + $0x70] sm:$0xf]
      %v952 = vld [vmem:[%s922 + $0x74] sm:$0xf]
      %v953 = vld [vmem:[%s922 + $0x78] sm:$0xf]
      %v954 = vld [vmem:[%s922 + $0x7c] sm:$0xf]
      %v955 = vld [vmem:[%s922 + $0x80] sm:$0xf]
      %v956 = vld [vmem:[%s922 + $0x84] sm:$0xf]
      %v957 = vld [vmem:[%s922 + $0x88] sm:$0xf]
      %v958 = vld [vmem:[%s922 + $0x8c] sm:$0xf]
      %v959 = vld [vmem:[%s922 + $0x90] sm:$0xf]
      %v960 = vld [vmem:[%s922 + $0x94] sm:$0xf]
      %v961 = vld [vmem:[%s922 + $0x98] sm:$0xf]
      %v962 = vld [vmem:[%s922 + $0x9c] sm:$0xf]
      %v963 = vld [vmem:[%s922 + $0xa0] sm:$0xf]
      %v964 = vld [vmem:[%s922 + $0xa4] sm:$0xf]
      %v965 = vld [vmem:[%s922 + $0xa8] sm:$0xf]
      %v966 = vld [vmem:[%s922 + $0xac] sm:$0xf]
      %v967 = vld [vmem:[%s922 + $0xb0] sm:$0xf]
      %v968 = vld [vmem:[%s922 + $0xb4] sm:$0xf]
      %v969 = vld [vmem:[%s922 + $0xb8] sm:$0xf]
      %v970 = vld [vmem:[%s922 + $0xbc] sm:$0xf]
      %v1019 = vunpack.c.l.b16 %v923
      %v1020 = vunpack.c.l.b16 %v924
      %v1021 = vunpack.c.l.b16 %v925
      %v1022 = vunpack.c.l.b16 %v926
      %v1023 = vunpack.c.l.b16 %v927
      %v1024 = vunpack.c.l.b16 %v928
      %v1025 = vunpack.c.l.b16 %v929
      %v1026 = vunpack.c.l.b16 %v930
      %v1027 = vunpack.c.l.b16 %v931
      %v1028 = vunpack.c.l.b16 %v932
      %v1029 = vunpack.c.l.b16 %v933
      %v1030 = vunpack.c.l.b16 %v934
      %v1031 = vunpack.c.l.b16 %v935
      %v1032 = vunpack.c.l.b16 %v936
      %v1033 = vunpack.c.l.b16 %v937
      %v1034 = vunpack.c.l.b16 %v938
      %v1035 = vunpack.c.l.b16 %v939
      %v1036 = vunpack.c.l.b16 %v940
      %v1037 = vunpack.c.l.b16 %v941
      %v1038 = vunpack.c.l.b16 %v942
      %v1039 = vunpack.c.l.b16 %v943
      %v1040 = vunpack.c.l.b16 %v944
      %v1041 = vunpack.c.l.b16 %v945
      %v1042 = vunpack.c.l.b16 %v946
      %v1043 = vunpack.c.l.b16 %v947
      %v1044 = vunpack.c.l.b16 %v948
      %v1045 = vunpack.c.l.b16 %v949
      %v1046 = vunpack.c.l.b16 %v950
      %v1047 = vunpack.c.l.b16 %v951
      %v1048 = vunpack.c.l.b16 %v952
      %v1049 = vunpack.c.l.b16 %v953
      %v1050 = vunpack.c.l.b16 %v954
      %v1051 = vunpack.c.l.b16 %v955
      %v1052 = vunpack.c.l.b16 %v956
      %v1053 = vunpack.c.l.b16 %v957
      %v1054 = vunpack.c.l.b16 %v958
      %v1055 = vunpack.c.l.b16 %v959
      %v1056 = vunpack.c.l.b16 %v960
      %v1057 = vunpack.c.l.b16 %v961
      %v1058 = vunpack.c.l.b16 %v962
      %v1059 = vunpack.c.l.b16 %v963
      %v1060 = vunpack.c.l.b16 %v964
      %v1061 = vunpack.c.l.b16 %v965
      %v1062 = vunpack.c.l.b16 %v966
      %v1063 = vunpack.c.l.b16 %v967
      %v1064 = vunpack.c.l.b16 %v968
      %v1065 = vunpack.c.l.b16 %v969
      %v1066 = vunpack.c.l.b16 %v970
      %v1067 = vpack.c.b16 %v1020, %v1019
      %v1068 = vpack.c.b16 %v1022, %v1021
      %v1069 = vpack.c.b16 %v1024, %v1023
      %v1070 = vpack.c.b16 %v1026, %v1025
      %v1071 = vpack.c.b16 %v1028, %v1027
      %v1072 = vpack.c.b16 %v1030, %v1029
      %v1073 = vpack.c.b16 %v1032, %v1031
      %v1074 = vpack.c.b16 %v1034, %v1033
      %v1075 = vpack.c.b16 %v1036, %v1035
      %v1076 = vpack.c.b16 %v1038, %v1037
      %v1077 = vpack.c.b16 %v1040, %v1039
      %v1078 = vpack.c.b16 %v1042, %v1041
      %v1079 = vpack.c.b16 %v1044, %v1043
      %v1080 = vpack.c.b16 %v1046, %v1045
      %v1081 = vpack.c.b16 %v1048, %v1047
      %v1082 = vpack.c.b16 %v1050, %v1049
      %v1083 = vpack.c.b16 %v1052, %v1051
      %v1084 = vpack.c.b16 %v1054, %v1053
      %v1085 = vpack.c.b16 %v1056, %v1055
      %v1086 = vpack.c.b16 %v1058, %v1057
      %v1087 = vpack.c.b16 %v1060, %v1059
      %v1088 = vpack.c.b16 %v1062, %v1061
      %v1089 = vpack.c.b16 %v1064, %v1063
      %v1090 = vpack.c.b16 %v1066, %v1065
      %1115 = vmatprep.subr.bf16.mxu0 0
      %1116 = vmatpush1.bf16.msra.mxu0 %v1067
      %1117 = vmatprep.subr.bf16.mxu0 0
      %1118 = vmatpush1.bf16.msra.mxu0 %v1068
      %1119 = vmatprep.subr.bf16.mxu0 0
      %1120 = vmatpush1.bf16.msra.mxu0 %v1069
      %1121 = vmatprep.subr.bf16.mxu0 0
      %1122 = vmatpush1.bf16.msra.mxu0 %v1070
      %1123 = vmatprep.subr.bf16.mxu0 0
      %1124 = vmatpush1.bf16.msra.mxu0 %v1071
      %1125 = vmatprep.subr.bf16.mxu0 0
      %1126 = vmatpush1.bf16.msra.mxu0 %v1072
      %1127 = vmatprep.subr.bf16.mxu0 0
      %1128 = vmatpush1.bf16.msra.mxu0 %v1073
      %1129 = vmatprep.subr.bf16.mxu0 0
      %1130 = vmatpush1.bf16.msra.mxu0 %v1074
      %1131 = vmatprep.subr.bf16.mxu0 0
      %1132 = vmatpush1.bf16.msra.mxu0 %v1075
      %1133 = vmatprep.subr.bf16.mxu0 0
      %1134 = vmatpush1.bf16.msra.mxu0 %v1076
      %1135 = vmatprep.subr.bf16.mxu0 0
      %1136 = vmatpush1.bf16.msra.mxu0 %v1077
      %1137 = vmatprep.subr.bf16.mxu0 0
      %1138 = vmatpush1.bf16.msra.mxu0 %v1078
      %1139 = vmatprep.subr.bf16.mxu0 0
      %1140 = vmatpush1.bf16.msra.mxu0 %v1079
      %1141 = vmatprep.subr.bf16.mxu0 0
      %1142 = vmatpush1.bf16.msra.mxu0 %v1080
      %1143 = vmatprep.subr.bf16.mxu0 0
      %1144 = vmatpush1.bf16.msra.mxu0 %v1081
      %1145 = vmatprep.subr.bf16.mxu0 0
      %1146 = vmatpush1.bf16.msra.mxu0 %v1082
      %1147 = vmatprep.mubr.bf16.mxu0 %v534
      %1148 = vmatmul.mubr.bf16.gmra.mrb[0].mxu0 %v577
      %v1149 = vpop.f32.mrb[0].mxu0
      %v1150 = vadd.f32 0.0, %v1149
      %v1151 = vpop.f32.mrb[0].mxu0
      %v1152 = vpop.f32.mrb[0].mxu0
      %v1153 = vadd.f32 0.0, %v1152
      %v1154 = vpop.f32.mrb[0].mxu0
      %1155 = vmatprep.mubr.bf16.mxu0 %v535
      %1156 = vmatmul.mubr.bf16.gmra.mrb[0].mxu0 %v585
      %v1157 = vpop.f32.mrb[0].mxu0
      %v1158 = vadd.f32 0.0, %v1157
      %v1159 = vpop.f32.mrb[0].mxu0
      %v1160 = vpop.f32.mrb[0].mxu0
      %v1161 = vadd.f32 0.0, %v1160
      %v1162 = vpop.f32.mrb[0].mxu0
      %1163 = vmatprep.mubr.bf16.mxu0 %v536
      %1164 = vmatmul.mubr.bf16.gmra.mrb[0].mxu0 %v593
      %v1165 = vpop.f32.mrb[0].mxu0
      %v1166 = vadd.f32 0.0, %v1165
      %v1167 = vpop.f32.mrb[0].mxu0
      %v1168 = vpop.f32.mrb[0].mxu0
      %v1169 = vadd.f32 0.0, %v1168
      %v1170 = vpop.f32.mrb[0].mxu0
      %1171 = vmatprep.mubr.bf16.mxu0 %v537
      %1172 = vmatmul.mubr.bf16.gmra.mrb[0].mxu0 %v601
      %v1173 = vpop.f32.mrb[0].mxu0
      %v1174 = vadd.f32 0.0, %v1173
      %v1175 = vpop.f32.mrb[0].mxu0
      %v1176 = vpop.f32.mrb[0].mxu0
      %v1177 = vadd.f32 0.0, %v1176
      %v1178 = vpop.f32.mrb[0].mxu0
      %1179 = vmatprep.mubr.bf16.mxu0 %v538
      %1180 = vmatmul.mubr.bf16.gmra.mrb[0].mxu0 %v609
      %v1181 = vpop.f32.mrb[0].mxu0
      %v1182 = vadd.f32 0.0, %v1181
      %v1183 = vpop.f32.mrb[0].mxu0
      %v1184 = vpop.f32.mrb[0].mxu0
      %v1185 = vadd.f32 0.0, %v1184
      %v1186 = vpop.f32.mrb[0].mxu0
      %1187 = vmatprep.mubr.bf16.mxu0 %v539
      %1188 = vmatmul.mubr.bf16.gmra.mrb[0].mxu0 %v617
      %v1189 = vpop.f32.mrb[0].mxu0
      %v1190 = vadd.f32 0.0, %v1189
      %v1191 = vpop.f32.mrb[0].mxu0
      %v1192 = vpop.f32.mrb[0].mxu0
      %v1193 = vadd.f32 0.0, %v1192
      %v1194 = vpop.f32.mrb[0].mxu0
      %1195 = vmatprep.mubr.bf16.mxu0 %v540
      %1196 = vmatmul.mubr.bf16.gmra.mrb[0].mxu0 %v625
      %v1197 = vpop.f32.mrb[0].mxu0
      %v1198 = vadd.f32 0.0, %v1197
      %v1199 = vpop.f32.mrb[0].mxu0
      %v1200 = vpop.f32.mrb[0].mxu0
      %v1201 = vadd.f32 0.0, %v1200
      %v1202 = vpop.f32.mrb[0].mxu0
      %1203 = vmatprep.mubr.bf16.mxu0 %v541
      %1204 = vmatmul.mubr.bf16.gmra.mrb[0].mxu0 %v633
      %v1205 = vpop.f32.mrb[0].mxu0
      %v1206 = vadd.f32 0.0, %v1205
      %v1207 = vpop.f32.mrb[0].mxu0
      %v1208 = vpop.f32.mrb[0].mxu0
      %v1209 = vadd.f32 0.0, %v1208
      %v1210 = vpop.f32.mrb[0].mxu0
      %1211 = vmatprep.mubr.bf16.mxu0 %v542
      %1212 = vmatmul.mubr.bf16.gmra.mrb[0].mxu0 %v641
      %v1213 = vpop.f32.mrb[0].mxu0
      %v1214 = vadd.f32 0.0, %v1213
      %v1215 = vpop.f32.mrb[0].mxu0
      %v1216 = vpop.f32.mrb[0].mxu0
      %v1217 = vadd.f32 0.0, %v1216
      %v1218 = vpop.f32.mrb[0].mxu0
      %1219 = vmatprep.mubr.bf16.mxu0 %v543
      %1220 = vmatmul.mubr.bf16.gmra.mrb[0].mxu0 %v649
      %v1221 = vpop.f32.mrb[0].mxu0
      %v1222 = vadd.f32 0.0, %v1221
      %v1223 = vpop.f32.mrb[0].mxu0
      %v1224 = vpop.f32.mrb[0].mxu0
      %v1225 = vadd.f32 0.0, %v1224
      %v1226 = vpop.f32.mrb[0].mxu0
      %1227 = vmatprep.mubr.bf16.mxu0 %v544
      %1228 = vmatmul.mubr.bf16.gmra.mrb[0].mxu0 %v657
      %v1229 = vpop.f32.mrb[0].mxu0
      %v1230 = vadd.f32 0.0, %v1229
      %v1231 = vpop.f32.mrb[0].mxu0
      %v1232 = vpop.f32.mrb[0].mxu0
      %v1233 = vadd.f32 0.0, %v1232
      %v1234 = vpop.f32.mrb[0].mxu0
      %1235 = vmatprep.mubr.bf16.mxu0 %v545
      %1236 = vmatmul.mubr.bf16.gmra.mrb[0].mxu0 %v665
      %v1237 = vpop.f32.mrb[0].mxu0
      %v1238 = vadd.f32 0.0, %v1237
      %v1239 = vpop.f32.mrb[0].mxu0
      %v1240 = vpop.f32.mrb[0].mxu0
      %v1241 = vadd.f32 0.0, %v1240
      %v1242 = vpop.f32.mrb[0].mxu0
      %1243 = vmatprep.mubr.bf16.mxu0 %v546
      %1244 = vmatmul.mubr.bf16.gmra.mrb[0].mxu0 %v673
      %v1245 = vpop.f32.mrb[0].mxu0
      %v1246 = vadd.f32 0.0, %v1245
      %v1247 = vpop.f32.mrb[0].mxu0
      %v1248 = vpop.f32.mrb[0].mxu0
      %v1249 = vadd.f32 0.0, %v1248
      %v1250 = vpop.f32.mrb[0].mxu0
      %1251 = vmatprep.mubr.bf16.mxu0 %v547
      %1252 = vmatmul.mubr.bf16.gmra.mrb[0].mxu0 %v681
      %v1253 = vpop.f32.mrb[0].mxu0
      %v1254 = vadd.f32 0.0, %v1253
      %v1255 = vpop.f32.mrb[0].mxu0
      %v1256 = vpop.f32.mrb[0].mxu0
      %v1257 = vadd.f32 0.0, %v1256
      %v1258 = vpop.f32.mrb[0].mxu0
      %1259 = vmatprep.mubr.bf16.mxu0 %v548
      %1260 = vmatmul.mubr.bf16.gmra.mrb[0].mxu0 %v689
      %v1261 = vpop.f32.mrb[0].mxu0
      %v1262 = vadd.f32 0.0, %v1261
      %v1263 = vpop.f32.mrb[0].mxu0
      %v1264 = vpop.f32.mrb[0].mxu0
      %v1265 = vadd.f32 0.0, %v1264
      %v1266 = vpop.f32.mrb[0].mxu0
      %1267 = vmatprep.mubr.bf16.mxu0 %v549
      %1268 = vmatmul.mubr.bf16.gmra.mrb[0].mxu0 %v697
      %v1269 = vpop.f32.mrb[0].mxu0
      %v1270 = vadd.f32 0.0, %v1269
      %v1271 = vpop.f32.mrb[0].mxu0
      %v1272 = vpop.f32.mrb[0].mxu0
      %v1273 = vadd.f32 0.0, %v1272
      %v1274 = vpop.f32.mrb[0].mxu0
      %1275 = vmatprep.mubr.bf16.mxu0 %v550
      %1276 = vmatmul.mubr.bf16.gmra.mrb[0].mxu0 %v705
      %v1277 = vpop.f32.mrb[0].mxu0
      %v1278 = vadd.f32 0.0, %v1277
      %v1279 = vpop.f32.mrb[0].mxu0
      %v1280 = vpop.f32.mrb[0].mxu0
      %v1281 = vadd.f32 0.0, %v1280
      %v1282 = vpop.f32.mrb[0].mxu0
      %1283 = vmatprep.mubr.bf16.mxu0 %v551
      %1284 = vmatmul.mubr.bf16.gmra.mrb[0].mxu0 %v713
      %v1285 = vpop.f32.mrb[0].mxu0
      %v1286 = vadd.f32 0.0, %v1285
      %v1287 = vpop.f32.mrb[0].mxu0
      %v1288 = vpop.f32.mrb[0].mxu0
      %v1289 = vadd.f32 0.0, %v1288
      %v1290 = vpop.f32.mrb[0].mxu0
      %1291 = vdwg.mxu0
      %1292 = vmatprep.subr.bf16.mxu0 0
      %1293 = vmatpush1.bf16.msra.mxu0 %v1083
      %1294 = vmatprep.subr.bf16.mxu0 0
      %1295 = vmatpush1.bf16.msra.mxu0 %v1084
      %1296 = vmatprep.subr.bf16.mxu0 0
      %1297 = vmatpush1.bf16.msra.mxu0 %v1085
      %1298 = vmatprep.subr.bf16.mxu0 0
      %1299 = vmatpush1.bf16.msra.mxu0 %v1086
      %1300 = vmatprep.subr.bf16.mxu0 0
      %1301 = vmatpush1.bf16.msra.mxu0 %v1087
      %1302 = vmatprep.subr.bf16.mxu0 0
      %1303 = vmatpush1.bf16.msra.mxu0 %v1088
      %1304 = vmatprep.subr.bf16.mxu0 0
      %1305 = vmatpush1.bf16.msra.mxu0 %v1089
      %1306 = vmatprep.subr.bf16.mxu0 0
      %1307 = vmatpush1.bf16.msra.mxu0 %v1090
      %1308 = vmatprep.subr.bf16.mxu0 0
      %1309 = vmatpush1.bf16.msra.mxu0 0
      %1310 = vmatprep.subr.bf16.mxu0 0
      %1311 = vmatpush1.bf16.msra.mxu0 0
      %1312 = vmatprep.subr.bf16.mxu0 0
      %1313 = vmatpush1.bf16.msra.mxu0 0
      %1314 = vmatprep.subr.bf16.mxu0 0
      %1315 = vmatpush1.bf16.msra.mxu0 0
      %1316 = vmatprep.subr.bf16.mxu0 0
      %1317 = vmatpush1.bf16.msra.mxu0 0
      %1318 = vmatprep.subr.bf16.mxu0 0
      %1319 = vmatpush1.bf16.msra.mxu0 0
      %1320 = vmatprep.subr.bf16.mxu0 0
      %1321 = vmatpush1.bf16.msra.mxu0 0
      %1322 = vmatprep.subr.bf16.mxu0 0
      %1323 = vmatpush1.bf16.msra.mxu0 0
      %1324 = vmatprep.mubr.bf16.mxu0 0
      %1325 = vmatmul.mubr.bf16.gmra.mrb[0].mxu0 %v765
      %v1326 = vpop.f32.mrb[0].mxu0
      %v1327 = vadd.f32 %v1150, %v1326
      %v1328 = vpop.f32.mrb[0].mxu0
      %v1329 = vpop.f32.mrb[0].mxu0
      %v1330 = vadd.f32 %v1153, %v1329
      %v1331 = vpop.f32.mrb[0].mxu0
      %1332 = vmatprep.mubr.bf16.mxu0 0
      %1333 = vmatmul.mubr.bf16.gmra.mrb[0].mxu0 %v768
      %v1334 = vpop.f32.mrb[0].mxu0
      %v1335 = vadd.f32 %v1158, %v1334
      %v1336 = vpop.f32.mrb[0].mxu0
      %v1337 = vpop.f32.mrb[0].mxu0
      %v1338 = vadd.f32 %v1161, %v1337
      %v1339 = vpop.f32.mrb[0].mxu0
      %1340 = vmatprep.mubr.bf16.mxu0 0
      %1341 = vmatmul.mubr.bf16.gmra.mrb[0].mxu0 %v771
      %v1342 = vpop.f32.mrb[0].mxu0
      %v1343 = vadd.f32 %v1166, %v1342
      %v1344 = vpop.f32.mrb[0].mxu0
      %v1345 = vpop.f32.mrb[0].mxu0
      %v1346 = vadd.f32 %v1169, %v1345
      %v1347 = vpop.f32.mrb[0].mxu0
      %1348 = vmatprep.mubr.bf16.mxu0 0
      %1349 = vmatmul.mubr.bf16.gmra.mrb[0].mxu0 %v774
      %v1350 = vpop.f32.mrb[0].mxu0
      %v1351 = vadd.f32 %v1174, %v1350
      %v1352 = vpop.f32.mrb[0].mxu0
      %v1353 = vpop.f32.mrb[0].mxu0
      %v1354 = vadd.f32 %v1177, %v1353
      %v1355 = vpop.f32.mrb[0].mxu0
      %1356 = vmatprep.mubr.bf16.mxu0 0
      %1357 = vmatmul.mubr.bf16.gmra.mrb[0].mxu0 %v777
      %v1358 = vpop.f32.mrb[0].mxu0
      %v1359 = vadd.f32 %v1182, %v1358
      %v1360 = vpop.f32.mrb[0].mxu0
      %v1361 = vpop.f32.mrb[0].mxu0
      %v1362 = vadd.f32 %v1185, %v1361
      %v1363 = vpop.f32.mrb[0].mxu0
      %1364 = vmatprep.mubr.bf16.mxu0 0
      %1365 = vmatmul.mubr.bf16.gmra.mrb[0].mxu0 %v780
      %v1366 = vpop.f32.mrb[0].mxu0
      %v1367 = vadd.f32 %v1190, %v1366
      %v1368 = vpop.f32.mrb[0].mxu0
      %v1369 = vpop.f32.mrb[0].mxu0
      %v1370 = vadd.f32 %v1193, %v1369
      %v1371 = vpop.f32.mrb[0].mxu0
      %1372 = vmatprep.mubr.bf16.mxu0 0
      %1373 = vmatmul.mubr.bf16.gmra.mrb[0].mxu0 %v783
      %v1374 = vpop.f32.mrb[0].mxu0
      %v1375 = vadd.f32 %v1198, %v1374
      %v1376 = vpop.f32.mrb[0].mxu0
      %v1377 = vpop.f32.mrb[0].mxu0
      %v1378 = vadd.f32 %v1201, %v1377
      %v1379 = vpop.f32.mrb[0].mxu0
      %1380 = vmatprep.mubr.bf16.mxu0 0
      %1381 = vmatmul.mubr.bf16.gmra.mrb[0].mxu0 %v786
      %v1382 = vpop.f32.mrb[0].mxu0
      %v1383 = vadd.f32 %v1206, %v1382
      %v1384 = vpop.f32.mrb[0].mxu0
      %v1385 = vpop.f32.mrb[0].mxu0
      %v1386 = vadd.f32 %v1209, %v1385
      %v1387 = vpop.f32.mrb[0].mxu0
      %1388 = vmatprep.mubr.bf16.mxu0 0
      %1389 = vmatmul.mubr.bf16.gmra.mrb[0].mxu0 %v789
      %v1390 = vpop.f32.mrb[0].mxu0
      %v1391 = vadd.f32 %v1214, %v1390
      %v1392 = vpop.f32.mrb[0].mxu0
      %v1393 = vpop.f32.mrb[0].mxu0
      %v1394 = vadd.f32 %v1217, %v1393
      %v1395 = vpop.f32.mrb[0].mxu0
      %1396 = vmatprep.mubr.bf16.mxu0 0
      %1397 = vmatmul.mubr.bf16.gmra.mrb[0].mxu0 %v792
      %v1398 = vpop.f32.mrb[0].mxu0
      %v1399 = vadd.f32 %v1222, %v1398
      %v1400 = vpop.f32.mrb[0].mxu0
      %v1401 = vpop.f32.mrb[0].mxu0
      %v1402 = vadd.f32 %v1225, %v1401
      %v1403 = vpop.f32.mrb[0].mxu0
      %1404 = vmatprep.mubr.bf16.mxu0 0
      %1405 = vmatmul.mubr.bf16.gmra.mrb[0].mxu0 %v795
      %v1406 = vpop.f32.mrb[0].mxu0
      %v1407 = vadd.f32 %v1230, %v1406
      %v1408 = vpop.f32.mrb[0].mxu0
      %v1409 = vpop.f32.mrb[0].mxu0
      %v1410 = vadd.f32 %v1233, %v1409
      %v1411 = vpop.f32.mrb[0].mxu0
      %1412 = vmatprep.mubr.bf16.mxu0 0
      %1413 = vmatmul.mubr.bf16.gmra.mrb[0].mxu0 %v798
      %v1414 = vpop.f32.mrb[0].mxu0
      %v1415 = vadd.f32 %v1238, %v1414
      %v1416 = vpop.f32.mrb[0].mxu0
      %v1417 = vpop.f32.mrb[0].mxu0
      %v1418 = vadd.f32 %v1241, %v1417
      %v1419 = vpop.f32.mrb[0].mxu0
      %1420 = vmatprep.mubr.bf16.mxu0 0
      %1421 = vmatmul.mubr.bf16.gmra.mrb[0].mxu0 %v801
      %v1422 = vpop.f32.mrb[0].mxu0
      %v1423 = vadd.f32 %v1246, %v1422
      %v1424 = vpop.f32.mrb[0].mxu0
      %v1425 = vpop.f32.mrb[0].mxu0
      %v1426 = vadd.f32 %v1249, %v1425
      %v1427 = vpop.f32.mrb[0].mxu0
      %1428 = vmatprep.mubr.bf16.mxu0 0
      %1429 = vmatmul.mubr.bf16.gmra.mrb[0].mxu0 %v804
      %v1430 = vpop.f32.mrb[0].mxu0
      %v1431 = vadd.f32 %v1254, %v1430
      %v1432 = vpop.f32.mrb[0].mxu0
      %v1433 = vpop.f32.mrb[0].mxu0
      %v1434 = vadd.f32 %v1257, %v1433
      %v1435 = vpop.f32.mrb[0].mxu0
      %1436 = vmatprep.mubr.bf16.mxu0 0
      %1437 = vmatmul.mubr.bf16.gmra.mrb[0].mxu0 %v807
      %v1438 = vpop.f32.mrb[0].mxu0
      %v1439 = vadd.f32 %v1262, %v1438
      %v1440 = vpop.f32.mrb[0].mxu0
      %v1441 = vpop.f32.mrb[0].mxu0
      %v1442 = vadd.f32 %v1265, %v1441
      %v1443 = vpop.f32.mrb[0].mxu0
      %1444 = vmatprep.mubr.bf16.mxu0 0
      %1445 = vmatmul.mubr.bf16.gmra.mrb[0].mxu0 %v810
      %v1446 = vpop.f32.mrb[0].mxu0
      %v1447 = vadd.f32 %v1270, %v1446
      %v1448 = vpop.f32.mrb[0].mxu0
      %v1449 = vpop.f32.mrb[0].mxu0
      %v1450 = vadd.f32 %v1273, %v1449
      %v1451 = vpop.f32.mrb[0].mxu0
      %1452 = vmatprep.mubr.bf16.mxu0 0
      %1453 = vmatmul.mubr.bf16.gmra.mrb[0].mxu0 %v813
      %v1454 = vpop.f32.mrb[0].mxu0
      %v1455 = vadd.f32 %v1278, %v1454
      %v1456 = vpop.f32.mrb[0].mxu0
      %v1457 = vpop.f32.mrb[0].mxu0
      %v1458 = vadd.f32 %v1281, %v1457
      %v1459 = vpop.f32.mrb[0].mxu0
      %1460 = vmatprep.mubr.bf16.mxu0 0
      %1461 = vmatmul.mubr.bf16.gmra.mrb[0].mxu0 %v816
      %v1462 = vpop.f32.mrb[0].mxu0
      %v1463 = vadd.f32 %v1286, %v1462
      %v1464 = vpop.f32.mrb[0].mxu0
      %v1465 = vpop.f32.mrb[0].mxu0
      %v1466 = vadd.f32 %v1289, %v1465
      %v1467 = vpop.f32.mrb[0].mxu0
      %1468 = vdwg.mxu0
      %v1517 = vunpack.c.l.b16 %v874
      %v1518 = vunpack.c.l.b16 %v875
      %v1519 = vunpack.c.l.b16 %v876
      %v1520 = vunpack.c.l.b16 %v877
      %v1521 = vunpack.c.l.b16 %v878
      %v1522 = vunpack.c.l.b16 %v879
      %v1523 = vunpack.c.l.b16 %v880
      %v1524 = vunpack.c.l.b16 %v881
      %v1525 = vunpack.c.l.b16 %v882
      %v1526 = vunpack.c.l.b16 %v883
      %v1527 = vunpack.c.l.b16 %v884
      %v1528 = vunpack.c.l.b16 %v885
      %v1529 = vunpack.c.l.b16 %v886
      %v1530 = vunpack.c.l.b16 %v887
      %v1531 = vunpack.c.l.b16 %v888
      %v1532 = vunpack.c.l.b16 %v889
      %v1533 = vunpack.c.l.b16 %v890
      %v1534 = vunpack.c.l.b16 %v891
      %v1535 = vunpack.c.l.b16 %v892
      %v1536 = vunpack.c.l.b16 %v893
      %v1537 = vunpack.c.l.b16 %v894
      %v1538 = vunpack.c.l.b16 %v895
      %v1539 = vunpack.c.l.b16 %v896
      %v1540 = vunpack.c.l.b16 %v897
      %v1541 = vunpack.c.l.b16 %v898
      %v1542 = vunpack.c.l.b16 %v899
      %v1543 = vunpack.c.l.b16 %v900
      %v1544 = vunpack.c.l.b16 %v901
      %v1545 = vunpack.c.l.b16 %v902
      %v1546 = vunpack.c.l.b16 %v903
      %v1547 = vunpack.c.l.b16 %v904
      %v1548 = vunpack.c.l.b16 %v905
      %v1549 = vunpack.c.l.b16 %v906
      %v1550 = vunpack.c.l.b16 %v907
      %v1551 = vunpack.c.l.b16 %v908
      %v1552 = vunpack.c.l.b16 %v909
      %v1553 = vunpack.c.l.b16 %v910
      %v1554 = vunpack.c.l.b16 %v911
      %v1555 = vunpack.c.l.b16 %v912
      %v1556 = vunpack.c.l.b16 %v913
      %v1557 = vunpack.c.l.b16 %v914
      %v1558 = vunpack.c.l.b16 %v915
      %v1559 = vunpack.c.l.b16 %v916
      %v1560 = vunpack.c.l.b16 %v917
      %v1561 = vunpack.c.l.b16 %v918
      %v1562 = vunpack.c.l.b16 %v919
      %v1563 = vunpack.c.l.b16 %v920
      %v1564 = vunpack.c.l.b16 %v921
      %v1565 = vpack.c.b16 %v1518, %v1517
      %v1566 = vpack.c.b16 %v1520, %v1519
      %v1567 = vpack.c.b16 %v1522, %v1521
      %v1568 = vpack.c.b16 %v1524, %v1523
      %v1569 = vpack.c.b16 %v1526, %v1525
      %v1570 = vpack.c.b16 %v1528, %v1527
      %v1571 = vpack.c.b16 %v1530, %v1529
      %v1572 = vpack.c.b16 %v1532, %v1531
      %v1573 = vpack.c.b16 %v1534, %v1533
      %v1574 = vpack.c.b16 %v1536, %v1535
      %v1575 = vpack.c.b16 %v1538, %v1537
      %v1576 = vpack.c.b16 %v1540, %v1539
      %v1577 = vpack.c.b16 %v1542, %v1541
      %v1578 = vpack.c.b16 %v1544, %v1543
      %v1579 = vpack.c.b16 %v1546, %v1545
      %v1580 = vpack.c.b16 %v1548, %v1547
      %v1581 = vpack.c.b16 %v1550, %v1549
      %v1582 = vpack.c.b16 %v1552, %v1551
      %v1583 = vpack.c.b16 %v1554, %v1553
      %v1584 = vpack.c.b16 %v1556, %v1555
      %v1585 = vpack.c.b16 %v1558, %v1557
      %v1586 = vpack.c.b16 %v1560, %v1559
      %v1587 = vpack.c.b16 %v1562, %v1561
      %v1588 = vpack.c.b16 %v1564, %v1563
      %1613 = vmatprep.subr.bf16.mxu0 0
      %1614 = vmatpush1.bf16.msra.mxu0 %v1565
      %1615 = vmatprep.subr.bf16.mxu0 0
      %1616 = vmatpush1.bf16.msra.mxu0 %v1566
      %1617 = vmatprep.subr.bf16.mxu0 0
      %1618 = vmatpush1.bf16.msra.mxu0 %v1567
      %1619 = vmatprep.subr.bf16.mxu0 0
      %1620 = vmatpush1.bf16.msra.mxu0 %v1568
      %1621 = vmatprep.subr.bf16.mxu0 0
      %1622 = vmatpush1.bf16.msra.mxu0 %v1569
      %1623 = vmatprep.subr.bf16.mxu0 0
      %1624 = vmatpush1.bf16.msra.mxu0 %v1570
      %1625 = vmatprep.subr.bf16.mxu0 0
      %1626 = vmatpush1.bf16.msra.mxu0 %v1571
      %1627 = vmatprep.subr.bf16.mxu0 0
      %1628 = vmatpush1.bf16.msra.mxu0 %v1572
      %1629 = vmatprep.subr.bf16.mxu0 0
      %1630 = vmatpush1.bf16.msra.mxu0 %v1573
      %1631 = vmatprep.subr.bf16.mxu0 0
      %1632 = vmatpush1.bf16.msra.mxu0 %v1574
      %1633 = vmatprep.subr.bf16.mxu0 0
      %1634 = vmatpush1.bf16.msra.mxu0 %v1575
      %1635 = vmatprep.subr.bf16.mxu0 0
      %1636 = vmatpush1.bf16.msra.mxu0 %v1576
      %1637 = vmatprep.subr.bf16.mxu0 0
      %1638 = vmatpush1.bf16.msra.mxu0 %v1577
      %1639 = vmatprep.subr.bf16.mxu0 0
      %1640 = vmatpush1.bf16.msra.mxu0 %v1578
      %1641 = vmatprep.subr.bf16.mxu0 0
      %1642 = vmatpush1.bf16.msra.mxu0 %v1579
      %1643 = vmatprep.subr.bf16.mxu0 0
      %1644 = vmatpush1.bf16.msra.mxu0 %v1580
      %1645 = vmatprep.mubr.bf16.mxu0 %v532
      %1646 = vmatmul.mubr.bf16.gmra.mrb[0].mxu0 %v754
      %v1647 = vpop.f32.mrb[0].mxu0
      %v1648 = vadd.f32 %v1327, %v1647
      %v1649 = vpop.f32.mrb[0].mxu0
      %v1650 = vpop.f32.mrb[0].mxu0
      %v1651 = vadd.f32 %v1330, %v1650
      %v1652 = vpop.f32.mrb[0].mxu0
      %1653 = vmatprep.mubr.bf16.mxu0 %v533
      %1654 = vmatmul.mubr.bf16.gmra.mrb[0].mxu0 %v569
      %v1655 = vpop.f32.mrb[0].mxu0
      %v1656 = vadd.f32 %v1335, %v1655
      %v1657 = vpop.f32.mrb[0].mxu0
      %v1658 = vpop.f32.mrb[0].mxu0
      %v1659 = vadd.f32 %v1338, %v1658
      %v1660 = vpop.f32.mrb[0].mxu0
      %1661 = vmatprep.mubr.bf16.mxu0 %v534
      %1662 = vmatmul.mubr.bf16.gmra.mrb[0].mxu0 %v577
      %v1663 = vpop.f32.mrb[0].mxu0
      %v1664 = vadd.f32 %v1343, %v1663
      %v1665 = vpop.f32.mrb[0].mxu0
      %v1666 = vpop.f32.mrb[0].mxu0
      %v1667 = vadd.f32 %v1346, %v1666
      %v1668 = vpop.f32.mrb[0].mxu0
      %1669 = vmatprep.mubr.bf16.mxu0 %v535
      %1670 = vmatmul.mubr.bf16.gmra.mrb[0].mxu0 %v585
      %v1671 = vpop.f32.mrb[0].mxu0
      %v1672 = vadd.f32 %v1351, %v1671
      %v1673 = vpop.f32.mrb[0].mxu0
      %v1674 = vpop.f32.mrb[0].mxu0
      %v1675 = vadd.f32 %v1354, %v1674
      %v1676 = vpop.f32.mrb[0].mxu0
      %1677 = vmatprep.mubr.bf16.mxu0 %v536
      %1678 = vmatmul.mubr.bf16.gmra.mrb[0].mxu0 %v593
      %v1679 = vpop.f32.mrb[0].mxu0
      %v1680 = vadd.f32 %v1359, %v1679
      %v1681 = vpop.f32.mrb[0].mxu0
      %v1682 = vpop.f32.mrb[0].mxu0
      %v1683 = vadd.f32 %v1362, %v1682
      %v1684 = vpop.f32.mrb[0].mxu0
      %1685 = vmatprep.mubr.bf16.mxu0 %v537
      %1686 = vmatmul.mubr.bf16.gmra.mrb[0].mxu0 %v601
      %v1687 = vpop.f32.mrb[0].mxu0
      %v1688 = vadd.f32 %v1367, %v1687
      %v1689 = vpop.f32.mrb[0].mxu0
      %v1690 = vpop.f32.mrb[0].mxu0
      %v1691 = vadd.f32 %v1370, %v1690
      %v1692 = vpop.f32.mrb[0].mxu0
      %1693 = vmatprep.mubr.bf16.mxu0 %v538
      %1694 = vmatmul.mubr.bf16.gmra.mrb[0].mxu0 %v609
      %v1695 = vpop.f32.mrb[0].mxu0
      %v1696 = vadd.f32 %v1375, %v1695
      %v1697 = vpop.f32.mrb[0].mxu0
      %v1698 = vpop.f32.mrb[0].mxu0
      %v1699 = vadd.f32 %v1378, %v1698
      %v1700 = vpop.f32.mrb[0].mxu0
      %1701 = vmatprep.mubr.bf16.mxu0 %v539
      %1702 = vmatmul.mubr.bf16.gmra.mrb[0].mxu0 %v617
      %v1703 = vpop.f32.mrb[0].mxu0
      %v1704 = vadd.f32 %v1383, %v1703
      %v1705 = vpop.f32.mrb[0].mxu0
      %v1706 = vpop.f32.mrb[0].mxu0
      %v1707 = vadd.f32 %v1386, %v1706
      %v1708 = vpop.f32.mrb[0].mxu0
      %1709 = vmatprep.mubr.bf16.mxu0 %v540
      %1710 = vmatmul.mubr.bf16.gmra.mrb[0].mxu0 %v625
      %v1711 = vpop.f32.mrb[0].mxu0
      %v1712 = vadd.f32 %v1391, %v1711
      %v1713 = vpop.f32.mrb[0].mxu0
      %v1714 = vpop.f32.mrb[0].mxu0
      %v1715 = vadd.f32 %v1394, %v1714
      %v1716 = vpop.f32.mrb[0].mxu0
      %1717 = vmatprep.mubr.bf16.mxu0 %v541
      %1718 = vmatmul.mubr.bf16.gmra.mrb[0].mxu0 %v633
      %v1719 = vpop.f32.mrb[0].mxu0
      %v1720 = vadd.f32 %v1399, %v1719
      %v1721 = vpop.f32.mrb[0].mxu0
      %v1722 = vpop.f32.mrb[0].mxu0
      %v1723 = vadd.f32 %v1402, %v1722
      %v1724 = vpop.f32.mrb[0].mxu0
      %1725 = vmatprep.mubr.bf16.mxu0 %v542
      %1726 = vmatmul.mubr.bf16.gmra.mrb[0].mxu0 %v641
      %v1727 = vpop.f32.mrb[0].mxu0
      %v1728 = vadd.f32 %v1407, %v1727
      %v1729 = vpop.f32.mrb[0].mxu0
      %v1730 = vpop.f32.mrb[0].mxu0
      %v1731 = vadd.f32 %v1410, %v1730
      %v1732 = vpop.f32.mrb[0].mxu0
      %1733 = vmatprep.mubr.bf16.mxu0 %v543
      %1734 = vmatmul.mubr.bf16.gmra.mrb[0].mxu0 %v649
      %v1735 = vpop.f32.mrb[0].mxu0
      %v1736 = vadd.f32 %v1415, %v1735
      %v1737 = vpop.f32.mrb[0].mxu0
      %v1738 = vpop.f32.mrb[0].mxu0
      %v1739 = vadd.f32 %v1418, %v1738
      %v1740 = vpop.f32.mrb[0].mxu0
      %1741 = vmatprep.mubr.bf16.mxu0 %v544
      %1742 = vmatmul.mubr.bf16.gmra.mrb[0].mxu0 %v657
      %v1743 = vpop.f32.mrb[0].mxu0
      %v1744 = vadd.f32 %v1423, %v1743
      %v1745 = vpop.f32.mrb[0].mxu0
      %v1746 = vpop.f32.mrb[0].mxu0
      %v1747 = vadd.f32 %v1426, %v1746
      %v1748 = vpop.f32.mrb[0].mxu0
      %1749 = vmatprep.mubr.bf16.mxu0 %v545
      %1750 = vmatmul.mubr.bf16.gmra.mrb[0].mxu0 %v665
      %v1751 = vpop.f32.mrb[0].mxu0
      %v1752 = vadd.f32 %v1431, %v1751
      %v1753 = vpop.f32.mrb[0].mxu0
      %v1754 = vpop.f32.mrb[0].mxu0
      %v1755 = vadd.f32 %v1434, %v1754
      %v1756 = vpop.f32.mrb[0].mxu0
      %1757 = vmatprep.mubr.bf16.mxu0 %v546
      %1758 = vmatmul.mubr.bf16.gmra.mrb[0].mxu0 %v673
      %v1759 = vpop.f32.mrb[0].mxu0
      %v1760 = vadd.f32 %v1439, %v1759
      %v1761 = vpop.f32.mrb[0].mxu0
      %v1762 = vpop.f32.mrb[0].mxu0
      %v1763 = vadd.f32 %v1442, %v1762
      %v1764 = vpop.f32.mrb[0].mxu0
      %1765 = vmatprep.mubr.bf16.mxu0 %v547
      %1766 = vmatmul.mubr.bf16.gmra.mrb[0].mxu0 %v681
      %v1767 = vpop.f32.mrb[0].mxu0
      %v1768 = vadd.f32 %v1447, %v1767
      %v1769 = vpop.f32.mrb[0].mxu0
      %v1770 = vpop.f32.mrb[0].mxu0
      %v1771 = vadd.f32 %v1450, %v1770
      %v1772 = vpop.f32.mrb[0].mxu0
      %1773 = vmatprep.mubr.bf16.mxu0 %v548
      %1774 = vmatmul.mubr.bf16.gmra.mrb[0].mxu0 %v689
      %v1775 = vpop.f32.mrb[0].mxu0
      %v1776 = vadd.f32 %v1455, %v1775
      %v1777 = vpop.f32.mrb[0].mxu0
      %v1778 = vpop.f32.mrb[0].mxu0
      %v1779 = vadd.f32 %v1458, %v1778
      %v1780 = vpop.f32.mrb[0].mxu0
      %1781 = vmatprep.mubr.bf16.mxu0 %v549
      %1782 = vmatmul.mubr.bf16.gmra.mrb[0].mxu0 %v697
      %v1783 = vpop.f32.mrb[0].mxu0
      %v1784 = vadd.f32 %v1463, %v1783
      %v1785 = vpop.f32.mrb[0].mxu0
      %v1786 = vpop.f32.mrb[0].mxu0
      %v1787 = vadd.f32 %v1466, %v1786
      %v1788 = vpop.f32.mrb[0].mxu0
      %1789 = vdwg.mxu0
      %1790 = vmatprep.subr.bf16.mxu0 0
      %1791 = vmatpush1.bf16.msra.mxu0 %v1581
      %1792 = vmatprep.subr.bf16.mxu0 0
      %1793 = vmatpush1.bf16.msra.mxu0 %v1582
      %1794 = vmatprep.subr.bf16.mxu0 0
      %1795 = vmatpush1.bf16.msra.mxu0 %v1583
      %1796 = vmatprep.subr.bf16.mxu0 0
      %1797 = vmatpush1.bf16.msra.mxu0 %v1584
      %1798 = vmatprep.subr.bf16.mxu0 0
      %1799 = vmatpush1.bf16.msra.mxu0 %v1585
      %1800 = vmatprep.subr.bf16.mxu0 0
      %1801 = vmatpush1.bf16.msra.mxu0 %v1586
      %1802 = vmatprep.subr.bf16.mxu0 0
      %1803 = vmatpush1.bf16.msra.mxu0 %v1587
      %1804 = vmatprep.subr.bf16.mxu0 0
      %1805 = vmatpush1.bf16.msra.mxu0 %v1588
      %1806 = vmatprep.subr.bf16.mxu0 0
      %1807 = vmatpush1.bf16.msra.mxu0 0
      %1808 = vmatprep.subr.bf16.mxu0 0
      %1809 = vmatpush1.bf16.msra.mxu0 0
      %1810 = vmatprep.subr.bf16.mxu0 0
      %1811 = vmatpush1.bf16.msra.mxu0 0
      %1812 = vmatprep.subr.bf16.mxu0 0
      %1813 = vmatpush1.bf16.msra.mxu0 0
      %1814 = vmatprep.subr.bf16.mxu0 0
      %1815 = vmatpush1.bf16.msra.mxu0 0
      %1816 = vmatprep.subr.bf16.mxu0 0
      %1817 = vmatpush1.bf16.msra.mxu0 0
      %1818 = vmatprep.subr.bf16.mxu0 0
      %1819 = vmatpush1.bf16.msra.mxu0 0
      %1820 = vmatprep.subr.bf16.mxu0 0
      %1821 = vmatpush1.bf16.msra.mxu0 0
      %1822 = vmatprep.mubr.bf16.mxu0 0
      %1823 = vmatmul.mubr.bf16.gmra.mrb[0].mxu0 %v759
      %v1824 = vpop.f32.mrb[0].mxu0
      %v1825 = vadd.f32 %v1648, %v1824
      %v1826 = vpop.f32.mrb[0].mxu0
      %v1827 = vpop.f32.mrb[0].mxu0
      %v1828 = vadd.f32 %v1651, %v1827
      %v1829 = vpop.f32.mrb[0].mxu0
      %1830 = vmatprep.mubr.bf16.mxu0 0
      %1831 = vmatmul.mubr.bf16.gmra.mrb[0].mxu0 %v762
      %v1832 = vpop.f32.mrb[0].mxu0
      %v1833 = vadd.f32 %v1656, %v1832
      %v1834 = vpop.f32.mrb[0].mxu0
      %v1835 = vpop.f32.mrb[0].mxu0
      %v1836 = vadd.f32 %v1659, %v1835
      %v1837 = vpop.f32.mrb[0].mxu0
      %1838 = vmatprep.mubr.bf16.mxu0 0
      %1839 = vmatmul.mubr.bf16.gmra.mrb[0].mxu0 %v765
      %v1840 = vpop.f32.mrb[0].mxu0
      %v1841 = vadd.f32 %v1664, %v1840
      %v1842 = vpop.f32.mrb[0].mxu0
      %v1843 = vpop.f32.mrb[0].mxu0
      %v1844 = vadd.f32 %v1667, %v1843
      %v1845 = vpop.f32.mrb[0].mxu0
      %1846 = vmatprep.mubr.bf16.mxu0 0
      %1847 = vmatmul.mubr.bf16.gmra.mrb[0].mxu0 %v768
      %v1848 = vpop.f32.mrb[0].mxu0
      %v1849 = vadd.f32 %v1672, %v1848
      %v1850 = vpop.f32.mrb[0].mxu0
      %v1851 = vpop.f32.mrb[0].mxu0
      %v1852 = vadd.f32 %v1675, %v1851
      %v1853 = vpop.f32.mrb[0].mxu0
      %1854 = vmatprep.mubr.bf16.mxu0 0
      %1855 = vmatmul.mubr.bf16.gmra.mrb[0].mxu0 %v771
      %v1856 = vpop.f32.mrb[0].mxu0
      %v1857 = vadd.f32 %v1680, %v1856
      %v1858 = vpop.f32.mrb[0].mxu0
      %v1859 = vpop.f32.mrb[0].mxu0
      %v1860 = vadd.f32 %v1683, %v1859
      %v1861 = vpop.f32.mrb[0].mxu0
      %1862 = vmatprep.mubr.bf16.mxu0 0
      %1863 = vmatmul.mubr.bf16.gmra.mrb[0].mxu0 %v774
      %v1864 = vpop.f32.mrb[0].mxu0
      %v1865 = vadd.f32 %v1688, %v1864
      %v1866 = vpop.f32.mrb[0].mxu0
      %v1867 = vpop.f32.mrb[0].mxu0
      %v1868 = vadd.f32 %v1691, %v1867
      %v1869 = vpop.f32.mrb[0].mxu0
      %1870 = vmatprep.mubr.bf16.mxu0 0
      %1871 = vmatmul.mubr.bf16.gmra.mrb[0].mxu0 %v777
      %v1872 = vpop.f32.mrb[0].mxu0
      %v1873 = vadd.f32 %v1696, %v1872
      %v1874 = vpop.f32.mrb[0].mxu0
      %v1875 = vpop.f32.mrb[0].mxu0
      %v1876 = vadd.f32 %v1699, %v1875
      %v1877 = vpop.f32.mrb[0].mxu0
      %1878 = vmatprep.mubr.bf16.mxu0 0
      %1879 = vmatmul.mubr.bf16.gmra.mrb[0].mxu0 %v780
      %v1880 = vpop.f32.mrb[0].mxu0
      %v1881 = vadd.f32 %v1704, %v1880
      %v1882 = vpop.f32.mrb[0].mxu0
      %v1883 = vpop.f32.mrb[0].mxu0
      %v1884 = vadd.f32 %v1707, %v1883
      %v1885 = vpop.f32.mrb[0].mxu0
      %1886 = vmatprep.mubr.bf16.mxu0 0
      %1887 = vmatmul.mubr.bf16.gmra.mrb[0].mxu0 %v783
      %v1888 = vpop.f32.mrb[0].mxu0
      %v1889 = vadd.f32 %v1712, %v1888
      %v1890 = vpop.f32.mrb[0].mxu0
      %v1891 = vpop.f32.mrb[0].mxu0
      %v1892 = vadd.f32 %v1715, %v1891
      %v1893 = vpop.f32.mrb[0].mxu0
      %1894 = vmatprep.mubr.bf16.mxu0 0
      %1895 = vmatmul.mubr.bf16.gmra.mrb[0].mxu0 %v786
      %v1896 = vpop.f32.mrb[0].mxu0
      %v1897 = vadd.f32 %v1720, %v1896
      %v1898 = vpop.f32.mrb[0].mxu0
      %v1899 = vpop.f32.mrb[0].mxu0
      %v1900 = vadd.f32 %v1723, %v1899
      %v1901 = vpop.f32.mrb[0].mxu0
      %1902 = vmatprep.mubr.bf16.mxu0 0
      %1903 = vmatmul.mubr.bf16.gmra.mrb[0].mxu0 %v789
      %v1904 = vpop.f32.mrb[0].mxu0
      %v1905 = vadd.f32 %v1728, %v1904
      %v1906 = vpop.f32.mrb[0].mxu0
      %v1907 = vpop.f32.mrb[0].mxu0
      %v1908 = vadd.f32 %v1731, %v1907
      %v1909 = vpop.f32.mrb[0].mxu0
      %1910 = vmatprep.mubr.bf16.mxu0 0
      %1911 = vmatmul.mubr.bf16.gmra.mrb[0].mxu0 %v792
      %v1912 = vpop.f32.mrb[0].mxu0
      %v1913 = vadd.f32 %v1736, %v1912
      %v1914 = vpop.f32.mrb[0].mxu0
      %v1915 = vpop.f32.mrb[0].mxu0
      %v1916 = vadd.f32 %v1739, %v1915
      %v1917 = vpop.f32.mrb[0].mxu0
      %1918 = vmatprep.mubr.bf16.mxu0 0
      %1919 = vmatmul.mubr.bf16.gmra.mrb[0].mxu0 %v795
      %v1920 = vpop.f32.mrb[0].mxu0
      %v1921 = vadd.f32 %v1744, %v1920
      %v1922 = vpop.f32.mrb[0].mxu0
      %v1923 = vpop.f32.mrb[0].mxu0
      %v1924 = vadd.f32 %v1747, %v1923
      %v1925 = vpop.f32.mrb[0].mxu0
      %1926 = vmatprep.mubr.bf16.mxu0 0
      %1927 = vmatmul.mubr.bf16.gmra.mrb[0].mxu0 %v798
      %v1928 = vpop.f32.mrb[0].mxu0
      %v1929 = vadd.f32 %v1752, %v1928
      %v1930 = vpop.f32.mrb[0].mxu0
      %v1931 = vpop.f32.mrb[0].mxu0
      %v1932 = vadd.f32 %v1755, %v1931
      %v1933 = vpop.f32.mrb[0].mxu0
      %1934 = vmatprep.mubr.bf16.mxu0 0
      %1935 = vmatmul.mubr.bf16.gmra.mrb[0].mxu0 %v801
      %v1936 = vpop.f32.mrb[0].mxu0
      %v1937 = vadd.f32 %v1760, %v1936
      %v1938 = vpop.f32.mrb[0].mxu0
      %v1939 = vpop.f32.mrb[0].mxu0
      %v1940 = vadd.f32 %v1763, %v1939
      %v1941 = vpop.f32.mrb[0].mxu0
      %1942 = vmatprep.mubr.bf16.mxu0 0
      %1943 = vmatmul.mubr.bf16.gmra.mrb[0].mxu0 %v804
      %v1944 = vpop.f32.mrb[0].mxu0
      %v1945 = vadd.f32 %v1768, %v1944
      %v1946 = vpop.f32.mrb[0].mxu0
      %v1947 = vpop.f32.mrb[0].mxu0
      %v1948 = vadd.f32 %v1771, %v1947
      %v1949 = vpop.f32.mrb[0].mxu0
      %1950 = vmatprep.mubr.bf16.mxu0 0
      %1951 = vmatmul.mubr.bf16.gmra.mrb[0].mxu0 %v807
      %v1952 = vpop.f32.mrb[0].mxu0
      %v1953 = vadd.f32 %v1776, %v1952
      %v1954 = vpop.f32.mrb[0].mxu0
      %v1955 = vpop.f32.mrb[0].mxu0
      %v1956 = vadd.f32 %v1779, %v1955
      %v1957 = vpop.f32.mrb[0].mxu0
      %1958 = vmatprep.mubr.bf16.mxu0 0
      %1959 = vmatmul.mubr.bf16.gmra.mrb[0].mxu0 %v810
      %v1960 = vpop.f32.mrb[0].mxu0
      %v1961 = vadd.f32 %v1784, %v1960
      %v1962 = vpop.f32.mrb[0].mxu0
      %v1963 = vpop.f32.mrb[0].mxu0
      %v1964 = vadd.f32 %v1787, %v1963
      %v1965 = vpop.f32.mrb[0].mxu0
      %1966 = vdwg.mxu0
      %s1967 = scalar_lea.vmem %s3, 384
      %v1968 = vld [vmem:[%s1967] sm:$0xf]
      %v1969 = vld [vmem:[%s1967 + $0x4] sm:$0xf]
      %v1970 = vld [vmem:[%s1967 + $0x8] sm:$0xf]
      %v1971 = vld [vmem:[%s1967 + $0xc] sm:$0xf]
      %v1972 = vld [vmem:[%s1967 + $0x10] sm:$0xf]
      %v1973 = vld [vmem:[%s1967 + $0x14] sm:$0xf]
      %v1974 = vld [vmem:[%s1967 + $0x18] sm:$0xf]
      %v1975 = vld [vmem:[%s1967 + $0x1c] sm:$0xf]
      %v1976 = vld [vmem:[%s1967 + $0x20] sm:$0xf]
      %v1977 = vld [vmem:[%s1967 + $0x24] sm:$0xf]
      %v1978 = vld [vmem:[%s1967 + $0x28] sm:$0xf]
      %v1979 = vld [vmem:[%s1967 + $0x2c] sm:$0xf]
      %v1980 = vld [vmem:[%s1967 + $0x30] sm:$0xf]
      %v1981 = vld [vmem:[%s1967 + $0x34] sm:$0xf]
      %v1982 = vld [vmem:[%s1967 + $0x38] sm:$0xf]
      %v1983 = vld [vmem:[%s1967 + $0x3c] sm:$0xf]
      %v1984 = vld [vmem:[%s1967 + $0x40] sm:$0xf]
      %v1985 = vld [vmem:[%s1967 + $0x44] sm:$0xf]
      %v1986 = vld [vmem:[%s1967 + $0x48] sm:$0xf]
      %v1987 = vld [vmem:[%s1967 + $0x4c] sm:$0xf]
      %v1988 = vld [vmem:[%s1967 + $0x50] sm:$0xf]
      %v1989 = vld [vmem:[%s1967 + $0x54] sm:$0xf]
      %v1990 = vld [vmem:[%s1967 + $0x58] sm:$0xf]
      %v1991 = vld [vmem:[%s1967 + $0x5c] sm:$0xf]
      %v1992 = vld [vmem:[%s1967 + $0x60] sm:$0xf]
      %v1993 = vld [vmem:[%s1967 + $0x64] sm:$0xf]
      %v1994 = vld [vmem:[%s1967 + $0x68] sm:$0xf]
      %v1995 = vld [vmem:[%s1967 + $0x6c] sm:$0xf]
      %v1996 = vld [vmem:[%s1967 + $0x70] sm:$0xf]
      %v1997 = vld [vmem:[%s1967 + $0x74] sm:$0xf]
      %v1998 = vld [vmem:[%s1967 + $0x78] sm:$0xf]
      %v1999 = vld [vmem:[%s1967 + $0x7c] sm:$0xf]
      %v2000 = vld [vmem:[%s1967 + $0x80] sm:$0xf]
      %v2001 = vld [vmem:[%s1967 + $0x84] sm:$0xf]
      %v2002 = vld [vmem:[%s1967 + $0x88] sm:$0xf]
      %v2003 = vld [vmem:[%s1967 + $0x8c] sm:$0xf]
      %v2004 = vld [vmem:[%s1967 + $0x90] sm:$0xf]
      %v2005 = vld [vmem:[%s1967 + $0x94] sm:$0xf]
      %v2006 = vld [vmem:[%s1967 + $0x98] sm:$0xf]
      %v2007 = vld [vmem:[%s1967 + $0x9c] sm:$0xf]
      %v2008 = vld [vmem:[%s1967 + $0xa0] sm:$0xf]
      %v2009 = vld [vmem:[%s1967 + $0xa4] sm:$0xf]
      %v2010 = vld [vmem:[%s1967 + $0xa8] sm:$0xf]
      %v2011 = vld [vmem:[%s1967 + $0xac] sm:$0xf]
      %v2012 = vld [vmem:[%s1967 + $0xb0] sm:$0xf]
      %v2013 = vld [vmem:[%s1967 + $0xb4] sm:$0xf]
      %v2014 = vld [vmem:[%s1967 + $0xb8] sm:$0xf]
      %v2015 = vld [vmem:[%s1967 + $0xbc] sm:$0xf]
      %v2064 = vunpack.c.l.b16 %v1968
      %v2065 = vunpack.c.l.b16 %v1969
      %v2066 = vunpack.c.l.b16 %v1970
      %v2067 = vunpack.c.l.b16 %v1971
      %v2068 = vunpack.c.l.b16 %v1972
      %v2069 = vunpack.c.l.b16 %v1973
      %v2070 = vunpack.c.l.b16 %v1974
      %v2071 = vunpack.c.l.b16 %v1975
      %v2072 = vunpack.c.l.b16 %v1976
      %v2073 = vunpack.c.l.b16 %v1977
      %v2074 = vunpack.c.l.b16 %v1978
      %v2075 = vunpack.c.l.b16 %v1979
      %v2076 = vunpack.c.l.b16 %v1980
      %v2077 = vunpack.c.l.b16 %v1981
      %v2078 = vunpack.c.l.b16 %v1982
      %v2079 = vunpack.c.l.b16 %v1983
      %v2080 = vunpack.c.l.b16 %v1984
      %v2081 = vunpack.c.l.b16 %v1985
      %v2082 = vunpack.c.l.b16 %v1986
      %v2083 = vunpack.c.l.b16 %v1987
      %v2084 = vunpack.c.l.b16 %v1988
      %v2085 = vunpack.c.l.b16 %v1989
      %v2086 = vunpack.c.l.b16 %v1990
      %v2087 = vunpack.c.l.b16 %v1991
      %v2088 = vunpack.c.l.b16 %v1992
      %v2089 = vunpack.c.l.b16 %v1993
      %v2090 = vunpack.c.l.b16 %v1994
      %v2091 = vunpack.c.l.b16 %v1995
      %v2092 = vunpack.c.l.b16 %v1996
      %v2093 = vunpack.c.l.b16 %v1997
      %v2094 = vunpack.c.l.b16 %v1998
      %v2095 = vunpack.c.l.b16 %v1999
      %v2096 = vunpack.c.l.b16 %v2000
      %v2097 = vunpack.c.l.b16 %v2001
      %v2098 = vunpack.c.l.b16 %v2002
      %v2099 = vunpack.c.l.b16 %v2003
      %v2100 = vunpack.c.l.b16 %v2004
      %v2101 = vunpack.c.l.b16 %v2005
      %v2102 = vunpack.c.l.b16 %v2006
      %v2103 = vunpack.c.l.b16 %v2007
      %v2104 = vunpack.c.l.b16 %v2008
      %v2105 = vunpack.c.l.b16 %v2009
      %v2106 = vunpack.c.l.b16 %v2010
      %v2107 = vunpack.c.l.b16 %v2011
      %v2108 = vunpack.c.l.b16 %v2012
      %v2109 = vunpack.c.l.b16 %v2013
      %v2110 = vunpack.c.l.b16 %v2014
      %v2111 = vunpack.c.l.b16 %v2015
      %v2112 = vpack.c.b16 %v2065, %v2064
      %v2113 = vpack.c.b16 %v2067, %v2066
      %v2114 = vpack.c.b16 %v2069, %v2068
      %v2115 = vpack.c.b16 %v2071, %v2070
      %v2116 = vpack.c.b16 %v2073, %v2072
      %v2117 = vpack.c.b16 %v2075, %v2074
      %v2118 = vpack.c.b16 %v2077, %v2076
      %v2119 = vpack.c.b16 %v2079, %v2078
      %v2120 = vpack.c.b16 %v2081, %v2080
      %v2121 = vpack.c.b16 %v2083, %v2082
      %v2122 = vpack.c.b16 %v2085, %v2084
      %v2123 = vpack.c.b16 %v2087, %v2086
      %v2124 = vpack.c.b16 %v2089, %v2088
      %v2125 = vpack.c.b16 %v2091, %v2090
      %v2126 = vpack.c.b16 %v2093, %v2092
      %v2127 = vpack.c.b16 %v2095, %v2094
      %v2128 = vpack.c.b16 %v2097, %v2096
      %v2129 = vpack.c.b16 %v2099, %v2098
      %v2130 = vpack.c.b16 %v2101, %v2100
      %v2131 = vpack.c.b16 %v2103, %v2102
      %v2132 = vpack.c.b16 %v2105, %v2104
      %v2133 = vpack.c.b16 %v2107, %v2106
      %v2134 = vpack.c.b16 %v2109, %v2108
      %v2135 = vpack.c.b16 %v2111, %v2110
      %2160 = vmatprep.subr.bf16.mxu0 0
      %2161 = vmatpush1.bf16.msra.mxu0 %v2112
      %2162 = vmatprep.subr.bf16.mxu0 0
      %2163 = vmatpush1.bf16.msra.mxu0 %v2113
      %2164 = vmatprep.subr.bf16.mxu0 0
      %2165 = vmatpush1.bf16.msra.mxu0 %v2114
      %2166 = vmatprep.subr.bf16.mxu0 0
      %2167 = vmatpush1.bf16.msra.mxu0 %v2115
      %2168 = vmatprep.subr.bf16.mxu0 0
      %2169 = vmatpush1.bf16.msra.mxu0 %v2116
      %2170 = vmatprep.subr.bf16.mxu0 0
      %2171 = vmatpush1.bf16.msra.mxu0 %v2117
      %2172 = vmatprep.subr.bf16.mxu0 0
      %2173 = vmatpush1.bf16.msra.mxu0 %v2118
      %2174 = vmatprep.subr.bf16.mxu0 0
      %2175 = vmatpush1.bf16.msra.mxu0 %v2119
      %2176 = vmatprep.subr.bf16.mxu0 0
      %2177 = vmatpush1.bf16.msra.mxu0 %v2120
      %2178 = vmatprep.subr.bf16.mxu0 0
      %2179 = vmatpush1.bf16.msra.mxu0 %v2121
      %2180 = vmatprep.subr.bf16.mxu0 0
      %2181 = vmatpush1.bf16.msra.mxu0 %v2122
      %2182 = vmatprep.subr.bf16.mxu0 0
      %2183 = vmatpush1.bf16.msra.mxu0 %v2123
      %2184 = vmatprep.subr.bf16.mxu0 0
      %2185 = vmatpush1.bf16.msra.mxu0 %v2124
      %2186 = vmatprep.subr.bf16.mxu0 0
      %2187 = vmatpush1.bf16.msra.mxu0 %v2125
      %2188 = vmatprep.subr.bf16.mxu0 0
      %2189 = vmatpush1.bf16.msra.mxu0 %v2126
      %2190 = vmatprep.subr.bf16.mxu0 0
      %2191 = vmatpush1.bf16.msra.mxu0 %v2127
      %2192 = vmatprep.mubr.bf16.mxu0 %v536
      %2193 = vmatmul.mubr.bf16.gmra.mrb[0].mxu0 %v593
      %v2194 = vpop.f32.mrb[0].mxu0
      %v2195 = vadd.f32 0.0, %v2194
      %v2196 = vpop.f32.mrb[0].mxu0
      %v2197 = vpop.f32.mrb[0].mxu0
      %v2198 = vadd.f32 0.0, %v2197
      %v2199 = vpop.f32.mrb[0].mxu0
      %2200 = vmatprep.mubr.bf16.mxu0 %v537
      %2201 = vmatmul.mubr.bf16.gmra.mrb[0].mxu0 %v601
      %v2202 = vpop.f32.mrb[0].mxu0
      %v2203 = vadd.f32 0.0, %v2202
      %v2204 = vpop.f32.mrb[0].mxu0
      %v2205 = vpop.f32.mrb[0].mxu0
      %v2206 = vadd.f32 0.0, %v2205
      %v2207 = vpop.f32.mrb[0].mxu0
      %2208 = vmatprep.mubr.bf16.mxu0 %v538
      %2209 = vmatmul.mubr.bf16.gmra.mrb[0].mxu0 %v609
      %v2210 = vpop.f32.mrb[0].mxu0
      %v2211 = vadd.f32 0.0, %v2210
      %v2212 = vpop.f32.mrb[0].mxu0
      %v2213 = vpop.f32.mrb[0].mxu0
      %v2214 = vadd.f32 0.0, %v2213
      %v2215 = vpop.f32.mrb[0].mxu0
      %2216 = vmatprep.mubr.bf16.mxu0 %v539
      %2217 = vmatmul.mubr.bf16.gmra.mrb[0].mxu0 %v617
      %v2218 = vpop.f32.mrb[0].mxu0
      %v2219 = vadd.f32 0.0, %v2218
      %v2220 = vpop.f32.mrb[0].mxu0
      %v2221 = vpop.f32.mrb[0].mxu0
      %v2222 = vadd.f32 0.0, %v2221
      %v2223 = vpop.f32.mrb[0].mxu0
      %2224 = vmatprep.mubr.bf16.mxu0 %v540
      %2225 = vmatmul.mubr.bf16.gmra.mrb[0].mxu0 %v625
      %v2226 = vpop.f32.mrb[0].mxu0
      %v2227 = vadd.f32 0.0, %v2226
      %v2228 = vpop.f32.mrb[0].mxu0
      %v2229 = vpop.f32.mrb[0].mxu0
      %v2230 = vadd.f32 0.0, %v2229
      %v2231 = vpop.f32.mrb[0].mxu0
      %2232 = vmatprep.mubr.bf16.mxu0 %v541
      %2233 = vmatmul.mubr.bf16.gmra.mrb[0].mxu0 %v633
      %v2234 = vpop.f32.mrb[0].mxu0
      %v2235 = vadd.f32 0.0, %v2234
      %v2236 = vpop.f32.mrb[0].mxu0
      %v2237 = vpop.f32.mrb[0].mxu0
      %v2238 = vadd.f32 0.0, %v2237
      %v2239 = vpop.f32.mrb[0].mxu0
      %2240 = vmatprep.mubr.bf16.mxu0 %v542
      %2241 = vmatmul.mubr.bf16.gmra.mrb[0].mxu0 %v641
      %v2242 = vpop.f32.mrb[0].mxu0
      %v2243 = vadd.f32 0.0, %v2242
      %v2244 = vpop.f32.mrb[0].mxu0
      %v2245 = vpop.f32.mrb[0].mxu0
      %v2246 = vadd.f32 0.0, %v2245
      %v2247 = vpop.f32.mrb[0].mxu0
      %2248 = vmatprep.mubr.bf16.mxu0 %v543
      %2249 = vmatmul.mubr.bf16.gmra.mrb[0].mxu0 %v649
      %v2250 = vpop.f32.mrb[0].mxu0
      %v2251 = vadd.f32 0.0, %v2250
      %v2252 = vpop.f32.mrb[0].mxu0
      %v2253 = vpop.f32.mrb[0].mxu0
      %v2254 = vadd.f32 0.0, %v2253
      %v2255 = vpop.f32.mrb[0].mxu0
      %2256 = vmatprep.mubr.bf16.mxu0 %v544
      %2257 = vmatmul.mubr.bf16.gmra.mrb[0].mxu0 %v657
      %v2258 = vpop.f32.mrb[0].mxu0
      %v2259 = vadd.f32 0.0, %v2258
      %v2260 = vpop.f32.mrb[0].mxu0
      %v2261 = vpop.f32.mrb[0].mxu0
      %v2262 = vadd.f32 0.0, %v2261
      %v2263 = vpop.f32.mrb[0].mxu0
      %2264 = vmatprep.mubr.bf16.mxu0 %v545
      %2265 = vmatmul.mubr.bf16.gmra.mrb[0].mxu0 %v665
      %v2266 = vpop.f32.mrb[0].mxu0
      %v2267 = vadd.f32 0.0, %v2266
      %v2268 = vpop.f32.mrb[0].mxu0
      %v2269 = vpop.f32.mrb[0].mxu0
      %v2270 = vadd.f32 0.0, %v2269
      %v2271 = vpop.f32.mrb[0].mxu0
      %2272 = vmatprep.mubr.bf16.mxu0 %v546
      %2273 = vmatmul.mubr.bf16.gmra.mrb[0].mxu0 %v673
      %v2274 = vpop.f32.mrb[0].mxu0
      %v2275 = vadd.f32 0.0, %v2274
      %v2276 = vpop.f32.mrb[0].mxu0
      %v2277 = vpop.f32.mrb[0].mxu0
      %v2278 = vadd.f32 0.0, %v2277
      %v2279 = vpop.f32.mrb[0].mxu0
      %2280 = vmatprep.mubr.bf16.mxu0 %v547
      %2281 = vmatmul.mubr.bf16.gmra.mrb[0].mxu0 %v681
      %v2282 = vpop.f32.mrb[0].mxu0
      %v2283 = vadd.f32 0.0, %v2282
      %v2284 = vpop.f32.mrb[0].mxu0
      %v2285 = vpop.f32.mrb[0].mxu0
      %v2286 = vadd.f32 0.0, %v2285
      %v2287 = vpop.f32.mrb[0].mxu0
      %2288 = vmatprep.mubr.bf16.mxu0 %v548
      %2289 = vmatmul.mubr.bf16.gmra.mrb[0].mxu0 %v689
      %v2290 = vpop.f32.mrb[0].mxu0
      %v2291 = vadd.f32 0.0, %v2290
      %v2292 = vpop.f32.mrb[0].mxu0
      %v2293 = vpop.f32.mrb[0].mxu0
      %v2294 = vadd.f32 0.0, %v2293
      %v2295 = vpop.f32.mrb[0].mxu0
      %2296 = vmatprep.mubr.bf16.mxu0 %v549
      %2297 = vmatmul.mubr.bf16.gmra.mrb[0].mxu0 %v697
      %v2298 = vpop.f32.mrb[0].mxu0
      %v2299 = vadd.f32 0.0, %v2298
      %v2300 = vpop.f32.mrb[0].mxu0
      %v2301 = vpop.f32.mrb[0].mxu0
      %v2302 = vadd.f32 0.0, %v2301
      %v2303 = vpop.f32.mrb[0].mxu0
      %2304 = vmatprep.mubr.bf16.mxu0 %v550
      %2305 = vmatmul.mubr.bf16.gmra.mrb[0].mxu0 %v705
      %v2306 = vpop.f32.mrb[0].mxu0
      %v2307 = vadd.f32 0.0, %v2306
      %v2308 = vpop.f32.mrb[0].mxu0
      %v2309 = vpop.f32.mrb[0].mxu0
      %v2310 = vadd.f32 0.0, %v2309
      %v2311 = vpop.f32.mrb[0].mxu0
      %2312 = vmatprep.mubr.bf16.mxu0 %v551
      %2313 = vmatmul.mubr.bf16.gmra.mrb[0].mxu0 %v713
      %v2314 = vpop.f32.mrb[0].mxu0
      %v2315 = vadd.f32 0.0, %v2314
      %v2316 = vpop.f32.mrb[0].mxu0
      %v2317 = vpop.f32.mrb[0].mxu0
      %v2318 = vadd.f32 0.0, %v2317
      %v2319 = vpop.f32.mrb[0].mxu0
      %2320 = vmatprep.mubr.bf16.mxu0 %v552
      %2321 = vmatmul.mubr.bf16.gmra.mrb[0].mxu0 %v721
      %v2322 = vpop.f32.mrb[0].mxu0
      %v2323 = vadd.f32 0.0, %v2322
      %v2324 = vpop.f32.mrb[0].mxu0
      %v2325 = vpop.f32.mrb[0].mxu0
      %v2326 = vadd.f32 0.0, %v2325
      %v2327 = vpop.f32.mrb[0].mxu0
      %2328 = vmatprep.mubr.bf16.mxu0 %v553
      %2329 = vmatmul.mubr.bf16.gmra.mrb[0].mxu0 %v729
      %v2330 = vpop.f32.mrb[0].mxu0
      %v2331 = vadd.f32 0.0, %v2330
      %v2332 = vpop.f32.mrb[0].mxu0
      %v2333 = vpop.f32.mrb[0].mxu0
      %v2334 = vadd.f32 0.0, %v2333
      %v2335 = vpop.f32.mrb[0].mxu0
      %2336 = vdwg.mxu0
      %2337 = vmatprep.subr.bf16.mxu0 0
      %2338 = vmatpush1.bf16.msra.mxu0 %v2128
      %2339 = vmatprep.subr.bf16.mxu0 0
      %2340 = vmatpush1.bf16.msra.mxu0 %v2129
      %2341 = vmatprep.subr.bf16.mxu0 0
      %2342 = vmatpush1.bf16.msra.mxu0 %v2130
      %2343 = vmatprep.subr.bf16.mxu0 0
      %2344 = vmatpush1.bf16.msra.mxu0 %v2131
      %2345 = vmatprep.subr.bf16.mxu0 0
      %2346 = vmatpush1.bf16.msra.mxu0 %v2132
      %2347 = vmatprep.subr.bf16.mxu0 0
      %2348 = vmatpush1.bf16.msra.mxu0 %v2133
      %2349 = vmatprep.subr.bf16.mxu0 0
      %2350 = vmatpush1.bf16.msra.mxu0 %v2134
      %2351 = vmatprep.subr.bf16.mxu0 0
      %2352 = vmatpush1.bf16.msra.mxu0 %v2135
      %2353 = vmatprep.subr.bf16.mxu0 0
      %2354 = vmatpush1.bf16.msra.mxu0 0
      %2355 = vmatprep.subr.bf16.mxu0 0
      %2356 = vmatpush1.bf16.msra.mxu0 0
      %2357 = vmatprep.subr.bf16.mxu0 0
      %2358 = vmatpush1.bf16.msra.mxu0 0
      %2359 = vmatprep.subr.bf16.mxu0 0
      %2360 = vmatpush1.bf16.msra.mxu0 0
      %2361 = vmatprep.subr.bf16.mxu0 0
      %2362 = vmatpush1.bf16.msra.mxu0 0
      %2363 = vmatprep.subr.bf16.mxu0 0
      %2364 = vmatpush1.bf16.msra.mxu0 0
      %2365 = vmatprep.subr.bf16.mxu0 0
      %2366 = vmatpush1.bf16.msra.mxu0 0
      %2367 = vmatprep.subr.bf16.mxu0 0
      %2368 = vmatpush1.bf16.msra.mxu0 0
      %2369 = vmatprep.mubr.bf16.mxu0 0
      %2370 = vmatmul.mubr.bf16.gmra.mrb[0].mxu0 %v771
      %v2371 = vpop.f32.mrb[0].mxu0
      %v2372 = vadd.f32 %v2195, %v2371
      %v2373 = vpop.f32.mrb[0].mxu0
      %v2374 = vpop.f32.mrb[0].mxu0
      %v2375 = vadd.f32 %v2198, %v2374
      %v2376 = vpop.f32.mrb[0].mxu0
      %2377 = vmatprep.mubr.bf16.mxu0 0
      %2378 = vmatmul.mubr.bf16.gmra.mrb[0].mxu0 %v774
      %v2379 = vpop.f32.mrb[0].mxu0
      %v2380 = vadd.f32 %v2203, %v2379
      %v2381 = vpop.f32.mrb[0].mxu0
      %v2382 = vpop.f32.mrb[0].mxu0
      %v2383 = vadd.f32 %v2206, %v2382
      %v2384 = vpop.f32.mrb[0].mxu0
      %2385 = vmatprep.mubr.bf16.mxu0 0
      %2386 = vmatmul.mubr.bf16.gmra.mrb[0].mxu0 %v777
      %v2387 = vpop.f32.mrb[0].mxu0
      %v2388 = vadd.f32 %v2211, %v2387
      %v2389 = vpop.f32.mrb[0].mxu0
      %v2390 = vpop.f32.mrb[0].mxu0
      %v2391 = vadd.f32 %v2214, %v2390
      %v2392 = vpop.f32.mrb[0].mxu0
      %2393 = vmatprep.mubr.bf16.mxu0 0
      %2394 = vmatmul.mubr.bf16.gmra.mrb[0].mxu0 %v780
      %v2395 = vpop.f32.mrb[0].mxu0
      %v2396 = vadd.f32 %v2219, %v2395
      %v2397 = vpop.f32.mrb[0].mxu0
      %v2398 = vpop.f32.mrb[0].mxu0
      %v2399 = vadd.f32 %v2222, %v2398
      %v2400 = vpop.f32.mrb[0].mxu0
      %2401 = vmatprep.mubr.bf16.mxu0 0
      %2402 = vmatmul.mubr.bf16.gmra.mrb[0].mxu0 %v783
      %v2403 = vpop.f32.mrb[0].mxu0
      %v2404 = vadd.f32 %v2227, %v2403
      %v2405 = vpop.f32.mrb[0].mxu0
      %v2406 = vpop.f32.mrb[0].mxu0
      %v2407 = vadd.f32 %v2230, %v2406
      %v2408 = vpop.f32.mrb[0].mxu0
      %2409 = vmatprep.mubr.bf16.mxu0 0
      %2410 = vmatmul.mubr.bf16.gmra.mrb[0].mxu0 %v786
      %v2411 = vpop.f32.mrb[0].mxu0
      %v2412 = vadd.f32 %v2235, %v2411
      %v2413 = vpop.f32.mrb[0].mxu0
      %v2414 = vpop.f32.mrb[0].mxu0
      %v2415 = vadd.f32 %v2238, %v2414
      %v2416 = vpop.f32.mrb[0].mxu0
      %2417 = vmatprep.mubr.bf16.mxu0 0
      %2418 = vmatmul.mubr.bf16.gmra.mrb[0].mxu0 %v789
      %v2419 = vpop.f32.mrb[0].mxu0
      %v2420 = vadd.f32 %v2243, %v2419
      %v2421 = vpop.f32.mrb[0].mxu0
      %v2422 = vpop.f32.mrb[0].mxu0
      %v2423 = vadd.f32 %v2246, %v2422
      %v2424 = vpop.f32.mrb[0].mxu0
      %2425 = vmatprep.mubr.bf16.mxu0 0
      %2426 = vmatmul.mubr.bf16.gmra.mrb[0].mxu0 %v792
      %v2427 = vpop.f32.mrb[0].mxu0
      %v2428 = vadd.f32 %v2251, %v2427
      %v2429 = vpop.f32.mrb[0].mxu0
      %v2430 = vpop.f32.mrb[0].mxu0
      %v2431 = vadd.f32 %v2254, %v2430
      %v2432 = vpop.f32.mrb[0].mxu0
      %2433 = vmatprep.mubr.bf16.mxu0 0
      %2434 = vmatmul.mubr.bf16.gmra.mrb[0].mxu0 %v795
      %v2435 = vpop.f32.mrb[0].mxu0
      %v2436 = vadd.f32 %v2259, %v2435
      %v2437 = vpop.f32.mrb[0].mxu0
      %v2438 = vpop.f32.mrb[0].mxu0
      %v2439 = vadd.f32 %v2262, %v2438
      %v2440 = vpop.f32.mrb[0].mxu0
      %2441 = vmatprep.mubr.bf16.mxu0 0
      %2442 = vmatmul.mubr.bf16.gmra.mrb[0].mxu0 %v798
      %v2443 = vpop.f32.mrb[0].mxu0
      %v2444 = vadd.f32 %v2267, %v2443
      %v2445 = vpop.f32.mrb[0].mxu0
      %v2446 = vpop.f32.mrb[0].mxu0
      %v2447 = vadd.f32 %v2270, %v2446
      %v2448 = vpop.f32.mrb[0].mxu0
      %2449 = vmatprep.mubr.bf16.mxu0 0
      %2450 = vmatmul.mubr.bf16.gmra.mrb[0].mxu0 %v801
      %v2451 = vpop.f32.mrb[0].mxu0
      %v2452 = vadd.f32 %v2275, %v2451
      %v2453 = vpop.f32.mrb[0].mxu0
      %v2454 = vpop.f32.mrb[0].mxu0
      %v2455 = vadd.f32 %v2278, %v2454
      %v2456 = vpop.f32.mrb[0].mxu0
      %2457 = vmatprep.mubr.bf16.mxu0 0
      %2458 = vmatmul.mubr.bf16.gmra.mrb[0].mxu0 %v804
      %v2459 = vpop.f32.mrb[0].mxu0
      %v2460 = vadd.f32 %v2283, %v2459
      %v2461 = vpop.f32.mrb[0].mxu0
      %v2462 = vpop.f32.mrb[0].mxu0
      %v2463 = vadd.f32 %v2286, %v2462
      %v2464 = vpop.f32.mrb[0].mxu0
      %2465 = vmatprep.mubr.bf16.mxu0 0
      %2466 = vmatmul.mubr.bf16.gmra.mrb[0].mxu0 %v807
      %v2467 = vpop.f32.mrb[0].mxu0
      %v2468 = vadd.f32 %v2291, %v2467
      %v2469 = vpop.f32.mrb[0].mxu0
      %v2470 = vpop.f32.mrb[0].mxu0
      %v2471 = vadd.f32 %v2294, %v2470
      %v2472 = vpop.f32.mrb[0].mxu0
      %2473 = vmatprep.mubr.bf16.mxu0 0
      %2474 = vmatmul.mubr.bf16.gmra.mrb[0].mxu0 %v810
      %v2475 = vpop.f32.mrb[0].mxu0
      %v2476 = vadd.f32 %v2299, %v2475
      %v2477 = vpop.f32.mrb[0].mxu0
      %v2478 = vpop.f32.mrb[0].mxu0
      %v2479 = vadd.f32 %v2302, %v2478
      %v2480 = vpop.f32.mrb[0].mxu0
      %2481 = vmatprep.mubr.bf16.mxu0 0
      %2482 = vmatmul.mubr.bf16.gmra.mrb[0].mxu0 %v813
      %v2483 = vpop.f32.mrb[0].mxu0
      %v2484 = vadd.f32 %v2307, %v2483
      %v2485 = vpop.f32.mrb[0].mxu0
      %v2486 = vpop.f32.mrb[0].mxu0
      %v2487 = vadd.f32 %v2310, %v2486
      %v2488 = vpop.f32.mrb[0].mxu0
      %2489 = vmatprep.mubr.bf16.mxu0 0
      %2490 = vmatmul.mubr.bf16.gmra.mrb[0].mxu0 %v816
      %v2491 = vpop.f32.mrb[0].mxu0
      %v2492 = vadd.f32 %v2315, %v2491
      %v2493 = vpop.f32.mrb[0].mxu0
      %v2494 = vpop.f32.mrb[0].mxu0
      %v2495 = vadd.f32 %v2318, %v2494
      %v2496 = vpop.f32.mrb[0].mxu0
      %2497 = vmatprep.mubr.bf16.mxu0 0
      %2498 = vmatmul.mubr.bf16.gmra.mrb[0].mxu0 %v819
      %v2499 = vpop.f32.mrb[0].mxu0
      %v2500 = vadd.f32 %v2323, %v2499
      %v2501 = vpop.f32.mrb[0].mxu0
      %v2502 = vpop.f32.mrb[0].mxu0
      %v2503 = vadd.f32 %v2326, %v2502
      %v2504 = vpop.f32.mrb[0].mxu0
      %2505 = vmatprep.mubr.bf16.mxu0 0
      %2506 = vmatmul.mubr.bf16.gmra.mrb[0].mxu0 %v851
      %v2507 = vpop.f32.mrb[0].mxu0
      %v2508 = vadd.f32 %v2331, %v2507
      %v2509 = vpop.f32.mrb[0].mxu0
      %v2510 = vpop.f32.mrb[0].mxu0
      %v2511 = vadd.f32 %v2334, %v2510
      %v2512 = vpop.f32.mrb[0].mxu0
      %2513 = vdwg.mxu0
      %v2514 = vadd.f32 %v1825, %v2372
      %v2515 = vadd.f32 %v1828, %v2375
      %v2516 = vadd.f32 %v1833, %v2380
      %v2517 = vadd.f32 %v1836, %v2383
      %v2518 = vadd.f32 %v1841, %v2388
      %v2519 = vadd.f32 %v1844, %v2391
      %v2520 = vadd.f32 %v1849, %v2396
      %v2521 = vadd.f32 %v1852, %v2399
      %v2522 = vadd.f32 %v1857, %v2404
      %v2523 = vadd.f32 %v1860, %v2407
      %v2524 = vadd.f32 %v1865, %v2412
      %v2525 = vadd.f32 %v1868, %v2415
      %v2526 = vadd.f32 %v1873, %v2420
      %v2527 = vadd.f32 %v1876, %v2423
      %v2528 = vadd.f32 %v1881, %v2428
      %v2529 = vadd.f32 %v1884, %v2431
      %v2530 = vadd.f32 %v1889, %v2436
      %v2531 = vadd.f32 %v1892, %v2439
      %v2532 = vadd.f32 %v1897, %v2444
      %v2533 = vadd.f32 %v1900, %v2447
      %v2534 = vadd.f32 %v1905, %v2452
      %v2535 = vadd.f32 %v1908, %v2455
      %v2536 = vadd.f32 %v1913, %v2460
      %v2537 = vadd.f32 %v1916, %v2463
      %v2538 = vadd.f32 %v1921, %v2468
      %v2539 = vadd.f32 %v1924, %v2471
      %v2540 = vadd.f32 %v1929, %v2476
      %v2541 = vadd.f32 %v1932, %v2479
      %v2542 = vadd.f32 %v1937, %v2484
      %v2543 = vadd.f32 %v1940, %v2487
      %v2544 = vadd.f32 %v1945, %v2492
      %v2545 = vadd.f32 %v1948, %v2495
      %v2546 = vadd.f32 %v1953, %v2500
      %v2547 = vadd.f32 %v1956, %v2503
      %v2548 = vadd.f32 %v1961, %v2508
      %v2549 = vadd.f32 %v1964, %v2511
      %v2550 = vld [vmem:[%s4] sm:$0x1]
      %v2552 = vlaneseq
      %v2553 = vshrl.u32 %v2552, 7
      %v2554 = vsub.s32 0, %v2553
      %v2555 = vrot.slane %v2550, %v2554
      %v2557 = vadd.f32 %v2514, %v2555
      %v2558 = vadd.f32 %v2515, %v2555
      %v2559 = vadd.f32 %v2516, %v2555
      %v2560 = vadd.f32 %v2517, %v2555
      %v2561 = vadd.f32 %v2518, %v2555
      %v2562 = vadd.f32 %v2519, %v2555
      %v2563 = vadd.f32 %v2520, %v2555
      %v2564 = vadd.f32 %v2521, %v2555
      %v2565 = vadd.f32 %v2522, %v2555
      %v2566 = vadd.f32 %v2523, %v2555
      %v2567 = vadd.f32 %v2524, %v2555
      %v2568 = vadd.f32 %v2525, %v2555
      %v2569 = vadd.f32 %v2526, %v2555
      %v2570 = vadd.f32 %v2527, %v2555
      %v2571 = vadd.f32 %v2528, %v2555
      %v2572 = vadd.f32 %v2529, %v2555
      %v2573 = vadd.f32 %v2530, %v2555
      %v2574 = vadd.f32 %v2531, %v2555
      %v2575 = vadd.f32 %v2532, %v2555
      %v2576 = vadd.f32 %v2533, %v2555
      %v2577 = vadd.f32 %v2534, %v2555
      %v2578 = vadd.f32 %v2535, %v2555
      %v2579 = vadd.f32 %v2536, %v2555
      %v2580 = vadd.f32 %v2537, %v2555
      %v2581 = vadd.f32 %v2538, %v2555
      %v2582 = vadd.f32 %v2539, %v2555
      %v2583 = vadd.f32 %v2540, %v2555
      %v2584 = vadd.f32 %v2541, %v2555
      %v2585 = vadd.f32 %v2542, %v2555
      %v2586 = vadd.f32 %v2543, %v2555
      %v2587 = vadd.f32 %v2544, %v2555
      %v2588 = vadd.f32 %v2545, %v2555
      %v2589 = vadd.f32 %v2546, %v2555
      %v2590 = vadd.f32 %v2547, %v2555
      %v2591 = vadd.f32 %v2548, %v2555
      %v2592 = vadd.f32 %v2549, %v2555
      %v2593 = vmax.f32 %v2557, 0.0
      %v2594 = vmax.f32 %v2558, 0.0
      %v2595 = vmax.f32 %v2559, 0.0
      %v2596 = vmax.f32 %v2560, 0.0
      %v2597 = vmax.f32 %v2561, 0.0
      %v2598 = vmax.f32 %v2562, 0.0
      %v2599 = vmax.f32 %v2563, 0.0
      %v2600 = vmax.f32 %v2564, 0.0
      %v2601 = vmax.f32 %v2565, 0.0
      %v2602 = vmax.f32 %v2566, 0.0
      %v2603 = vmax.f32 %v2567, 0.0
      %v2604 = vmax.f32 %v2568, 0.0
      %v2605 = vmax.f32 %v2569, 0.0
      %v2606 = vmax.f32 %v2570, 0.0
      %v2607 = vmax.f32 %v2571, 0.0
      %v2608 = vmax.f32 %v2572, 0.0
      %v2609 = vmax.f32 %v2573, 0.0
      %v2610 = vmax.f32 %v2574, 0.0
      %v2611 = vmax.f32 %v2575, 0.0
      %v2612 = vmax.f32 %v2576, 0.0
      %v2613 = vmax.f32 %v2577, 0.0
      %v2614 = vmax.f32 %v2578, 0.0
      %v2615 = vmax.f32 %v2579, 0.0
      %v2616 = vmax.f32 %v2580, 0.0
      %v2617 = vmax.f32 %v2581, 0.0
      %v2618 = vmax.f32 %v2582, 0.0
      %v2619 = vmax.f32 %v2583, 0.0
      %v2620 = vmax.f32 %v2584, 0.0
      %v2621 = vmax.f32 %v2585, 0.0
      %v2622 = vmax.f32 %v2586, 0.0
      %v2623 = vmax.f32 %v2587, 0.0
      %v2624 = vmax.f32 %v2588, 0.0
      %v2625 = vmax.f32 %v2589, 0.0
      %v2626 = vmax.f32 %v2590, 0.0
      %v2627 = vmax.f32 %v2591, 0.0
      %v2628 = vmax.f32 %v2592, 0.0
      %s2629 = smul.u32 %s21, 9
      %v2630 = vstv %s2629
      %v2631 = vadd.s32 %v2630, 1
      %v2632 = vadd.s32 %v2630, 2
      %v2633 = vadd.s32 %v2630, 3
      %v2634 = vadd.s32 %v2630, 4
      %v2635 = vadd.s32 %v2630, 5
      %v2636 = vadd.s32 %v2630, 6
      %v2637 = vadd.s32 %v2630, 7
      %v2638 = vadd.s32 %v2630, 8
      %v2639 = vlaneseq
      %v2640 = vshrl.u32 %v2639, 7
      %v2641 = vadd.s32 %v2640, 8
      %v2642 = vadd.s32 %v2640, 16
      %v2643 = vadd.s32 %v2640, 24
      %vm2644 = vcmp.ge.s32.totalorder %v2630, 1
      %vm2645 = vcmp.ge.s32.totalorder %v2631, 1
      %vm2646 = vcmp.ge.s32.totalorder %v2632, 1
      %vm2647 = vcmp.ge.s32.totalorder %v2633, 1
      %vm2648 = vcmp.ge.s32.totalorder %v2634, 1
      %vm2649 = vcmp.ge.s32.totalorder %v2635, 1
      %vm2650 = vcmp.ge.s32.totalorder %v2636, 1
      %vm2651 = vcmp.ge.s32.totalorder %v2637, 1
      %vm2652 = vcmp.ge.s32.totalorder %v2638, 1
      %vm2653 = vcmp.lt.s32.totalorder %v2630, 17
      %vm2654 = vcmp.lt.s32.totalorder %v2631, 17
      %vm2655 = vcmp.lt.s32.totalorder %v2632, 17
      %vm2656 = vcmp.lt.s32.totalorder %v2633, 17
      %vm2657 = vcmp.lt.s32.totalorder %v2634, 17
      %vm2658 = vcmp.lt.s32.totalorder %v2635, 17
      %vm2659 = vcmp.lt.s32.totalorder %v2636, 17
      %vm2660 = vcmp.lt.s32.totalorder %v2637, 17
      %vm2661 = vcmp.lt.s32.totalorder %v2638, 17
      %vm2662 = vmand %vm2644, %vm2653
      %vm2663 = vmand %vm2645, %vm2654
      %vm2664 = vmand %vm2646, %vm2655
      %vm2665 = vmand %vm2647, %vm2656
      %vm2666 = vmand %vm2648, %vm2657
      %vm2667 = vmand %vm2649, %vm2658
      %vm2668 = vmand %vm2650, %vm2659
      %vm2669 = vmand %vm2651, %vm2660
      %vm2670 = vmand %vm2652, %vm2661
      %vm2671 = vcmp.ge.s32.totalorder %v2640, 1
      %vm2672 = vcmp.ge.s32.totalorder %v2641, 1
      %vm2673 = vcmp.ge.s32.totalorder %v2642, 1
      %vm2674 = vcmp.ge.s32.totalorder %v2643, 1
      %vm2675 = vmand %vm2662, %vm2671
      %vm2676 = vmand %vm2662, %vm2672
      %vm2677 = vmand %vm2662, %vm2673
      %vm2678 = vmand %vm2662, %vm2674
      %vm2679 = vmand %vm2663, %vm2671
      %vm2680 = vmand %vm2663, %vm2672
      %vm2681 = vmand %vm2663, %vm2673
      %vm2682 = vmand %vm2663, %vm2674
      %vm2683 = vmand %vm2664, %vm2671
      %vm2684 = vmand %vm2664, %vm2672
      %vm2685 = vmand %vm2664, %vm2673
      %vm2686 = vmand %vm2664, %vm2674
      %vm2687 = vmand %vm2665, %vm2671
      %vm2688 = vmand %vm2665, %vm2672
      %vm2689 = vmand %vm2665, %vm2673
      %vm2690 = vmand %vm2665, %vm2674
      %vm2691 = vmand %vm2666, %vm2671
      %vm2692 = vmand %vm2666, %vm2672
      %vm2693 = vmand %vm2666, %vm2673
      %vm2694 = vmand %vm2666, %vm2674
      %vm2695 = vmand %vm2667, %vm2671
      %vm2696 = vmand %vm2667, %vm2672
      %vm2697 = vmand %vm2667, %vm2673
      %vm2698 = vmand %vm2667, %vm2674
      %vm2699 = vmand %vm2668, %vm2671
      %vm2700 = vmand %vm2668, %vm2672
      %vm2701 = vmand %vm2668, %vm2673
      %vm2702 = vmand %vm2668, %vm2674
      %vm2703 = vmand %vm2669, %vm2671
      %vm2704 = vmand %vm2669, %vm2672
      %vm2705 = vmand %vm2669, %vm2673
      %vm2706 = vmand %vm2669, %vm2674
      %vm2707 = vmand %vm2670, %vm2671
      %vm2708 = vmand %vm2670, %vm2672
      %vm2709 = vmand %vm2670, %vm2673
      %vm2710 = vmand %vm2670, %vm2674
      %vm2711 = vcmp.lt.s32.totalorder %v2640, 17
      %vm2712 = vcmp.lt.s32.totalorder %v2641, 17
      %vm2713 = vcmp.lt.s32.totalorder %v2642, 17
      %vm2714 = vcmp.lt.s32.totalorder %v2643, 17
      %vm2715 = vmand %vm2675, %vm2711
      %vm2716 = vmand %vm2676, %vm2712
      %vm2717 = vmand %vm2677, %vm2713
      %vm2718 = vmand %vm2678, %vm2714
      %vm2719 = vmand %vm2679, %vm2711
      %vm2720 = vmand %vm2680, %vm2712
      %vm2721 = vmand %vm2681, %vm2713
      %vm2722 = vmand %vm2682, %vm2714
      %vm2723 = vmand %vm2683, %vm2711
      %vm2724 = vmand %vm2684, %vm2712
      %vm2725 = vmand %vm2685, %vm2713
      %vm2726 = vmand %vm2686, %vm2714
      %vm2727 = vmand %vm2687, %vm2711
      %vm2728 = vmand %vm2688, %vm2712
      %vm2729 = vmand %vm2689, %vm2713
      %vm2730 = vmand %vm2690, %vm2714
      %vm2731 = vmand %vm2691, %vm2711
      %vm2732 = vmand %vm2692, %vm2712
      %vm2733 = vmand %vm2693, %vm2713
      %vm2734 = vmand %vm2694, %vm2714
      %vm2735 = vmand %vm2695, %vm2711
      %vm2736 = vmand %vm2696, %vm2712
      %vm2737 = vmand %vm2697, %vm2713
      %vm2738 = vmand %vm2698, %vm2714
      %vm2739 = vmand %vm2699, %vm2711
      %vm2740 = vmand %vm2700, %vm2712
      %vm2741 = vmand %vm2701, %vm2713
      %vm2742 = vmand %vm2702, %vm2714
      %vm2743 = vmand %vm2703, %vm2711
      %vm2744 = vmand %vm2704, %vm2712
      %vm2745 = vmand %vm2705, %vm2713
      %vm2746 = vmand %vm2706, %vm2714
      %vm2747 = vmand %vm2707, %vm2711
      %vm2748 = vmand %vm2708, %vm2712
      %vm2749 = vmand %vm2709, %vm2713
      %vm2750 = vmand %vm2710, %vm2714
      %v2751 = vsel %vm2715, %v2593, 0.0
      %v2752 = vsel %vm2716, %v2594, 0.0
      %v2753 = vsel %vm2717, %v2595, 0.0
      %v2754 = vsel %vm2718, %v2596, 0.0
      %v2755 = vsel %vm2719, %v2597, 0.0
      %v2756 = vsel %vm2720, %v2598, 0.0
      %v2757 = vsel %vm2721, %v2599, 0.0
      %v2758 = vsel %vm2722, %v2600, 0.0
      %v2759 = vsel %vm2723, %v2601, 0.0
      %v2760 = vsel %vm2724, %v2602, 0.0
      %v2761 = vsel %vm2725, %v2603, 0.0
      %v2762 = vsel %vm2726, %v2604, 0.0
      %v2763 = vsel %vm2727, %v2605, 0.0
      %v2764 = vsel %vm2728, %v2606, 0.0
      %v2765 = vsel %vm2729, %v2607, 0.0
      %v2766 = vsel %vm2730, %v2608, 0.0
      %v2767 = vsel %vm2731, %v2609, 0.0
      %v2768 = vsel %vm2732, %v2610, 0.0
      %v2769 = vsel %vm2733, %v2611, 0.0
      %v2770 = vsel %vm2734, %v2612, 0.0
      %v2771 = vsel %vm2735, %v2613, 0.0
      %v2772 = vsel %vm2736, %v2614, 0.0
      %v2773 = vsel %vm2737, %v2615, 0.0
      %v2774 = vsel %vm2738, %v2616, 0.0
      %v2775 = vsel %vm2739, %v2617, 0.0
      %v2776 = vsel %vm2740, %v2618, 0.0
      %v2777 = vsel %vm2741, %v2619, 0.0
      %v2778 = vsel %vm2742, %v2620, 0.0
      %v2779 = vsel %vm2743, %v2621, 0.0
      %v2780 = vsel %vm2744, %v2622, 0.0
      %v2781 = vsel %vm2745, %v2623, 0.0
      %v2782 = vsel %vm2746, %v2624, 0.0
      %v2783 = vsel %vm2747, %v2625, 0.0
      %v2784 = vsel %vm2748, %v2626, 0.0
      %v2785 = vsel %vm2749, %v2627, 0.0
      %v2786 = vsel %vm2750, %v2628, 0.0
      %v2787 = vpack.c.bf16 %v2752, %v2751
      %v2788 = vpack.c.bf16 %v2754, %v2753
      %v2789 = vpack.c.bf16 %v2756, %v2755
      %v2790 = vpack.c.bf16 %v2758, %v2757
      %v2791 = vpack.c.bf16 %v2760, %v2759
      %v2792 = vpack.c.bf16 %v2762, %v2761
      %v2793 = vpack.c.bf16 %v2764, %v2763
      %v2794 = vpack.c.bf16 %v2766, %v2765
      %v2795 = vpack.c.bf16 %v2768, %v2767
      %v2796 = vpack.c.bf16 %v2770, %v2769
      %v2797 = vpack.c.bf16 %v2772, %v2771
      %v2798 = vpack.c.bf16 %v2774, %v2773
      %v2799 = vpack.c.bf16 %v2776, %v2775
      %v2800 = vpack.c.bf16 %v2778, %v2777
      %v2801 = vpack.c.bf16 %v2780, %v2779
      %v2802 = vpack.c.bf16 %v2782, %v2781
      %v2803 = vpack.c.bf16 %v2784, %v2783
      %v2804 = vpack.c.bf16 %v2786, %v2785
      %v2823 = vunpack.c.l.b16 %v2787
      %v2824 = vunpack.c.h.b16 %v2787
      %v2825 = vunpack.c.l.b16 %v2788
      %v2826 = vunpack.c.h.b16 %v2788
      %v2827 = vunpack.c.l.b16 %v2789
      %v2828 = vunpack.c.h.b16 %v2789
      %v2829 = vunpack.c.l.b16 %v2790
      %v2830 = vunpack.c.h.b16 %v2790
      %v2831 = vunpack.c.l.b16 %v2791
      %v2832 = vunpack.c.h.b16 %v2791
      %v2833 = vunpack.c.l.b16 %v2792
      %v2834 = vunpack.c.h.b16 %v2792
      %v2835 = vunpack.c.l.b16 %v2793
      %v2836 = vunpack.c.h.b16 %v2793
      %v2837 = vunpack.c.l.b16 %v2794
      %v2838 = vunpack.c.h.b16 %v2794
      %v2839 = vunpack.c.l.b16 %v2795
      %v2840 = vunpack.c.h.b16 %v2795
      %v2841 = vunpack.c.l.b16 %v2796
      %v2842 = vunpack.c.h.b16 %v2796
      %v2843 = vunpack.c.l.b16 %v2797
      %v2844 = vunpack.c.h.b16 %v2797
      %v2845 = vunpack.c.l.b16 %v2798
      %v2846 = vunpack.c.h.b16 %v2798
      %v2847 = vunpack.c.l.b16 %v2799
      %v2848 = vunpack.c.h.b16 %v2799
      %v2849 = vunpack.c.l.b16 %v2800
      %v2850 = vunpack.c.h.b16 %v2800
      %v2851 = vunpack.c.l.b16 %v2801
      %v2852 = vunpack.c.h.b16 %v2801
      %v2853 = vunpack.c.l.b16 %v2802
      %v2854 = vunpack.c.h.b16 %v2802
      %v2855 = vunpack.c.l.b16 %v2803
      %v2856 = vunpack.c.h.b16 %v2803
      %v2857 = vunpack.c.l.b16 %v2804
      %v2858 = vunpack.c.h.b16 %v2804
      %v2859 = vpack.c.b16 %v2823, %v2823
      %v2860 = vpack.c.b16 %v2824, %v2824
      %v2861 = vpack.c.b16 %v2825, %v2825
      %v2862 = vpack.c.b16 %v2826, %v2826
      %v2863 = vpack.c.b16 %v2827, %v2827
      %v2864 = vpack.c.b16 %v2828, %v2828
      %v2865 = vpack.c.b16 %v2829, %v2829
      %v2866 = vpack.c.b16 %v2830, %v2830
      %v2867 = vpack.c.b16 %v2831, %v2831
      %v2868 = vpack.c.b16 %v2832, %v2832
      %v2869 = vpack.c.b16 %v2833, %v2833
      %v2870 = vpack.c.b16 %v2834, %v2834
      %v2871 = vpack.c.b16 %v2835, %v2835
      %v2872 = vpack.c.b16 %v2836, %v2836
      %v2873 = vpack.c.b16 %v2837, %v2837
      %v2874 = vpack.c.b16 %v2838, %v2838
      %v2875 = vpack.c.b16 %v2839, %v2839
      %v2876 = vpack.c.b16 %v2840, %v2840
      %v2877 = vpack.c.b16 %v2841, %v2841
      %v2878 = vpack.c.b16 %v2842, %v2842
      %v2879 = vpack.c.b16 %v2843, %v2843
      %v2880 = vpack.c.b16 %v2844, %v2844
      %v2881 = vpack.c.b16 %v2845, %v2845
      %v2882 = vpack.c.b16 %v2846, %v2846
      %v2883 = vpack.c.b16 %v2847, %v2847
      %v2884 = vpack.c.b16 %v2848, %v2848
      %v2885 = vpack.c.b16 %v2849, %v2849
      %v2886 = vpack.c.b16 %v2850, %v2850
      %v2887 = vpack.c.b16 %v2851, %v2851
      %v2888 = vpack.c.b16 %v2852, %v2852
      %v2889 = vpack.c.b16 %v2853, %v2853
      %v2890 = vpack.c.b16 %v2854, %v2854
      %v2891 = vpack.c.b16 %v2855, %v2855
      %v2892 = vpack.c.b16 %v2856, %v2856
      %v2893 = vpack.c.b16 %v2857, %v2857
      %v2894 = vpack.c.b16 %v2858, %v2858
      %2931 = vst [vmem:[%s391] sm:$0xf] %v2859
      %2932 = vst [vmem:[%s391 + $0x4] sm:$0xf] %v2860
      %2933 = vst [vmem:[%s391 + $0x8] sm:$0xf] %v2861
      %2934 = vst [vmem:[%s391 + $0xc] sm:$0xf] %v2862
      %2935 = vst [vmem:[%s391 + $0x10] sm:$0xf] %v2863
      %2936 = vst [vmem:[%s391 + $0x14] sm:$0xf] %v2864
      %2937 = vst [vmem:[%s391 + $0x18] sm:$0xf] %v2865
      %2938 = vst [vmem:[%s391 + $0x1c] sm:$0xf] %v2866
      %2939 = vst [vmem:[%s391 + $0x20] sm:$0xf] %v2867
      %2940 = vst [vmem:[%s391 + $0x24] sm:$0xf] %v2868
      %2941 = vst [vmem:[%s391 + $0x28] sm:$0xf] %v2869
      %2942 = vst [vmem:[%s391 + $0x2c] sm:$0xf] %v2870
      %2943 = vst [vmem:[%s391 + $0x30] sm:$0xf] %v2871
      %2944 = vst [vmem:[%s391 + $0x34] sm:$0xf] %v2872
      %2945 = vst [vmem:[%s391 + $0x38] sm:$0xf] %v2873
      %2946 = vst [vmem:[%s391 + $0x3c] sm:$0xf] %v2874
      %2947 = vst [vmem:[%s391 + $0x40] sm:$0xf] %v2875
      %2948 = vst [vmem:[%s391 + $0x44] sm:$0xf] %v2876
      %2949 = vst [vmem:[%s391 + $0x48] sm:$0xf] %v2877
      %2950 = vst [vmem:[%s391 + $0x4c] sm:$0xf] %v2878
      %2951 = vst [vmem:[%s391 + $0x50] sm:$0xf] %v2879
      %2952 = vst [vmem:[%s391 + $0x54] sm:$0xf] %v2880
      %2953 = vst [vmem:[%s391 + $0x58] sm:$0xf] %v2881
      %2954 = vst [vmem:[%s391 + $0x5c] sm:$0xf] %v2882
      %2955 = vst [vmem:[%s391 + $0x60] sm:$0xf] %v2883
      %2956 = vst [vmem:[%s391 + $0x64] sm:$0xf] %v2884
      %2957 = vst [vmem:[%s391 + $0x68] sm:$0xf] %v2885
      %2958 = vst [vmem:[%s391 + $0x6c] sm:$0xf] %v2886
      %2959 = vst [vmem:[%s391 + $0x70] sm:$0xf] %v2887
      %2960 = vst [vmem:[%s391 + $0x74] sm:$0xf] %v2888
      %2961 = vst [vmem:[%s391 + $0x78] sm:$0xf] %v2889
      %2962 = vst [vmem:[%s391 + $0x7c] sm:$0xf] %v2890
      %2963 = vst [vmem:[%s391 + $0x80] sm:$0xf] %v2891
      %2964 = vst [vmem:[%s391 + $0x84] sm:$0xf] %v2892
      %2965 = vst [vmem:[%s391 + $0x88] sm:$0xf] %v2893
      %2966 = vst [vmem:[%s391 + $0x8c] sm:$0xf] %v2894
      %s2967 = smul.u32 9, %s21
      %p2968 = scmp.lt.s32.totalorder %s20, 1
      %s2969 = scalar_select %p2968, %s20, 1
      %p2970 = scmp.lt.s32.totalorder %s2967, 17
      %s2971 = scalar_select %p2970, %s2967, 17
      %s2972 = smul.addr %s2971, 4
      %s2973 = smul.addr %s2969, 72
      %s2974 = sadd.s32 %s2972, %s2973
      %s2975 = smul.addr %s2974, 4
      %s2976 = scalar_lea.vmem %s5, %s2975
      // Predicated region
      $region41: #{res_unet_2d_encoder.6} parent=39 // pred_check
        %p2977 = pneg %p190
      $region42: #{res_unet_2d_encoder.6} parent=39 // pred_check_branch
        %2979 = sbr.rel (%p2977) target = $region44
      $region43: #{res_unet_2d_encoder.6} parent=39 // pred_region
        %s2980 = smul.u32 9, %s21
      $region44: #{res_unet_2d_encoder.6} parent=39 // pred_fallthru
        _
    $region40: #{res_unet_2d_encoder.6} parent=5 // pred_fallthru
      _
    %p2981 = scmp.le.s32.totalorder 2, %s11
    // Predicated region
    $region45: #{res_unet_2d_encoder.6} parent=5 // pred_check
      %p2982 = pneg %p2981
    $region46: #{res_unet_2d_encoder.6} parent=5 // pred_check_branch
      %2984 = sbr.rel (%p2982) target = $region48
    $region47: #{res_unet_2d_encoder.6} parent=5 // pred_region
      %s2985 = ssub.s32 %s11, 2
      // Predicated region
      $region49: #{res_unet_2d_encoder.6} parent=47 // pred_check
        %p2986 = pneg %p196
      $region50: #{res_unet_2d_encoder.6} parent=47 // pred_check_branch
        %2988 = sbr.rel (%p2986) target = $region52
      $region51: #{res_unet_2d_encoder.6} parent=47 // pred_region
        %s2989 = smul.u32 9, %s23
        %p2990 = scmp.lt.s32.totalorder %s22, 1
        %s2991 = scalar_select %p2990, %s22, 1
        %p2992 = scmp.lt.s32.totalorder %s2989, 17
        %s2993 = scalar_select %p2992, %s2989, 17
        %s2994 = smul.addr %s2993, 4
        %s2995 = smul.addr %s2991, 72
        %s2996 = sadd.s32 %s2994, %s2995
        %s2997 = smul.addr %s2996, 4
        %s2998 = scalar_lea.vmem %s5, %s2997
      $region52: #{res_unet_2d_encoder.6} parent=47 // pred_fallthru
        _
    $region48: #{res_unet_2d_encoder.6} parent=5 // pred_fallthru
      _
  $region6: #{res_unet_2d_encoder.6} parent=0 // loop_footer
    %s15 = sadd.s32 1, %s11
  $region7: #{res_unet_2d_encoder.6} parent=0 // loop_footer_branch
    %10 = sbr.rel target = $region3
  $region8: #{res_unet_2d_encoder.6} parent=0 // loop_exit
    _

// kernel: res_unet_2d_encoder.5
$region0: #{res_unet_2d_encoder.5}
  #allocation0 [shape = 'u32[]', space=smem, size = 0x4, offset = 0x4, fixed_abs, tag = 'smem constant byte address 0x4 - core index']
  #allocation1 [shape = 'u32[144,128]{1,0:T(1,128)}', space=vmem, size = 0x12000, scoped, tag = 'internal scratch']
  %s0 = inlined_call_operand.vmem [shape: bf16[2,18,32,128], index: 0, kind: input, shape index: {}, may-alias: {0,1,2}]
  %s1 = inlined_call_operand.vmem [shape: bf16[2,18,32,128], index: 1, kind: input, shape index: {}, may-alias: {0,1,2}]
  %s2 = inlined_call_operand.vmem [shape: bf16[2,18,32,128], index: 2, kind: input, shape index: {}, may-alias: {0,1,2}]
  %s3 = inlined_call_operand.vmem [shape: bf16[3,384,128], index: 3, kind: input, shape index: {}]
  %s4 = inlined_call_operand.vmem [shape: f32[1,128], index: 4, kind: input, shape index: {}]
  %s5 = inlined_call_operand.vmem [shape: bf16[2,18,32,128], index: 5, kind: output, shape index: {}]
  %s6 = sld [smem:[#allocation0]]
  $region53: #{res_unet_2d_encoder.5} parent=0
    _
  %s8 = ssub.s32 1, %s6
  %s9 = scalar_select 0, %s8, %s6
  loop: start=0, step=1, limit=6
  $region2: #{res_unet_2d_encoder.5} parent=0 // loop_pre_header
    _
  $region3: #{res_unet_2d_encoder.5} parent=0 // loop_header
    %s11 = sphi 0, %s15
    %p12 = scmp.ge.s32.totalorder %s11, 6
    %s18 = sphi 0, %s30
    %s19 = sphi 0, %s26
    %s20 = sphi 0, %s18
    %s21 = sphi 0, %s19
    %s22 = sphi 0, %s20
    %s23 = sphi 0, %s21
    %s35 = sphi 0, %s37
    %s38 = sphi 0, %s35
    %s39 = sphi 0, %s38
    %s55 = sphi 0, %s39
    %s71 = sphi 0, %s73
    %s74 = sphi 0, %s71
    %s75 = sphi 0, %s74
    %s91 = sphi 0, %s75
    %s107 = sphi 0, %s109
    %s110 = sphi 0, %s107
    %s111 = sphi 0, %s110
    %s127 = sphi 0, %s111
    %s131 = sphi 0, %s131
    %s133 = sphi 0, %s131
    %s134 = sphi 0, %s133
    %s148 = sphi 0, %s134
    %s152 = sphi 0, %s152
    %s154 = sphi 0, %s152
    %s155 = sphi 0, %s154
    %s169 = sphi 0, %s155
    %s177 = sphi 0, %s179
    %s180 = sphi 0, %s177
    %s181 = sphi 0, %s180
    %s197 = sphi 0, %s181
  $region4: #{res_unet_2d_encoder.5} parent=0 // loop_header_branch
    %14 = sbr.rel (%p12) target = $region8
  $region5: #{res_unet_2d_encoder.5} parent=0 // loop_body
    %s16 = ssub.s32 %s11, 1
    %s17 = ssub.s32 %s11, 2
    %s24 = sadd.s32 1, %s19
    %p25 = scmp.ge.s32.totalorder %s24, 2
    %s26 = scalar_select %p25, 0, %s24
    %s27 = sadd.s32 1, %s18
    %s28 = scalar_select %p25, %s27, %s18
    %p29 = scmp.ge.s32.totalorder %s28, 2
    %s30 = scalar_select %p29, 0, %s28
    %s31 = ssub.s32 %s18, %s30
    %s32 = ssub.s32 %s19, %s26
    %s33 = sor.u32 %s31, %s32
    %p34 = scmp.eq.s32.totalorder %s33, 0
    %s36 = sadd.s32 %s35, 1
    %s37 = scalar_select %p34, %s35, %s36
    %p40 = pneg %p34
    %p41 = scmp.eq.s32.totalorder %s11, 3
    %p42 = por %p40, %p41
    %p43 = scmp.ne.s32.totalorder %s35, %s38
    %p44 = scmp.eq.s32.totalorder %s11, 0
    %p45 = por %p43, %p44
    %p46 = scmp.ne.s32.totalorder %s35, %s38
    %p47 = scmp.eq.s32.totalorder %s16, 3
    %p48 = por %p46, %p47
    %p49 = scmp.ne.s32.totalorder %s38, %s39
    %p50 = scmp.eq.s32.totalorder %s16, 0
    %p51 = por %p49, %p50
    %p52 = scmp.ne.s32.totalorder %s38, %s39
    %p53 = scmp.eq.s32.totalorder %s17, 3
    %p54 = por %p52, %p53
    %p56 = scmp.ne.s32.totalorder %s39, %s55
    %p57 = scmp.eq.s32.totalorder %s17, 0
    %p58 = por %p56, %p57
    %s59 = smul.u32 %s19, 9
    %s60 = ssub.s32 %s59, 1
    %p61 = scmp.gt.s32.totalorder %s60, 0
    %s62 = scalar_select %p61, %s60, 0
    %s63 = smul.u32 %s26, 9
    %s64 = ssub.s32 %s63, 1
    %p65 = scmp.gt.s32.totalorder %s64, 0
    %s66 = scalar_select %p65, %s64, 0
    %s67 = ssub.s32 %s18, %s30
    %s68 = ssub.s32 %s62, %s66
    %s69 = sor.u32 %s67, %s68
    %p70 = scmp.eq.s32.totalorder %s69, 0
    %s72 = sadd.s32 %s71, 1
    %s73 = scalar_select %p70, %s71, %s72
    %p76 = pneg %p70
    %p77 = scmp.eq.s32.totalorder %s11, 3
    %p78 = por %p76, %p77
    %p79 = scmp.ne.s32.totalorder %s71, %s74
    %p80 = scmp.eq.s32.totalorder %s11, 0
    %p81 = por %p79, %p80
    %p82 = scmp.ne.s32.totalorder %s71, %s74
    %p83 = scmp.eq.s32.totalorder %s16, 3
    %p84 = por %p82, %p83
    %p85 = scmp.ne.s32.totalorder %s74, %s75
    %p86 = scmp.eq.s32.totalorder %s16, 0
    %p87 = por %p85, %p86
    %p88 = scmp.ne.s32.totalorder %s74, %s75
    %p89 = scmp.eq.s32.totalorder %s17, 3
    %p90 = por %p88, %p89
    %p92 = scmp.ne.s32.totalorder %s75, %s91
    %p93 = scmp.eq.s32.totalorder %s17, 0
    %p94 = por %p92, %p93
    %s95 = sadd.s32 %s19, 1
    %s96 = smul.u32 %s95, 9
    %p97 = scmp.lt.s32.totalorder %s96, 17
    %s98 = scalar_select %p97, %s96, 17
    %s99 = sadd.s32 %s26, 1
    %s100 = smul.u32 %s99, 9
    %p101 = scmp.lt.s32.totalorder %s100, 17
    %s102 = scalar_select %p101, %s100, 17
    %s103 = ssub.s32 %s18, %s30
    %s104 = ssub.s32 %s98, %s102
    %s105 = sor.u32 %s103, %s104
    %p106 = scmp.eq.s32.totalorder %s105, 0
    %s108 = sadd.s32 %s107, 1
    %s109 = scalar_select %p106, %s107, %s108
    %p112 = pneg %p106
    %p113 = scmp.eq.s32.totalorder %s11, 3
    %p114 = por %p112, %p113
    %p115 = scmp.ne.s32.totalorder %s107, %s110
    %p116 = scmp.eq.s32.totalorder %s11, 0
    %p117 = por %p115, %p116
    %p118 = scmp.ne.s32.totalorder %s107, %s110
    %p119 = scmp.eq.s32.totalorder %s16, 3
    %p120 = por %p118, %p119
    %p121 = scmp.ne.s32.totalorder %s110, %s111
    %p122 = scmp.eq.s32.totalorder %s16, 0
    %p123 = por %p121, %p122
    %p124 = scmp.ne.s32.totalorder %s110, %s111
    %p125 = scmp.eq.s32.totalorder %s17, 3
    %p126 = por %p124, %p125
    %p128 = scmp.ne.s32.totalorder %s111, %s127
    %p129 = scmp.eq.s32.totalorder %s17, 0
    %p130 = por %p128, %p129
    %s132 = sadd.s32 %s131, 1
    %p135 = scmp.eq.s32.totalorder %s11, 3
    %p136 = scmp.ne.s32.totalorder %s131, %s133
    %p137 = scmp.eq.s32.totalorder %s11, 0
    %p138 = por %p136, %p137
    %p139 = scmp.ne.s32.totalorder %s131, %s133
    %p140 = scmp.eq.s32.totalorder %s16, 3
    %p141 = por %p139, %p140
    %p142 = scmp.ne.s32.totalorder %s133, %s134
    %p143 = scmp.eq.s32.totalorder %s16, 0
    %p144 = por %p142, %p143
    %p145 = scmp.ne.s32.totalorder %s133, %s134
    %p146 = scmp.eq.s32.totalorder %s17, 3
    %p147 = por %p145, %p146
    %p149 = scmp.ne.s32.totalorder %s134, %s148
    %p150 = scmp.eq.s32.totalorder %s17, 0
    %p151 = por %p149, %p150
    %s153 = sadd.s32 %s152, 1
    %p156 = scmp.eq.s32.totalorder %s11, 3
    %p157 = scmp.ne.s32.totalorder %s152, %s154
    %p158 = scmp.eq.s32.totalorder %s11, 0
    %p159 = por %p157, %p158
    %p160 = scmp.ne.s32.totalorder %s152, %s154
    %p161 = scmp.eq.s32.totalorder %s16, 3
    %p162 = por %p160, %p161
    %p163 = scmp.ne.s32.totalorder %s154, %s155
    %p164 = scmp.eq.s32.totalorder %s16, 0
    %p165 = por %p163, %p164
    %p166 = scmp.ne.s32.totalorder %s154, %s155
    %p167 = scmp.eq.s32.totalorder %s17, 3
    %p168 = por %p166, %p167
    %p170 = scmp.ne.s32.totalorder %s155, %s169
    %p171 = scmp.eq.s32.totalorder %s17, 0
    %p172 = por %p170, %p171
    %s173 = ssub.s32 %s18, %s30
    %s174 = ssub.s32 %s19, %s26
    %s175 = sor.u32 %s173, %s174
    %p176 = scmp.eq.s32.totalorder %s175, 0
    %s178 = sadd.s32 %s177, 1
    %s179 = scalar_select %p176, %s177, %s178
    %p182 = pneg %p176
    %p183 = scmp.eq.s32.totalorder %s11, 3
    %p184 = por %p182, %p183
    %p185 = scmp.ne.s32.totalorder %s177, %s180
    %p186 = scmp.eq.s32.totalorder %s11, 0
    %p187 = por %p185, %p186
    %p188 = scmp.ne.s32.totalorder %s177, %s180
    %p189 = scmp.eq.s32.totalorder %s16, 3
    %p190 = por %p188, %p189
    %p191 = scmp.ne.s32.totalorder %s180, %s181
    %p192 = scmp.eq.s32.totalorder %s16, 0
    %p193 = por %p191, %p192
    %p194 = scmp.ne.s32.totalorder %s180, %s181
    %p195 = scmp.eq.s32.totalorder %s17, 3
    %p196 = por %p194, %p195
    %p198 = scmp.ne.s32.totalorder %s181, %s197
    %p199 = scmp.eq.s32.totalorder %s17, 0
    %p200 = por %p198, %p199
    %p201 = scmp.le.s32.totalorder 1, %s11
    %p202 = scmp.lt.s32.totalorder %s11, 5
    %p203 = pnand %p201, %p202
    %p204 = pneg %p203
    // Predicated region
    $region9: #{res_unet_2d_encoder.5} parent=5 // pred_check
      _
    $region10: #{res_unet_2d_encoder.5} parent=5 // pred_check_branch
      %206 = sbr.rel (%p203) target = $region12
    $region11: #{res_unet_2d_encoder.5} parent=5 // pred_region
      %s207 = ssub.s32 %s11, 1
      // Predicated region
      $region13: #{res_unet_2d_encoder.5} parent=11 // pred_check
        %p208 = pneg %p144
      $region14: #{res_unet_2d_encoder.5} parent=11 // pred_check_branch
        %210 = sbr.rel (%p208) target = $region16
      $region15: #{res_unet_2d_encoder.5} parent=11 // pred_region
        _
      $region16: #{res_unet_2d_encoder.5} parent=11 // pred_fallthru
        _
      // Predicated region
      $region17: #{res_unet_2d_encoder.5} parent=11 // pred_check
        %p211 = pneg %p165
      $region18: #{res_unet_2d_encoder.5} parent=11 // pred_check_branch
        %213 = sbr.rel (%p211) target = $region20
      $region19: #{res_unet_2d_encoder.5} parent=11 // pred_region
        _
      $region20: #{res_unet_2d_encoder.5} parent=11 // pred_fallthru
        _
    $region12: #{res_unet_2d_encoder.5} parent=5 // pred_fallthru
      _
    %p214 = scmp.lt.s32.totalorder %s11, 4
    // Predicated region
    $region21: #{res_unet_2d_encoder.5} parent=5 // pred_check
      %p215 = pneg %p214
    $region22: #{res_unet_2d_encoder.5} parent=5 // pred_check_branch
      %217 = sbr.rel (%p215) target = $region24
    $region23: #{res_unet_2d_encoder.5} parent=5 // pred_region
      // Predicated region
      $region25: #{res_unet_2d_encoder.5} parent=23 // pred_check
        %p218 = pneg %p45
      $region26: #{res_unet_2d_encoder.5} parent=23 // pred_check_branch
        %220 = sbr.rel (%p218) target = $region28
      $region27: #{res_unet_2d_encoder.5} parent=23 // pred_region
        %s221 = smul.u32 9, %s19
        %p222 = scmp.lt.s32.totalorder %s18, 1
        %s223 = scalar_select %p222, %s18, 1
        %p224 = scmp.lt.s32.totalorder %s221, 17
        %s225 = scalar_select %p224, %s221, 17
        %s226 = smul.addr %s225, 4
        %s227 = smul.addr %s223, 72
        %s228 = sadd.s32 %s226, %s227
        %s229 = smul.addr %s228, 4
        %s230 = scalar_lea.vmem %s0, %s229
        %s231 = smul.u32 9, %s19
      $region28: #{res_unet_2d_encoder.5} parent=23 // pred_fallthru
        _
      // Predicated region
      $region29: #{res_unet_2d_encoder.5} parent=23 // pred_check
        %p232 = pneg %p81
      $region30: #{res_unet_2d_encoder.5} parent=23 // pred_check_branch
        %234 = sbr.rel (%p232) target = $region32
      $region31: #{res_unet_2d_encoder.5} parent=23 // pred_region
        %s235 = smul.u32 %s19, 9
        %s236 = ssub.s32 %s235, 1
        %p237 = scmp.gt.s32.totalorder %s236, 0
        %s238 = scalar_select %p237, %s236, 0
        %p239 = scmp.lt.s32.totalorder %s18, 1
        %s240 = scalar_select %p239, %s18, 1
        %p241 = scmp.lt.s32.totalorder %s238, 17
        %s242 = scalar_select %p241, %s238, 17
        %s243 = smul.addr %s242, 4
        %s244 = smul.addr %s240, 72
        %s245 = sadd.s32 %s243, %s244
        %s246 = smul.addr %s245, 4
        %s247 = scalar_lea.vmem %s1, %s246
        %s248 = smul.u32 %s19, 9
        %s249 = ssub.s32 %s248, 1
        %p250 = scmp.gt.s32.totalorder %s249, 0
        %s251 = scalar_select %p250, %s249, 0
      $region32: #{res_unet_2d_encoder.5} parent=23 // pred_fallthru
        _
      // Predicated region
      $region33: #{res_unet_2d_encoder.5} parent=23 // pred_check
        %p252 = pneg %p117
      $region34: #{res_unet_2d_encoder.5} parent=23 // pred_check_branch
        %254 = sbr.rel (%p252) target = $region36
      $region35: #{res_unet_2d_encoder.5} parent=23 // pred_region
        %s255 = sadd.s32 %s19, 1
        %s256 = smul.u32 %s255, 9
        %p257 = scmp.lt.s32.totalorder %s256, 17
        %s258 = scalar_select %p257, %s256, 17
        %p259 = scmp.lt.s32.totalorder %s18, 1
        %s260 = scalar_select %p259, %s18, 1
        %p261 = scmp.lt.s32.totalorder %s258, 17
        %s262 = scalar_select %p261, %s258, 17
        %s263 = smul.addr %s262, 4
        %s264 = smul.addr %s260, 72
        %s265 = sadd.s32 %s263, %s264
        %s266 = smul.addr %s265, 4
        %s267 = scalar_lea.vmem %s2, %s266
        %s268 = sadd.s32 %s19, 1
        %s269 = smul.u32 %s268, 9
        %p270 = scmp.lt.s32.totalorder %s269, 17
        %s271 = scalar_select %p270, %s269, 17
      $region36: #{res_unet_2d_encoder.5} parent=23 // pred_fallthru
        _
    $region24: #{res_unet_2d_encoder.5} parent=5 // pred_fallthru
      _
    %p272 = scmp.le.s32.totalorder 1, %s11
    %p273 = scmp.lt.s32.totalorder %s11, 5
    %p274 = pnand %p272, %p273
    %p275 = pneg %p274
    // Predicated region
    $region37: #{res_unet_2d_encoder.5} parent=5 // pred_check
      _
    $region38: #{res_unet_2d_encoder.5} parent=5 // pred_check_branch
      %277 = sbr.rel (%p274) target = $region40
    $region39: #{res_unet_2d_encoder.5} parent=5 // pred_region
      %s278 = ssub.s32 %s11, 1
      %s279 = smul.u32 9, %s21
      %p280 = scmp.lt.s32.totalorder %s20, 1
      %s281 = scalar_select %p280, %s20, 1
      %p282 = scmp.lt.s32.totalorder %s279, 17
      %s283 = scalar_select %p282, %s279, 17
      %s284 = smul.addr %s283, 4
      %s285 = smul.addr %s281, 72
      %s286 = sadd.s32 %s284, %s285
      %s287 = smul.addr %s286, 4
      %s288 = scalar_lea.vmem %s0, %s287
      %p289 = pneg %p51
      %p290 = pneg %p48
      %s291 = smul.u32 %s21, 9
      %s292 = ssub.s32 %s291, 1
      %p293 = scmp.gt.s32.totalorder %s292, 0
      %s294 = scalar_select %p293, %s292, 0
      %p295 = scmp.lt.s32.totalorder %s20, 1
      %s296 = scalar_select %p295, %s20, 1
      %p297 = scmp.lt.s32.totalorder %s294, 17
      %s298 = scalar_select %p297, %s294, 17
      %s299 = smul.addr %s298, 4
      %s300 = smul.addr %s296, 72
      %s301 = sadd.s32 %s299, %s300
      %s302 = smul.addr %s301, 4
      %s303 = scalar_lea.vmem %s1, %s302
      %p304 = pneg %p87
      %p305 = pneg %p84
      %s306 = sadd.s32 %s21, 1
      %s307 = smul.u32 %s306, 9
      %p308 = scmp.lt.s32.totalorder %s307, 17
      %s309 = scalar_select %p308, %s307, 17
      %p310 = scmp.lt.s32.totalorder %s20, 1
      %s311 = scalar_select %p310, %s20, 1
      %p312 = scmp.lt.s32.totalorder %s309, 17
      %s313 = scalar_select %p312, %s309, 17
      %s314 = smul.addr %s313, 4
      %s315 = smul.addr %s311, 72
      %s316 = sadd.s32 %s314, %s315
      %s317 = smul.addr %s316, 4
      %s318 = scalar_lea.vmem %s2, %s317
      %p319 = pneg %p123
      %p320 = pneg %p120
      %p321 = pneg %p144
      %p322 = pneg %p141
      %p323 = pneg %p165
      %p324 = pneg %p162
      %p325 = pneg %p193
      %p326 = pneg %p190
      %s327 = smul.u32 9, %s21
      %p328 = scmp.lt.s32.totalorder %s20, 1
      %s329 = scalar_select %p328, %s20, 1
      %p330 = scmp.lt.s32.totalorder %s327, 17
      %s331 = scalar_select %p330, %s327, 17
      %s332 = smul.addr %s331, 4
      %s333 = smul.addr %s329, 72
      %s334 = sadd.s32 %s332, %s333
      %s335 = smul.addr %s334, 4
      %s336 = scalar_lea.vmem %s5, %s335
      %s337 = smul.u32 9, %s21
      %p338 = scmp.lt.s32.totalorder %s20, 1
      %s339 = scalar_select %p338, %s20, 1
      %p340 = scmp.lt.s32.totalorder %s337, 17
      %s341 = scalar_select %p340, %s337, 17
      %s342 = smul.addr %s341, 4
      %s343 = smul.addr %s339, 72
      %s344 = sadd.s32 %s342, %s343
      %s345 = smul.addr %s344, 4
      %s346 = scalar_lea.vmem %s0, %s345
      %s347 = smul.u32 9, %s21
      %s348 = smul.u32 %s21, 9
      %s349 = ssub.s32 %s348, 1
      %p350 = scmp.gt.s32.totalorder %s349, 0
      %s351 = scalar_select %p350, %s349, 0
      %p352 = scmp.lt.s32.totalorder %s20, 1
      %s353 = scalar_select %p352, %s20, 1
      %p354 = scmp.lt.s32.totalorder %s351, 17
      %s355 = scalar_select %p354, %s351, 17
      %s356 = smul.addr %s355, 4
      %s357 = smul.addr %s353, 72
      %s358 = sadd.s32 %s356, %s357
      %s359 = smul.addr %s358, 4
      %s360 = scalar_lea.vmem %s1, %s359
      %s361 = smul.u32 %s21, 9
      %s362 = ssub.s32 %s361, 1
      %p363 = scmp.gt.s32.totalorder %s362, 0
      %s364 = scalar_select %p363, %s362, 0
      %s365 = sadd.s32 %s21, 1
      %s366 = smul.u32 %s365, 9
      %p367 = scmp.lt.s32.totalorder %s366, 17
      %s368 = scalar_select %p367, %s366, 17
      %p369 = scmp.lt.s32.totalorder %s20, 1
      %s370 = scalar_select %p369, %s20, 1
      %p371 = scmp.lt.s32.totalorder %s368, 17
      %s372 = scalar_select %p371, %s368, 17
      %s373 = smul.addr %s372, 4
      %s374 = smul.addr %s370, 72
      %s375 = sadd.s32 %s373, %s374
      %s376 = smul.addr %s375, 4
      %s377 = scalar_lea.vmem %s2, %s376
      %s378 = sadd.s32 %s21, 1
      %s379 = smul.u32 %s378, 9
      %p380 = scmp.lt.s32.totalorder %s379, 17
      %s381 = scalar_select %p380, %s379, 17
      %s382 = smul.u32 9, %s21
      %p383 = scmp.lt.s32.totalorder %s20, 1
      %s384 = scalar_select %p383, %s20, 1
      %p385 = scmp.lt.s32.totalorder %s382, 17
      %s386 = scalar_select %p385, %s382, 17
      %s387 = smul.addr %s386, 4
      %s388 = smul.addr %s384, 72
      %s389 = sadd.s32 %s387, %s388
      %s390 = smul.addr %s389, 4
      %s391 = scalar_lea.vmem %s5, %s390
      %s392 = smul.u32 9, %s21
      %v394 = vld [vmem:[%s360] sm:$0xf]
      %v395 = vld [vmem:[%s360 + $0x4] sm:$0xf]
      %v396 = vld [vmem:[%s360 + $0x8] sm:$0xf]
      %v397 = vld [vmem:[%s360 + $0xc] sm:$0xf]
      %v398 = vld [vmem:[%s346] sm:$0xf]
      %v399 = vld [vmem:[%s346 + $0x4] sm:$0xf]
      %v400 = vld [vmem:[%s346 + $0x8] sm:$0xf]
      %v401 = vld [vmem:[%s346 + $0xc] sm:$0xf]
      %v402 = vld [vmem:[%s346 + $0x10] sm:$0xf]
      %v403 = vld [vmem:[%s346 + $0x14] sm:$0xf]
      %v404 = vld [vmem:[%s346 + $0x18] sm:$0xf]
      %v405 = vld [vmem:[%s346 + $0x1c] sm:$0xf]
      %v406 = vld [vmem:[%s346 + $0x20] sm:$0xf]
      %v407 = vld [vmem:[%s346 + $0x24] sm:$0xf]
      %v408 = vld [vmem:[%s346 + $0x28] sm:$0xf]
      %v409 = vld [vmem:[%s346 + $0x2c] sm:$0xf]
      %v410 = vld [vmem:[%s346 + $0x30] sm:$0xf]
      %v411 = vld [vmem:[%s346 + $0x34] sm:$0xf]
      %v412 = vld [vmem:[%s346 + $0x38] sm:$0xf]
      %v413 = vld [vmem:[%s346 + $0x3c] sm:$0xf]
      %v414 = vld [vmem:[%s346 + $0x40] sm:$0xf]
      %v415 = vld [vmem:[%s346 + $0x44] sm:$0xf]
      %v416 = vld [vmem:[%s346 + $0x48] sm:$0xf]
      %v417 = vld [vmem:[%s346 + $0x4c] sm:$0xf]
      %v418 = vld [vmem:[%s346 + $0x50] sm:$0xf]
      %v419 = vld [vmem:[%s346 + $0x54] sm:$0xf]
      %v420 = vld [vmem:[%s346 + $0x58] sm:$0xf]
      %v421 = vld [vmem:[%s346 + $0x5c] sm:$0xf]
      %v422 = vld [vmem:[%s346 + $0x60] sm:$0xf]
      %v423 = vld [vmem:[%s346 + $0x64] sm:$0xf]
      %v424 = vld [vmem:[%s346 + $0x68] sm:$0xf]
      %v425 = vld [vmem:[%s346 + $0x6c] sm:$0xf]
      %v426 = vld [vmem:[%s346 + $0x70] sm:$0xf]
      %v427 = vld [vmem:[%s346 + $0x74] sm:$0xf]
      %v428 = vld [vmem:[%s346 + $0x78] sm:$0xf]
      %v429 = vld [vmem:[%s346 + $0x7c] sm:$0xf]
      %v430 = vld [vmem:[%s346 + $0x80] sm:$0xf]
      %v431 = vld [vmem:[%s346 + $0x84] sm:$0xf]
      %v432 = vld [vmem:[%s346 + $0x88] sm:$0xf]
      %v433 = vld [vmem:[%s346 + $0x8c] sm:$0xf]
      %v434 = vld [vmem:[%s377] sm:$0xf]
      %v435 = vld [vmem:[%s377 + $0x4] sm:$0xf]
      %v436 = vld [vmem:[%s377 + $0x8] sm:$0xf]
      %v437 = vld [vmem:[%s377 + $0xc] sm:$0xf]
      %v439 = vunpack.c.l.b16 %v437
      %v440 = vpack.c.b16 %v439, %v439
      %v442 = vshrl.u32 %v440, 16
      %v444 = vrot.slane %v442, 3
      %v489 = vunpack.c.l.b16 %v394
      %v490 = vunpack.c.l.b16 %v395
      %v491 = vunpack.c.l.b16 %v396
      %v492 = vunpack.c.l.b16 %v397
      %v493 = vunpack.c.l.b16 %v398
      %v494 = vunpack.c.l.b16 %v399
      %v495 = vunpack.c.l.b16 %v400
      %v496 = vunpack.c.l.b16 %v401
      %v497 = vunpack.c.l.b16 %v402
      %v498 = vunpack.c.l.b16 %v403
      %v499 = vunpack.c.l.b16 %v404
      %v500 = vunpack.c.l.b16 %v405
      %v501 = vunpack.c.l.b16 %v406
      %v502 = vunpack.c.l.b16 %v407
      %v503 = vunpack.c.l.b16 %v408
      %v504 = vunpack.c.l.b16 %v409
      %v505 = vunpack.c.l.b16 %v410
      %v506 = vunpack.c.l.b16 %v411
      %v507 = vunpack.c.l.b16 %v412
      %v508 = vunpack.c.l.b16 %v413
      %v509 = vunpack.c.l.b16 %v414
      %v510 = vunpack.c.l.b16 %v415
      %v511 = vunpack.c.l.b16 %v416
      %v512 = vunpack.c.l.b16 %v417
      %v513 = vunpack.c.l.b16 %v418
      %v514 = vunpack.c.l.b16 %v419
      %v515 = vunpack.c.l.b16 %v420
      %v516 = vunpack.c.l.b16 %v421
      %v517 = vunpack.c.l.b16 %v422
      %v518 = vunpack.c.l.b16 %v423
      %v519 = vunpack.c.l.b16 %v424
      %v520 = vunpack.c.l.b16 %v425
      %v521 = vunpack.c.l.b16 %v426
      %v522 = vunpack.c.l.b16 %v427
      %v523 = vunpack.c.l.b16 %v428
      %v524 = vunpack.c.l.b16 %v429
      %v525 = vunpack.c.l.b16 %v430
      %v526 = vunpack.c.l.b16 %v431
      %v527 = vunpack.c.l.b16 %v432
      %v528 = vunpack.c.l.b16 %v433
      %v529 = vunpack.c.l.b16 %v434
      %v530 = vunpack.c.l.b16 %v435
      %v531 = vunpack.c.l.b16 %v436
      %v532 = vpack.c.b16 %v490, %v489
      %v533 = vpack.c.b16 %v492, %v491
      %v534 = vpack.c.b16 %v494, %v493
      %v535 = vpack.c.b16 %v496, %v495
      %v536 = vpack.c.b16 %v498, %v497
      %v537 = vpack.c.b16 %v500, %v499
      %v538 = vpack.c.b16 %v502, %v501
      %v539 = vpack.c.b16 %v504, %v503
      %v540 = vpack.c.b16 %v506, %v505
      %v541 = vpack.c.b16 %v508, %v507
      %v542 = vpack.c.b16 %v510, %v509
      %v543 = vpack.c.b16 %v512, %v511
      %v544 = vpack.c.b16 %v514, %v513
      %v545 = vpack.c.b16 %v516, %v515
      %v546 = vpack.c.b16 %v518, %v517
      %v547 = vpack.c.b16 %v520, %v519
      %v548 = vpack.c.b16 %v522, %v521
      %v549 = vpack.c.b16 %v524, %v523
      %v550 = vpack.c.b16 %v526, %v525
      %v551 = vpack.c.b16 %v528, %v527
      %v552 = vpack.c.b16 %v530, %v529
      %v553 = vpack.c.b16 %v439, %v531
      %vm554 = vsmask.f32 256
      %v556 = vshrl.u32 %v532, 16
      %v558 = vrot.slane %v556, 7
      %v559 = vshll.u32 %v532, 16
      %v561 = vor.u32 %v558, %v559
      %v563 = vshrl.u32 %v533, 16
      %v565 = vrot.slane %v563, 7
      %v566 = vshll.u32 %v533, 16
      %v568 = vor.u32 %v565, %v566
      %v569 = vsel %vm554, %v558, %v568
      %v571 = vshrl.u32 %v534, 16
      %v573 = vrot.slane %v571, 7
      %v574 = vshll.u32 %v534, 16
      %v576 = vor.u32 %v573, %v574
      %v577 = vsel %vm554, %v565, %v576
      %v579 = vshrl.u32 %v535, 16
      %v581 = vrot.slane %v579, 7
      %v582 = vshll.u32 %v535, 16
      %v584 = vor.u32 %v581, %v582
      %v585 = vsel %vm554, %v573, %v584
      %v587 = vshrl.u32 %v536, 16
      %v589 = vrot.slane %v587, 7
      %v590 = vshll.u32 %v536, 16
      %v592 = vor.u32 %v589, %v590
      %v593 = vsel %vm554, %v581, %v592
      %v595 = vshrl.u32 %v537, 16
      %v597 = vrot.slane %v595, 7
      %v598 = vshll.u32 %v537, 16
      %v600 = vor.u32 %v597, %v598
      %v601 = vsel %vm554, %v589, %v600
      %v603 = vshrl.u32 %v538, 16
      %v605 = vrot.slane %v603, 7
      %v606 = vshll.u32 %v538, 16
      %v608 = vor.u32 %v605, %v606
      %v609 = vsel %vm554, %v597, %v608
      %v611 = vshrl.u32 %v539, 16
      %v613 = vrot.slane %v611, 7
      %v614 = vshll.u32 %v539, 16
      %v616 = vor.u32 %v613, %v614
      %v617 = vsel %vm554, %v605, %v616
      %v619 = vshrl.u32 %v540, 16
      %v621 = vrot.slane %v619, 7
      %v622 = vshll.u32 %v540, 16
      %v624 = vor.u32 %v621, %v622
      %v625 = vsel %vm554, %v613, %v624
      %v627 = vshrl.u32 %v541, 16
      %v629 = vrot.slane %v627, 7
      %v630 = vshll.u32 %v541, 16
      %v632 = vor.u32 %v629, %v630
      %v633 = vsel %vm554, %v621, %v632
      %v635 = vshrl.u32 %v542, 16
      %v637 = vrot.slane %v635, 7
      %v638 = vshll.u32 %v542, 16
      %v640 = vor.u32 %v637, %v638
      %v641 = vsel %vm554, %v629, %v640
      %v643 = vshrl.u32 %v543, 16
      %v645 = vrot.slane %v643, 7
      %v646 = vshll.u32 %v543, 16
      %v648 = vor.u32 %v645, %v646
      %v649 = vsel %vm554, %v637, %v648
      %v651 = vshrl.u32 %v544, 16
      %v653 = vrot.slane %v651, 7
      %v654 = vshll.u32 %v544, 16
      %v656 = vor.u32 %v653, %v654
      %v657 = vsel %vm554, %v645, %v656
      %v659 = vshrl.u32 %v545, 16
      %v661 = vrot.slane %v659, 7
      %v662 = vshll.u32 %v545, 16
      %v664 = vor.u32 %v661, %v662
      %v665 = vsel %vm554, %v653, %v664
      %v667 = vshrl.u32 %v546, 16
      %v669 = vrot.slane %v667, 7
      %v670 = vshll.u32 %v546, 16
      %v672 = vor.u32 %v669, %v670
      %v673 = vsel %vm554, %v661, %v672
      %v675 = vshrl.u32 %v547, 16
      %v677 = vrot.slane %v675, 7
      %v678 = vshll.u32 %v547, 16
      %v680 = vor.u32 %v677, %v678
      %v681 = vsel %vm554, %v669, %v680
      %v683 = vshrl.u32 %v548, 16
      %v685 = vrot.slane %v683, 7
      %v686 = vshll.u32 %v548, 16
      %v688 = vor.u32 %v685, %v686
      %v689 = vsel %vm554, %v677, %v688
      %v691 = vshrl.u32 %v549, 16
      %v693 = vrot.slane %v691, 7
      %v694 = vshll.u32 %v549, 16
      %v696 = vor.u32 %v693, %v694
      %v697 = vsel %vm554, %v685, %v696
      %v699 = vshrl.u32 %v550, 16
      %v701 = vrot.slane %v699, 7
      %v702 = vshll.u32 %v550, 16
      %v704 = vor.u32 %v701, %v702
      %v705 = vsel %vm554, %v693, %v704
      %v707 = vshrl.u32 %v551, 16
      %v709 = vrot.slane %v707, 7
      %v710 = vshll.u32 %v551, 16
      %v712 = vor.u32 %v709, %v710
      %v713 = vsel %vm554, %v701, %v712
      %v715 = vshrl.u32 %v552, 16
      %v717 = vrot.slane %v715, 7
      %v718 = vshll.u32 %v552, 16
      %v720 = vor.u32 %v717, %v718
      %v721 = vsel %vm554, %v709, %v720
      %v723 = vshrl.u32 %v553, 16
      %v725 = vrot.slane %v723, 7
      %v726 = vshll.u32 %v553, 16
      %v728 = vor.u32 %v725, %v726
      %v729 = vsel %vm554, %v717, %v728
      %vm752 = vcmask 1040384
      %vm753 = vmand %vm752, %vm554
      %v754 = vsel %vm753, %v444, %v561
      %vm755 = vsmask.f32 7424
      %v756 = vrot.slane %v559, 1
      %v757 = vor.u32 %v556, %v756
      %v758 = vrot.slane %v566, 1
      %v759 = vsel %vm755, %v757, %v758
      %v760 = vor.u32 %v563, %v758
      %v761 = vrot.slane %v574, 1
      %v762 = vsel %vm755, %v760, %v761
      %v763 = vor.u32 %v571, %v761
      %v764 = vrot.slane %v582, 1
      %v765 = vsel %vm755, %v763, %v764
      %v766 = vor.u32 %v579, %v764
      %v767 = vrot.slane %v590, 1
      %v768 = vsel %vm755, %v766, %v767
      %v769 = vor.u32 %v587, %v767
      %v770 = vrot.slane %v598, 1
      %v771 = vsel %vm755, %v769, %v770
      %v772 = vor.u32 %v595, %v770
      %v773 = vrot.slane %v606, 1
      %v774 = vsel %vm755, %v772, %v773
      %v775 = vor.u32 %v603, %v773
      %v776 = vrot.slane %v614, 1
      %v777 = vsel %vm755, %v775, %v776
      %v778 = vor.u32 %v611, %v776
      %v779 = vrot.slane %v622, 1
      %v780 = vsel %vm755, %v778, %v779
      %v781 = vor.u32 %v619, %v779
      %v782 = vrot.slane %v630, 1
      %v783 = vsel %vm755, %v781, %v782
      %v784 = vor.u32 %v627, %v782
      %v785 = vrot.slane %v638, 1
      %v786 = vsel %vm755, %v784, %v785
      %v787 = vor.u32 %v635, %v785
      %v788 = vrot.slane %v646, 1
      %v789 = vsel %vm755, %v787, %v788
      %v790 = vor.u32 %v643, %v788
      %v791 = vrot.slane %v654, 1
      %v792 = vsel %vm755, %v790, %v791
      %v793 = vor.u32 %v651, %v791
      %v794 = vrot.slane %v662, 1
      %v795 = vsel %vm755, %v793, %v794
      %v796 = vor.u32 %v659, %v794
      %v797 = vrot.slane %v670, 1
      %v798 = vsel %vm755, %v796, %v797
      %v799 = vor.u32 %v667, %v797
      %v800 = vrot.slane %v678, 1
      %v801 = vsel %vm755, %v799, %v800
      %v802 = vor.u32 %v675, %v800
      %v803 = vrot.slane %v686, 1
      %v804 = vsel %vm755, %v802, %v803
      %v805 = vor.u32 %v683, %v803
      %v806 = vrot.slane %v694, 1
      %v807 = vsel %vm755, %v805, %v806
      %v808 = vor.u32 %v691, %v806
      %v809 = vrot.slane %v702, 1
      %v810 = vsel %vm755, %v808, %v809
      %v811 = vor.u32 %v699, %v809
      %v812 = vrot.slane %v710, 1
      %v813 = vsel %vm755, %v811, %v812
      %v814 = vor.u32 %v707, %v812
      %v815 = vrot.slane %v718, 1
      %v816 = vsel %vm755, %v814, %v815
      %v817 = vor.u32 %v715, %v815
      %v818 = vrot.slane %v726, 1
      %v819 = vsel %vm755, %v817, %v818
      %v820 = vor.u32 %v723, %v818
      %v843 = vpack.c.b16 %v489, %v489
      %v845 = vshll.u32 %v843, 16
      %v847 = vrot.slane %v845, 1
      %vm849 = vcmask 1047552
      %vm850 = vmand %vm849, %vm755
      %v851 = vsel %vm850, %v820, %v847
      %v874 = vld [vmem:[%s3] sm:$0xf]
      %v875 = vld [vmem:[%s3 + $0x4] sm:$0xf]
      %v876 = vld [vmem:[%s3 + $0x8] sm:$0xf]
      %v877 = vld [vmem:[%s3 + $0xc] sm:$0xf]
      %v878 = vld [vmem:[%s3 + $0x10] sm:$0xf]
      %v879 = vld [vmem:[%s3 + $0x14] sm:$0xf]
      %v880 = vld [vmem:[%s3 + $0x18] sm:$0xf]
      %v881 = vld [vmem:[%s3 + $0x1c] sm:$0xf]
      %v882 = vld [vmem:[%s3 + $0x20] sm:$0xf]
      %v883 = vld [vmem:[%s3 + $0x24] sm:$0xf]
      %v884 = vld [vmem:[%s3 + $0x28] sm:$0xf]
      %v885 = vld [vmem:[%s3 + $0x2c] sm:$0xf]
      %v886 = vld [vmem:[%s3 + $0x30] sm:$0xf]
      %v887 = vld [vmem:[%s3 + $0x34] sm:$0xf]
      %v888 = vld [vmem:[%s3 + $0x38] sm:$0xf]
      %v889 = vld [vmem:[%s3 + $0x3c] sm:$0xf]
      %v890 = vld [vmem:[%s3 + $0x40] sm:$0xf]
      %v891 = vld [vmem:[%s3 + $0x44] sm:$0xf]
      %v892 = vld [vmem:[%s3 + $0x48] sm:$0xf]
      %v893 = vld [vmem:[%s3 + $0x4c] sm:$0xf]
      %v894 = vld [vmem:[%s3 + $0x50] sm:$0xf]
      %v895 = vld [vmem:[%s3 + $0x54] sm:$0xf]
      %v896 = vld [vmem:[%s3 + $0x58] sm:$0xf]
      %v897 = vld [vmem:[%s3 + $0x5c] sm:$0xf]
      %v898 = vld [vmem:[%s3 + $0x60] sm:$0xf]
      %v899 = vld [vmem:[%s3 + $0x64] sm:$0xf]
      %v900 = vld [vmem:[%s3 + $0x68] sm:$0xf]
      %v901 = vld [vmem:[%s3 + $0x6c] sm:$0xf]
      %v902 = vld [vmem:[%s3 + $0x70] sm:$0xf]
      %v903 = vld [vmem:[%s3 + $0x74] sm:$0xf]
      %v904 = vld [vmem:[%s3 + $0x78] sm:$0xf]
      %v905 = vld [vmem:[%s3 + $0x7c] sm:$0xf]
      %v906 = vld [vmem:[%s3 + $0x80] sm:$0xf]
      %v907 = vld [vmem:[%s3 + $0x84] sm:$0xf]
      %v908 = vld [vmem:[%s3 + $0x88] sm:$0xf]
      %v909 = vld [vmem:[%s3 + $0x8c] sm:$0xf]
      %v910 = vld [vmem:[%s3 + $0x90] sm:$0xf]
      %v911 = vld [vmem:[%s3 + $0x94] sm:$0xf]
      %v912 = vld [vmem:[%s3 + $0x98] sm:$0xf]
      %v913 = vld [vmem:[%s3 + $0x9c] sm:$0xf]
      %v914 = vld [vmem:[%s3 + $0xa0] sm:$0xf]
      %v915 = vld [vmem:[%s3 + $0xa4] sm:$0xf]
      %v916 = vld [vmem:[%s3 + $0xa8] sm:$0xf]
      %v917 = vld [vmem:[%s3 + $0xac] sm:$0xf]
      %v918 = vld [vmem:[%s3 + $0xb0] sm:$0xf]
      %v919 = vld [vmem:[%s3 + $0xb4] sm:$0xf]
      %v920 = vld [vmem:[%s3 + $0xb8] sm:$0xf]
      %v921 = vld [vmem:[%s3 + $0xbc] sm:$0xf]
      %s922 = scalar_lea.vmem %s3, 192
      %v923 = vld [vmem:[%s922] sm:$0xf]
      %v924 = vld [vmem:[%s922 + $0x4] sm:$0xf]
      %v925 = vld [vmem:[%s922 + $0x8] sm:$0xf]
      %v926 = vld [vmem:[%s922 + $0xc] sm:$0xf]
      %v927 = vld [vmem:[%s922 + $0x10] sm:$0xf]
      %v928 = vld [vmem:[%s922 + $0x14] sm:$0xf]
      %v929 = vld [vmem:[%s922 + $0x18] sm:$0xf]
      %v930 = vld [vmem:[%s922 + $0x1c] sm:$0xf]
      %v931 = vld [vmem:[%s922 + $0x20] sm:$0xf]
      %v932 = vld [vmem:[%s922 + $0x24] sm:$0xf]
      %v933 = vld [vmem:[%s922 + $0x28] sm:$0xf]
      %v934 = vld [vmem:[%s922 + $0x2c] sm:$0xf]
      %v935 = vld [vmem:[%s922 + $0x30] sm:$0xf]
      %v936 = vld [vmem:[%s922 + $0x34] sm:$0xf]
      %v937 = vld [vmem:[%s922 + $0x38] sm:$0xf]
      %v938 = vld [vmem:[%s922 + $0x3c] sm:$0xf]
      %v939 = vld [vmem:[%s922 + $0x40] sm:$0xf]
      %v940 = vld [vmem:[%s922 + $0x44] sm:$0xf]
      %v941 = vld [vmem:[%s922 + $0x48] sm:$0xf]
      %v942 = vld [vmem:[%s922 + $0x4c] sm:$0xf]
      %v943 = vld [vmem:[%s922 + $0x50] sm:$0xf]
      %v944 = vld [vmem:[%s922 + $0x54] sm:$0xf]
      %v945 = vld [vmem:[%s922 + $0x58] sm:$0xf]
      %v946 = vld [vmem:[%s922 + $0x5c] sm:$0xf]
      %v947 = vld [vmem:[%s922 + $0x60] sm:$0xf]
      %v948 = vld [vmem:[%s922 + $0x64] sm:$0xf]
      %v949 = vld [vmem:[%s922 + $0x68] sm:$0xf]
      %v950 = vld [vmem:[%s922 + $0x6c] sm:$0xf]
      %v951 = vld [vmem:[%s922 + $0x70] sm:$0xf]
      %v952 = vld [vmem:[%s922 + $0x74] sm:$0xf]
      %v953 = vld [vmem:[%s922 + $0x78] sm:$0xf]
      %v954 = vld [vmem:[%s922 + $0x7c] sm:$0xf]
      %v955 = vld [vmem:[%s922 + $0x80] sm:$0xf]
      %v956 = vld [vmem:[%s922 + $0x84] sm:$0xf]
      %v957 = vld [vmem:[%s922 + $0x88] sm:$0xf]
      %v958 = vld [vmem:[%s922 + $0x8c] sm:$0xf]
      %v959 = vld [vmem:[%s922 + $0x90] sm:$0xf]
      %v960 = vld [vmem:[%s922 + $0x94] sm:$0xf]
      %v961 = vld [vmem:[%s922 + $0x98] sm:$0xf]
      %v962 = vld [vmem:[%s922 + $0x9c] sm:$0xf]
      %v963 = vld [vmem:[%s922 + $0xa0] sm:$0xf]
      %v964 = vld [vmem:[%s922 + $0xa4] sm:$0xf]
      %v965 = vld [vmem:[%s922 + $0xa8] sm:$0xf]
      %v966 = vld [vmem:[%s922 + $0xac] sm:$0xf]
      %v967 = vld [vmem:[%s922 + $0xb0] sm:$0xf]
      %v968 = vld [vmem:[%s922 + $0xb4] sm:$0xf]
      %v969 = vld [vmem:[%s922 + $0xb8] sm:$0xf]
      %v970 = vld [vmem:[%s922 + $0xbc] sm:$0xf]
      %v1019 = vunpack.c.l.b16 %v923
      %v1020 = vunpack.c.l.b16 %v924
      %v1021 = vunpack.c.l.b16 %v925
      %v1022 = vunpack.c.l.b16 %v926
      %v1023 = vunpack.c.l.b16 %v927
      %v1024 = vunpack.c.l.b16 %v928
      %v1025 = vunpack.c.l.b16 %v929
      %v1026 = vunpack.c.l.b16 %v930
      %v1027 = vunpack.c.l.b16 %v931
      %v1028 = vunpack.c.l.b16 %v932
      %v1029 = vunpack.c.l.b16 %v933
      %v1030 = vunpack.c.l.b16 %v934
      %v1031 = vunpack.c.l.b16 %v935
      %v1032 = vunpack.c.l.b16 %v936
      %v1033 = vunpack.c.l.b16 %v937
      %v1034 = vunpack.c.l.b16 %v938
      %v1035 = vunpack.c.l.b16 %v939
      %v1036 = vunpack.c.l.b16 %v940
      %v1037 = vunpack.c.l.b16 %v941
      %v1038 = vunpack.c.l.b16 %v942
      %v1039 = vunpack.c.l.b16 %v943
      %v1040 = vunpack.c.l.b16 %v944
      %v1041 = vunpack.c.l.b16 %v945
      %v1042 = vunpack.c.l.b16 %v946
      %v1043 = vunpack.c.l.b16 %v947
      %v1044 = vunpack.c.l.b16 %v948
      %v1045 = vunpack.c.l.b16 %v949
      %v1046 = vunpack.c.l.b16 %v950
      %v1047 = vunpack.c.l.b16 %v951
      %v1048 = vunpack.c.l.b16 %v952
      %v1049 = vunpack.c.l.b16 %v953
      %v1050 = vunpack.c.l.b16 %v954
      %v1051 = vunpack.c.l.b16 %v955
      %v1052 = vunpack.c.l.b16 %v956
      %v1053 = vunpack.c.l.b16 %v957
      %v1054 = vunpack.c.l.b16 %v958
      %v1055 = vunpack.c.l.b16 %v959
      %v1056 = vunpack.c.l.b16 %v960
      %v1057 = vunpack.c.l.b16 %v961
      %v1058 = vunpack.c.l.b16 %v962
      %v1059 = vunpack.c.l.b16 %v963
      %v1060 = vunpack.c.l.b16 %v964
      %v1061 = vunpack.c.l.b16 %v965
      %v1062 = vunpack.c.l.b16 %v966
      %v1063 = vunpack.c.l.b16 %v967
      %v1064 = vunpack.c.l.b16 %v968
      %v1065 = vunpack.c.l.b16 %v969
      %v1066 = vunpack.c.l.b16 %v970
      %v1067 = vpack.c.b16 %v1020, %v1019
      %v1068 = vpack.c.b16 %v1022, %v1021
      %v1069 = vpack.c.b16 %v1024, %v1023
      %v1070 = vpack.c.b16 %v1026, %v1025
      %v1071 = vpack.c.b16 %v1028, %v1027
      %v1072 = vpack.c.b16 %v1030, %v1029
      %v1073 = vpack.c.b16 %v1032, %v1031
      %v1074 = vpack.c.b16 %v1034, %v1033
      %v1075 = vpack.c.b16 %v1036, %v1035
      %v1076 = vpack.c.b16 %v1038, %v1037
      %v1077 = vpack.c.b16 %v1040, %v1039
      %v1078 = vpack.c.b16 %v1042, %v1041
      %v1079 = vpack.c.b16 %v1044, %v1043
      %v1080 = vpack.c.b16 %v1046, %v1045
      %v1081 = vpack.c.b16 %v1048, %v1047
      %v1082 = vpack.c.b16 %v1050, %v1049
      %v1083 = vpack.c.b16 %v1052, %v1051
      %v1084 = vpack.c.b16 %v1054, %v1053
      %v1085 = vpack.c.b16 %v1056, %v1055
      %v1086 = vpack.c.b16 %v1058, %v1057
      %v1087 = vpack.c.b16 %v1060, %v1059
      %v1088 = vpack.c.b16 %v1062, %v1061
      %v1089 = vpack.c.b16 %v1064, %v1063
      %v1090 = vpack.c.b16 %v1066, %v1065
      %1115 = vmatprep.subr.bf16.mxu0 0
      %1116 = vmatpush1.bf16.msra.mxu0 %v1067
      %1117 = vmatprep.subr.bf16.mxu0 0
      %1118 = vmatpush1.bf16.msra.mxu0 %v1068
      %1119 = vmatprep.subr.bf16.mxu0 0
      %1120 = vmatpush1.bf16.msra.mxu0 %v1069
      %1121 = vmatprep.subr.bf16.mxu0 0
      %1122 = vmatpush1.bf16.msra.mxu0 %v1070
      %1123 = vmatprep.subr.bf16.mxu0 0
      %1124 = vmatpush1.bf16.msra.mxu0 %v1071
      %1125 = vmatprep.subr.bf16.mxu0 0
      %1126 = vmatpush1.bf16.msra.mxu0 %v1072
      %1127 = vmatprep.subr.bf16.mxu0 0
      %1128 = vmatpush1.bf16.msra.mxu0 %v1073
      %1129 = vmatprep.subr.bf16.mxu0 0
      %1130 = vmatpush1.bf16.msra.mxu0 %v1074
      %1131 = vmatprep.subr.bf16.mxu0 0
      %1132 = vmatpush1.bf16.msra.mxu0 %v1075
      %1133 = vmatprep.subr.bf16.mxu0 0
      %1134 = vmatpush1.bf16.msra.mxu0 %v1076
      %1135 = vmatprep.subr.bf16.mxu0 0
      %1136 = vmatpush1.bf16.msra.mxu0 %v1077
      %1137 = vmatprep.subr.bf16.mxu0 0
      %1138 = vmatpush1.bf16.msra.mxu0 %v1078
      %1139 = vmatprep.subr.bf16.mxu0 0
      %1140 = vmatpush1.bf16.msra.mxu0 %v1079
      %1141 = vmatprep.subr.bf16.mxu0 0
      %1142 = vmatpush1.bf16.msra.mxu0 %v1080
      %1143 = vmatprep.subr.bf16.mxu0 0
      %1144 = vmatpush1.bf16.msra.mxu0 %v1081
      %1145 = vmatprep.subr.bf16.mxu0 0
      %1146 = vmatpush1.bf16.msra.mxu0 %v1082
      %1147 = vmatprep.mubr.bf16.mxu0 %v534
      %1148 = vmatmul.mubr.bf16.gmra.mrb[0].mxu0 %v577
      %v1149 = vpop.f32.mrb[0].mxu0
      %v1150 = vadd.f32 0.0, %v1149
      %v1151 = vpop.f32.mrb[0].mxu0
      %v1152 = vpop.f32.mrb[0].mxu0
      %v1153 = vadd.f32 0.0, %v1152
      %v1154 = vpop.f32.mrb[0].mxu0
      %1155 = vmatprep.mubr.bf16.mxu0 %v535
      %1156 = vmatmul.mubr.bf16.gmra.mrb[0].mxu0 %v585
      %v1157 = vpop.f32.mrb[0].mxu0
      %v1158 = vadd.f32 0.0, %v1157
      %v1159 = vpop.f32.mrb[0].mxu0
      %v1160 = vpop.f32.mrb[0].mxu0
      %v1161 = vadd.f32 0.0, %v1160
      %v1162 = vpop.f32.mrb[0].mxu0
      %1163 = vmatprep.mubr.bf16.mxu0 %v536
      %1164 = vmatmul.mubr.bf16.gmra.mrb[0].mxu0 %v593
      %v1165 = vpop.f32.mrb[0].mxu0
      %v1166 = vadd.f32 0.0, %v1165
      %v1167 = vpop.f32.mrb[0].mxu0
      %v1168 = vpop.f32.mrb[0].mxu0
      %v1169 = vadd.f32 0.0, %v1168
      %v1170 = vpop.f32.mrb[0].mxu0
      %1171 = vmatprep.mubr.bf16.mxu0 %v537
      %1172 = vmatmul.mubr.bf16.gmra.mrb[0].mxu0 %v601
      %v1173 = vpop.f32.mrb[0].mxu0
      %v1174 = vadd.f32 0.0, %v1173
      %v1175 = vpop.f32.mrb[0].mxu0
      %v1176 = vpop.f32.mrb[0].mxu0
      %v1177 = vadd.f32 0.0, %v1176
      %v1178 = vpop.f32.mrb[0].mxu0
      %1179 = vmatprep.mubr.bf16.mxu0 %v538
      %1180 = vmatmul.mubr.bf16.gmra.mrb[0].mxu0 %v609
      %v1181 = vpop.f32.mrb[0].mxu0
      %v1182 = vadd.f32 0.0, %v1181
      %v1183 = vpop.f32.mrb[0].mxu0
      %v1184 = vpop.f32.mrb[0].mxu0
      %v1185 = vadd.f32 0.0, %v1184
      %v1186 = vpop.f32.mrb[0].mxu0
      %1187 = vmatprep.mubr.bf16.mxu0 %v539
      %1188 = vmatmul.mubr.bf16.gmra.mrb[0].mxu0 %v617
      %v1189 = vpop.f32.mrb[0].mxu0
      %v1190 = vadd.f32 0.0, %v1189
      %v1191 = vpop.f32.mrb[0].mxu0
      %v1192 = vpop.f32.mrb[0].mxu0
      %v1193 = vadd.f32 0.0, %v1192
      %v1194 = vpop.f32.mrb[0].mxu0
      %1195 = vmatprep.mubr.bf16.mxu0 %v540
      %1196 = vmatmul.mubr.bf16.gmra.mrb[0].mxu0 %v625
      %v1197 = vpop.f32.mrb[0].mxu0
      %v1198 = vadd.f32 0.0, %v1197
      %v1199 = vpop.f32.mrb[0].mxu0
      %v1200 = vpop.f32.mrb[0].mxu0
      %v1201 = vadd.f32 0.0, %v1200
      %v1202 = vpop.f32.mrb[0].mxu0
      %1203 = vmatprep.mubr.bf16.mxu0 %v541
      %1204 = vmatmul.mubr.bf16.gmra.mrb[0].mxu0 %v633
      %v1205 = vpop.f32.mrb[0].mxu0
      %v1206 = vadd.f32 0.0, %v1205
      %v1207 = vpop.f32.mrb[0].mxu0
      %v1208 = vpop.f32.mrb[0].mxu0
      %v1209 = vadd.f32 0.0, %v1208
      %v1210 = vpop.f32.mrb[0].mxu0
      %1211 = vmatprep.mubr.bf16.mxu0 %v542
      %1212 = vmatmul.mubr.bf16.gmra.mrb[0].mxu0 %v641
      %v1213 = vpop.f32.mrb[0].mxu0
      %v1214 = vadd.f32 0.0, %v1213
      %v1215 = vpop.f32.mrb[0].mxu0
      %v1216 = vpop.f32.mrb[0].mxu0
      %v1217 = vadd.f32 0.0, %v1216
      %v1218 = vpop.f32.mrb[0].mxu0
      %1219 = vmatprep.mubr.bf16.mxu0 %v543
      %1220 = vmatmul.mubr.bf16.gmra.mrb[0].mxu0 %v649
      %v1221 = vpop.f32.mrb[0].mxu0
      %v1222 = vadd.f32 0.0, %v1221
      %v1223 = vpop.f32.mrb[0].mxu0
      %v1224 = vpop.f32.mrb[0].mxu0
      %v1225 = vadd.f32 0.0, %v1224
      %v1226 = vpop.f32.mrb[0].mxu0
      %1227 = vmatprep.mubr.bf16.mxu0 %v544
      %1228 = vmatmul.mubr.bf16.gmra.mrb[0].mxu0 %v657
      %v1229 = vpop.f32.mrb[0].mxu0
      %v1230 = vadd.f32 0.0, %v1229
      %v1231 = vpop.f32.mrb[0].mxu0
      %v1232 = vpop.f32.mrb[0].mxu0
      %v1233 = vadd.f32 0.0, %v1232
      %v1234 = vpop.f32.mrb[0].mxu0
      %1235 = vmatprep.mubr.bf16.mxu0 %v545
      %1236 = vmatmul.mubr.bf16.gmra.mrb[0].mxu0 %v665
      %v1237 = vpop.f32.mrb[0].mxu0
      %v1238 = vadd.f32 0.0, %v1237
      %v1239 = vpop.f32.mrb[0].mxu0
      %v1240 = vpop.f32.mrb[0].mxu0
      %v1241 = vadd.f32 0.0, %v1240
      %v1242 = vpop.f32.mrb[0].mxu0
      %1243 = vmatprep.mubr.bf16.mxu0 %v546
      %1244 = vmatmul.mubr.bf16.gmra.mrb[0].mxu0 %v673
      %v1245 = vpop.f32.mrb[0].mxu0
      %v1246 = vadd.f32 0.0, %v1245
      %v1247 = vpop.f32.mrb[0].mxu0
      %v1248 = vpop.f32.mrb[0].mxu0
      %v1249 = vadd.f32 0.0, %v1248
      %v1250 = vpop.f32.mrb[0].mxu0
      %1251 = vmatprep.mubr.bf16.mxu0 %v547
      %1252 = vmatmul.mubr.bf16.gmra.mrb[0].mxu0 %v681
      %v1253 = vpop.f32.mrb[0].mxu0
      %v1254 = vadd.f32 0.0, %v1253
      %v1255 = vpop.f32.mrb[0].mxu0
      %v1256 = vpop.f32.mrb[0].mxu0
      %v1257 = vadd.f32 0.0, %v1256
      %v1258 = vpop.f32.mrb[0].mxu0
      %1259 = vmatprep.mubr.bf16.mxu0 %v548
      %1260 = vmatmul.mubr.bf16.gmra.mrb[0].mxu0 %v689
      %v1261 = vpop.f32.mrb[0].mxu0
      %v1262 = vadd.f32 0.0, %v1261
      %v1263 = vpop.f32.mrb[0].mxu0
      %v1264 = vpop.f32.mrb[0].mxu0
      %v1265 = vadd.f32 0.0, %v1264
      %v1266 = vpop.f32.mrb[0].mxu0
      %1267 = vmatprep.mubr.bf16.mxu0 %v549
      %1268 = vmatmul.mubr.bf16.gmra.mrb[0].mxu0 %v697
      %v1269 = vpop.f32.mrb[0].mxu0
      %v1270 = vadd.f32 0.0, %v1269
      %v1271 = vpop.f32.mrb[0].mxu0
      %v1272 = vpop.f32.mrb[0].mxu0
      %v1273 = vadd.f32 0.0, %v1272
      %v1274 = vpop.f32.mrb[0].mxu0
      %1275 = vmatprep.mubr.bf16.mxu0 %v550
      %1276 = vmatmul.mubr.bf16.gmra.mrb[0].mxu0 %v705
      %v1277 = vpop.f32.mrb[0].mxu0
      %v1278 = vadd.f32 0.0, %v1277
      %v1279 = vpop.f32.mrb[0].mxu0
      %v1280 = vpop.f32.mrb[0].mxu0
      %v1281 = vadd.f32 0.0, %v1280
      %v1282 = vpop.f32.mrb[0].mxu0
      %1283 = vmatprep.mubr.bf16.mxu0 %v551
      %1284 = vmatmul.mubr.bf16.gmra.mrb[0].mxu0 %v713
      %v1285 = vpop.f32.mrb[0].mxu0
      %v1286 = vadd.f32 0.0, %v1285
      %v1287 = vpop.f32.mrb[0].mxu0
      %v1288 = vpop.f32.mrb[0].mxu0
      %v1289 = vadd.f32 0.0, %v1288
      %v1290 = vpop.f32.mrb[0].mxu0
      %1291 = vdwg.mxu0
      %1292 = vmatprep.subr.bf16.mxu0 0
      %1293 = vmatpush1.bf16.msra.mxu0 %v1083
      %1294 = vmatprep.subr.bf16.mxu0 0
      %1295 = vmatpush1.bf16.msra.mxu0 %v1084
      %1296 = vmatprep.subr.bf16.mxu0 0
      %1297 = vmatpush1.bf16.msra.mxu0 %v1085
      %1298 = vmatprep.subr.bf16.mxu0 0
      %1299 = vmatpush1.bf16.msra.mxu0 %v1086
      %1300 = vmatprep.subr.bf16.mxu0 0
      %1301 = vmatpush1.bf16.msra.mxu0 %v1087
      %1302 = vmatprep.subr.bf16.mxu0 0
      %1303 = vmatpush1.bf16.msra.mxu0 %v1088
      %1304 = vmatprep.subr.bf16.mxu0 0
      %1305 = vmatpush1.bf16.msra.mxu0 %v1089
      %1306 = vmatprep.subr.bf16.mxu0 0
      %1307 = vmatpush1.bf16.msra.mxu0 %v1090
      %1308 = vmatprep.subr.bf16.mxu0 0
      %1309 = vmatpush1.bf16.msra.mxu0 0
      %1310 = vmatprep.subr.bf16.mxu0 0
      %1311 = vmatpush1.bf16.msra.mxu0 0
      %1312 = vmatprep.subr.bf16.mxu0 0
      %1313 = vmatpush1.bf16.msra.mxu0 0
      %1314 = vmatprep.subr.bf16.mxu0 0
      %1315 = vmatpush1.bf16.msra.mxu0 0
      %1316 = vmatprep.subr.bf16.mxu0 0
      %1317 = vmatpush1.bf16.msra.mxu0 0
      %1318 = vmatprep.subr.bf16.mxu0 0
      %1319 = vmatpush1.bf16.msra.mxu0 0
      %1320 = vmatprep.subr.bf16.mxu0 0
      %1321 = vmatpush1.bf16.msra.mxu0 0
      %1322 = vmatprep.subr.bf16.mxu0 0
      %1323 = vmatpush1.bf16.msra.mxu0 0
      %1324 = vmatprep.mubr.bf16.mxu0 0
      %1325 = vmatmul.mubr.bf16.gmra.mrb[0].mxu0 %v765
      %v1326 = vpop.f32.mrb[0].mxu0
      %v1327 = vadd.f32 %v1150, %v1326
      %v1328 = vpop.f32.mrb[0].mxu0
      %v1329 = vpop.f32.mrb[0].mxu0
      %v1330 = vadd.f32 %v1153, %v1329
      %v1331 = vpop.f32.mrb[0].mxu0
      %1332 = vmatprep.mubr.bf16.mxu0 0
      %1333 = vmatmul.mubr.bf16.gmra.mrb[0].mxu0 %v768
      %v1334 = vpop.f32.mrb[0].mxu0
      %v1335 = vadd.f32 %v1158, %v1334
      %v1336 = vpop.f32.mrb[0].mxu0
      %v1337 = vpop.f32.mrb[0].mxu0
      %v1338 = vadd.f32 %v1161, %v1337
      %v1339 = vpop.f32.mrb[0].mxu0
      %1340 = vmatprep.mubr.bf16.mxu0 0
      %1341 = vmatmul.mubr.bf16.gmra.mrb[0].mxu0 %v771
      %v1342 = vpop.f32.mrb[0].mxu0
      %v1343 = vadd.f32 %v1166, %v1342
      %v1344 = vpop.f32.mrb[0].mxu0
      %v1345 = vpop.f32.mrb[0].mxu0
      %v1346 = vadd.f32 %v1169, %v1345
      %v1347 = vpop.f32.mrb[0].mxu0
      %1348 = vmatprep.mubr.bf16.mxu0 0
      %1349 = vmatmul.mubr.bf16.gmra.mrb[0].mxu0 %v774
      %v1350 = vpop.f32.mrb[0].mxu0
      %v1351 = vadd.f32 %v1174, %v1350
      %v1352 = vpop.f32.mrb[0].mxu0
      %v1353 = vpop.f32.mrb[0].mxu0
      %v1354 = vadd.f32 %v1177, %v1353
      %v1355 = vpop.f32.mrb[0].mxu0
      %1356 = vmatprep.mubr.bf16.mxu0 0
      %1357 = vmatmul.mubr.bf16.gmra.mrb[0].mxu0 %v777
      %v1358 = vpop.f32.mrb[0].mxu0
      %v1359 = vadd.f32 %v1182, %v1358
      %v1360 = vpop.f32.mrb[0].mxu0
      %v1361 = vpop.f32.mrb[0].mxu0
      %v1362 = vadd.f32 %v1185, %v1361
      %v1363 = vpop.f32.mrb[0].mxu0
      %1364 = vmatprep.mubr.bf16.mxu0 0
      %1365 = vmatmul.mubr.bf16.gmra.mrb[0].mxu0 %v780
      %v1366 = vpop.f32.mrb[0].mxu0
      %v1367 = vadd.f32 %v1190, %v1366
      %v1368 = vpop.f32.mrb[0].mxu0
      %v1369 = vpop.f32.mrb[0].mxu0
      %v1370 = vadd.f32 %v1193, %v1369
      %v1371 = vpop.f32.mrb[0].mxu0
      %1372 = vmatprep.mubr.bf16.mxu0 0
      %1373 = vmatmul.mubr.bf16.gmra.mrb[0].mxu0 %v783
      %v1374 = vpop.f32.mrb[0].mxu0
      %v1375 = vadd.f32 %v1198, %v1374
      %v1376 = vpop.f32.mrb[0].mxu0
      %v1377 = vpop.f32.mrb[0].mxu0
      %v1378 = vadd.f32 %v1201, %v1377
      %v1379 = vpop.f32.mrb[0].mxu0
      %1380 = vmatprep.mubr.bf16.mxu0 0
      %1381 = vmatmul.mubr.bf16.gmra.mrb[0].mxu0 %v786
      %v1382 = vpop.f32.mrb[0].mxu0
      %v1383 = vadd.f32 %v1206, %v1382
      %v1384 = vpop.f32.mrb[0].mxu0
      %v1385 = vpop.f32.mrb[0].mxu0
      %v1386 = vadd.f32 %v1209, %v1385
      %v1387 = vpop.f32.mrb[0].mxu0
      %1388 = vmatprep.mubr.bf16.mxu0 0
      %1389 = vmatmul.mubr.bf16.gmra.mrb[0].mxu0 %v789
      %v1390 = vpop.f32.mrb[0].mxu0
      %v1391 = vadd.f32 %v1214, %v1390
      %v1392 = vpop.f32.mrb[0].mxu0
      %v1393 = vpop.f32.mrb[0].mxu0
      %v1394 = vadd.f32 %v1217, %v1393
      %v1395 = vpop.f32.mrb[0].mxu0
      %1396 = vmatprep.mubr.bf16.mxu0 0
      %1397 = vmatmul.mubr.bf16.gmra.mrb[0].mxu0 %v792
      %v1398 = vpop.f32.mrb[0].mxu0
      %v1399 = vadd.f32 %v1222, %v1398
      %v1400 = vpop.f32.mrb[0].mxu0
      %v1401 = vpop.f32.mrb[0].mxu0
      %v1402 = vadd.f32 %v1225, %v1401
      %v1403 = vpop.f32.mrb[0].mxu0
      %1404 = vmatprep.mubr.bf16.mxu0 0
      %1405 = vmatmul.mubr.bf16.gmra.mrb[0].mxu0 %v795
      %v1406 = vpop.f32.mrb[0].mxu0
      %v1407 = vadd.f32 %v1230, %v1406
      %v1408 = vpop.f32.mrb[0].mxu0
      %v1409 = vpop.f32.mrb[0].mxu0
      %v1410 = vadd.f32 %v1233, %v1409
      %v1411 = vpop.f32.mrb[0].mxu0
      %1412 = vmatprep.mubr.bf16.mxu0 0
      %1413 = vmatmul.mubr.bf16.gmra.mrb[0].mxu0 %v798
      %v1414 = vpop.f32.mrb[0].mxu0
      %v1415 = vadd.f32 %v1238, %v1414
      %v1416 = vpop.f32.mrb[0].mxu0
      %v1417 = vpop.f32.mrb[0].mxu0
      %v1418 = vadd.f32 %v1241, %v1417
      %v1419 = vpop.f32.mrb[0].mxu0
      %1420 = vmatprep.mubr.bf16.mxu0 0
      %1421 = vmatmul.mubr.bf16.gmra.mrb[0].mxu0 %v801
      %v1422 = vpop.f32.mrb[0].mxu0
      %v1423 = vadd.f32 %v1246, %v1422
      %v1424 = vpop.f32.mrb[0].mxu0
      %v1425 = vpop.f32.mrb[0].mxu0
      %v1426 = vadd.f32 %v1249, %v1425
      %v1427 = vpop.f32.mrb[0].mxu0
      %1428 = vmatprep.mubr.bf16.mxu0 0
      %1429 = vmatmul.mubr.bf16.gmra.mrb[0].mxu0 %v804
      %v1430 = vpop.f32.mrb[0].mxu0
      %v1431 = vadd.f32 %v1254, %v1430
      %v1432 = vpop.f32.mrb[0].mxu0
      %v1433 = vpop.f32.mrb[0].mxu0
      %v1434 = vadd.f32 %v1257, %v1433
      %v1435 = vpop.f32.mrb[0].mxu0
      %1436 = vmatprep.mubr.bf16.mxu0 0
      %1437 = vmatmul.mubr.bf16.gmra.mrb[0].mxu0 %v807
      %v1438 = vpop.f32.mrb[0].mxu0
      %v1439 = vadd.f32 %v1262, %v1438
      %v1440 = vpop.f32.mrb[0].mxu0
      %v1441 = vpop.f32.mrb[0].mxu0
      %v1442 = vadd.f32 %v1265, %v1441
      %v1443 = vpop.f32.mrb[0].mxu0
      %1444 = vmatprep.mubr.bf16.mxu0 0
      %1445 = vmatmul.mubr.bf16.gmra.mrb[0].mxu0 %v810
      %v1446 = vpop.f32.mrb[0].mxu0
      %v1447 = vadd.f32 %v1270, %v1446
      %v1448 = vpop.f32.mrb[0].mxu0
      %v1449 = vpop.f32.mrb[0].mxu0
      %v1450 = vadd.f32 %v1273, %v1449
      %v1451 = vpop.f32.mrb[0].mxu0
      %1452 = vmatprep.mubr.bf16.mxu0 0
      %1453 = vmatmul.mubr.bf16.gmra.mrb[0].mxu0 %v813
      %v1454 = vpop.f32.mrb[0].mxu0
      %v1455 = vadd.f32 %v1278, %v1454
      %v1456 = vpop.f32.mrb[0].mxu0
      %v1457 = vpop.f32.mrb[0].mxu0
      %v1458 = vadd.f32 %v1281, %v1457
      %v1459 = vpop.f32.mrb[0].mxu0
      %1460 = vmatprep.mubr.bf16.mxu0 0
      %1461 = vmatmul.mubr.bf16.gmra.mrb[0].mxu0 %v816
      %v1462 = vpop.f32.mrb[0].mxu0
      %v1463 = vadd.f32 %v1286, %v1462
      %v1464 = vpop.f32.mrb[0].mxu0
      %v1465 = vpop.f32.mrb[0].mxu0
      %v1466 = vadd.f32 %v1289, %v1465
      %v1467 = vpop.f32.mrb[0].mxu0
      %1468 = vdwg.mxu0
      %v1517 = vunpack.c.l.b16 %v874
      %v1518 = vunpack.c.l.b16 %v875
      %v1519 = vunpack.c.l.b16 %v876
      %v1520 = vunpack.c.l.b16 %v877
      %v1521 = vunpack.c.l.b16 %v878
      %v1522 = vunpack.c.l.b16 %v879
      %v1523 = vunpack.c.l.b16 %v880
      %v1524 = vunpack.c.l.b16 %v881
      %v1525 = vunpack.c.l.b16 %v882
      %v1526 = vunpack.c.l.b16 %v883
      %v1527 = vunpack.c.l.b16 %v884
      %v1528 = vunpack.c.l.b16 %v885
      %v1529 = vunpack.c.l.b16 %v886
      %v1530 = vunpack.c.l.b16 %v887
      %v1531 = vunpack.c.l.b16 %v888
      %v1532 = vunpack.c.l.b16 %v889
      %v1533 = vunpack.c.l.b16 %v890
      %v1534 = vunpack.c.l.b16 %v891
      %v1535 = vunpack.c.l.b16 %v892
      %v1536 = vunpack.c.l.b16 %v893
      %v1537 = vunpack.c.l.b16 %v894
      %v1538 = vunpack.c.l.b16 %v895
      %v1539 = vunpack.c.l.b16 %v896
      %v1540 = vunpack.c.l.b16 %v897
      %v1541 = vunpack.c.l.b16 %v898
      %v1542 = vunpack.c.l.b16 %v899
      %v1543 = vunpack.c.l.b16 %v900
      %v1544 = vunpack.c.l.b16 %v901
      %v1545 = vunpack.c.l.b16 %v902
      %v1546 = vunpack.c.l.b16 %v903
      %v1547 = vunpack.c.l.b16 %v904
      %v1548 = vunpack.c.l.b16 %v905
      %v1549 = vunpack.c.l.b16 %v906
      %v1550 = vunpack.c.l.b16 %v907
      %v1551 = vunpack.c.l.b16 %v908
      %v1552 = vunpack.c.l.b16 %v909
      %v1553 = vunpack.c.l.b16 %v910
      %v1554 = vunpack.c.l.b16 %v911
      %v1555 = vunpack.c.l.b16 %v912
      %v1556 = vunpack.c.l.b16 %v913
      %v1557 = vunpack.c.l.b16 %v914
      %v1558 = vunpack.c.l.b16 %v915
      %v1559 = vunpack.c.l.b16 %v916
      %v1560 = vunpack.c.l.b16 %v917
      %v1561 = vunpack.c.l.b16 %v918
      %v1562 = vunpack.c.l.b16 %v919
      %v1563 = vunpack.c.l.b16 %v920
      %v1564 = vunpack.c.l.b16 %v921
      %v1565 = vpack.c.b16 %v1518, %v1517
      %v1566 = vpack.c.b16 %v1520, %v1519
      %v1567 = vpack.c.b16 %v1522, %v1521
      %v1568 = vpack.c.b16 %v1524, %v1523
      %v1569 = vpack.c.b16 %v1526, %v1525
      %v1570 = vpack.c.b16 %v1528, %v1527
      %v1571 = vpack.c.b16 %v1530, %v1529
      %v1572 = vpack.c.b16 %v1532, %v1531
      %v1573 = vpack.c.b16 %v1534, %v1533
      %v1574 = vpack.c.b16 %v1536, %v1535
      %v1575 = vpack.c.b16 %v1538, %v1537
      %v1576 = vpack.c.b16 %v1540, %v1539
      %v1577 = vpack.c.b16 %v1542, %v1541
      %v1578 = vpack.c.b16 %v1544, %v1543
      %v1579 = vpack.c.b16 %v1546, %v1545
      %v1580 = vpack.c.b16 %v1548, %v1547
      %v1581 = vpack.c.b16 %v1550, %v1549
      %v1582 = vpack.c.b16 %v1552, %v1551
      %v1583 = vpack.c.b16 %v1554, %v1553
      %v1584 = vpack.c.b16 %v1556, %v1555
      %v1585 = vpack.c.b16 %v1558, %v1557
      %v1586 = vpack.c.b16 %v1560, %v1559
      %v1587 = vpack.c.b16 %v1562, %v1561
      %v1588 = vpack.c.b16 %v1564, %v1563
      %1613 = vmatprep.subr.bf16.mxu0 0
      %1614 = vmatpush1.bf16.msra.mxu0 %v1565
      %1615 = vmatprep.subr.bf16.mxu0 0
      %1616 = vmatpush1.bf16.msra.mxu0 %v1566
      %1617 = vmatprep.subr.bf16.mxu0 0
      %1618 = vmatpush1.bf16.msra.mxu0 %v1567
      %1619 = vmatprep.subr.bf16.mxu0 0
      %1620 = vmatpush1.bf16.msra.mxu0 %v1568
      %1621 = vmatprep.subr.bf16.mxu0 0
      %1622 = vmatpush1.bf16.msra.mxu0 %v1569
      %1623 = vmatprep.subr.bf16.mxu0 0
      %1624 = vmatpush1.bf16.msra.mxu0 %v1570
      %1625 = vmatprep.subr.bf16.mxu0 0
      %1626 = vmatpush1.bf16.msra.mxu0 %v1571
      %1627 = vmatprep.subr.bf16.mxu0 0
      %1628 = vmatpush1.bf16.msra.mxu0 %v1572
      %1629 = vmatprep.subr.bf16.mxu0 0
      %1630 = vmatpush1.bf16.msra.mxu0 %v1573
      %1631 = vmatprep.subr.bf16.mxu0 0
      %1632 = vmatpush1.bf16.msra.mxu0 %v1574
      %1633 = vmatprep.subr.bf16.mxu0 0
      %1634 = vmatpush1.bf16.msra.mxu0 %v1575
      %1635 = vmatprep.subr.bf16.mxu0 0
      %1636 = vmatpush1.bf16.msra.mxu0 %v1576
      %1637 = vmatprep.subr.bf16.mxu0 0
      %1638 = vmatpush1.bf16.msra.mxu0 %v1577
      %1639 = vmatprep.subr.bf16.mxu0 0
      %1640 = vmatpush1.bf16.msra.mxu0 %v1578
      %1641 = vmatprep.subr.bf16.mxu0 0
      %1642 = vmatpush1.bf16.msra.mxu0 %v1579
      %1643 = vmatprep.subr.bf16.mxu0 0
      %1644 = vmatpush1.bf16.msra.mxu0 %v1580
      %1645 = vmatprep.mubr.bf16.mxu0 %v532
      %1646 = vmatmul.mubr.bf16.gmra.mrb[0].mxu0 %v754
      %v1647 = vpop.f32.mrb[0].mxu0
      %v1648 = vadd.f32 %v1327, %v1647
      %v1649 = vpop.f32.mrb[0].mxu0
      %v1650 = vpop.f32.mrb[0].mxu0
      %v1651 = vadd.f32 %v1330, %v1650
      %v1652 = vpop.f32.mrb[0].mxu0
      %1653 = vmatprep.mubr.bf16.mxu0 %v533
      %1654 = vmatmul.mubr.bf16.gmra.mrb[0].mxu0 %v569
      %v1655 = vpop.f32.mrb[0].mxu0
      %v1656 = vadd.f32 %v1335, %v1655
      %v1657 = vpop.f32.mrb[0].mxu0
      %v1658 = vpop.f32.mrb[0].mxu0
      %v1659 = vadd.f32 %v1338, %v1658
      %v1660 = vpop.f32.mrb[0].mxu0
      %1661 = vmatprep.mubr.bf16.mxu0 %v534
      %1662 = vmatmul.mubr.bf16.gmra.mrb[0].mxu0 %v577
      %v1663 = vpop.f32.mrb[0].mxu0
      %v1664 = vadd.f32 %v1343, %v1663
      %v1665 = vpop.f32.mrb[0].mxu0
      %v1666 = vpop.f32.mrb[0].mxu0
      %v1667 = vadd.f32 %v1346, %v1666
      %v1668 = vpop.f32.mrb[0].mxu0
      %1669 = vmatprep.mubr.bf16.mxu0 %v535
      %1670 = vmatmul.mubr.bf16.gmra.mrb[0].mxu0 %v585
      %v1671 = vpop.f32.mrb[0].mxu0
      %v1672 = vadd.f32 %v1351, %v1671
      %v1673 = vpop.f32.mrb[0].mxu0
      %v1674 = vpop.f32.mrb[0].mxu0
      %v1675 = vadd.f32 %v1354, %v1674
      %v1676 = vpop.f32.mrb[0].mxu0
      %1677 = vmatprep.mubr.bf16.mxu0 %v536
      %1678 = vmatmul.mubr.bf16.gmra.mrb[0].mxu0 %v593
      %v1679 = vpop.f32.mrb[0].mxu0
      %v1680 = vadd.f32 %v1359, %v1679
      %v1681 = vpop.f32.mrb[0].mxu0
      %v1682 = vpop.f32.mrb[0].mxu0
      %v1683 = vadd.f32 %v1362, %v1682
      %v1684 = vpop.f32.mrb[0].mxu0
      %1685 = vmatprep.mubr.bf16.mxu0 %v537
      %1686 = vmatmul.mubr.bf16.gmra.mrb[0].mxu0 %v601
      %v1687 = vpop.f32.mrb[0].mxu0
      %v1688 = vadd.f32 %v1367, %v1687
      %v1689 = vpop.f32.mrb[0].mxu0
      %v1690 = vpop.f32.mrb[0].mxu0
      %v1691 = vadd.f32 %v1370, %v1690
      %v1692 = vpop.f32.mrb[0].mxu0
      %1693 = vmatprep.mubr.bf16.mxu0 %v538
      %1694 = vmatmul.mubr.bf16.gmra.mrb[0].mxu0 %v609
      %v1695 = vpop.f32.mrb[0].mxu0
      %v1696 = vadd.f32 %v1375, %v1695
      %v1697 = vpop.f32.mrb[0].mxu0
      %v1698 = vpop.f32.mrb[0].mxu0
      %v1699 = vadd.f32 %v1378, %v1698
      %v1700 = vpop.f32.mrb[0].mxu0
      %1701 = vmatprep.mubr.bf16.mxu0 %v539
      %1702 = vmatmul.mubr.bf16.gmra.mrb[0].mxu0 %v617
      %v1703 = vpop.f32.mrb[0].mxu0
      %v1704 = vadd.f32 %v1383, %v1703
      %v1705 = vpop.f32.mrb[0].mxu0
      %v1706 = vpop.f32.mrb[0].mxu0
      %v1707 = vadd.f32 %v1386, %v1706
      %v1708 = vpop.f32.mrb[0].mxu0
      %1709 = vmatprep.mubr.bf16.mxu0 %v540
      %1710 = vmatmul.mubr.bf16.gmra.mrb[0].mxu0 %v625
      %v1711 = vpop.f32.mrb[0].mxu0
      %v1712 = vadd.f32 %v1391, %v1711
      %v1713 = vpop.f32.mrb[0].mxu0
      %v1714 = vpop.f32.mrb[0].mxu0
      %v1715 = vadd.f32 %v1394, %v1714
      %v1716 = vpop.f32.mrb[0].mxu0
      %1717 = vmatprep.mubr.bf16.mxu0 %v541
      %1718 = vmatmul.mubr.bf16.gmra.mrb[0].mxu0 %v633
      %v1719 = vpop.f32.mrb[0].mxu0
      %v1720 = vadd.f32 %v1399, %v1719
      %v1721 = vpop.f32.mrb[0].mxu0
      %v1722 = vpop.f32.mrb[0].mxu0
      %v1723 = vadd.f32 %v1402, %v1722
      %v1724 = vpop.f32.mrb[0].mxu0
      %1725 = vmatprep.mubr.bf16.mxu0 %v542
      %1726 = vmatmul.mubr.bf16.gmra.mrb[0].mxu0 %v641
      %v1727 = vpop.f32.mrb[0].mxu0
      %v1728 = vadd.f32 %v1407, %v1727
      %v1729 = vpop.f32.mrb[0].mxu0
      %v1730 = vpop.f32.mrb[0].mxu0
      %v1731 = vadd.f32 %v1410, %v1730
      %v1732 = vpop.f32.mrb[0].mxu0
      %1733 = vmatprep.mubr.bf16.mxu0 %v543
      %1734 = vmatmul.mubr.bf16.gmra.mrb[0].mxu0 %v649
      %v1735 = vpop.f32.mrb[0].mxu0
      %v1736 = vadd.f32 %v1415, %v1735
      %v1737 = vpop.f32.mrb[0].mxu0
      %v1738 = vpop.f32.mrb[0].mxu0
      %v1739 = vadd.f32 %v1418, %v1738
      %v1740 = vpop.f32.mrb[0].mxu0
      %1741 = vmatprep.mubr.bf16.mxu0 %v544
      %1742 = vmatmul.mubr.bf16.gmra.mrb[0].mxu0 %v657
      %v1743 = vpop.f32.mrb[0].mxu0
      %v1744 = vadd.f32 %v1423, %v1743
      %v1745 = vpop.f32.mrb[0].mxu0
      %v1746 = vpop.f32.mrb[0].mxu0
      %v1747 = vadd.f32 %v1426, %v1746
      %v1748 = vpop.f32.mrb[0].mxu0
      %1749 = vmatprep.mubr.bf16.mxu0 %v545
      %1750 = vmatmul.mubr.bf16.gmra.mrb[0].mxu0 %v665
      %v1751 = vpop.f32.mrb[0].mxu0
      %v1752 = vadd.f32 %v1431, %v1751
      %v1753 = vpop.f32.mrb[0].mxu0
      %v1754 = vpop.f32.mrb[0].mxu0
      %v1755 = vadd.f32 %v1434, %v1754
      %v1756 = vpop.f32.mrb[0].mxu0
      %1757 = vmatprep.mubr.bf16.mxu0 %v546
      %1758 = vmatmul.mubr.bf16.gmra.mrb[0].mxu0 %v673
      %v1759 = vpop.f32.mrb[0].mxu0
      %v1760 = vadd.f32 %v1439, %v1759
      %v1761 = vpop.f32.mrb[0].mxu0
      %v1762 = vpop.f32.mrb[0].mxu0
      %v1763 = vadd.f32 %v1442, %v1762
      %v1764 = vpop.f32.mrb[0].mxu0
      %1765 = vmatprep.mubr.bf16.mxu0 %v547
      %1766 = vmatmul.mubr.bf16.gmra.mrb[0].mxu0 %v681
      %v1767 = vpop.f32.mrb[0].mxu0
      %v1768 = vadd.f32 %v1447, %v1767
      %v1769 = vpop.f32.mrb[0].mxu0
      %v1770 = vpop.f32.mrb[0].mxu0
      %v1771 = vadd.f32 %v1450, %v1770
      %v1772 = vpop.f32.mrb[0].mxu0
      %1773 = vmatprep.mubr.bf16.mxu0 %v548
      %1774 = vmatmul.mubr.bf16.gmra.mrb[0].mxu0 %v689
      %v1775 = vpop.f32.mrb[0].mxu0
      %v1776 = vadd.f32 %v1455, %v1775
      %v1777 = vpop.f32.mrb[0].mxu0
      %v1778 = vpop.f32.mrb[0].mxu0
      %v1779 = vadd.f32 %v1458, %v1778
      %v1780 = vpop.f32.mrb[0].mxu0
      %1781 = vmatprep.mubr.bf16.mxu0 %v549
      %1782 = vmatmul.mubr.bf16.gmra.mrb[0].mxu0 %v697
      %v1783 = vpop.f32.mrb[0].mxu0
      %v1784 = vadd.f32 %v1463, %v1783
      %v1785 = vpop.f32.mrb[0].mxu0
      %v1786 = vpop.f32.mrb[0].mxu0
      %v1787 = vadd.f32 %v1466, %v1786
      %v1788 = vpop.f32.mrb[0].mxu0
      %1789 = vdwg.mxu0
      %1790 = vmatprep.subr.bf16.mxu0 0
      %1791 = vmatpush1.bf16.msra.mxu0 %v1581
      %1792 = vmatprep.subr.bf16.mxu0 0
      %1793 = vmatpush1.bf16.msra.mxu0 %v1582
      %1794 = vmatprep.subr.bf16.mxu0 0
      %1795 = vmatpush1.bf16.msra.mxu0 %v1583
      %1796 = vmatprep.subr.bf16.mxu0 0
      %1797 = vmatpush1.bf16.msra.mxu0 %v1584
      %1798 = vmatprep.subr.bf16.mxu0 0
      %1799 = vmatpush1.bf16.msra.mxu0 %v1585
      %1800 = vmatprep.subr.bf16.mxu0 0
      %1801 = vmatpush1.bf16.msra.mxu0 %v1586
      %1802 = vmatprep.subr.bf16.mxu0 0
      %1803 = vmatpush1.bf16.msra.mxu0 %v1587
      %1804 = vmatprep.subr.bf16.mxu0 0
      %1805 = vmatpush1.bf16.msra.mxu0 %v1588
      %1806 = vmatprep.subr.bf16.mxu0 0
      %1807 = vmatpush1.bf16.msra.mxu0 0
      %1808 = vmatprep.subr.bf16.mxu0 0
      %1809 = vmatpush1.bf16.msra.mxu0 0
      %1810 = vmatprep.subr.bf16.mxu0 0
      %1811 = vmatpush1.bf16.msra.mxu0 0
      %1812 = vmatprep.subr.bf16.mxu0 0
      %1813 = vmatpush1.bf16.msra.mxu0 0
      %1814 = vmatprep.subr.bf16.mxu0 0
      %1815 = vmatpush1.bf16.msra.mxu0 0
      %1816 = vmatprep.subr.bf16.mxu0 0
      %1817 = vmatpush1.bf16.msra.mxu0 0
      %1818 = vmatprep.subr.bf16.mxu0 0
      %1819 = vmatpush1.bf16.msra.mxu0 0
      %1820 = vmatprep.subr.bf16.mxu0 0
      %1821 = vmatpush1.bf16.msra.mxu0 0
      %1822 = vmatprep.mubr.bf16.mxu0 0
      %1823 = vmatmul.mubr.bf16.gmra.mrb[0].mxu0 %v759
      %v1824 = vpop.f32.mrb[0].mxu0
      %v1825 = vadd.f32 %v1648, %v1824
      %v1826 = vpop.f32.mrb[0].mxu0
      %v1827 = vpop.f32.mrb[0].mxu0
      %v1828 = vadd.f32 %v1651, %v1827
      %v1829 = vpop.f32.mrb[0].mxu0
      %1830 = vmatprep.mubr.bf16.mxu0 0
      %1831 = vmatmul.mubr.bf16.gmra.mrb[0].mxu0 %v762
      %v1832 = vpop.f32.mrb[0].mxu0
      %v1833 = vadd.f32 %v1656, %v1832
      %v1834 = vpop.f32.mrb[0].mxu0
      %v1835 = vpop.f32.mrb[0].mxu0
      %v1836 = vadd.f32 %v1659, %v1835
      %v1837 = vpop.f32.mrb[0].mxu0
      %1838 = vmatprep.mubr.bf16.mxu0 0
      %1839 = vmatmul.mubr.bf16.gmra.mrb[0].mxu0 %v765
      %v1840 = vpop.f32.mrb[0].mxu0
      %v1841 = vadd.f32 %v1664, %v1840
      %v1842 = vpop.f32.mrb[0].mxu0
      %v1843 = vpop.f32.mrb[0].mxu0
      %v1844 = vadd.f32 %v1667, %v1843
      %v1845 = vpop.f32.mrb[0].mxu0
      %1846 = vmatprep.mubr.bf16.mxu0 0
      %1847 = vmatmul.mubr.bf16.gmra.mrb[0].mxu0 %v768
      %v1848 = vpop.f32.mrb[0].mxu0
      %v1849 = vadd.f32 %v1672, %v1848
      %v1850 = vpop.f32.mrb[0].mxu0
      %v1851 = vpop.f32.mrb[0].mxu0
      %v1852 = vadd.f32 %v1675, %v1851
      %v1853 = vpop.f32.mrb[0].mxu0
      %1854 = vmatprep.mubr.bf16.mxu0 0
      %1855 = vmatmul.mubr.bf16.gmra.mrb[0].mxu0 %v771
      %v1856 = vpop.f32.mrb[0].mxu0
      %v1857 = vadd.f32 %v1680, %v1856
      %v1858 = vpop.f32.mrb[0].mxu0
      %v1859 = vpop.f32.mrb[0].mxu0
      %v1860 = vadd.f32 %v1683, %v1859
      %v1861 = vpop.f32.mrb[0].mxu0
      %1862 = vmatprep.mubr.bf16.mxu0 0
      %1863 = vmatmul.mubr.bf16.gmra.mrb[0].mxu0 %v774
      %v1864 = vpop.f32.mrb[0].mxu0
      %v1865 = vadd.f32 %v1688, %v1864
      %v1866 = vpop.f32.mrb[0].mxu0
      %v1867 = vpop.f32.mrb[0].mxu0
      %v1868 = vadd.f32 %v1691, %v1867
      %v1869 = vpop.f32.mrb[0].mxu0
      %1870 = vmatprep.mubr.bf16.mxu0 0
      %1871 = vmatmul.mubr.bf16.gmra.mrb[0].mxu0 %v777
      %v1872 = vpop.f32.mrb[0].mxu0
      %v1873 = vadd.f32 %v1696, %v1872
      %v1874 = vpop.f32.mrb[0].mxu0
      %v1875 = vpop.f32.mrb[0].mxu0
      %v1876 = vadd.f32 %v1699, %v1875
      %v1877 = vpop.f32.mrb[0].mxu0
      %1878 = vmatprep.mubr.bf16.mxu0 0
      %1879 = vmatmul.mubr.bf16.gmra.mrb[0].mxu0 %v780
      %v1880 = vpop.f32.mrb[0].mxu0
      %v1881 = vadd.f32 %v1704, %v1880
      %v1882 = vpop.f32.mrb[0].mxu0
      %v1883 = vpop.f32.mrb[0].mxu0
      %v1884 = vadd.f32 %v1707, %v1883
      %v1885 = vpop.f32.mrb[0].mxu0
      %1886 = vmatprep.mubr.bf16.mxu0 0
      %1887 = vmatmul.mubr.bf16.gmra.mrb[0].mxu0 %v783
      %v1888 = vpop.f32.mrb[0].mxu0
      %v1889 = vadd.f32 %v1712, %v1888
      %v1890 = vpop.f32.mrb[0].mxu0
      %v1891 = vpop.f32.mrb[0].mxu0
      %v1892 = vadd.f32 %v1715, %v1891
      %v1893 = vpop.f32.mrb[0].mxu0
      %1894 = vmatprep.mubr.bf16.mxu0 0
      %1895 = vmatmul.mubr.bf16.gmra.mrb[0].mxu0 %v786
      %v1896 = vpop.f32.mrb[0].mxu0
      %v1897 = vadd.f32 %v1720, %v1896
      %v1898 = vpop.f32.mrb[0].mxu0
      %v1899 = vpop.f32.mrb[0].mxu0
      %v1900 = vadd.f32 %v1723, %v1899
      %v1901 = vpop.f32.mrb[0].mxu0
      %1902 = vmatprep.mubr.bf16.mxu0 0
      %1903 = vmatmul.mubr.bf16.gmra.mrb[0].mxu0 %v789
      %v1904 = vpop.f32.mrb[0].mxu0
      %v1905 = vadd.f32 %v1728, %v1904
      %v1906 = vpop.f32.mrb[0].mxu0
      %v1907 = vpop.f32.mrb[0].mxu0
      %v1908 = vadd.f32 %v1731, %v1907
      %v1909 = vpop.f32.mrb[0].mxu0
      %1910 = vmatprep.mubr.bf16.mxu0 0
      %1911 = vmatmul.mubr.bf16.gmra.mrb[0].mxu0 %v792
      %v1912 = vpop.f32.mrb[0].mxu0
      %v1913 = vadd.f32 %v1736, %v1912
      %v1914 = vpop.f32.mrb[0].mxu0
      %v1915 = vpop.f32.mrb[0].mxu0
      %v1916 = vadd.f32 %v1739, %v1915
      %v1917 = vpop.f32.mrb[0].mxu0
      %1918 = vmatprep.mubr.bf16.mxu0 0
      %1919 = vmatmul.mubr.bf16.gmra.mrb[0].mxu0 %v795
      %v1920 = vpop.f32.mrb[0].mxu0
      %v1921 = vadd.f32 %v1744, %v1920
      %v1922 = vpop.f32.mrb[0].mxu0
      %v1923 = vpop.f32.mrb[0].mxu0
      %v1924 = vadd.f32 %v1747, %v1923
      %v1925 = vpop.f32.mrb[0].mxu0
      %1926 = vmatprep.mubr.bf16.mxu0 0
      %1927 = vmatmul.mubr.bf16.gmra.mrb[0].mxu0 %v798
      %v1928 = vpop.f32.mrb[0].mxu0
      %v1929 = vadd.f32 %v1752, %v1928
      %v1930 = vpop.f32.mrb[0].mxu0
      %v1931 = vpop.f32.mrb[0].mxu0
      %v1932 = vadd.f32 %v1755, %v1931
      %v1933 = vpop.f32.mrb[0].mxu0
      %1934 = vmatprep.mubr.bf16.mxu0 0
      %1935 = vmatmul.mubr.bf16.gmra.mrb[0].mxu0 %v801
      %v1936 = vpop.f32.mrb[0].mxu0
      %v1937 = vadd.f32 %v1760, %v1936
      %v1938 = vpop.f32.mrb[0].mxu0
      %v1939 = vpop.f32.mrb[0].mxu0
      %v1940 = vadd.f32 %v1763, %v1939
      %v1941 = vpop.f32.mrb[0].mxu0
      %1942 = vmatprep.mubr.bf16.mxu0 0
      %1943 = vmatmul.mubr.bf16.gmra.mrb[0].mxu0 %v804
      %v1944 = vpop.f32.mrb[0].mxu0
      %v1945 = vadd.f32 %v1768, %v1944
      %v1946 = vpop.f32.mrb[0].mxu0
      %v1947 = vpop.f32.mrb[0].mxu0
      %v1948 = vadd.f32 %v1771, %v1947
      %v1949 = vpop.f32.mrb[0].mxu0
      %1950 = vmatprep.mubr.bf16.mxu0 0
      %1951 = vmatmul.mubr.bf16.gmra.mrb[0].mxu0 %v807
      %v1952 = vpop.f32.mrb[0].mxu0
      %v1953 = vadd.f32 %v1776, %v1952
      %v1954 = vpop.f32.mrb[0].mxu0
      %v1955 = vpop.f32.mrb[0].mxu0
      %v1956 = vadd.f32 %v1779, %v1955
      %v1957 = vpop.f32.mrb[0].mxu0
      %1958 = vmatprep.mubr.bf16.mxu0 0
      %1959 = vmatmul.mubr.bf16.gmra.mrb[0].mxu0 %v810
      %v1960 = vpop.f32.mrb[0].mxu0
      %v1961 = vadd.f32 %v1784, %v1960
      %v1962 = vpop.f32.mrb[0].mxu0
      %v1963 = vpop.f32.mrb[0].mxu0
      %v1964 = vadd.f32 %v1787, %v1963
      %v1965 = vpop.f32.mrb[0].mxu0
      %1966 = vdwg.mxu0
      %s1967 = scalar_lea.vmem %s3, 384
      %v1968 = vld [vmem:[%s1967] sm:$0xf]
      %v1969 = vld [vmem:[%s1967 + $0x4] sm:$0xf]
      %v1970 = vld [vmem:[%s1967 + $0x8] sm:$0xf]
      %v1971 = vld [vmem:[%s1967 + $0xc] sm:$0xf]
      %v1972 = vld [vmem:[%s1967 + $0x10] sm:$0xf]
      %v1973 = vld [vmem:[%s1967 + $0x14] sm:$0xf]
      %v1974 = vld [vmem:[%s1967 + $0x18] sm:$0xf]
      %v1975 = vld [vmem:[%s1967 + $0x1c] sm:$0xf]
      %v1976 = vld [vmem:[%s1967 + $0x20] sm:$0xf]
      %v1977 = vld [vmem:[%s1967 + $0x24] sm:$0xf]
      %v1978 = vld [vmem:[%s1967 + $0x28] sm:$0xf]
      %v1979 = vld [vmem:[%s1967 + $0x2c] sm:$0xf]
      %v1980 = vld [vmem:[%s1967 + $0x30] sm:$0xf]
      %v1981 = vld [vmem:[%s1967 + $0x34] sm:$0xf]
      %v1982 = vld [vmem:[%s1967 + $0x38] sm:$0xf]
      %v1983 = vld [vmem:[%s1967 + $0x3c] sm:$0xf]
      %v1984 = vld [vmem:[%s1967 + $0x40] sm:$0xf]
      %v1985 = vld [vmem:[%s1967 + $0x44] sm:$0xf]
      %v1986 = vld [vmem:[%s1967 + $0x48] sm:$0xf]
      %v1987 = vld [vmem:[%s1967 + $0x4c] sm:$0xf]
      %v1988 = vld [vmem:[%s1967 + $0x50] sm:$0xf]
      %v1989 = vld [vmem:[%s1967 + $0x54] sm:$0xf]
      %v1990 = vld [vmem:[%s1967 + $0x58] sm:$0xf]
      %v1991 = vld [vmem:[%s1967 + $0x5c] sm:$0xf]
      %v1992 = vld [vmem:[%s1967 + $0x60] sm:$0xf]
      %v1993 = vld [vmem:[%s1967 + $0x64] sm:$0xf]
      %v1994 = vld [vmem:[%s1967 + $0x68] sm:$0xf]
      %v1995 = vld [vmem:[%s1967 + $0x6c] sm:$0xf]
      %v1996 = vld [vmem:[%s1967 + $0x70] sm:$0xf]
      %v1997 = vld [vmem:[%s1967 + $0x74] sm:$0xf]
      %v1998 = vld [vmem:[%s1967 + $0x78] sm:$0xf]
      %v1999 = vld [vmem:[%s1967 + $0x7c] sm:$0xf]
      %v2000 = vld [vmem:[%s1967 + $0x80] sm:$0xf]
      %v2001 = vld [vmem:[%s1967 + $0x84] sm:$0xf]
      %v2002 = vld [vmem:[%s1967 + $0x88] sm:$0xf]
      %v2003 = vld [vmem:[%s1967 + $0x8c] sm:$0xf]
      %v2004 = vld [vmem:[%s1967 + $0x90] sm:$0xf]
      %v2005 = vld [vmem:[%s1967 + $0x94] sm:$0xf]
      %v2006 = vld [vmem:[%s1967 + $0x98] sm:$0xf]
      %v2007 = vld [vmem:[%s1967 + $0x9c] sm:$0xf]
      %v2008 = vld [vmem:[%s1967 + $0xa0] sm:$0xf]
      %v2009 = vld [vmem:[%s1967 + $0xa4] sm:$0xf]
      %v2010 = vld [vmem:[%s1967 + $0xa8] sm:$0xf]
      %v2011 = vld [vmem:[%s1967 + $0xac] sm:$0xf]
      %v2012 = vld [vmem:[%s1967 + $0xb0] sm:$0xf]
      %v2013 = vld [vmem:[%s1967 + $0xb4] sm:$0xf]
      %v2014 = vld [vmem:[%s1967 + $0xb8] sm:$0xf]
      %v2015 = vld [vmem:[%s1967 + $0xbc] sm:$0xf]
      %v2064 = vunpack.c.l.b16 %v1968
      %v2065 = vunpack.c.l.b16 %v1969
      %v2066 = vunpack.c.l.b16 %v1970
      %v2067 = vunpack.c.l.b16 %v1971
      %v2068 = vunpack.c.l.b16 %v1972
      %v2069 = vunpack.c.l.b16 %v1973
      %v2070 = vunpack.c.l.b16 %v1974
      %v2071 = vunpack.c.l.b16 %v1975
      %v2072 = vunpack.c.l.b16 %v1976
      %v2073 = vunpack.c.l.b16 %v1977
      %v2074 = vunpack.c.l.b16 %v1978
      %v2075 = vunpack.c.l.b16 %v1979
      %v2076 = vunpack.c.l.b16 %v1980
      %v2077 = vunpack.c.l.b16 %v1981
      %v2078 = vunpack.c.l.b16 %v1982
      %v2079 = vunpack.c.l.b16 %v1983
      %v2080 = vunpack.c.l.b16 %v1984
      %v2081 = vunpack.c.l.b16 %v1985
      %v2082 = vunpack.c.l.b16 %v1986
      %v2083 = vunpack.c.l.b16 %v1987
      %v2084 = vunpack.c.l.b16 %v1988
      %v2085 = vunpack.c.l.b16 %v1989
      %v2086 = vunpack.c.l.b16 %v1990
      %v2087 = vunpack.c.l.b16 %v1991
      %v2088 = vunpack.c.l.b16 %v1992
      %v2089 = vunpack.c.l.b16 %v1993
      %v2090 = vunpack.c.l.b16 %v1994
      %v2091 = vunpack.c.l.b16 %v1995
      %v2092 = vunpack.c.l.b16 %v1996
      %v2093 = vunpack.c.l.b16 %v1997
      %v2094 = vunpack.c.l.b16 %v1998
      %v2095 = vunpack.c.l.b16 %v1999
      %v2096 = vunpack.c.l.b16 %v2000
      %v2097 = vunpack.c.l.b16 %v2001
      %v2098 = vunpack.c.l.b16 %v2002
      %v2099 = vunpack.c.l.b16 %v2003
      %v2100 = vunpack.c.l.b16 %v2004
      %v2101 = vunpack.c.l.b16 %v2005
      %v2102 = vunpack.c.l.b16 %v2006
      %v2103 = vunpack.c.l.b16 %v2007
      %v2104 = vunpack.c.l.b16 %v2008
      %v2105 = vunpack.c.l.b16 %v2009
      %v2106 = vunpack.c.l.b16 %v2010
      %v2107 = vunpack.c.l.b16 %v2011
      %v2108 = vunpack.c.l.b16 %v2012
      %v2109 = vunpack.c.l.b16 %v2013
      %v2110 = vunpack.c.l.b16 %v2014
      %v2111 = vunpack.c.l.b16 %v2015
      %v2112 = vpack.c.b16 %v2065, %v2064
      %v2113 = vpack.c.b16 %v2067, %v2066
      %v2114 = vpack.c.b16 %v2069, %v2068
      %v2115 = vpack.c.b16 %v2071, %v2070
      %v2116 = vpack.c.b16 %v2073, %v2072
      %v2117 = vpack.c.b16 %v2075, %v2074
      %v2118 = vpack.c.b16 %v2077, %v2076
      %v2119 = vpack.c.b16 %v2079, %v2078
      %v2120 = vpack.c.b16 %v2081, %v2080
      %v2121 = vpack.c.b16 %v2083, %v2082
      %v2122 = vpack.c.b16 %v2085, %v2084
      %v2123 = vpack.c.b16 %v2087, %v2086
      %v2124 = vpack.c.b16 %v2089, %v2088
      %v2125 = vpack.c.b16 %v2091, %v2090
      %v2126 = vpack.c.b16 %v2093, %v2092
      %v2127 = vpack.c.b16 %v2095, %v2094
      %v2128 = vpack.c.b16 %v2097, %v2096
      %v2129 = vpack.c.b16 %v2099, %v2098
      %v2130 = vpack.c.b16 %v2101, %v2100
      %v2131 = vpack.c.b16 %v2103, %v2102
      %v2132 = vpack.c.b16 %v2105, %v2104
      %v2133 = vpack.c.b16 %v2107, %v2106
      %v2134 = vpack.c.b16 %v2109, %v2108
      %v2135 = vpack.c.b16 %v2111, %v2110
      %2160 = vmatprep.subr.bf16.mxu0 0
      %2161 = vmatpush1.bf16.msra.mxu0 %v2112
      %2162 = vmatprep.subr.bf16.mxu0 0
      %2163 = vmatpush1.bf16.msra.mxu0 %v2113
      %2164 = vmatprep.subr.bf16.mxu0 0
      %2165 = vmatpush1.bf16.msra.mxu0 %v2114
      %2166 = vmatprep.subr.bf16.mxu0 0
      %2167 = vmatpush1.bf16.msra.mxu0 %v2115
      %2168 = vmatprep.subr.bf16.mxu0 0
      %2169 = vmatpush1.bf16.msra.mxu0 %v2116
      %2170 = vmatprep.subr.bf16.mxu0 0
      %2171 = vmatpush1.bf16.msra.mxu0 %v2117
      %2172 = vmatprep.subr.bf16.mxu0 0
      %2173 = vmatpush1.bf16.msra.mxu0 %v2118
      %2174 = vmatprep.subr.bf16.mxu0 0
      %2175 = vmatpush1.bf16.msra.mxu0 %v2119
      %2176 = vmatprep.subr.bf16.mxu0 0
      %2177 = vmatpush1.bf16.msra.mxu0 %v2120
      %2178 = vmatprep.subr.bf16.mxu0 0
      %2179 = vmatpush1.bf16.msra.mxu0 %v2121
      %2180 = vmatprep.subr.bf16.mxu0 0
      %2181 = vmatpush1.bf16.msra.mxu0 %v2122
      %2182 = vmatprep.subr.bf16.mxu0 0
      %2183 = vmatpush1.bf16.msra.mxu0 %v2123
      %2184 = vmatprep.subr.bf16.mxu0 0
      %2185 = vmatpush1.bf16.msra.mxu0 %v2124
      %2186 = vmatprep.subr.bf16.mxu0 0
      %2187 = vmatpush1.bf16.msra.mxu0 %v2125
      %2188 = vmatprep.subr.bf16.mxu0 0
      %2189 = vmatpush1.bf16.msra.mxu0 %v2126
      %2190 = vmatprep.subr.bf16.mxu0 0
      %2191 = vmatpush1.bf16.msra.mxu0 %v2127
      %2192 = vmatprep.mubr.bf16.mxu0 %v536
      %2193 = vmatmul.mubr.bf16.gmra.mrb[0].mxu0 %v593
      %v2194 = vpop.f32.mrb[0].mxu0
      %v2195 = vadd.f32 0.0, %v2194
      %v2196 = vpop.f32.mrb[0].mxu0
      %v2197 = vpop.f32.mrb[0].mxu0
      %v2198 = vadd.f32 0.0, %v2197
      %v2199 = vpop.f32.mrb[0].mxu0
      %2200 = vmatprep.mubr.bf16.mxu0 %v537
      %2201 = vmatmul.mubr.bf16.gmra.mrb[0].mxu0 %v601
      %v2202 = vpop.f32.mrb[0].mxu0
      %v2203 = vadd.f32 0.0, %v2202
      %v2204 = vpop.f32.mrb[0].mxu0
      %v2205 = vpop.f32.mrb[0].mxu0
      %v2206 = vadd.f32 0.0, %v2205
      %v2207 = vpop.f32.mrb[0].mxu0
      %2208 = vmatprep.mubr.bf16.mxu0 %v538
      %2209 = vmatmul.mubr.bf16.gmra.mrb[0].mxu0 %v609
      %v2210 = vpop.f32.mrb[0].mxu0
      %v2211 = vadd.f32 0.0, %v2210
      %v2212 = vpop.f32.mrb[0].mxu0
      %v2213 = vpop.f32.mrb[0].mxu0
      %v2214 = vadd.f32 0.0, %v2213
      %v2215 = vpop.f32.mrb[0].mxu0
      %2216 = vmatprep.mubr.bf16.mxu0 %v539
      %2217 = vmatmul.mubr.bf16.gmra.mrb[0].mxu0 %v617
      %v2218 = vpop.f32.mrb[0].mxu0
      %v2219 = vadd.f32 0.0, %v2218
      %v2220 = vpop.f32.mrb[0].mxu0
      %v2221 = vpop.f32.mrb[0].mxu0
      %v2222 = vadd.f32 0.0, %v2221
      %v2223 = vpop.f32.mrb[0].mxu0
      %2224 = vmatprep.mubr.bf16.mxu0 %v540
      %2225 = vmatmul.mubr.bf16.gmra.mrb[0].mxu0 %v625
      %v2226 = vpop.f32.mrb[0].mxu0
      %v2227 = vadd.f32 0.0, %v2226
      %v2228 = vpop.f32.mrb[0].mxu0
      %v2229 = vpop.f32.mrb[0].mxu0
      %v2230 = vadd.f32 0.0, %v2229
      %v2231 = vpop.f32.mrb[0].mxu0
      %2232 = vmatprep.mubr.bf16.mxu0 %v541
      %2233 = vmatmul.mubr.bf16.gmra.mrb[0].mxu0 %v633
      %v2234 = vpop.f32.mrb[0].mxu0
      %v2235 = vadd.f32 0.0, %v2234
      %v2236 = vpop.f32.mrb[0].mxu0
      %v2237 = vpop.f32.mrb[0].mxu0
      %v2238 = vadd.f32 0.0, %v2237
      %v2239 = vpop.f32.mrb[0].mxu0
      %2240 = vmatprep.mubr.bf16.mxu0 %v542
      %2241 = vmatmul.mubr.bf16.gmra.mrb[0].mxu0 %v641
      %v2242 = vpop.f32.mrb[0].mxu0
      %v2243 = vadd.f32 0.0, %v2242
      %v2244 = vpop.f32.mrb[0].mxu0
      %v2245 = vpop.f32.mrb[0].mxu0
      %v2246 = vadd.f32 0.0, %v2245
      %v2247 = vpop.f32.mrb[0].mxu0
      %2248 = vmatprep.mubr.bf16.mxu0 %v543
      %2249 = vmatmul.mubr.bf16.gmra.mrb[0].mxu0 %v649
      %v2250 = vpop.f32.mrb[0].mxu0
      %v2251 = vadd.f32 0.0, %v2250
      %v2252 = vpop.f32.mrb[0].mxu0
      %v2253 = vpop.f32.mrb[0].mxu0
      %v2254 = vadd.f32 0.0, %v2253
      %v2255 = vpop.f32.mrb[0].mxu0
      %2256 = vmatprep.mubr.bf16.mxu0 %v544
      %2257 = vmatmul.mubr.bf16.gmra.mrb[0].mxu0 %v657
      %v2258 = vpop.f32.mrb[0].mxu0
      %v2259 = vadd.f32 0.0, %v2258
      %v2260 = vpop.f32.mrb[0].mxu0
      %v2261 = vpop.f32.mrb[0].mxu0
      %v2262 = vadd.f32 0.0, %v2261
      %v2263 = vpop.f32.mrb[0].mxu0
      %2264 = vmatprep.mubr.bf16.mxu0 %v545
      %2265 = vmatmul.mubr.bf16.gmra.mrb[0].mxu0 %v665
      %v2266 = vpop.f32.mrb[0].mxu0
      %v2267 = vadd.f32 0.0, %v2266
      %v2268 = vpop.f32.mrb[0].mxu0
      %v2269 = vpop.f32.mrb[0].mxu0
      %v2270 = vadd.f32 0.0, %v2269
      %v2271 = vpop.f32.mrb[0].mxu0
      %2272 = vmatprep.mubr.bf16.mxu0 %v546
      %2273 = vmatmul.mubr.bf16.gmra.mrb[0].mxu0 %v673
      %v2274 = vpop.f32.mrb[0].mxu0
      %v2275 = vadd.f32 0.0, %v2274
      %v2276 = vpop.f32.mrb[0].mxu0
      %v2277 = vpop.f32.mrb[0].mxu0
      %v2278 = vadd.f32 0.0, %v2277
      %v2279 = vpop.f32.mrb[0].mxu0
      %2280 = vmatprep.mubr.bf16.mxu0 %v547
      %2281 = vmatmul.mubr.bf16.gmra.mrb[0].mxu0 %v681
      %v2282 = vpop.f32.mrb[0].mxu0
      %v2283 = vadd.f32 0.0, %v2282
      %v2284 = vpop.f32.mrb[0].mxu0
      %v2285 = vpop.f32.mrb[0].mxu0
      %v2286 = vadd.f32 0.0, %v2285
      %v2287 = vpop.f32.mrb[0].mxu0
      %2288 = vmatprep.mubr.bf16.mxu0 %v548
      %2289 = vmatmul.mubr.bf16.gmra.mrb[0].mxu0 %v689
      %v2290 = vpop.f32.mrb[0].mxu0
      %v2291 = vadd.f32 0.0, %v2290
      %v2292 = vpop.f32.mrb[0].mxu0
      %v2293 = vpop.f32.mrb[0].mxu0
      %v2294 = vadd.f32 0.0, %v2293
      %v2295 = vpop.f32.mrb[0].mxu0
      %2296 = vmatprep.mubr.bf16.mxu0 %v549
      %2297 = vmatmul.mubr.bf16.gmra.mrb[0].mxu0 %v697
      %v2298 = vpop.f32.mrb[0].mxu0
      %v2299 = vadd.f32 0.0, %v2298
      %v2300 = vpop.f32.mrb[0].mxu0
      %v2301 = vpop.f32.mrb[0].mxu0
      %v2302 = vadd.f32 0.0, %v2301
      %v2303 = vpop.f32.mrb[0].mxu0
      %2304 = vmatprep.mubr.bf16.mxu0 %v550
      %2305 = vmatmul.mubr.bf16.gmra.mrb[0].mxu0 %v705
      %v2306 = vpop.f32.mrb[0].mxu0
      %v2307 = vadd.f32 0.0, %v2306
      %v2308 = vpop.f32.mrb[0].mxu0
      %v2309 = vpop.f32.mrb[0].mxu0
      %v2310 = vadd.f32 0.0, %v2309
      %v2311 = vpop.f32.mrb[0].mxu0
      %2312 = vmatprep.mubr.bf16.mxu0 %v551
      %2313 = vmatmul.mubr.bf16.gmra.mrb[0].mxu0 %v713
      %v2314 = vpop.f32.mrb[0].mxu0
      %v2315 = vadd.f32 0.0, %v2314
      %v2316 = vpop.f32.mrb[0].mxu0
      %v2317 = vpop.f32.mrb[0].mxu0
      %v2318 = vadd.f32 0.0, %v2317
      %v2319 = vpop.f32.mrb[0].mxu0
      %2320 = vmatprep.mubr.bf16.mxu0 %v552
      %2321 = vmatmul.mubr.bf16.gmra.mrb[0].mxu0 %v721
      %v2322 = vpop.f32.mrb[0].mxu0
      %v2323 = vadd.f32 0.0, %v2322
      %v2324 = vpop.f32.mrb[0].mxu0
      %v2325 = vpop.f32.mrb[0].mxu0
      %v2326 = vadd.f32 0.0, %v2325
      %v2327 = vpop.f32.mrb[0].mxu0
      %2328 = vmatprep.mubr.bf16.mxu0 %v553
      %2329 = vmatmul.mubr.bf16.gmra.mrb[0].mxu0 %v729
      %v2330 = vpop.f32.mrb[0].mxu0
      %v2331 = vadd.f32 0.0, %v2330
      %v2332 = vpop.f32.mrb[0].mxu0
      %v2333 = vpop.f32.mrb[0].mxu0
      %v2334 = vadd.f32 0.0, %v2333
      %v2335 = vpop.f32.mrb[0].mxu0
      %2336 = vdwg.mxu0
      %2337 = vmatprep.subr.bf16.mxu0 0
      %2338 = vmatpush1.bf16.msra.mxu0 %v2128
      %2339 = vmatprep.subr.bf16.mxu0 0
      %2340 = vmatpush1.bf16.msra.mxu0 %v2129
      %2341 = vmatprep.subr.bf16.mxu0 0
      %2342 = vmatpush1.bf16.msra.mxu0 %v2130
      %2343 = vmatprep.subr.bf16.mxu0 0
      %2344 = vmatpush1.bf16.msra.mxu0 %v2131
      %2345 = vmatprep.subr.bf16.mxu0 0
      %2346 = vmatpush1.bf16.msra.mxu0 %v2132
      %2347 = vmatprep.subr.bf16.mxu0 0
      %2348 = vmatpush1.bf16.msra.mxu0 %v2133
      %2349 = vmatprep.subr.bf16.mxu0 0
      %2350 = vmatpush1.bf16.msra.mxu0 %v2134
      %2351 = vmatprep.subr.bf16.mxu0 0
      %2352 = vmatpush1.bf16.msra.mxu0 %v2135
      %2353 = vmatprep.subr.bf16.mxu0 0
      %2354 = vmatpush1.bf16.msra.mxu0 0
      %2355 = vmatprep.subr.bf16.mxu0 0
      %2356 = vmatpush1.bf16.msra.mxu0 0
      %2357 = vmatprep.subr.bf16.mxu0 0
      %2358 = vmatpush1.bf16.msra.mxu0 0
      %2359 = vmatprep.subr.bf16.mxu0 0
      %2360 = vmatpush1.bf16.msra.mxu0 0
      %2361 = vmatprep.subr.bf16.mxu0 0
      %2362 = vmatpush1.bf16.msra.mxu0 0
      %2363 = vmatprep.subr.bf16.mxu0 0
      %2364 = vmatpush1.bf16.msra.mxu0 0
      %2365 = vmatprep.subr.bf16.mxu0 0
      %2366 = vmatpush1.bf16.msra.mxu0 0
      %2367 = vmatprep.subr.bf16.mxu0 0
      %2368 = vmatpush1.bf16.msra.mxu0 0
      %2369 = vmatprep.mubr.bf16.mxu0 0
      %2370 = vmatmul.mubr.bf16.gmra.mrb[0].mxu0 %v771
      %v2371 = vpop.f32.mrb[0].mxu0
      %v2372 = vadd.f32 %v2195, %v2371
      %v2373 = vpop.f32.mrb[0].mxu0
      %v2374 = vpop.f32.mrb[0].mxu0
      %v2375 = vadd.f32 %v2198, %v2374
      %v2376 = vpop.f32.mrb[0].mxu0
      %2377 = vmatprep.mubr.bf16.mxu0 0
      %2378 = vmatmul.mubr.bf16.gmra.mrb[0].mxu0 %v774
      %v2379 = vpop.f32.mrb[0].mxu0
      %v2380 = vadd.f32 %v2203, %v2379
      %v2381 = vpop.f32.mrb[0].mxu0
      %v2382 = vpop.f32.mrb[0].mxu0
      %v2383 = vadd.f32 %v2206, %v2382
      %v2384 = vpop.f32.mrb[0].mxu0
      %2385 = vmatprep.mubr.bf16.mxu0 0
      %2386 = vmatmul.mubr.bf16.gmra.mrb[0].mxu0 %v777
      %v2387 = vpop.f32.mrb[0].mxu0
      %v2388 = vadd.f32 %v2211, %v2387
      %v2389 = vpop.f32.mrb[0].mxu0
      %v2390 = vpop.f32.mrb[0].mxu0
      %v2391 = vadd.f32 %v2214, %v2390
      %v2392 = vpop.f32.mrb[0].mxu0
      %2393 = vmatprep.mubr.bf16.mxu0 0
      %2394 = vmatmul.mubr.bf16.gmra.mrb[0].mxu0 %v780
      %v2395 = vpop.f32.mrb[0].mxu0
      %v2396 = vadd.f32 %v2219, %v2395
      %v2397 = vpop.f32.mrb[0].mxu0
      %v2398 = vpop.f32.mrb[0].mxu0
      %v2399 = vadd.f32 %v2222, %v2398
      %v2400 = vpop.f32.mrb[0].mxu0
      %2401 = vmatprep.mubr.bf16.mxu0 0
      %2402 = vmatmul.mubr.bf16.gmra.mrb[0].mxu0 %v783
      %v2403 = vpop.f32.mrb[0].mxu0
      %v2404 = vadd.f32 %v2227, %v2403
      %v2405 = vpop.f32.mrb[0].mxu0
      %v2406 = vpop.f32.mrb[0].mxu0
      %v2407 = vadd.f32 %v2230, %v2406
      %v2408 = vpop.f32.mrb[0].mxu0
      %2409 = vmatprep.mubr.bf16.mxu0 0
      %2410 = vmatmul.mubr.bf16.gmra.mrb[0].mxu0 %v786
      %v2411 = vpop.f32.mrb[0].mxu0
      %v2412 = vadd.f32 %v2235, %v2411
      %v2413 = vpop.f32.mrb[0].mxu0
      %v2414 = vpop.f32.mrb[0].mxu0
      %v2415 = vadd.f32 %v2238, %v2414
      %v2416 = vpop.f32.mrb[0].mxu0
      %2417 = vmatprep.mubr.bf16.mxu0 0
      %2418 = vmatmul.mubr.bf16.gmra.mrb[0].mxu0 %v789
      %v2419 = vpop.f32.mrb[0].mxu0
      %v2420 = vadd.f32 %v2243, %v2419
      %v2421 = vpop.f32.mrb[0].mxu0
      %v2422 = vpop.f32.mrb[0].mxu0
      %v2423 = vadd.f32 %v2246, %v2422
      %v2424 = vpop.f32.mrb[0].mxu0
      %2425 = vmatprep.mubr.bf16.mxu0 0
      %2426 = vmatmul.mubr.bf16.gmra.mrb[0].mxu0 %v792
      %v2427 = vpop.f32.mrb[0].mxu0
      %v2428 = vadd.f32 %v2251, %v2427
      %v2429 = vpop.f32.mrb[0].mxu0
      %v2430 = vpop.f32.mrb[0].mxu0
      %v2431 = vadd.f32 %v2254, %v2430
      %v2432 = vpop.f32.mrb[0].mxu0
      %2433 = vmatprep.mubr.bf16.mxu0 0
      %2434 = vmatmul.mubr.bf16.gmra.mrb[0].mxu0 %v795
      %v2435 = vpop.f32.mrb[0].mxu0
      %v2436 = vadd.f32 %v2259, %v2435
      %v2437 = vpop.f32.mrb[0].mxu0
      %v2438 = vpop.f32.mrb[0].mxu0
      %v2439 = vadd.f32 %v2262, %v2438
      %v2440 = vpop.f32.mrb[0].mxu0
      %2441 = vmatprep.mubr.bf16.mxu0 0
      %2442 = vmatmul.mubr.bf16.gmra.mrb[0].mxu0 %v798
      %v2443 = vpop.f32.mrb[0].mxu0
      %v2444 = vadd.f32 %v2267, %v2443
      %v2445 = vpop.f32.mrb[0].mxu0
      %v2446 = vpop.f32.mrb[0].mxu0
      %v2447 = vadd.f32 %v2270, %v2446
      %v2448 = vpop.f32.mrb[0].mxu0
      %2449 = vmatprep.mubr.bf16.mxu0 0
      %2450 = vmatmul.mubr.bf16.gmra.mrb[0].mxu0 %v801
      %v2451 = vpop.f32.mrb[0].mxu0
      %v2452 = vadd.f32 %v2275, %v2451
      %v2453 = vpop.f32.mrb[0].mxu0
      %v2454 = vpop.f32.mrb[0].mxu0
      %v2455 = vadd.f32 %v2278, %v2454
      %v2456 = vpop.f32.mrb[0].mxu0
      %2457 = vmatprep.mubr.bf16.mxu0 0
      %2458 = vmatmul.mubr.bf16.gmra.mrb[0].mxu0 %v804
      %v2459 = vpop.f32.mrb[0].mxu0
      %v2460 = vadd.f32 %v2283, %v2459
      %v2461 = vpop.f32.mrb[0].mxu0
      %v2462 = vpop.f32.mrb[0].mxu0
      %v2463 = vadd.f32 %v2286, %v2462
      %v2464 = vpop.f32.mrb[0].mxu0
      %2465 = vmatprep.mubr.bf16.mxu0 0
      %2466 = vmatmul.mubr.bf16.gmra.mrb[0].mxu0 %v807
      %v2467 = vpop.f32.mrb[0].mxu0
      %v2468 = vadd.f32 %v2291, %v2467
      %v2469 = vpop.f32.mrb[0].mxu0
      %v2470 = vpop.f32.mrb[0].mxu0
      %v2471 = vadd.f32 %v2294, %v2470
      %v2472 = vpop.f32.mrb[0].mxu0
      %2473 = vmatprep.mubr.bf16.mxu0 0
      %2474 = vmatmul.mubr.bf16.gmra.mrb[0].mxu0 %v810
      %v2475 = vpop.f32.mrb[0].mxu0
      %v2476 = vadd.f32 %v2299, %v2475
      %v2477 = vpop.f32.mrb[0].mxu0
      %v2478 = vpop.f32.mrb[0].mxu0
      %v2479 = vadd.f32 %v2302, %v2478
      %v2480 = vpop.f32.mrb[0].mxu0
      %2481 = vmatprep.mubr.bf16.mxu0 0
      %2482 = vmatmul.mubr.bf16.gmra.mrb[0].mxu0 %v813
      %v2483 = vpop.f32.mrb[0].mxu0
      %v2484 = vadd.f32 %v2307, %v2483
      %v2485 = vpop.f32.mrb[0].mxu0
      %v2486 = vpop.f32.mrb[0].mxu0
      %v2487 = vadd.f32 %v2310, %v2486
      %v2488 = vpop.f32.mrb[0].mxu0
      %2489 = vmatprep.mubr.bf16.mxu0 0
      %2490 = vmatmul.mubr.bf16.gmra.mrb[0].mxu0 %v816
      %v2491 = vpop.f32.mrb[0].mxu0
      %v2492 = vadd.f32 %v2315, %v2491
      %v2493 = vpop.f32.mrb[0].mxu0
      %v2494 = vpop.f32.mrb[0].mxu0
      %v2495 = vadd.f32 %v2318, %v2494
      %v2496 = vpop.f32.mrb[0].mxu0
      %2497 = vmatprep.mubr.bf16.mxu0 0
      %2498 = vmatmul.mubr.bf16.gmra.mrb[0].mxu0 %v819
      %v2499 = vpop.f32.mrb[0].mxu0
      %v2500 = vadd.f32 %v2323, %v2499
      %v2501 = vpop.f32.mrb[0].mxu0
      %v2502 = vpop.f32.mrb[0].mxu0
      %v2503 = vadd.f32 %v2326, %v2502
      %v2504 = vpop.f32.mrb[0].mxu0
      %2505 = vmatprep.mubr.bf16.mxu0 0
      %2506 = vmatmul.mubr.bf16.gmra.mrb[0].mxu0 %v851
      %v2507 = vpop.f32.mrb[0].mxu0
      %v2508 = vadd.f32 %v2331, %v2507
      %v2509 = vpop.f32.mrb[0].mxu0
      %v2510 = vpop.f32.mrb[0].mxu0
      %v2511 = vadd.f32 %v2334, %v2510
      %v2512 = vpop.f32.mrb[0].mxu0
      %2513 = vdwg.mxu0
      %v2514 = vadd.f32 %v1825, %v2372
      %v2515 = vadd.f32 %v1828, %v2375
      %v2516 = vadd.f32 %v1833, %v2380
      %v2517 = vadd.f32 %v1836, %v2383
      %v2518 = vadd.f32 %v1841, %v2388
      %v2519 = vadd.f32 %v1844, %v2391
      %v2520 = vadd.f32 %v1849, %v2396
      %v2521 = vadd.f32 %v1852, %v2399
      %v2522 = vadd.f32 %v1857, %v2404
      %v2523 = vadd.f32 %v1860, %v2407
      %v2524 = vadd.f32 %v1865, %v2412
      %v2525 = vadd.f32 %v1868, %v2415
      %v2526 = vadd.f32 %v1873, %v2420
      %v2527 = vadd.f32 %v1876, %v2423
      %v2528 = vadd.f32 %v1881, %v2428
      %v2529 = vadd.f32 %v1884, %v2431
      %v2530 = vadd.f32 %v1889, %v2436
      %v2531 = vadd.f32 %v1892, %v2439
      %v2532 = vadd.f32 %v1897, %v2444
      %v2533 = vadd.f32 %v1900, %v2447
      %v2534 = vadd.f32 %v1905, %v2452
      %v2535 = vadd.f32 %v1908, %v2455
      %v2536 = vadd.f32 %v1913, %v2460
      %v2537 = vadd.f32 %v1916, %v2463
      %v2538 = vadd.f32 %v1921, %v2468
      %v2539 = vadd.f32 %v1924, %v2471
      %v2540 = vadd.f32 %v1929, %v2476
      %v2541 = vadd.f32 %v1932, %v2479
      %v2542 = vadd.f32 %v1937, %v2484
      %v2543 = vadd.f32 %v1940, %v2487
      %v2544 = vadd.f32 %v1945, %v2492
      %v2545 = vadd.f32 %v1948, %v2495
      %v2546 = vadd.f32 %v1953, %v2500
      %v2547 = vadd.f32 %v1956, %v2503
      %v2548 = vadd.f32 %v1961, %v2508
      %v2549 = vadd.f32 %v1964, %v2511
      %v2550 = vld [vmem:[%s4] sm:$0x1]
      %v2552 = vlaneseq
      %v2553 = vshrl.u32 %v2552, 7
      %v2554 = vsub.s32 0, %v2553
      %v2555 = vrot.slane %v2550, %v2554
      %v2557 = vadd.f32 %v2514, %v2555
      %v2558 = vadd.f32 %v2515, %v2555
      %v2559 = vadd.f32 %v2516, %v2555
      %v2560 = vadd.f32 %v2517, %v2555
      %v2561 = vadd.f32 %v2518, %v2555
      %v2562 = vadd.f32 %v2519, %v2555
      %v2563 = vadd.f32 %v2520, %v2555
      %v2564 = vadd.f32 %v2521, %v2555
      %v2565 = vadd.f32 %v2522, %v2555
      %v2566 = vadd.f32 %v2523, %v2555
      %v2567 = vadd.f32 %v2524, %v2555
      %v2568 = vadd.f32 %v2525, %v2555
      %v2569 = vadd.f32 %v2526, %v2555
      %v2570 = vadd.f32 %v2527, %v2555
      %v2571 = vadd.f32 %v2528, %v2555
      %v2572 = vadd.f32 %v2529, %v2555
      %v2573 = vadd.f32 %v2530, %v2555
      %v2574 = vadd.f32 %v2531, %v2555
      %v2575 = vadd.f32 %v2532, %v2555
      %v2576 = vadd.f32 %v2533, %v2555
      %v2577 = vadd.f32 %v2534, %v2555
      %v2578 = vadd.f32 %v2535, %v2555
      %v2579 = vadd.f32 %v2536, %v2555
      %v2580 = vadd.f32 %v2537, %v2555
      %v2581 = vadd.f32 %v2538, %v2555
      %v2582 = vadd.f32 %v2539, %v2555
      %v2583 = vadd.f32 %v2540, %v2555
      %v2584 = vadd.f32 %v2541, %v2555
      %v2585 = vadd.f32 %v2542, %v2555
      %v2586 = vadd.f32 %v2543, %v2555
      %v2587 = vadd.f32 %v2544, %v2555
      %v2588 = vadd.f32 %v2545, %v2555
      %v2589 = vadd.f32 %v2546, %v2555
      %v2590 = vadd.f32 %v2547, %v2555
      %v2591 = vadd.f32 %v2548, %v2555
      %v2592 = vadd.f32 %v2549, %v2555
      %s2593 = smul.u32 %s21, 9
      %v2594 = vstv %s2593
      %v2595 = vadd.s32 %v2594, 1
      %v2596 = vadd.s32 %v2594, 2
      %v2597 = vadd.s32 %v2594, 3
      %v2598 = vadd.s32 %v2594, 4
      %v2599 = vadd.s32 %v2594, 5
      %v2600 = vadd.s32 %v2594, 6
      %v2601 = vadd.s32 %v2594, 7
      %v2602 = vadd.s32 %v2594, 8
      %v2603 = vlaneseq
      %v2604 = vshrl.u32 %v2603, 7
      %v2605 = vadd.s32 %v2604, 8
      %v2606 = vadd.s32 %v2604, 16
      %v2607 = vadd.s32 %v2604, 24
      %vm2608 = vcmp.ge.s32.totalorder %v2594, 1
      %vm2609 = vcmp.ge.s32.totalorder %v2595, 1
      %vm2610 = vcmp.ge.s32.totalorder %v2596, 1
      %vm2611 = vcmp.ge.s32.totalorder %v2597, 1
      %vm2612 = vcmp.ge.s32.totalorder %v2598, 1
      %vm2613 = vcmp.ge.s32.totalorder %v2599, 1
      %vm2614 = vcmp.ge.s32.totalorder %v2600, 1
      %vm2615 = vcmp.ge.s32.totalorder %v2601, 1
      %vm2616 = vcmp.ge.s32.totalorder %v2602, 1
      %vm2617 = vcmp.lt.s32.totalorder %v2594, 17
      %vm2618 = vcmp.lt.s32.totalorder %v2595, 17
      %vm2619 = vcmp.lt.s32.totalorder %v2596, 17
      %vm2620 = vcmp.lt.s32.totalorder %v2597, 17
      %vm2621 = vcmp.lt.s32.totalorder %v2598, 17
      %vm2622 = vcmp.lt.s32.totalorder %v2599, 17
      %vm2623 = vcmp.lt.s32.totalorder %v2600, 17
      %vm2624 = vcmp.lt.s32.totalorder %v2601, 17
      %vm2625 = vcmp.lt.s32.totalorder %v2602, 17
      %vm2626 = vmand %vm2608, %vm2617
      %vm2627 = vmand %vm2609, %vm2618
      %vm2628 = vmand %vm2610, %vm2619
      %vm2629 = vmand %vm2611, %vm2620
      %vm2630 = vmand %vm2612, %vm2621
      %vm2631 = vmand %vm2613, %vm2622
      %vm2632 = vmand %vm2614, %vm2623
      %vm2633 = vmand %vm2615, %vm2624
      %vm2634 = vmand %vm2616, %vm2625
      %vm2635 = vcmp.ge.s32.totalorder %v2604, 1
      %vm2636 = vcmp.ge.s32.totalorder %v2605, 1
      %vm2637 = vcmp.ge.s32.totalorder %v2606, 1
      %vm2638 = vcmp.ge.s32.totalorder %v2607, 1
      %vm2639 = vmand %vm2626, %vm2635
      %vm2640 = vmand %vm2626, %vm2636
      %vm2641 = vmand %vm2626, %vm2637
      %vm2642 = vmand %vm2626, %vm2638
      %vm2643 = vmand %vm2627, %vm2635
      %vm2644 = vmand %vm2627, %vm2636
      %vm2645 = vmand %vm2627, %vm2637
      %vm2646 = vmand %vm2627, %vm2638
      %vm2647 = vmand %vm2628, %vm2635
      %vm2648 = vmand %vm2628, %vm2636
      %vm2649 = vmand %vm2628, %vm2637
      %vm2650 = vmand %vm2628, %vm2638
      %vm2651 = vmand %vm2629, %vm2635
      %vm2652 = vmand %vm2629, %vm2636
      %vm2653 = vmand %vm2629, %vm2637
      %vm2654 = vmand %vm2629, %vm2638
      %vm2655 = vmand %vm2630, %vm2635
      %vm2656 = vmand %vm2630, %vm2636
      %vm2657 = vmand %vm2630, %vm2637
      %vm2658 = vmand %vm2630, %vm2638
      %vm2659 = vmand %vm2631, %vm2635
      %vm2660 = vmand %vm2631, %vm2636
      %vm2661 = vmand %vm2631, %vm2637
      %vm2662 = vmand %vm2631, %vm2638
      %vm2663 = vmand %vm2632, %vm2635
      %vm2664 = vmand %vm2632, %vm2636
      %vm2665 = vmand %vm2632, %vm2637
      %vm2666 = vmand %vm2632, %vm2638
      %vm2667 = vmand %vm2633, %vm2635
      %vm2668 = vmand %vm2633, %vm2636
      %vm2669 = vmand %vm2633, %vm2637
      %vm2670 = vmand %vm2633, %vm2638
      %vm2671 = vmand %vm2634, %vm2635
      %vm2672 = vmand %vm2634, %vm2636
      %vm2673 = vmand %vm2634, %vm2637
      %vm2674 = vmand %vm2634, %vm2638
      %vm2675 = vcmp.lt.s32.totalorder %v2604, 17
      %vm2676 = vcmp.lt.s32.totalorder %v2605, 17
      %vm2677 = vcmp.lt.s32.totalorder %v2606, 17
      %vm2678 = vcmp.lt.s32.totalorder %v2607, 17
      %vm2679 = vmand %vm2639, %vm2675
      %vm2680 = vmand %vm2640, %vm2676
      %vm2681 = vmand %vm2641, %vm2677
      %vm2682 = vmand %vm2642, %vm2678
      %vm2683 = vmand %vm2643, %vm2675
      %vm2684 = vmand %vm2644, %vm2676
      %vm2685 = vmand %vm2645, %vm2677
      %vm2686 = vmand %vm2646, %vm2678
      %vm2687 = vmand %vm2647, %vm2675
      %vm2688 = vmand %vm2648, %vm2676
      %vm2689 = vmand %vm2649, %vm2677
      %vm2690 = vmand %vm2650, %vm2678
      %vm2691 = vmand %vm2651, %vm2675
      %vm2692 = vmand %vm2652, %vm2676
      %vm2693 = vmand %vm2653, %vm2677
      %vm2694 = vmand %vm2654, %vm2678
      %vm2695 = vmand %vm2655, %vm2675
      %vm2696 = vmand %vm2656, %vm2676
      %vm2697 = vmand %vm2657, %vm2677
      %vm2698 = vmand %vm2658, %vm2678
      %vm2699 = vmand %vm2659, %vm2675
      %vm2700 = vmand %vm2660, %vm2676
      %vm2701 = vmand %vm2661, %vm2677
      %vm2702 = vmand %vm2662, %vm2678
      %vm2703 = vmand %vm2663, %vm2675
      %vm2704 = vmand %vm2664, %vm2676
      %vm2705 = vmand %vm2665, %vm2677
      %vm2706 = vmand %vm2666, %vm2678
      %vm2707 = vmand %vm2667, %vm2675
      %vm2708 = vmand %vm2668, %vm2676
      %vm2709 = vmand %vm2669, %vm2677
      %vm2710 = vmand %vm2670, %vm2678
      %vm2711 = vmand %vm2671, %vm2675
      %vm2712 = vmand %vm2672, %vm2676
      %vm2713 = vmand %vm2673, %vm2677
      %vm2714 = vmand %vm2674, %vm2678
      %v2715 = vsel %vm2679, %v2557, 0.0
      %v2716 = vsel %vm2680, %v2558, 0.0
      %v2717 = vsel %vm2681, %v2559, 0.0
      %v2718 = vsel %vm2682, %v2560, 0.0
      %v2719 = vsel %vm2683, %v2561, 0.0
      %v2720 = vsel %vm2684, %v2562, 0.0
      %v2721 = vsel %vm2685, %v2563, 0.0
      %v2722 = vsel %vm2686, %v2564, 0.0
      %v2723 = vsel %vm2687, %v2565, 0.0
      %v2724 = vsel %vm2688, %v2566, 0.0
      %v2725 = vsel %vm2689, %v2567, 0.0
      %v2726 = vsel %vm2690, %v2568, 0.0
      %v2727 = vsel %vm2691, %v2569, 0.0
      %v2728 = vsel %vm2692, %v2570, 0.0
      %v2729 = vsel %vm2693, %v2571, 0.0
      %v2730 = vsel %vm2694, %v2572, 0.0
      %v2731 = vsel %vm2695, %v2573, 0.0
      %v2732 = vsel %vm2696, %v2574, 0.0
      %v2733 = vsel %vm2697, %v2575, 0.0
      %v2734 = vsel %vm2698, %v2576, 0.0
      %v2735 = vsel %vm2699, %v2577, 0.0
      %v2736 = vsel %vm2700, %v2578, 0.0
      %v2737 = vsel %vm2701, %v2579, 0.0
      %v2738 = vsel %vm2702, %v2580, 0.0
      %v2739 = vsel %vm2703, %v2581, 0.0
      %v2740 = vsel %vm2704, %v2582, 0.0
      %v2741 = vsel %vm2705, %v2583, 0.0
      %v2742 = vsel %vm2706, %v2584, 0.0
      %v2743 = vsel %vm2707, %v2585, 0.0
      %v2744 = vsel %vm2708, %v2586, 0.0
      %v2745 = vsel %vm2709, %v2587, 0.0
      %v2746 = vsel %vm2710, %v2588, 0.0
      %v2747 = vsel %vm2711, %v2589, 0.0
      %v2748 = vsel %vm2712, %v2590, 0.0
      %v2749 = vsel %vm2713, %v2591, 0.0
      %v2750 = vsel %vm2714, %v2592, 0.0
      %v2751 = vpack.c.bf16 %v2716, %v2715
      %v2752 = vpack.c.bf16 %v2718, %v2717
      %v2753 = vpack.c.bf16 %v2720, %v2719
      %v2754 = vpack.c.bf16 %v2722, %v2721
      %v2755 = vpack.c.bf16 %v2724, %v2723
      %v2756 = vpack.c.bf16 %v2726, %v2725
      %v2757 = vpack.c.bf16 %v2728, %v2727
      %v2758 = vpack.c.bf16 %v2730, %v2729
      %v2759 = vpack.c.bf16 %v2732, %v2731
      %v2760 = vpack.c.bf16 %v2734, %v2733
      %v2761 = vpack.c.bf16 %v2736, %v2735
      %v2762 = vpack.c.bf16 %v2738, %v2737
      %v2763 = vpack.c.bf16 %v2740, %v2739
      %v2764 = vpack.c.bf16 %v2742, %v2741
      %v2765 = vpack.c.bf16 %v2744, %v2743
      %v2766 = vpack.c.bf16 %v2746, %v2745
      %v2767 = vpack.c.bf16 %v2748, %v2747
      %v2768 = vpack.c.bf16 %v2750, %v2749
      %v2787 = vunpack.c.l.b16 %v2751
      %v2788 = vunpack.c.h.b16 %v2751
      %v2789 = vunpack.c.l.b16 %v2752
      %v2790 = vunpack.c.h.b16 %v2752
      %v2791 = vunpack.c.l.b16 %v2753
      %v2792 = vunpack.c.h.b16 %v2753
      %v2793 = vunpack.c.l.b16 %v2754
      %v2794 = vunpack.c.h.b16 %v2754
      %v2795 = vunpack.c.l.b16 %v2755
      %v2796 = vunpack.c.h.b16 %v2755
      %v2797 = vunpack.c.l.b16 %v2756
      %v2798 = vunpack.c.h.b16 %v2756
      %v2799 = vunpack.c.l.b16 %v2757
      %v2800 = vunpack.c.h.b16 %v2757
      %v2801 = vunpack.c.l.b16 %v2758
      %v2802 = vunpack.c.h.b16 %v2758
      %v2803 = vunpack.c.l.b16 %v2759
      %v2804 = vunpack.c.h.b16 %v2759
      %v2805 = vunpack.c.l.b16 %v2760
      %v2806 = vunpack.c.h.b16 %v2760
      %v2807 = vunpack.c.l.b16 %v2761
      %v2808 = vunpack.c.h.b16 %v2761
      %v2809 = vunpack.c.l.b16 %v2762
      %v2810 = vunpack.c.h.b16 %v2762
      %v2811 = vunpack.c.l.b16 %v2763
      %v2812 = vunpack.c.h.b16 %v2763
      %v2813 = vunpack.c.l.b16 %v2764
      %v2814 = vunpack.c.h.b16 %v2764
      %v2815 = vunpack.c.l.b16 %v2765
      %v2816 = vunpack.c.h.b16 %v2765
      %v2817 = vunpack.c.l.b16 %v2766
      %v2818 = vunpack.c.h.b16 %v2766
      %v2819 = vunpack.c.l.b16 %v2767
      %v2820 = vunpack.c.h.b16 %v2767
      %v2821 = vunpack.c.l.b16 %v2768
      %v2822 = vunpack.c.h.b16 %v2768
      %v2823 = vpack.c.b16 %v2787, %v2787
      %v2824 = vpack.c.b16 %v2788, %v2788
      %v2825 = vpack.c.b16 %v2789, %v2789
      %v2826 = vpack.c.b16 %v2790, %v2790
      %v2827 = vpack.c.b16 %v2791, %v2791
      %v2828 = vpack.c.b16 %v2792, %v2792
      %v2829 = vpack.c.b16 %v2793, %v2793
      %v2830 = vpack.c.b16 %v2794, %v2794
      %v2831 = vpack.c.b16 %v2795, %v2795
      %v2832 = vpack.c.b16 %v2796, %v2796
      %v2833 = vpack.c.b16 %v2797, %v2797
      %v2834 = vpack.c.b16 %v2798, %v2798
      %v2835 = vpack.c.b16 %v2799, %v2799
      %v2836 = vpack.c.b16 %v2800, %v2800
      %v2837 = vpack.c.b16 %v2801, %v2801
      %v2838 = vpack.c.b16 %v2802, %v2802
      %v2839 = vpack.c.b16 %v2803, %v2803
      %v2840 = vpack.c.b16 %v2804, %v2804
      %v2841 = vpack.c.b16 %v2805, %v2805
      %v2842 = vpack.c.b16 %v2806, %v2806
      %v2843 = vpack.c.b16 %v2807, %v2807
      %v2844 = vpack.c.b16 %v2808, %v2808
      %v2845 = vpack.c.b16 %v2809, %v2809
      %v2846 = vpack.c.b16 %v2810, %v2810
      %v2847 = vpack.c.b16 %v2811, %v2811
      %v2848 = vpack.c.b16 %v2812, %v2812
      %v2849 = vpack.c.b16 %v2813, %v2813
      %v2850 = vpack.c.b16 %v2814, %v2814
      %v2851 = vpack.c.b16 %v2815, %v2815
      %v2852 = vpack.c.b16 %v2816, %v2816
      %v2853 = vpack.c.b16 %v2817, %v2817
      %v2854 = vpack.c.b16 %v2818, %v2818
      %v2855 = vpack.c.b16 %v2819, %v2819
      %v2856 = vpack.c.b16 %v2820, %v2820
      %v2857 = vpack.c.b16 %v2821, %v2821
      %v2858 = vpack.c.b16 %v2822, %v2822
      %2895 = vst [vmem:[%s391] sm:$0xf] %v2823
      %2896 = vst [vmem:[%s391 + $0x4] sm:$0xf] %v2824
      %2897 = vst [vmem:[%s391 + $0x8] sm:$0xf] %v2825
      %2898 = vst [vmem:[%s391 + $0xc] sm:$0xf] %v2826
      %2899 = vst [vmem:[%s391 + $0x10] sm:$0xf] %v2827
      %2900 = vst [vmem:[%s391 + $0x14] sm:$0xf] %v2828
      %2901 = vst [vmem:[%s391 + $0x18] sm:$0xf] %v2829
      %2902 = vst [vmem:[%s391 + $0x1c] sm:$0xf] %v2830
      %2903 = vst [vmem:[%s391 + $0x20] sm:$0xf] %v2831
      %2904 = vst [vmem:[%s391 + $0x24] sm:$0xf] %v2832
      %2905 = vst [vmem:[%s391 + $0x28] sm:$0xf] %v2833
      %2906 = vst [vmem:[%s391 + $0x2c] sm:$0xf] %v2834
      %2907 = vst [vmem:[%s391 + $0x30] sm:$0xf] %v2835
      %2908 = vst [vmem:[%s391 + $0x34] sm:$0xf] %v2836
      %2909 = vst [vmem:[%s391 + $0x38] sm:$0xf] %v2837
      %2910 = vst [vmem:[%s391 + $0x3c] sm:$0xf] %v2838
      %2911 = vst [vmem:[%s391 + $0x40] sm:$0xf] %v2839
      %2912 = vst [vmem:[%s391 + $0x44] sm:$0xf] %v2840
      %2913 = vst [vmem:[%s391 + $0x48] sm:$0xf] %v2841
      %2914 = vst [vmem:[%s391 + $0x4c] sm:$0xf] %v2842
      %2915 = vst [vmem:[%s391 + $0x50] sm:$0xf] %v2843
      %2916 = vst [vmem:[%s391 + $0x54] sm:$0xf] %v2844
      %2917 = vst [vmem:[%s391 + $0x58] sm:$0xf] %v2845
      %2918 = vst [vmem:[%s391 + $0x5c] sm:$0xf] %v2846
      %2919 = vst [vmem:[%s391 + $0x60] sm:$0xf] %v2847
      %2920 = vst [vmem:[%s391 + $0x64] sm:$0xf] %v2848
      %2921 = vst [vmem:[%s391 + $0x68] sm:$0xf] %v2849
      %2922 = vst [vmem:[%s391 + $0x6c] sm:$0xf] %v2850
      %2923 = vst [vmem:[%s391 + $0x70] sm:$0xf] %v2851
      %2924 = vst [vmem:[%s391 + $0x74] sm:$0xf] %v2852
      %2925 = vst [vmem:[%s391 + $0x78] sm:$0xf] %v2853
      %2926 = vst [vmem:[%s391 + $0x7c] sm:$0xf] %v2854
      %2927 = vst [vmem:[%s391 + $0x80] sm:$0xf] %v2855
      %2928 = vst [vmem:[%s391 + $0x84] sm:$0xf] %v2856
      %2929 = vst [vmem:[%s391 + $0x88] sm:$0xf] %v2857
      %2930 = vst [vmem:[%s391 + $0x8c] sm:$0xf] %v2858
      %s2931 = smul.u32 9, %s21
      %p2932 = scmp.lt.s32.totalorder %s20, 1
      %s2933 = scalar_select %p2932, %s20, 1
      %p2934 = scmp.lt.s32.totalorder %s2931, 17
      %s2935 = scalar_select %p2934, %s2931, 17
      %s2936 = smul.addr %s2935, 4
      %s2937 = smul.addr %s2933, 72
      %s2938 = sadd.s32 %s2936, %s2937
      %s2939 = smul.addr %s2938, 4
      %s2940 = scalar_lea.vmem %s5, %s2939
      // Predicated region
      $region41: #{res_unet_2d_encoder.5} parent=39 // pred_check
        %p2941 = pneg %p190
      $region42: #{res_unet_2d_encoder.5} parent=39 // pred_check_branch
        %2943 = sbr.rel (%p2941) target = $region44
      $region43: #{res_unet_2d_encoder.5} parent=39 // pred_region
        %s2944 = smul.u32 9, %s21
      $region44: #{res_unet_2d_encoder.5} parent=39 // pred_fallthru
        _
    $region40: #{res_unet_2d_encoder.5} parent=5 // pred_fallthru
      _
    %p2945 = scmp.le.s32.totalorder 2, %s11
    // Predicated region
    $region45: #{res_unet_2d_encoder.5} parent=5 // pred_check
      %p2946 = pneg %p2945
    $region46: #{res_unet_2d_encoder.5} parent=5 // pred_check_branch
      %2948 = sbr.rel (%p2946) target = $region48
    $region47: #{res_unet_2d_encoder.5} parent=5 // pred_region
      %s2949 = ssub.s32 %s11, 2
      // Predicated region
      $region49: #{res_unet_2d_encoder.5} parent=47 // pred_check
        %p2950 = pneg %p196
      $region50: #{res_unet_2d_encoder.5} parent=47 // pred_check_branch
        %2952 = sbr.rel (%p2950) target = $region52
      $region51: #{res_unet_2d_encoder.5} parent=47 // pred_region
        %s2953 = smul.u32 9, %s23
        %p2954 = scmp.lt.s32.totalorder %s22, 1
        %s2955 = scalar_select %p2954, %s22, 1
        %p2956 = scmp.lt.s32.totalorder %s2953, 17
        %s2957 = scalar_select %p2956, %s2953, 17
        %s2958 = smul.addr %s2957, 4
        %s2959 = smul.addr %s2955, 72
        %s2960 = sadd.s32 %s2958, %s2959
        %s2961 = smul.addr %s2960, 4
        %s2962 = scalar_lea.vmem %s5, %s2961
      $region52: #{res_unet_2d_encoder.5} parent=47 // pred_fallthru
        _
    $region48: #{res_unet_2d_encoder.5} parent=5 // pred_fallthru
      _
  $region6: #{res_unet_2d_encoder.5} parent=0 // loop_footer
    %s15 = sadd.s32 1, %s11
  $region7: #{res_unet_2d_encoder.5} parent=0 // loop_footer_branch
    %10 = sbr.rel target = $region3
  $region8: #{res_unet_2d_encoder.5} parent=0 // loop_exit
    _

// kernel: res_unet_2d_encoder.7
$region0: #{res_unet_2d_encoder.7}
  #allocation0 [shape = 'u32[]', space=smem, size = 0x4, offset = 0x4, fixed_abs, tag = 'smem constant byte address 0x4 - core index']
  #allocation1 [shape = 'u32[144,128]{1,0:T(1,128)}', space=vmem, size = 0x12000, scoped, tag = 'internal scratch']
  %s0 = inlined_call_operand.vmem [shape: bf16[2,18,32,128], index: 0, kind: input, shape index: {}, may-alias: {0,1,2}]
  %s1 = inlined_call_operand.vmem [shape: bf16[2,18,32,128], index: 1, kind: input, shape index: {}, may-alias: {0,1,2}]
  %s2 = inlined_call_operand.vmem [shape: bf16[2,18,32,128], index: 2, kind: input, shape index: {}, may-alias: {0,1,2}]
  %s3 = inlined_call_operand.vmem [shape: bf16[3,384,128], index: 3, kind: input, shape index: {}]
  %s4 = inlined_call_operand.vmem [shape: f32[1,128], index: 4, kind: input, shape index: {}]
  %s5 = inlined_call_operand.vmem [shape: bf16[2,18,32,128], index: 5, kind: input, shape index: {}]
  %s6 = inlined_call_operand.vmem [shape: bf16[128,128], index: 6, kind: input, shape index: {}]
  %s7 = inlined_call_operand.vmem [shape: f32[1,128], index: 7, kind: input, shape index: {}]
  %s8 = inlined_call_operand.vmem [shape: bf16[2,18,32,128], index: 8, kind: output, shape index: {}]
  %s9 = sld [smem:[#allocation0]]
  $region65: #{res_unet_2d_encoder.7} parent=0
    _
  %s11 = ssub.s32 1, %s9
  %s12 = scalar_select 0, %s11, %s9
  loop: start=0, step=1, limit=6
  $region2: #{res_unet_2d_encoder.7} parent=0 // loop_pre_header
    _
  $region3: #{res_unet_2d_encoder.7} parent=0 // loop_header
    %s14 = sphi 0, %s18
    %p15 = scmp.ge.s32.totalorder %s14, 6
    %s21 = sphi 0, %s33
    %s22 = sphi 0, %s29
    %s23 = sphi 0, %s21
    %s24 = sphi 0, %s22
    %s25 = sphi 0, %s23
    %s26 = sphi 0, %s24
    %s38 = sphi 0, %s40
    %s41 = sphi 0, %s38
    %s42 = sphi 0, %s41
    %s58 = sphi 0, %s42
    %s74 = sphi 0, %s76
    %s77 = sphi 0, %s74
    %s78 = sphi 0, %s77
    %s94 = sphi 0, %s78
    %s110 = sphi 0, %s112
    %s113 = sphi 0, %s110
    %s114 = sphi 0, %s113
    %s130 = sphi 0, %s114
    %s134 = sphi 0, %s134
    %s136 = sphi 0, %s134
    %s137 = sphi 0, %s136
    %s151 = sphi 0, %s137
    %s155 = sphi 0, %s155
    %s157 = sphi 0, %s155
    %s158 = sphi 0, %s157
    %s172 = sphi 0, %s158
    %s180 = sphi 0, %s182
    %s183 = sphi 0, %s180
    %s184 = sphi 0, %s183
    %s200 = sphi 0, %s184
    %s204 = sphi 0, %s204
    %s206 = sphi 0, %s204
    %s207 = sphi 0, %s206
    %s221 = sphi 0, %s207
    %s225 = sphi 0, %s225
    %s227 = sphi 0, %s225
    %s228 = sphi 0, %s227
    %s242 = sphi 0, %s228
    %s250 = sphi 0, %s252
    %s253 = sphi 0, %s250
    %s254 = sphi 0, %s253
    %s270 = sphi 0, %s254
  $region4: #{res_unet_2d_encoder.7} parent=0 // loop_header_branch
    %17 = sbr.rel (%p15) target = $region8
  $region5: #{res_unet_2d_encoder.7} parent=0 // loop_body
    %s19 = ssub.s32 %s14, 1
    %s20 = ssub.s32 %s14, 2
    %s27 = sadd.s32 1, %s22
    %p28 = scmp.ge.s32.totalorder %s27, 2
    %s29 = scalar_select %p28, 0, %s27
    %s30 = sadd.s32 1, %s21
    %s31 = scalar_select %p28, %s30, %s21
    %p32 = scmp.ge.s32.totalorder %s31, 2
    %s33 = scalar_select %p32, 0, %s31
    %s34 = ssub.s32 %s21, %s33
    %s35 = ssub.s32 %s22, %s29
    %s36 = sor.u32 %s34, %s35
    %p37 = scmp.eq.s32.totalorder %s36, 0
    %s39 = sadd.s32 %s38, 1
    %s40 = scalar_select %p37, %s38, %s39
    %p43 = pneg %p37
    %p44 = scmp.eq.s32.totalorder %s14, 3
    %p45 = por %p43, %p44
    %p46 = scmp.ne.s32.totalorder %s38, %s41
    %p47 = scmp.eq.s32.totalorder %s14, 0
    %p48 = por %p46, %p47
    %p49 = scmp.ne.s32.totalorder %s38, %s41
    %p50 = scmp.eq.s32.totalorder %s19, 3
    %p51 = por %p49, %p50
    %p52 = scmp.ne.s32.totalorder %s41, %s42
    %p53 = scmp.eq.s32.totalorder %s19, 0
    %p54 = por %p52, %p53
    %p55 = scmp.ne.s32.totalorder %s41, %s42
    %p56 = scmp.eq.s32.totalorder %s20, 3
    %p57 = por %p55, %p56
    %p59 = scmp.ne.s32.totalorder %s42, %s58
    %p60 = scmp.eq.s32.totalorder %s20, 0
    %p61 = por %p59, %p60
    %s62 = smul.u32 %s22, 9
    %s63 = ssub.s32 %s62, 1
    %p64 = scmp.gt.s32.totalorder %s63, 0
    %s65 = scalar_select %p64, %s63, 0
    %s66 = smul.u32 %s29, 9
    %s67 = ssub.s32 %s66, 1
    %p68 = scmp.gt.s32.totalorder %s67, 0
    %s69 = scalar_select %p68, %s67, 0
    %s70 = ssub.s32 %s21, %s33
    %s71 = ssub.s32 %s65, %s69
    %s72 = sor.u32 %s70, %s71
    %p73 = scmp.eq.s32.totalorder %s72, 0
    %s75 = sadd.s32 %s74, 1
    %s76 = scalar_select %p73, %s74, %s75
    %p79 = pneg %p73
    %p80 = scmp.eq.s32.totalorder %s14, 3
    %p81 = por %p79, %p80
    %p82 = scmp.ne.s32.totalorder %s74, %s77
    %p83 = scmp.eq.s32.totalorder %s14, 0
    %p84 = por %p82, %p83
    %p85 = scmp.ne.s32.totalorder %s74, %s77
    %p86 = scmp.eq.s32.totalorder %s19, 3
    %p87 = por %p85, %p86
    %p88 = scmp.ne.s32.totalorder %s77, %s78
    %p89 = scmp.eq.s32.totalorder %s19, 0
    %p90 = por %p88, %p89
    %p91 = scmp.ne.s32.totalorder %s77, %s78
    %p92 = scmp.eq.s32.totalorder %s20, 3
    %p93 = por %p91, %p92
    %p95 = scmp.ne.s32.totalorder %s78, %s94
    %p96 = scmp.eq.s32.totalorder %s20, 0
    %p97 = por %p95, %p96
    %s98 = sadd.s32 %s22, 1
    %s99 = smul.u32 %s98, 9
    %p100 = scmp.lt.s32.totalorder %s99, 17
    %s101 = scalar_select %p100, %s99, 17
    %s102 = sadd.s32 %s29, 1
    %s103 = smul.u32 %s102, 9
    %p104 = scmp.lt.s32.totalorder %s103, 17
    %s105 = scalar_select %p104, %s103, 17
    %s106 = ssub.s32 %s21, %s33
    %s107 = ssub.s32 %s101, %s105
    %s108 = sor.u32 %s106, %s107
    %p109 = scmp.eq.s32.totalorder %s108, 0
    %s111 = sadd.s32 %s110, 1
    %s112 = scalar_select %p109, %s110, %s111
    %p115 = pneg %p109
    %p116 = scmp.eq.s32.totalorder %s14, 3
    %p117 = por %p115, %p116
    %p118 = scmp.ne.s32.totalorder %s110, %s113
    %p119 = scmp.eq.s32.totalorder %s14, 0
    %p120 = por %p118, %p119
    %p121 = scmp.ne.s32.totalorder %s110, %s113
    %p122 = scmp.eq.s32.totalorder %s19, 3
    %p123 = por %p121, %p122
    %p124 = scmp.ne.s32.totalorder %s113, %s114
    %p125 = scmp.eq.s32.totalorder %s19, 0
    %p126 = por %p124, %p125
    %p127 = scmp.ne.s32.totalorder %s113, %s114
    %p128 = scmp.eq.s32.totalorder %s20, 3
    %p129 = por %p127, %p128
    %p131 = scmp.ne.s32.totalorder %s114, %s130
    %p132 = scmp.eq.s32.totalorder %s20, 0
    %p133 = por %p131, %p132
    %s135 = sadd.s32 %s134, 1
    %p138 = scmp.eq.s32.totalorder %s14, 3
    %p139 = scmp.ne.s32.totalorder %s134, %s136
    %p140 = scmp.eq.s32.totalorder %s14, 0
    %p141 = por %p139, %p140
    %p142 = scmp.ne.s32.totalorder %s134, %s136
    %p143 = scmp.eq.s32.totalorder %s19, 3
    %p144 = por %p142, %p143
    %p145 = scmp.ne.s32.totalorder %s136, %s137
    %p146 = scmp.eq.s32.totalorder %s19, 0
    %p147 = por %p145, %p146
    %p148 = scmp.ne.s32.totalorder %s136, %s137
    %p149 = scmp.eq.s32.totalorder %s20, 3
    %p150 = por %p148, %p149
    %p152 = scmp.ne.s32.totalorder %s137, %s151
    %p153 = scmp.eq.s32.totalorder %s20, 0
    %p154 = por %p152, %p153
    %s156 = sadd.s32 %s155, 1
    %p159 = scmp.eq.s32.totalorder %s14, 3
    %p160 = scmp.ne.s32.totalorder %s155, %s157
    %p161 = scmp.eq.s32.totalorder %s14, 0
    %p162 = por %p160, %p161
    %p163 = scmp.ne.s32.totalorder %s155, %s157
    %p164 = scmp.eq.s32.totalorder %s19, 3
    %p165 = por %p163, %p164
    %p166 = scmp.ne.s32.totalorder %s157, %s158
    %p167 = scmp.eq.s32.totalorder %s19, 0
    %p168 = por %p166, %p167
    %p169 = scmp.ne.s32.totalorder %s157, %s158
    %p170 = scmp.eq.s32.totalorder %s20, 3
    %p171 = por %p169, %p170
    %p173 = scmp.ne.s32.totalorder %s158, %s172
    %p174 = scmp.eq.s32.totalorder %s20, 0
    %p175 = por %p173, %p174
    %s176 = ssub.s32 %s21, %s33
    %s177 = ssub.s32 %s22, %s29
    %s178 = sor.u32 %s176, %s177
    %p179 = scmp.eq.s32.totalorder %s178, 0
    %s181 = sadd.s32 %s180, 1
    %s182 = scalar_select %p179, %s180, %s181
    %p185 = pneg %p179
    %p186 = scmp.eq.s32.totalorder %s14, 3
    %p187 = por %p185, %p186
    %p188 = scmp.ne.s32.totalorder %s180, %s183
    %p189 = scmp.eq.s32.totalorder %s14, 0
    %p190 = por %p188, %p189
    %p191 = scmp.ne.s32.totalorder %s180, %s183
    %p192 = scmp.eq.s32.totalorder %s19, 3
    %p193 = por %p191, %p192
    %p194 = scmp.ne.s32.totalorder %s183, %s184
    %p195 = scmp.eq.s32.totalorder %s19, 0
    %p196 = por %p194, %p195
    %p197 = scmp.ne.s32.totalorder %s183, %s184
    %p198 = scmp.eq.s32.totalorder %s20, 3
    %p199 = por %p197, %p198
    %p201 = scmp.ne.s32.totalorder %s184, %s200
    %p202 = scmp.eq.s32.totalorder %s20, 0
    %p203 = por %p201, %p202
    %s205 = sadd.s32 %s204, 1
    %p208 = scmp.eq.s32.totalorder %s14, 3
    %p209 = scmp.ne.s32.totalorder %s204, %s206
    %p210 = scmp.eq.s32.totalorder %s14, 0
    %p211 = por %p209, %p210
    %p212 = scmp.ne.s32.totalorder %s204, %s206
    %p213 = scmp.eq.s32.totalorder %s19, 3
    %p214 = por %p212, %p213
    %p215 = scmp.ne.s32.totalorder %s206, %s207
    %p216 = scmp.eq.s32.totalorder %s19, 0
    %p217 = por %p215, %p216
    %p218 = scmp.ne.s32.totalorder %s206, %s207
    %p219 = scmp.eq.s32.totalorder %s20, 3
    %p220 = por %p218, %p219
    %p222 = scmp.ne.s32.totalorder %s207, %s221
    %p223 = scmp.eq.s32.totalorder %s20, 0
    %p224 = por %p222, %p223
    %s226 = sadd.s32 %s225, 1
    %p229 = scmp.eq.s32.totalorder %s14, 3
    %p230 = scmp.ne.s32.totalorder %s225, %s227
    %p231 = scmp.eq.s32.totalorder %s14, 0
    %p232 = por %p230, %p231
    %p233 = scmp.ne.s32.totalorder %s225, %s227
    %p234 = scmp.eq.s32.totalorder %s19, 3
    %p235 = por %p233, %p234
    %p236 = scmp.ne.s32.totalorder %s227, %s228
    %p237 = scmp.eq.s32.totalorder %s19, 0
    %p238 = por %p236, %p237
    %p239 = scmp.ne.s32.totalorder %s227, %s228
    %p240 = scmp.eq.s32.totalorder %s20, 3
    %p241 = por %p239, %p240
    %p243 = scmp.ne.s32.totalorder %s228, %s242
    %p244 = scmp.eq.s32.totalorder %s20, 0
    %p245 = por %p243, %p244
    %s246 = ssub.s32 %s21, %s33
    %s247 = ssub.s32 %s22, %s29
    %s248 = sor.u32 %s246, %s247
    %p249 = scmp.eq.s32.totalorder %s248, 0
    %s251 = sadd.s32 %s250, 1
    %s252 = scalar_select %p249, %s250, %s251
    %p255 = pneg %p249
    %p256 = scmp.eq.s32.totalorder %s14, 3
    %p257 = por %p255, %p256
    %p258 = scmp.ne.s32.totalorder %s250, %s253
    %p259 = scmp.eq.s32.totalorder %s14, 0
    %p260 = por %p258, %p259
    %p261 = scmp.ne.s32.totalorder %s250, %s253
    %p262 = scmp.eq.s32.totalorder %s19, 3
    %p263 = por %p261, %p262
    %p264 = scmp.ne.s32.totalorder %s253, %s254
    %p265 = scmp.eq.s32.totalorder %s19, 0
    %p266 = por %p264, %p265
    %p267 = scmp.ne.s32.totalorder %s253, %s254
    %p268 = scmp.eq.s32.totalorder %s20, 3
    %p269 = por %p267, %p268
    %p271 = scmp.ne.s32.totalorder %s254, %s270
    %p272 = scmp.eq.s32.totalorder %s20, 0
    %p273 = por %p271, %p272
    %p274 = scmp.le.s32.totalorder 1, %s14
    %p275 = scmp.lt.s32.totalorder %s14, 5
    %p276 = pnand %p274, %p275
    %p277 = pneg %p276
    // Predicated region
    $region9: #{res_unet_2d_encoder.7} parent=5 // pred_check
      _
    $region10: #{res_unet_2d_encoder.7} parent=5 // pred_check_branch
      %279 = sbr.rel (%p276) target = $region12
    $region11: #{res_unet_2d_encoder.7} parent=5 // pred_region
      %s280 = ssub.s32 %s14, 1
      // Predicated region
      $region13: #{res_unet_2d_encoder.7} parent=11 // pred_check
        %p281 = pneg %p147
      $region14: #{res_unet_2d_encoder.7} parent=11 // pred_check_branch
        %283 = sbr.rel (%p281) target = $region16
      $region15: #{res_unet_2d_encoder.7} parent=11 // pred_region
        _
      $region16: #{res_unet_2d_encoder.7} parent=11 // pred_fallthru
        _
      // Predicated region
      $region17: #{res_unet_2d_encoder.7} parent=11 // pred_check
        %p284 = pneg %p168
      $region18: #{res_unet_2d_encoder.7} parent=11 // pred_check_branch
        %286 = sbr.rel (%p284) target = $region20
      $region19: #{res_unet_2d_encoder.7} parent=11 // pred_region
        _
      $region20: #{res_unet_2d_encoder.7} parent=11 // pred_fallthru
        _
      // Predicated region
      $region21: #{res_unet_2d_encoder.7} parent=11 // pred_check
        %p287 = pneg %p217
      $region22: #{res_unet_2d_encoder.7} parent=11 // pred_check_branch
        %289 = sbr.rel (%p287) target = $region24
      $region23: #{res_unet_2d_encoder.7} parent=11 // pred_region
        _
      $region24: #{res_unet_2d_encoder.7} parent=11 // pred_fallthru
        _
      // Predicated region
      $region25: #{res_unet_2d_encoder.7} parent=11 // pred_check
        %p290 = pneg %p238
      $region26: #{res_unet_2d_encoder.7} parent=11 // pred_check_branch
        %292 = sbr.rel (%p290) target = $region28
      $region27: #{res_unet_2d_encoder.7} parent=11 // pred_region
        _
      $region28: #{res_unet_2d_encoder.7} parent=11 // pred_fallthru
        _
    $region12: #{res_unet_2d_encoder.7} parent=5 // pred_fallthru
      _
    %p293 = scmp.lt.s32.totalorder %s14, 4
    // Predicated region
    $region29: #{res_unet_2d_encoder.7} parent=5 // pred_check
      %p294 = pneg %p293
    $region30: #{res_unet_2d_encoder.7} parent=5 // pred_check_branch
      %296 = sbr.rel (%p294) target = $region32
    $region31: #{res_unet_2d_encoder.7} parent=5 // pred_region
      // Predicated region
      $region33: #{res_unet_2d_encoder.7} parent=31 // pred_check
        %p297 = pneg %p48
      $region34: #{res_unet_2d_encoder.7} parent=31 // pred_check_branch
        %299 = sbr.rel (%p297) target = $region36
      $region35: #{res_unet_2d_encoder.7} parent=31 // pred_region
        %s300 = smul.u32 9, %s22
        %p301 = scmp.lt.s32.totalorder %s21, 1
        %s302 = scalar_select %p301, %s21, 1
        %p303 = scmp.lt.s32.totalorder %s300, 17
        %s304 = scalar_select %p303, %s300, 17
        %s305 = smul.addr %s304, 4
        %s306 = smul.addr %s302, 72
        %s307 = sadd.s32 %s305, %s306
        %s308 = smul.addr %s307, 4
        %s309 = scalar_lea.vmem %s0, %s308
        %s310 = smul.u32 9, %s22
      $region36: #{res_unet_2d_encoder.7} parent=31 // pred_fallthru
        _
      // Predicated region
      $region37: #{res_unet_2d_encoder.7} parent=31 // pred_check
        %p311 = pneg %p84
      $region38: #{res_unet_2d_encoder.7} parent=31 // pred_check_branch
        %313 = sbr.rel (%p311) target = $region40
      $region39: #{res_unet_2d_encoder.7} parent=31 // pred_region
        %s314 = smul.u32 %s22, 9
        %s315 = ssub.s32 %s314, 1
        %p316 = scmp.gt.s32.totalorder %s315, 0
        %s317 = scalar_select %p316, %s315, 0
        %p318 = scmp.lt.s32.totalorder %s21, 1
        %s319 = scalar_select %p318, %s21, 1
        %p320 = scmp.lt.s32.totalorder %s317, 17
        %s321 = scalar_select %p320, %s317, 17
        %s322 = smul.addr %s321, 4
        %s323 = smul.addr %s319, 72
        %s324 = sadd.s32 %s322, %s323
        %s325 = smul.addr %s324, 4
        %s326 = scalar_lea.vmem %s1, %s325
        %s327 = smul.u32 %s22, 9
        %s328 = ssub.s32 %s327, 1
        %p329 = scmp.gt.s32.totalorder %s328, 0
        %s330 = scalar_select %p329, %s328, 0
      $region40: #{res_unet_2d_encoder.7} parent=31 // pred_fallthru
        _
      // Predicated region
      $region41: #{res_unet_2d_encoder.7} parent=31 // pred_check
        %p331 = pneg %p120
      $region42: #{res_unet_2d_encoder.7} parent=31 // pred_check_branch
        %333 = sbr.rel (%p331) target = $region44
      $region43: #{res_unet_2d_encoder.7} parent=31 // pred_region
        %s334 = sadd.s32 %s22, 1
        %s335 = smul.u32 %s334, 9
        %p336 = scmp.lt.s32.totalorder %s335, 17
        %s337 = scalar_select %p336, %s335, 17
        %p338 = scmp.lt.s32.totalorder %s21, 1
        %s339 = scalar_select %p338, %s21, 1
        %p340 = scmp.lt.s32.totalorder %s337, 17
        %s341 = scalar_select %p340, %s337, 17
        %s342 = smul.addr %s341, 4
        %s343 = smul.addr %s339, 72
        %s344 = sadd.s32 %s342, %s343
        %s345 = smul.addr %s344, 4
        %s346 = scalar_lea.vmem %s2, %s345
        %s347 = sadd.s32 %s22, 1
        %s348 = smul.u32 %s347, 9
        %p349 = scmp.lt.s32.totalorder %s348, 17
        %s350 = scalar_select %p349, %s348, 17
      $region44: #{res_unet_2d_encoder.7} parent=31 // pred_fallthru
        _
      // Predicated region
      $region45: #{res_unet_2d_encoder.7} parent=31 // pred_check
        %p351 = pneg %p190
      $region46: #{res_unet_2d_encoder.7} parent=31 // pred_check_branch
        %353 = sbr.rel (%p351) target = $region48
      $region47: #{res_unet_2d_encoder.7} parent=31 // pred_region
        %s354 = smul.u32 9, %s22
        %p355 = scmp.lt.s32.totalorder %s21, 1
        %s356 = scalar_select %p355, %s21, 1
        %p357 = scmp.lt.s32.totalorder %s354, 17
        %s358 = scalar_select %p357, %s354, 17
        %s359 = smul.addr %s358, 4
        %s360 = smul.addr %s356, 72
        %s361 = sadd.s32 %s359, %s360
        %s362 = smul.addr %s361, 4
        %s363 = scalar_lea.vmem %s5, %s362
        %s364 = smul.u32 9, %s22
      $region48: #{res_unet_2d_encoder.7} parent=31 // pred_fallthru
        _
    $region32: #{res_unet_2d_encoder.7} parent=5 // pred_fallthru
      _
    %p365 = scmp.le.s32.totalorder 1, %s14
    %p366 = scmp.lt.s32.totalorder %s14, 5
    %p367 = pnand %p365, %p366
    %p368 = pneg %p367
    // Predicated region
    $region49: #{res_unet_2d_encoder.7} parent=5 // pred_check
      _
    $region50: #{res_unet_2d_encoder.7} parent=5 // pred_check_branch
      %370 = sbr.rel (%p367) target = $region52
    $region51: #{res_unet_2d_encoder.7} parent=5 // pred_region
      %s371 = ssub.s32 %s14, 1
      %s372 = smul.u32 9, %s24
      %p373 = scmp.lt.s32.totalorder %s23, 1
      %s374 = scalar_select %p373, %s23, 1
      %p375 = scmp.lt.s32.totalorder %s372, 17
      %s376 = scalar_select %p375, %s372, 17
      %s377 = smul.addr %s376, 4
      %s378 = smul.addr %s374, 72
      %s379 = sadd.s32 %s377, %s378
      %s380 = smul.addr %s379, 4
      %s381 = scalar_lea.vmem %s0, %s380
      %p382 = pneg %p54
      %p383 = pneg %p51
      %s384 = smul.u32 %s24, 9
      %s385 = ssub.s32 %s384, 1
      %p386 = scmp.gt.s32.totalorder %s385, 0
      %s387 = scalar_select %p386, %s385, 0
      %p388 = scmp.lt.s32.totalorder %s23, 1
      %s389 = scalar_select %p388, %s23, 1
      %p390 = scmp.lt.s32.totalorder %s387, 17
      %s391 = scalar_select %p390, %s387, 17
      %s392 = smul.addr %s391, 4
      %s393 = smul.addr %s389, 72
      %s394 = sadd.s32 %s392, %s393
      %s395 = smul.addr %s394, 4
      %s396 = scalar_lea.vmem %s1, %s395
      %p397 = pneg %p90
      %p398 = pneg %p87
      %s399 = sadd.s32 %s24, 1
      %s400 = smul.u32 %s399, 9
      %p401 = scmp.lt.s32.totalorder %s400, 17
      %s402 = scalar_select %p401, %s400, 17
      %p403 = scmp.lt.s32.totalorder %s23, 1
      %s404 = scalar_select %p403, %s23, 1
      %p405 = scmp.lt.s32.totalorder %s402, 17
      %s406 = scalar_select %p405, %s402, 17
      %s407 = smul.addr %s406, 4
      %s408 = smul.addr %s404, 72
      %s409 = sadd.s32 %s407, %s408
      %s410 = smul.addr %s409, 4
      %s411 = scalar_lea.vmem %s2, %s410
      %p412 = pneg %p126
      %p413 = pneg %p123
      %p414 = pneg %p147
      %p415 = pneg %p144
      %p416 = pneg %p168
      %p417 = pneg %p165
      %s418 = smul.u32 9, %s24
      %p419 = scmp.lt.s32.totalorder %s23, 1
      %s420 = scalar_select %p419, %s23, 1
      %p421 = scmp.lt.s32.totalorder %s418, 17
      %s422 = scalar_select %p421, %s418, 17
      %s423 = smul.addr %s422, 4
      %s424 = smul.addr %s420, 72
      %s425 = sadd.s32 %s423, %s424
      %s426 = smul.addr %s425, 4
      %s427 = scalar_lea.vmem %s5, %s426
      %p428 = pneg %p196
      %p429 = pneg %p193
      %p430 = pneg %p217
      %p431 = pneg %p214
      %p432 = pneg %p238
      %p433 = pneg %p235
      %p434 = pneg %p266
      %p435 = pneg %p263
      %s436 = smul.u32 9, %s24
      %p437 = scmp.lt.s32.totalorder %s23, 1
      %s438 = scalar_select %p437, %s23, 1
      %p439 = scmp.lt.s32.totalorder %s436, 17
      %s440 = scalar_select %p439, %s436, 17
      %s441 = smul.addr %s440, 4
      %s442 = smul.addr %s438, 72
      %s443 = sadd.s32 %s441, %s442
      %s444 = smul.addr %s443, 4
      %s445 = scalar_lea.vmem %s8, %s444
      %s446 = smul.u32 9, %s24
      %p447 = scmp.lt.s32.totalorder %s23, 1
      %s448 = scalar_select %p447, %s23, 1
      %p449 = scmp.lt.s32.totalorder %s446, 17
      %s450 = scalar_select %p449, %s446, 17
      %s451 = smul.addr %s450, 4
      %s452 = smul.addr %s448, 72
      %s453 = sadd.s32 %s451, %s452
      %s454 = smul.addr %s453, 4
      %s455 = scalar_lea.vmem %s0, %s454
      %s456 = smul.u32 9, %s24
      %s457 = smul.u32 %s24, 9
      %s458 = ssub.s32 %s457, 1
      %p459 = scmp.gt.s32.totalorder %s458, 0
      %s460 = scalar_select %p459, %s458, 0
      %p461 = scmp.lt.s32.totalorder %s23, 1
      %s462 = scalar_select %p461, %s23, 1
      %p463 = scmp.lt.s32.totalorder %s460, 17
      %s464 = scalar_select %p463, %s460, 17
      %s465 = smul.addr %s464, 4
      %s466 = smul.addr %s462, 72
      %s467 = sadd.s32 %s465, %s466
      %s468 = smul.addr %s467, 4
      %s469 = scalar_lea.vmem %s1, %s468
      %s470 = smul.u32 %s24, 9
      %s471 = ssub.s32 %s470, 1
      %p472 = scmp.gt.s32.totalorder %s471, 0
      %s473 = scalar_select %p472, %s471, 0
      %s474 = sadd.s32 %s24, 1
      %s475 = smul.u32 %s474, 9
      %p476 = scmp.lt.s32.totalorder %s475, 17
      %s477 = scalar_select %p476, %s475, 17
      %p478 = scmp.lt.s32.totalorder %s23, 1
      %s479 = scalar_select %p478, %s23, 1
      %p480 = scmp.lt.s32.totalorder %s477, 17
      %s481 = scalar_select %p480, %s477, 17
      %s482 = smul.addr %s481, 4
      %s483 = smul.addr %s479, 72
      %s484 = sadd.s32 %s482, %s483
      %s485 = smul.addr %s484, 4
      %s486 = scalar_lea.vmem %s2, %s485
      %s487 = sadd.s32 %s24, 1
      %s488 = smul.u32 %s487, 9
      %p489 = scmp.lt.s32.totalorder %s488, 17
      %s490 = scalar_select %p489, %s488, 17
      %s491 = smul.u32 9, %s24
      %p492 = scmp.lt.s32.totalorder %s23, 1
      %s493 = scalar_select %p492, %s23, 1
      %p494 = scmp.lt.s32.totalorder %s491, 17
      %s495 = scalar_select %p494, %s491, 17
      %s496 = smul.addr %s495, 4
      %s497 = smul.addr %s493, 72
      %s498 = sadd.s32 %s496, %s497
      %s499 = smul.addr %s498, 4
      %s500 = scalar_lea.vmem %s5, %s499
      %s501 = smul.u32 9, %s24
      %s502 = smul.u32 9, %s24
      %p503 = scmp.lt.s32.totalorder %s23, 1
      %s504 = scalar_select %p503, %s23, 1
      %p505 = scmp.lt.s32.totalorder %s502, 17
      %s506 = scalar_select %p505, %s502, 17
      %s507 = smul.addr %s506, 4
      %s508 = smul.addr %s504, 72
      %s509 = sadd.s32 %s507, %s508
      %s510 = smul.addr %s509, 4
      %s511 = scalar_lea.vmem %s8, %s510
      %s512 = smul.u32 9, %s24
      %v514 = vld [vmem:[%s469] sm:$0xf]
      %v515 = vld [vmem:[%s469 + $0x4] sm:$0xf]
      %v516 = vld [vmem:[%s469 + $0x8] sm:$0xf]
      %v517 = vld [vmem:[%s469 + $0xc] sm:$0xf]
      %v518 = vld [vmem:[%s455] sm:$0xf]
      %v519 = vld [vmem:[%s455 + $0x4] sm:$0xf]
      %v520 = vld [vmem:[%s455 + $0x8] sm:$0xf]
      %v521 = vld [vmem:[%s455 + $0xc] sm:$0xf]
      %v522 = vld [vmem:[%s455 + $0x10] sm:$0xf]
      %v523 = vld [vmem:[%s455 + $0x14] sm:$0xf]
      %v524 = vld [vmem:[%s455 + $0x18] sm:$0xf]
      %v525 = vld [vmem:[%s455 + $0x1c] sm:$0xf]
      %v526 = vld [vmem:[%s455 + $0x20] sm:$0xf]
      %v527 = vld [vmem:[%s455 + $0x24] sm:$0xf]
      %v528 = vld [vmem:[%s455 + $0x28] sm:$0xf]
      %v529 = vld [vmem:[%s455 + $0x2c] sm:$0xf]
      %v530 = vld [vmem:[%s455 + $0x30] sm:$0xf]
      %v531 = vld [vmem:[%s455 + $0x34] sm:$0xf]
      %v532 = vld [vmem:[%s455 + $0x38] sm:$0xf]
      %v533 = vld [vmem:[%s455 + $0x3c] sm:$0xf]
      %v534 = vld [vmem:[%s455 + $0x40] sm:$0xf]
      %v535 = vld [vmem:[%s455 + $0x44] sm:$0xf]
      %v536 = vld [vmem:[%s455 + $0x48] sm:$0xf]
      %v537 = vld [vmem:[%s455 + $0x4c] sm:$0xf]
      %v538 = vld [vmem:[%s455 + $0x50] sm:$0xf]
      %v539 = vld [vmem:[%s455 + $0x54] sm:$0xf]
      %v540 = vld [vmem:[%s455 + $0x58] sm:$0xf]
      %v541 = vld [vmem:[%s455 + $0x5c] sm:$0xf]
      %v542 = vld [vmem:[%s455 + $0x60] sm:$0xf]
      %v543 = vld [vmem:[%s455 + $0x64] sm:$0xf]
      %v544 = vld [vmem:[%s455 + $0x68] sm:$0xf]
      %v545 = vld [vmem:[%s455 + $0x6c] sm:$0xf]
      %v546 = vld [vmem:[%s455 + $0x70] sm:$0xf]
      %v547 = vld [vmem:[%s455 + $0x74] sm:$0xf]
      %v548 = vld [vmem:[%s455 + $0x78] sm:$0xf]
      %v549 = vld [vmem:[%s455 + $0x7c] sm:$0xf]
      %v550 = vld [vmem:[%s455 + $0x80] sm:$0xf]
      %v551 = vld [vmem:[%s455 + $0x84] sm:$0xf]
      %v552 = vld [vmem:[%s455 + $0x88] sm:$0xf]
      %v553 = vld [vmem:[%s455 + $0x8c] sm:$0xf]
      %v554 = vld [vmem:[%s486] sm:$0xf]
      %v555 = vld [vmem:[%s486 + $0x4] sm:$0xf]
      %v556 = vld [vmem:[%s486 + $0x8] sm:$0xf]
      %v557 = vld [vmem:[%s486 + $0xc] sm:$0xf]
      %v559 = vunpack.c.l.b16 %v557
      %v560 = vpack.c.b16 %v559, %v559
      %v562 = vshrl.u32 %v560, 16
      %v564 = vrot.slane %v562, 3
      %v609 = vunpack.c.l.b16 %v514
      %v610 = vunpack.c.l.b16 %v515
      %v611 = vunpack.c.l.b16 %v516
      %v612 = vunpack.c.l.b16 %v517
      %v613 = vunpack.c.l.b16 %v518
      %v614 = vunpack.c.l.b16 %v519
      %v615 = vunpack.c.l.b16 %v520
      %v616 = vunpack.c.l.b16 %v521
      %v617 = vunpack.c.l.b16 %v522
      %v618 = vunpack.c.l.b16 %v523
      %v619 = vunpack.c.l.b16 %v524
      %v620 = vunpack.c.l.b16 %v525
      %v621 = vunpack.c.l.b16 %v526
      %v622 = vunpack.c.l.b16 %v527
      %v623 = vunpack.c.l.b16 %v528
      %v624 = vunpack.c.l.b16 %v529
      %v625 = vunpack.c.l.b16 %v530
      %v626 = vunpack.c.l.b16 %v531
      %v627 = vunpack.c.l.b16 %v532
      %v628 = vunpack.c.l.b16 %v533
      %v629 = vunpack.c.l.b16 %v534
      %v630 = vunpack.c.l.b16 %v535
      %v631 = vunpack.c.l.b16 %v536
      %v632 = vunpack.c.l.b16 %v537
      %v633 = vunpack.c.l.b16 %v538
      %v634 = vunpack.c.l.b16 %v539
      %v635 = vunpack.c.l.b16 %v540
      %v636 = vunpack.c.l.b16 %v541
      %v637 = vunpack.c.l.b16 %v542
      %v638 = vunpack.c.l.b16 %v543
      %v639 = vunpack.c.l.b16 %v544
      %v640 = vunpack.c.l.b16 %v545
      %v641 = vunpack.c.l.b16 %v546
      %v642 = vunpack.c.l.b16 %v547
      %v643 = vunpack.c.l.b16 %v548
      %v644 = vunpack.c.l.b16 %v549
      %v645 = vunpack.c.l.b16 %v550
      %v646 = vunpack.c.l.b16 %v551
      %v647 = vunpack.c.l.b16 %v552
      %v648 = vunpack.c.l.b16 %v553
      %v649 = vunpack.c.l.b16 %v554
      %v650 = vunpack.c.l.b16 %v555
      %v651 = vunpack.c.l.b16 %v556
      %v652 = vpack.c.b16 %v610, %v609
      %v653 = vpack.c.b16 %v612, %v611
      %v654 = vpack.c.b16 %v614, %v613
      %v655 = vpack.c.b16 %v616, %v615
      %v656 = vpack.c.b16 %v618, %v617
      %v657 = vpack.c.b16 %v620, %v619
      %v658 = vpack.c.b16 %v622, %v621
      %v659 = vpack.c.b16 %v624, %v623
      %v660 = vpack.c.b16 %v626, %v625
      %v661 = vpack.c.b16 %v628, %v627
      %v662 = vpack.c.b16 %v630, %v629
      %v663 = vpack.c.b16 %v632, %v631
      %v664 = vpack.c.b16 %v634, %v633
      %v665 = vpack.c.b16 %v636, %v635
      %v666 = vpack.c.b16 %v638, %v637
      %v667 = vpack.c.b16 %v640, %v639
      %v668 = vpack.c.b16 %v642, %v641
      %v669 = vpack.c.b16 %v644, %v643
      %v670 = vpack.c.b16 %v646, %v645
      %v671 = vpack.c.b16 %v648, %v647
      %v672 = vpack.c.b16 %v650, %v649
      %v673 = vpack.c.b16 %v559, %v651
      %vm674 = vsmask.f32 256
      %v676 = vshrl.u32 %v652, 16
      %v678 = vrot.slane %v676, 7
      %v679 = vshll.u32 %v652, 16
      %v681 = vor.u32 %v678, %v679
      %v683 = vshrl.u32 %v653, 16
      %v685 = vrot.slane %v683, 7
      %v686 = vshll.u32 %v653, 16
      %v688 = vor.u32 %v685, %v686
      %v689 = vsel %vm674, %v678, %v688
      %v691 = vshrl.u32 %v654, 16
      %v693 = vrot.slane %v691, 7
      %v694 = vshll.u32 %v654, 16
      %v696 = vor.u32 %v693, %v694
      %v697 = vsel %vm674, %v685, %v696
      %v699 = vshrl.u32 %v655, 16
      %v701 = vrot.slane %v699, 7
      %v702 = vshll.u32 %v655, 16
      %v704 = vor.u32 %v701, %v702
      %v705 = vsel %vm674, %v693, %v704
      %v707 = vshrl.u32 %v656, 16
      %v709 = vrot.slane %v707, 7
      %v710 = vshll.u32 %v656, 16
      %v712 = vor.u32 %v709, %v710
      %v713 = vsel %vm674, %v701, %v712
      %v715 = vshrl.u32 %v657, 16
      %v717 = vrot.slane %v715, 7
      %v718 = vshll.u32 %v657, 16
      %v720 = vor.u32 %v717, %v718
      %v721 = vsel %vm674, %v709, %v720
      %v723 = vshrl.u32 %v658, 16
      %v725 = vrot.slane %v723, 7
      %v726 = vshll.u32 %v658, 16
      %v728 = vor.u32 %v725, %v726
      %v729 = vsel %vm674, %v717, %v728
      %v731 = vshrl.u32 %v659, 16
      %v733 = vrot.slane %v731, 7
      %v734 = vshll.u32 %v659, 16
      %v736 = vor.u32 %v733, %v734
      %v737 = vsel %vm674, %v725, %v736
      %v739 = vshrl.u32 %v660, 16
      %v741 = vrot.slane %v739, 7
      %v742 = vshll.u32 %v660, 16
      %v744 = vor.u32 %v741, %v742
      %v745 = vsel %vm674, %v733, %v744
      %v747 = vshrl.u32 %v661, 16
      %v749 = vrot.slane %v747, 7
      %v750 = vshll.u32 %v661, 16
      %v752 = vor.u32 %v749, %v750
      %v753 = vsel %vm674, %v741, %v752
      %v755 = vshrl.u32 %v662, 16
      %v757 = vrot.slane %v755, 7
      %v758 = vshll.u32 %v662, 16
      %v760 = vor.u32 %v757, %v758
      %v761 = vsel %vm674, %v749, %v760
      %v763 = vshrl.u32 %v663, 16
      %v765 = vrot.slane %v763, 7
      %v766 = vshll.u32 %v663, 16
      %v768 = vor.u32 %v765, %v766
      %v769 = vsel %vm674, %v757, %v768
      %v771 = vshrl.u32 %v664, 16
      %v773 = vrot.slane %v771, 7
      %v774 = vshll.u32 %v664, 16
      %v776 = vor.u32 %v773, %v774
      %v777 = vsel %vm674, %v765, %v776
      %v779 = vshrl.u32 %v665, 16
      %v781 = vrot.slane %v779, 7
      %v782 = vshll.u32 %v665, 16
      %v784 = vor.u32 %v781, %v782
      %v785 = vsel %vm674, %v773, %v784
      %v787 = vshrl.u32 %v666, 16
      %v789 = vrot.slane %v787, 7
      %v790 = vshll.u32 %v666, 16
      %v792 = vor.u32 %v789, %v790
      %v793 = vsel %vm674, %v781, %v792
      %v795 = vshrl.u32 %v667, 16
      %v797 = vrot.slane %v795, 7
      %v798 = vshll.u32 %v667, 16
      %v800 = vor.u32 %v797, %v798
      %v801 = vsel %vm674, %v789, %v800
      %v803 = vshrl.u32 %v668, 16
      %v805 = vrot.slane %v803, 7
      %v806 = vshll.u32 %v668, 16
      %v808 = vor.u32 %v805, %v806
      %v809 = vsel %vm674, %v797, %v808
      %v811 = vshrl.u32 %v669, 16
      %v813 = vrot.slane %v811, 7
      %v814 = vshll.u32 %v669, 16
      %v816 = vor.u32 %v813, %v814
      %v817 = vsel %vm674, %v805, %v816
      %v819 = vshrl.u32 %v670, 16
      %v821 = vrot.slane %v819, 7
      %v822 = vshll.u32 %v670, 16
      %v824 = vor.u32 %v821, %v822
      %v825 = vsel %vm674, %v813, %v824
      %v827 = vshrl.u32 %v671, 16
      %v829 = vrot.slane %v827, 7
      %v830 = vshll.u32 %v671, 16
      %v832 = vor.u32 %v829, %v830
      %v833 = vsel %vm674, %v821, %v832
      %v835 = vshrl.u32 %v672, 16
      %v837 = vrot.slane %v835, 7
      %v838 = vshll.u32 %v672, 16
      %v840 = vor.u32 %v837, %v838
      %v841 = vsel %vm674, %v829, %v840
      %v843 = vshrl.u32 %v673, 16
      %v845 = vrot.slane %v843, 7
      %v846 = vshll.u32 %v673, 16
      %v848 = vor.u32 %v845, %v846
      %v849 = vsel %vm674, %v837, %v848
      %vm872 = vcmask 1040384
      %vm873 = vmand %vm872, %vm674
      %v874 = vsel %vm873, %v564, %v681
      %vm875 = vsmask.f32 7424
      %v876 = vrot.slane %v679, 1
      %v877 = vor.u32 %v676, %v876
      %v878 = vrot.slane %v686, 1
      %v879 = vsel %vm875, %v877, %v878
      %v880 = vor.u32 %v683, %v878
      %v881 = vrot.slane %v694, 1
      %v882 = vsel %vm875, %v880, %v881
      %v883 = vor.u32 %v691, %v881
      %v884 = vrot.slane %v702, 1
      %v885 = vsel %vm875, %v883, %v884
      %v886 = vor.u32 %v699, %v884
      %v887 = vrot.slane %v710, 1
      %v888 = vsel %vm875, %v886, %v887
      %v889 = vor.u32 %v707, %v887
      %v890 = vrot.slane %v718, 1
      %v891 = vsel %vm875, %v889, %v890
      %v892 = vor.u32 %v715, %v890
      %v893 = vrot.slane %v726, 1
      %v894 = vsel %vm875, %v892, %v893
      %v895 = vor.u32 %v723, %v893
      %v896 = vrot.slane %v734, 1
      %v897 = vsel %vm875, %v895, %v896
      %v898 = vor.u32 %v731, %v896
      %v899 = vrot.slane %v742, 1
      %v900 = vsel %vm875, %v898, %v899
      %v901 = vor.u32 %v739, %v899
      %v902 = vrot.slane %v750, 1
      %v903 = vsel %vm875, %v901, %v902
      %v904 = vor.u32 %v747, %v902
      %v905 = vrot.slane %v758, 1
      %v906 = vsel %vm875, %v904, %v905
      %v907 = vor.u32 %v755, %v905
      %v908 = vrot.slane %v766, 1
      %v909 = vsel %vm875, %v907, %v908
      %v910 = vor.u32 %v763, %v908
      %v911 = vrot.slane %v774, 1
      %v912 = vsel %vm875, %v910, %v911
      %v913 = vor.u32 %v771, %v911
      %v914 = vrot.slane %v782, 1
      %v915 = vsel %vm875, %v913, %v914
      %v916 = vor.u32 %v779, %v914
      %v917 = vrot.slane %v790, 1
      %v918 = vsel %vm875, %v916, %v917
      %v919 = vor.u32 %v787, %v917
      %v920 = vrot.slane %v798, 1
      %v921 = vsel %vm875, %v919, %v920
      %v922 = vor.u32 %v795, %v920
      %v923 = vrot.slane %v806, 1
      %v924 = vsel %vm875, %v922, %v923
      %v925 = vor.u32 %v803, %v923
      %v926 = vrot.slane %v814, 1
      %v927 = vsel %vm875, %v925, %v926
      %v928 = vor.u32 %v811, %v926
      %v929 = vrot.slane %v822, 1
      %v930 = vsel %vm875, %v928, %v929
      %v931 = vor.u32 %v819, %v929
      %v932 = vrot.slane %v830, 1
      %v933 = vsel %vm875, %v931, %v932
      %v934 = vor.u32 %v827, %v932
      %v935 = vrot.slane %v838, 1
      %v936 = vsel %vm875, %v934, %v935
      %v937 = vor.u32 %v835, %v935
      %v938 = vrot.slane %v846, 1
      %v939 = vsel %vm875, %v937, %v938
      %v940 = vor.u32 %v843, %v938
      %v963 = vpack.c.b16 %v609, %v609
      %v965 = vshll.u32 %v963, 16
      %v967 = vrot.slane %v965, 1
      %vm969 = vcmask 1047552
      %vm970 = vmand %vm969, %vm875
      %v971 = vsel %vm970, %v940, %v967
      %v994 = vld [vmem:[%s3] sm:$0xf]
      %v995 = vld [vmem:[%s3 + $0x4] sm:$0xf]
      %v996 = vld [vmem:[%s3 + $0x8] sm:$0xf]
      %v997 = vld [vmem:[%s3 + $0xc] sm:$0xf]
      %v998 = vld [vmem:[%s3 + $0x10] sm:$0xf]
      %v999 = vld [vmem:[%s3 + $0x14] sm:$0xf]
      %v1000 = vld [vmem:[%s3 + $0x18] sm:$0xf]
      %v1001 = vld [vmem:[%s3 + $0x1c] sm:$0xf]
      %v1002 = vld [vmem:[%s3 + $0x20] sm:$0xf]
      %v1003 = vld [vmem:[%s3 + $0x24] sm:$0xf]
      %v1004 = vld [vmem:[%s3 + $0x28] sm:$0xf]
      %v1005 = vld [vmem:[%s3 + $0x2c] sm:$0xf]
      %v1006 = vld [vmem:[%s3 + $0x30] sm:$0xf]
      %v1007 = vld [vmem:[%s3 + $0x34] sm:$0xf]
      %v1008 = vld [vmem:[%s3 + $0x38] sm:$0xf]
      %v1009 = vld [vmem:[%s3 + $0x3c] sm:$0xf]
      %v1010 = vld [vmem:[%s3 + $0x40] sm:$0xf]
      %v1011 = vld [vmem:[%s3 + $0x44] sm:$0xf]
      %v1012 = vld [vmem:[%s3 + $0x48] sm:$0xf]
      %v1013 = vld [vmem:[%s3 + $0x4c] sm:$0xf]
      %v1014 = vld [vmem:[%s3 + $0x50] sm:$0xf]
      %v1015 = vld [vmem:[%s3 + $0x54] sm:$0xf]
      %v1016 = vld [vmem:[%s3 + $0x58] sm:$0xf]
      %v1017 = vld [vmem:[%s3 + $0x5c] sm:$0xf]
      %v1018 = vld [vmem:[%s3 + $0x60] sm:$0xf]
      %v1019 = vld [vmem:[%s3 + $0x64] sm:$0xf]
      %v1020 = vld [vmem:[%s3 + $0x68] sm:$0xf]
      %v1021 = vld [vmem:[%s3 + $0x6c] sm:$0xf]
      %v1022 = vld [vmem:[%s3 + $0x70] sm:$0xf]
      %v1023 = vld [vmem:[%s3 + $0x74] sm:$0xf]
      %v1024 = vld [vmem:[%s3 + $0x78] sm:$0xf]
      %v1025 = vld [vmem:[%s3 + $0x7c] sm:$0xf]
      %v1026 = vld [vmem:[%s3 + $0x80] sm:$0xf]
      %v1027 = vld [vmem:[%s3 + $0x84] sm:$0xf]
      %v1028 = vld [vmem:[%s3 + $0x88] sm:$0xf]
      %v1029 = vld [vmem:[%s3 + $0x8c] sm:$0xf]
      %v1030 = vld [vmem:[%s3 + $0x90] sm:$0xf]
      %v1031 = vld [vmem:[%s3 + $0x94] sm:$0xf]
      %v1032 = vld [vmem:[%s3 + $0x98] sm:$0xf]
      %v1033 = vld [vmem:[%s3 + $0x9c] sm:$0xf]
      %v1034 = vld [vmem:[%s3 + $0xa0] sm:$0xf]
      %v1035 = vld [vmem:[%s3 + $0xa4] sm:$0xf]
      %v1036 = vld [vmem:[%s3 + $0xa8] sm:$0xf]
      %v1037 = vld [vmem:[%s3 + $0xac] sm:$0xf]
      %v1038 = vld [vmem:[%s3 + $0xb0] sm:$0xf]
      %v1039 = vld [vmem:[%s3 + $0xb4] sm:$0xf]
      %v1040 = vld [vmem:[%s3 + $0xb8] sm:$0xf]
      %v1041 = vld [vmem:[%s3 + $0xbc] sm:$0xf]
      %s1042 = scalar_lea.vmem %s3, 192
      %v1043 = vld [vmem:[%s1042] sm:$0xf]
      %v1044 = vld [vmem:[%s1042 + $0x4] sm:$0xf]
      %v1045 = vld [vmem:[%s1042 + $0x8] sm:$0xf]
      %v1046 = vld [vmem:[%s1042 + $0xc] sm:$0xf]
      %v1047 = vld [vmem:[%s1042 + $0x10] sm:$0xf]
      %v1048 = vld [vmem:[%s1042 + $0x14] sm:$0xf]
      %v1049 = vld [vmem:[%s1042 + $0x18] sm:$0xf]
      %v1050 = vld [vmem:[%s1042 + $0x1c] sm:$0xf]
      %v1051 = vld [vmem:[%s1042 + $0x20] sm:$0xf]
      %v1052 = vld [vmem:[%s1042 + $0x24] sm:$0xf]
      %v1053 = vld [vmem:[%s1042 + $0x28] sm:$0xf]
      %v1054 = vld [vmem:[%s1042 + $0x2c] sm:$0xf]
      %v1055 = vld [vmem:[%s1042 + $0x30] sm:$0xf]
      %v1056 = vld [vmem:[%s1042 + $0x34] sm:$0xf]
      %v1057 = vld [vmem:[%s1042 + $0x38] sm:$0xf]
      %v1058 = vld [vmem:[%s1042 + $0x3c] sm:$0xf]
      %v1059 = vld [vmem:[%s1042 + $0x40] sm:$0xf]
      %v1060 = vld [vmem:[%s1042 + $0x44] sm:$0xf]
      %v1061 = vld [vmem:[%s1042 + $0x48] sm:$0xf]
      %v1062 = vld [vmem:[%s1042 + $0x4c] sm:$0xf]
      %v1063 = vld [vmem:[%s1042 + $0x50] sm:$0xf]
      %v1064 = vld [vmem:[%s1042 + $0x54] sm:$0xf]
      %v1065 = vld [vmem:[%s1042 + $0x58] sm:$0xf]
      %v1066 = vld [vmem:[%s1042 + $0x5c] sm:$0xf]
      %v1067 = vld [vmem:[%s1042 + $0x60] sm:$0xf]
      %v1068 = vld [vmem:[%s1042 + $0x64] sm:$0xf]
      %v1069 = vld [vmem:[%s1042 + $0x68] sm:$0xf]
      %v1070 = vld [vmem:[%s1042 + $0x6c] sm:$0xf]
      %v1071 = vld [vmem:[%s1042 + $0x70] sm:$0xf]
      %v1072 = vld [vmem:[%s1042 + $0x74] sm:$0xf]
      %v1073 = vld [vmem:[%s1042 + $0x78] sm:$0xf]
      %v1074 = vld [vmem:[%s1042 + $0x7c] sm:$0xf]
      %v1075 = vld [vmem:[%s1042 + $0x80] sm:$0xf]
      %v1076 = vld [vmem:[%s1042 + $0x84] sm:$0xf]
      %v1077 = vld [vmem:[%s1042 + $0x88] sm:$0xf]
      %v1078 = vld [vmem:[%s1042 + $0x8c] sm:$0xf]
      %v1079 = vld [vmem:[%s1042 + $0x90] sm:$0xf]
      %v1080 = vld [vmem:[%s1042 + $0x94] sm:$0xf]
      %v1081 = vld [vmem:[%s1042 + $0x98] sm:$0xf]
      %v1082 = vld [vmem:[%s1042 + $0x9c] sm:$0xf]
      %v1083 = vld [vmem:[%s1042 + $0xa0] sm:$0xf]
      %v1084 = vld [vmem:[%s1042 + $0xa4] sm:$0xf]
      %v1085 = vld [vmem:[%s1042 + $0xa8] sm:$0xf]
      %v1086 = vld [vmem:[%s1042 + $0xac] sm:$0xf]
      %v1087 = vld [vmem:[%s1042 + $0xb0] sm:$0xf]
      %v1088 = vld [vmem:[%s1042 + $0xb4] sm:$0xf]
      %v1089 = vld [vmem:[%s1042 + $0xb8] sm:$0xf]
      %v1090 = vld [vmem:[%s1042 + $0xbc] sm:$0xf]
      %v1139 = vunpack.c.l.b16 %v1043
      %v1140 = vunpack.c.l.b16 %v1044
      %v1141 = vunpack.c.l.b16 %v1045
      %v1142 = vunpack.c.l.b16 %v1046
      %v1143 = vunpack.c.l.b16 %v1047
      %v1144 = vunpack.c.l.b16 %v1048
      %v1145 = vunpack.c.l.b16 %v1049
      %v1146 = vunpack.c.l.b16 %v1050
      %v1147 = vunpack.c.l.b16 %v1051
      %v1148 = vunpack.c.l.b16 %v1052
      %v1149 = vunpack.c.l.b16 %v1053
      %v1150 = vunpack.c.l.b16 %v1054
      %v1151 = vunpack.c.l.b16 %v1055
      %v1152 = vunpack.c.l.b16 %v1056
      %v1153 = vunpack.c.l.b16 %v1057
      %v1154 = vunpack.c.l.b16 %v1058
      %v1155 = vunpack.c.l.b16 %v1059
      %v1156 = vunpack.c.l.b16 %v1060
      %v1157 = vunpack.c.l.b16 %v1061
      %v1158 = vunpack.c.l.b16 %v1062
      %v1159 = vunpack.c.l.b16 %v1063
      %v1160 = vunpack.c.l.b16 %v1064
      %v1161 = vunpack.c.l.b16 %v1065
      %v1162 = vunpack.c.l.b16 %v1066
      %v1163 = vunpack.c.l.b16 %v1067
      %v1164 = vunpack.c.l.b16 %v1068
      %v1165 = vunpack.c.l.b16 %v1069
      %v1166 = vunpack.c.l.b16 %v1070
      %v1167 = vunpack.c.l.b16 %v1071
      %v1168 = vunpack.c.l.b16 %v1072
      %v1169 = vunpack.c.l.b16 %v1073
      %v1170 = vunpack.c.l.b16 %v1074
      %v1171 = vunpack.c.l.b16 %v1075
      %v1172 = vunpack.c.l.b16 %v1076
      %v1173 = vunpack.c.l.b16 %v1077
      %v1174 = vunpack.c.l.b16 %v1078
      %v1175 = vunpack.c.l.b16 %v1079
      %v1176 = vunpack.c.l.b16 %v1080
      %v1177 = vunpack.c.l.b16 %v1081
      %v1178 = vunpack.c.l.b16 %v1082
      %v1179 = vunpack.c.l.b16 %v1083
      %v1180 = vunpack.c.l.b16 %v1084
      %v1181 = vunpack.c.l.b16 %v1085
      %v1182 = vunpack.c.l.b16 %v1086
      %v1183 = vunpack.c.l.b16 %v1087
      %v1184 = vunpack.c.l.b16 %v1088
      %v1185 = vunpack.c.l.b16 %v1089
      %v1186 = vunpack.c.l.b16 %v1090
      %v1187 = vpack.c.b16 %v1140, %v1139
      %v1188 = vpack.c.b16 %v1142, %v1141
      %v1189 = vpack.c.b16 %v1144, %v1143
      %v1190 = vpack.c.b16 %v1146, %v1145
      %v1191 = vpack.c.b16 %v1148, %v1147
      %v1192 = vpack.c.b16 %v1150, %v1149
      %v1193 = vpack.c.b16 %v1152, %v1151
      %v1194 = vpack.c.b16 %v1154, %v1153
      %v1195 = vpack.c.b16 %v1156, %v1155
      %v1196 = vpack.c.b16 %v1158, %v1157
      %v1197 = vpack.c.b16 %v1160, %v1159
      %v1198 = vpack.c.b16 %v1162, %v1161
      %v1199 = vpack.c.b16 %v1164, %v1163
      %v1200 = vpack.c.b16 %v1166, %v1165
      %v1201 = vpack.c.b16 %v1168, %v1167
      %v1202 = vpack.c.b16 %v1170, %v1169
      %v1203 = vpack.c.b16 %v1172, %v1171
      %v1204 = vpack.c.b16 %v1174, %v1173
      %v1205 = vpack.c.b16 %v1176, %v1175
      %v1206 = vpack.c.b16 %v1178, %v1177
      %v1207 = vpack.c.b16 %v1180, %v1179
      %v1208 = vpack.c.b16 %v1182, %v1181
      %v1209 = vpack.c.b16 %v1184, %v1183
      %v1210 = vpack.c.b16 %v1186, %v1185
      %1235 = vmatprep.subr.bf16.mxu0 0
      %1236 = vmatpush1.bf16.msra.mxu0 %v1187
      %1237 = vmatprep.subr.bf16.mxu0 0
      %1238 = vmatpush1.bf16.msra.mxu0 %v1188
      %1239 = vmatprep.subr.bf16.mxu0 0
      %1240 = vmatpush1.bf16.msra.mxu0 %v1189
      %1241 = vmatprep.subr.bf16.mxu0 0
      %1242 = vmatpush1.bf16.msra.mxu0 %v1190
      %1243 = vmatprep.subr.bf16.mxu0 0
      %1244 = vmatpush1.bf16.msra.mxu0 %v1191
      %1245 = vmatprep.subr.bf16.mxu0 0
      %1246 = vmatpush1.bf16.msra.mxu0 %v1192
      %1247 = vmatprep.subr.bf16.mxu0 0
      %1248 = vmatpush1.bf16.msra.mxu0 %v1193
      %1249 = vmatprep.subr.bf16.mxu0 0
      %1250 = vmatpush1.bf16.msra.mxu0 %v1194
      %1251 = vmatprep.subr.bf16.mxu0 0
      %1252 = vmatpush1.bf16.msra.mxu0 %v1195
      %1253 = vmatprep.subr.bf16.mxu0 0
      %1254 = vmatpush1.bf16.msra.mxu0 %v1196
      %1255 = vmatprep.subr.bf16.mxu0 0
      %1256 = vmatpush1.bf16.msra.mxu0 %v1197
      %1257 = vmatprep.subr.bf16.mxu0 0
      %1258 = vmatpush1.bf16.msra.mxu0 %v1198
      %1259 = vmatprep.subr.bf16.mxu0 0
      %1260 = vmatpush1.bf16.msra.mxu0 %v1199
      %1261 = vmatprep.subr.bf16.mxu0 0
      %1262 = vmatpush1.bf16.msra.mxu0 %v1200
      %1263 = vmatprep.subr.bf16.mxu0 0
      %1264 = vmatpush1.bf16.msra.mxu0 %v1201
      %1265 = vmatprep.subr.bf16.mxu0 0
      %1266 = vmatpush1.bf16.msra.mxu0 %v1202
      %1267 = vmatprep.mubr.bf16.mxu0 %v654
      %1268 = vmatmul.mubr.bf16.gmra.mrb[0].mxu0 %v697
      %v1269 = vpop.f32.mrb[0].mxu0
      %v1270 = vadd.f32 0.0, %v1269
      %v1271 = vpop.f32.mrb[0].mxu0
      %v1272 = vpop.f32.mrb[0].mxu0
      %v1273 = vadd.f32 0.0, %v1272
      %v1274 = vpop.f32.mrb[0].mxu0
      %1275 = vmatprep.mubr.bf16.mxu0 %v655
      %1276 = vmatmul.mubr.bf16.gmra.mrb[0].mxu0 %v705
      %v1277 = vpop.f32.mrb[0].mxu0
      %v1278 = vadd.f32 0.0, %v1277
      %v1279 = vpop.f32.mrb[0].mxu0
      %v1280 = vpop.f32.mrb[0].mxu0
      %v1281 = vadd.f32 0.0, %v1280
      %v1282 = vpop.f32.mrb[0].mxu0
      %1283 = vmatprep.mubr.bf16.mxu0 %v656
      %1284 = vmatmul.mubr.bf16.gmra.mrb[0].mxu0 %v713
      %v1285 = vpop.f32.mrb[0].mxu0
      %v1286 = vadd.f32 0.0, %v1285
      %v1287 = vpop.f32.mrb[0].mxu0
      %v1288 = vpop.f32.mrb[0].mxu0
      %v1289 = vadd.f32 0.0, %v1288
      %v1290 = vpop.f32.mrb[0].mxu0
      %1291 = vmatprep.mubr.bf16.mxu0 %v657
      %1292 = vmatmul.mubr.bf16.gmra.mrb[0].mxu0 %v721
      %v1293 = vpop.f32.mrb[0].mxu0
      %v1294 = vadd.f32 0.0, %v1293
      %v1295 = vpop.f32.mrb[0].mxu0
      %v1296 = vpop.f32.mrb[0].mxu0
      %v1297 = vadd.f32 0.0, %v1296
      %v1298 = vpop.f32.mrb[0].mxu0
      %1299 = vmatprep.mubr.bf16.mxu0 %v658
      %1300 = vmatmul.mubr.bf16.gmra.mrb[0].mxu0 %v729
      %v1301 = vpop.f32.mrb[0].mxu0
      %v1302 = vadd.f32 0.0, %v1301
      %v1303 = vpop.f32.mrb[0].mxu0
      %v1304 = vpop.f32.mrb[0].mxu0
      %v1305 = vadd.f32 0.0, %v1304
      %v1306 = vpop.f32.mrb[0].mxu0
      %1307 = vmatprep.mubr.bf16.mxu0 %v659
      %1308 = vmatmul.mubr.bf16.gmra.mrb[0].mxu0 %v737
      %v1309 = vpop.f32.mrb[0].mxu0
      %v1310 = vadd.f32 0.0, %v1309
      %v1311 = vpop.f32.mrb[0].mxu0
      %v1312 = vpop.f32.mrb[0].mxu0
      %v1313 = vadd.f32 0.0, %v1312
      %v1314 = vpop.f32.mrb[0].mxu0
      %1315 = vmatprep.mubr.bf16.mxu0 %v660
      %1316 = vmatmul.mubr.bf16.gmra.mrb[0].mxu0 %v745
      %v1317 = vpop.f32.mrb[0].mxu0
      %v1318 = vadd.f32 0.0, %v1317
      %v1319 = vpop.f32.mrb[0].mxu0
      %v1320 = vpop.f32.mrb[0].mxu0
      %v1321 = vadd.f32 0.0, %v1320
      %v1322 = vpop.f32.mrb[0].mxu0
      %1323 = vmatprep.mubr.bf16.mxu0 %v661
      %1324 = vmatmul.mubr.bf16.gmra.mrb[0].mxu0 %v753
      %v1325 = vpop.f32.mrb[0].mxu0
      %v1326 = vadd.f32 0.0, %v1325
      %v1327 = vpop.f32.mrb[0].mxu0
      %v1328 = vpop.f32.mrb[0].mxu0
      %v1329 = vadd.f32 0.0, %v1328
      %v1330 = vpop.f32.mrb[0].mxu0
      %1331 = vmatprep.mubr.bf16.mxu0 %v662
      %1332 = vmatmul.mubr.bf16.gmra.mrb[0].mxu0 %v761
      %v1333 = vpop.f32.mrb[0].mxu0
      %v1334 = vadd.f32 0.0, %v1333
      %v1335 = vpop.f32.mrb[0].mxu0
      %v1336 = vpop.f32.mrb[0].mxu0
      %v1337 = vadd.f32 0.0, %v1336
      %v1338 = vpop.f32.mrb[0].mxu0
      %1339 = vmatprep.mubr.bf16.mxu0 %v663
      %1340 = vmatmul.mubr.bf16.gmra.mrb[0].mxu0 %v769
      %v1341 = vpop.f32.mrb[0].mxu0
      %v1342 = vadd.f32 0.0, %v1341
      %v1343 = vpop.f32.mrb[0].mxu0
      %v1344 = vpop.f32.mrb[0].mxu0
      %v1345 = vadd.f32 0.0, %v1344
      %v1346 = vpop.f32.mrb[0].mxu0
      %1347 = vmatprep.mubr.bf16.mxu0 %v664
      %1348 = vmatmul.mubr.bf16.gmra.mrb[0].mxu0 %v777
      %v1349 = vpop.f32.mrb[0].mxu0
      %v1350 = vadd.f32 0.0, %v1349
      %v1351 = vpop.f32.mrb[0].mxu0
      %v1352 = vpop.f32.mrb[0].mxu0
      %v1353 = vadd.f32 0.0, %v1352
      %v1354 = vpop.f32.mrb[0].mxu0
      %1355 = vmatprep.mubr.bf16.mxu0 %v665
      %1356 = vmatmul.mubr.bf16.gmra.mrb[0].mxu0 %v785
      %v1357 = vpop.f32.mrb[0].mxu0
      %v1358 = vadd.f32 0.0, %v1357
      %v1359 = vpop.f32.mrb[0].mxu0
      %v1360 = vpop.f32.mrb[0].mxu0
      %v1361 = vadd.f32 0.0, %v1360
      %v1362 = vpop.f32.mrb[0].mxu0
      %1363 = vmatprep.mubr.bf16.mxu0 %v666
      %1364 = vmatmul.mubr.bf16.gmra.mrb[0].mxu0 %v793
      %v1365 = vpop.f32.mrb[0].mxu0
      %v1366 = vadd.f32 0.0, %v1365
      %v1367 = vpop.f32.mrb[0].mxu0
      %v1368 = vpop.f32.mrb[0].mxu0
      %v1369 = vadd.f32 0.0, %v1368
      %v1370 = vpop.f32.mrb[0].mxu0
      %1371 = vmatprep.mubr.bf16.mxu0 %v667
      %1372 = vmatmul.mubr.bf16.gmra.mrb[0].mxu0 %v801
      %v1373 = vpop.f32.mrb[0].mxu0
      %v1374 = vadd.f32 0.0, %v1373
      %v1375 = vpop.f32.mrb[0].mxu0
      %v1376 = vpop.f32.mrb[0].mxu0
      %v1377 = vadd.f32 0.0, %v1376
      %v1378 = vpop.f32.mrb[0].mxu0
      %1379 = vmatprep.mubr.bf16.mxu0 %v668
      %1380 = vmatmul.mubr.bf16.gmra.mrb[0].mxu0 %v809
      %v1381 = vpop.f32.mrb[0].mxu0
      %v1382 = vadd.f32 0.0, %v1381
      %v1383 = vpop.f32.mrb[0].mxu0
      %v1384 = vpop.f32.mrb[0].mxu0
      %v1385 = vadd.f32 0.0, %v1384
      %v1386 = vpop.f32.mrb[0].mxu0
      %1387 = vmatprep.mubr.bf16.mxu0 %v669
      %1388 = vmatmul.mubr.bf16.gmra.mrb[0].mxu0 %v817
      %v1389 = vpop.f32.mrb[0].mxu0
      %v1390 = vadd.f32 0.0, %v1389
      %v1391 = vpop.f32.mrb[0].mxu0
      %v1392 = vpop.f32.mrb[0].mxu0
      %v1393 = vadd.f32 0.0, %v1392
      %v1394 = vpop.f32.mrb[0].mxu0
      %1395 = vmatprep.mubr.bf16.mxu0 %v670
      %1396 = vmatmul.mubr.bf16.gmra.mrb[0].mxu0 %v825
      %v1397 = vpop.f32.mrb[0].mxu0
      %v1398 = vadd.f32 0.0, %v1397
      %v1399 = vpop.f32.mrb[0].mxu0
      %v1400 = vpop.f32.mrb[0].mxu0
      %v1401 = vadd.f32 0.0, %v1400
      %v1402 = vpop.f32.mrb[0].mxu0
      %1403 = vmatprep.mubr.bf16.mxu0 %v671
      %1404 = vmatmul.mubr.bf16.gmra.mrb[0].mxu0 %v833
      %v1405 = vpop.f32.mrb[0].mxu0
      %v1406 = vadd.f32 0.0, %v1405
      %v1407 = vpop.f32.mrb[0].mxu0
      %v1408 = vpop.f32.mrb[0].mxu0
      %v1409 = vadd.f32 0.0, %v1408
      %v1410 = vpop.f32.mrb[0].mxu0
      %1411 = vdwg.mxu0
      %1412 = vmatprep.subr.bf16.mxu0 0
      %1413 = vmatpush1.bf16.msra.mxu0 %v1203
      %1414 = vmatprep.subr.bf16.mxu0 0
      %1415 = vmatpush1.bf16.msra.mxu0 %v1204
      %1416 = vmatprep.subr.bf16.mxu0 0
      %1417 = vmatpush1.bf16.msra.mxu0 %v1205
      %1418 = vmatprep.subr.bf16.mxu0 0
      %1419 = vmatpush1.bf16.msra.mxu0 %v1206
      %1420 = vmatprep.subr.bf16.mxu0 0
      %1421 = vmatpush1.bf16.msra.mxu0 %v1207
      %1422 = vmatprep.subr.bf16.mxu0 0
      %1423 = vmatpush1.bf16.msra.mxu0 %v1208
      %1424 = vmatprep.subr.bf16.mxu0 0
      %1425 = vmatpush1.bf16.msra.mxu0 %v1209
      %1426 = vmatprep.subr.bf16.mxu0 0
      %1427 = vmatpush1.bf16.msra.mxu0 %v1210
      %1428 = vmatprep.subr.bf16.mxu0 0
      %1429 = vmatpush1.bf16.msra.mxu0 0
      %1430 = vmatprep.subr.bf16.mxu0 0
      %1431 = vmatpush1.bf16.msra.mxu0 0
      %1432 = vmatprep.subr.bf16.mxu0 0
      %1433 = vmatpush1.bf16.msra.mxu0 0
      %1434 = vmatprep.subr.bf16.mxu0 0
      %1435 = vmatpush1.bf16.msra.mxu0 0
      %1436 = vmatprep.subr.bf16.mxu0 0
      %1437 = vmatpush1.bf16.msra.mxu0 0
      %1438 = vmatprep.subr.bf16.mxu0 0
      %1439 = vmatpush1.bf16.msra.mxu0 0
      %1440 = vmatprep.subr.bf16.mxu0 0
      %1441 = vmatpush1.bf16.msra.mxu0 0
      %1442 = vmatprep.subr.bf16.mxu0 0
      %1443 = vmatpush1.bf16.msra.mxu0 0
      %1444 = vmatprep.mubr.bf16.mxu0 0
      %1445 = vmatmul.mubr.bf16.gmra.mrb[0].mxu0 %v885
      %v1446 = vpop.f32.mrb[0].mxu0
      %v1447 = vadd.f32 %v1270, %v1446
      %v1448 = vpop.f32.mrb[0].mxu0
      %v1449 = vpop.f32.mrb[0].mxu0
      %v1450 = vadd.f32 %v1273, %v1449
      %v1451 = vpop.f32.mrb[0].mxu0
      %1452 = vmatprep.mubr.bf16.mxu0 0
      %1453 = vmatmul.mubr.bf16.gmra.mrb[0].mxu0 %v888
      %v1454 = vpop.f32.mrb[0].mxu0
      %v1455 = vadd.f32 %v1278, %v1454
      %v1456 = vpop.f32.mrb[0].mxu0
      %v1457 = vpop.f32.mrb[0].mxu0
      %v1458 = vadd.f32 %v1281, %v1457
      %v1459 = vpop.f32.mrb[0].mxu0
      %1460 = vmatprep.mubr.bf16.mxu0 0
      %1461 = vmatmul.mubr.bf16.gmra.mrb[0].mxu0 %v891
      %v1462 = vpop.f32.mrb[0].mxu0
      %v1463 = vadd.f32 %v1286, %v1462
      %v1464 = vpop.f32.mrb[0].mxu0
      %v1465 = vpop.f32.mrb[0].mxu0
      %v1466 = vadd.f32 %v1289, %v1465
      %v1467 = vpop.f32.mrb[0].mxu0
      %1468 = vmatprep.mubr.bf16.mxu0 0
      %1469 = vmatmul.mubr.bf16.gmra.mrb[0].mxu0 %v894
      %v1470 = vpop.f32.mrb[0].mxu0
      %v1471 = vadd.f32 %v1294, %v1470
      %v1472 = vpop.f32.mrb[0].mxu0
      %v1473 = vpop.f32.mrb[0].mxu0
      %v1474 = vadd.f32 %v1297, %v1473
      %v1475 = vpop.f32.mrb[0].mxu0
      %1476 = vmatprep.mubr.bf16.mxu0 0
      %1477 = vmatmul.mubr.bf16.gmra.mrb[0].mxu0 %v897
      %v1478 = vpop.f32.mrb[0].mxu0
      %v1479 = vadd.f32 %v1302, %v1478
      %v1480 = vpop.f32.mrb[0].mxu0
      %v1481 = vpop.f32.mrb[0].mxu0
      %v1482 = vadd.f32 %v1305, %v1481
      %v1483 = vpop.f32.mrb[0].mxu0
      %1484 = vmatprep.mubr.bf16.mxu0 0
      %1485 = vmatmul.mubr.bf16.gmra.mrb[0].mxu0 %v900
      %v1486 = vpop.f32.mrb[0].mxu0
      %v1487 = vadd.f32 %v1310, %v1486
      %v1488 = vpop.f32.mrb[0].mxu0
      %v1489 = vpop.f32.mrb[0].mxu0
      %v1490 = vadd.f32 %v1313, %v1489
      %v1491 = vpop.f32.mrb[0].mxu0
      %1492 = vmatprep.mubr.bf16.mxu0 0
      %1493 = vmatmul.mubr.bf16.gmra.mrb[0].mxu0 %v903
      %v1494 = vpop.f32.mrb[0].mxu0
      %v1495 = vadd.f32 %v1318, %v1494
      %v1496 = vpop.f32.mrb[0].mxu0
      %v1497 = vpop.f32.mrb[0].mxu0
      %v1498 = vadd.f32 %v1321, %v1497
      %v1499 = vpop.f32.mrb[0].mxu0
      %1500 = vmatprep.mubr.bf16.mxu0 0
      %1501 = vmatmul.mubr.bf16.gmra.mrb[0].mxu0 %v906
      %v1502 = vpop.f32.mrb[0].mxu0
      %v1503 = vadd.f32 %v1326, %v1502
      %v1504 = vpop.f32.mrb[0].mxu0
      %v1505 = vpop.f32.mrb[0].mxu0
      %v1506 = vadd.f32 %v1329, %v1505
      %v1507 = vpop.f32.mrb[0].mxu0
      %1508 = vmatprep.mubr.bf16.mxu0 0
      %1509 = vmatmul.mubr.bf16.gmra.mrb[0].mxu0 %v909
      %v1510 = vpop.f32.mrb[0].mxu0
      %v1511 = vadd.f32 %v1334, %v1510
      %v1512 = vpop.f32.mrb[0].mxu0
      %v1513 = vpop.f32.mrb[0].mxu0
      %v1514 = vadd.f32 %v1337, %v1513
      %v1515 = vpop.f32.mrb[0].mxu0
      %1516 = vmatprep.mubr.bf16.mxu0 0
      %1517 = vmatmul.mubr.bf16.gmra.mrb[0].mxu0 %v912
      %v1518 = vpop.f32.mrb[0].mxu0
      %v1519 = vadd.f32 %v1342, %v1518
      %v1520 = vpop.f32.mrb[0].mxu0
      %v1521 = vpop.f32.mrb[0].mxu0
      %v1522 = vadd.f32 %v1345, %v1521
      %v1523 = vpop.f32.mrb[0].mxu0
      %1524 = vmatprep.mubr.bf16.mxu0 0
      %1525 = vmatmul.mubr.bf16.gmra.mrb[0].mxu0 %v915
      %v1526 = vpop.f32.mrb[0].mxu0
      %v1527 = vadd.f32 %v1350, %v1526
      %v1528 = vpop.f32.mrb[0].mxu0
      %v1529 = vpop.f32.mrb[0].mxu0
      %v1530 = vadd.f32 %v1353, %v1529
      %v1531 = vpop.f32.mrb[0].mxu0
      %1532 = vmatprep.mubr.bf16.mxu0 0
      %1533 = vmatmul.mubr.bf16.gmra.mrb[0].mxu0 %v918
      %v1534 = vpop.f32.mrb[0].mxu0
      %v1535 = vadd.f32 %v1358, %v1534
      %v1536 = vpop.f32.mrb[0].mxu0
      %v1537 = vpop.f32.mrb[0].mxu0
      %v1538 = vadd.f32 %v1361, %v1537
      %v1539 = vpop.f32.mrb[0].mxu0
      %1540 = vmatprep.mubr.bf16.mxu0 0
      %1541 = vmatmul.mubr.bf16.gmra.mrb[0].mxu0 %v921
      %v1542 = vpop.f32.mrb[0].mxu0
      %v1543 = vadd.f32 %v1366, %v1542
      %v1544 = vpop.f32.mrb[0].mxu0
      %v1545 = vpop.f32.mrb[0].mxu0
      %v1546 = vadd.f32 %v1369, %v1545
      %v1547 = vpop.f32.mrb[0].mxu0
      %1548 = vmatprep.mubr.bf16.mxu0 0
      %1549 = vmatmul.mubr.bf16.gmra.mrb[0].mxu0 %v924
      %v1550 = vpop.f32.mrb[0].mxu0
      %v1551 = vadd.f32 %v1374, %v1550
      %v1552 = vpop.f32.mrb[0].mxu0
      %v1553 = vpop.f32.mrb[0].mxu0
      %v1554 = vadd.f32 %v1377, %v1553
      %v1555 = vpop.f32.mrb[0].mxu0
      %1556 = vmatprep.mubr.bf16.mxu0 0
      %1557 = vmatmul.mubr.bf16.gmra.mrb[0].mxu0 %v927
      %v1558 = vpop.f32.mrb[0].mxu0
      %v1559 = vadd.f32 %v1382, %v1558
      %v1560 = vpop.f32.mrb[0].mxu0
      %v1561 = vpop.f32.mrb[0].mxu0
      %v1562 = vadd.f32 %v1385, %v1561
      %v1563 = vpop.f32.mrb[0].mxu0
      %1564 = vmatprep.mubr.bf16.mxu0 0
      %1565 = vmatmul.mubr.bf16.gmra.mrb[0].mxu0 %v930
      %v1566 = vpop.f32.mrb[0].mxu0
      %v1567 = vadd.f32 %v1390, %v1566
      %v1568 = vpop.f32.mrb[0].mxu0
      %v1569 = vpop.f32.mrb[0].mxu0
      %v1570 = vadd.f32 %v1393, %v1569
      %v1571 = vpop.f32.mrb[0].mxu0
      %1572 = vmatprep.mubr.bf16.mxu0 0
      %1573 = vmatmul.mubr.bf16.gmra.mrb[0].mxu0 %v933
      %v1574 = vpop.f32.mrb[0].mxu0
      %v1575 = vadd.f32 %v1398, %v1574
      %v1576 = vpop.f32.mrb[0].mxu0
      %v1577 = vpop.f32.mrb[0].mxu0
      %v1578 = vadd.f32 %v1401, %v1577
      %v1579 = vpop.f32.mrb[0].mxu0
      %1580 = vmatprep.mubr.bf16.mxu0 0
      %1581 = vmatmul.mubr.bf16.gmra.mrb[0].mxu0 %v936
      %v1582 = vpop.f32.mrb[0].mxu0
      %v1583 = vadd.f32 %v1406, %v1582
      %v1584 = vpop.f32.mrb[0].mxu0
      %v1585 = vpop.f32.mrb[0].mxu0
      %v1586 = vadd.f32 %v1409, %v1585
      %v1587 = vpop.f32.mrb[0].mxu0
      %1588 = vdwg.mxu0
      %v1637 = vunpack.c.l.b16 %v994
      %v1638 = vunpack.c.l.b16 %v995
      %v1639 = vunpack.c.l.b16 %v996
      %v1640 = vunpack.c.l.b16 %v997
      %v1641 = vunpack.c.l.b16 %v998
      %v1642 = vunpack.c.l.b16 %v999
      %v1643 = vunpack.c.l.b16 %v1000
      %v1644 = vunpack.c.l.b16 %v1001
      %v1645 = vunpack.c.l.b16 %v1002
      %v1646 = vunpack.c.l.b16 %v1003
      %v1647 = vunpack.c.l.b16 %v1004
      %v1648 = vunpack.c.l.b16 %v1005
      %v1649 = vunpack.c.l.b16 %v1006
      %v1650 = vunpack.c.l.b16 %v1007
      %v1651 = vunpack.c.l.b16 %v1008
      %v1652 = vunpack.c.l.b16 %v1009
      %v1653 = vunpack.c.l.b16 %v1010
      %v1654 = vunpack.c.l.b16 %v1011
      %v1655 = vunpack.c.l.b16 %v1012
      %v1656 = vunpack.c.l.b16 %v1013
      %v1657 = vunpack.c.l.b16 %v1014
      %v1658 = vunpack.c.l.b16 %v1015
      %v1659 = vunpack.c.l.b16 %v1016
      %v1660 = vunpack.c.l.b16 %v1017
      %v1661 = vunpack.c.l.b16 %v1018
      %v1662 = vunpack.c.l.b16 %v1019
      %v1663 = vunpack.c.l.b16 %v1020
      %v1664 = vunpack.c.l.b16 %v1021
      %v1665 = vunpack.c.l.b16 %v1022
      %v1666 = vunpack.c.l.b16 %v1023
      %v1667 = vunpack.c.l.b16 %v1024
      %v1668 = vunpack.c.l.b16 %v1025
      %v1669 = vunpack.c.l.b16 %v1026
      %v1670 = vunpack.c.l.b16 %v1027
      %v1671 = vunpack.c.l.b16 %v1028
      %v1672 = vunpack.c.l.b16 %v1029
      %v1673 = vunpack.c.l.b16 %v1030
      %v1674 = vunpack.c.l.b16 %v1031
      %v1675 = vunpack.c.l.b16 %v1032
      %v1676 = vunpack.c.l.b16 %v1033
      %v1677 = vunpack.c.l.b16 %v1034
      %v1678 = vunpack.c.l.b16 %v1035
      %v1679 = vunpack.c.l.b16 %v1036
      %v1680 = vunpack.c.l.b16 %v1037
      %v1681 = vunpack.c.l.b16 %v1038
      %v1682 = vunpack.c.l.b16 %v1039
      %v1683 = vunpack.c.l.b16 %v1040
      %v1684 = vunpack.c.l.b16 %v1041
      %v1685 = vpack.c.b16 %v1638, %v1637
      %v1686 = vpack.c.b16 %v1640, %v1639
      %v1687 = vpack.c.b16 %v1642, %v1641
      %v1688 = vpack.c.b16 %v1644, %v1643
      %v1689 = vpack.c.b16 %v1646, %v1645
      %v1690 = vpack.c.b16 %v1648, %v1647
      %v1691 = vpack.c.b16 %v1650, %v1649
      %v1692 = vpack.c.b16 %v1652, %v1651
      %v1693 = vpack.c.b16 %v1654, %v1653
      %v1694 = vpack.c.b16 %v1656, %v1655
      %v1695 = vpack.c.b16 %v1658, %v1657
      %v1696 = vpack.c.b16 %v1660, %v1659
      %v1697 = vpack.c.b16 %v1662, %v1661
      %v1698 = vpack.c.b16 %v1664, %v1663
      %v1699 = vpack.c.b16 %v1666, %v1665
      %v1700 = vpack.c.b16 %v1668, %v1667
      %v1701 = vpack.c.b16 %v1670, %v1669
      %v1702 = vpack.c.b16 %v1672, %v1671
      %v1703 = vpack.c.b16 %v1674, %v1673
      %v1704 = vpack.c.b16 %v1676, %v1675
      %v1705 = vpack.c.b16 %v1678, %v1677
      %v1706 = vpack.c.b16 %v1680, %v1679
      %v1707 = vpack.c.b16 %v1682, %v1681
      %v1708 = vpack.c.b16 %v1684, %v1683
      %1733 = vmatprep.subr.bf16.mxu0 0
      %1734 = vmatpush1.bf16.msra.mxu0 %v1685
      %1735 = vmatprep.subr.bf16.mxu0 0
      %1736 = vmatpush1.bf16.msra.mxu0 %v1686
      %1737 = vmatprep.subr.bf16.mxu0 0
      %1738 = vmatpush1.bf16.msra.mxu0 %v1687
      %1739 = vmatprep.subr.bf16.mxu0 0
      %1740 = vmatpush1.bf16.msra.mxu0 %v1688
      %1741 = vmatprep.subr.bf16.mxu0 0
      %1742 = vmatpush1.bf16.msra.mxu0 %v1689
      %1743 = vmatprep.subr.bf16.mxu0 0
      %1744 = vmatpush1.bf16.msra.mxu0 %v1690
      %1745 = vmatprep.subr.bf16.mxu0 0
      %1746 = vmatpush1.bf16.msra.mxu0 %v1691
      %1747 = vmatprep.subr.bf16.mxu0 0
      %1748 = vmatpush1.bf16.msra.mxu0 %v1692
      %1749 = vmatprep.subr.bf16.mxu0 0
      %1750 = vmatpush1.bf16.msra.mxu0 %v1693
      %1751 = vmatprep.subr.bf16.mxu0 0
      %1752 = vmatpush1.bf16.msra.mxu0 %v1694
      %1753 = vmatprep.subr.bf16.mxu0 0
      %1754 = vmatpush1.bf16.msra.mxu0 %v1695
      %1755 = vmatprep.subr.bf16.mxu0 0
      %1756 = vmatpush1.bf16.msra.mxu0 %v1696
      %1757 = vmatprep.subr.bf16.mxu0 0
      %1758 = vmatpush1.bf16.msra.mxu0 %v1697
      %1759 = vmatprep.subr.bf16.mxu0 0
      %1760 = vmatpush1.bf16.msra.mxu0 %v1698
      %1761 = vmatprep.subr.bf16.mxu0 0
      %1762 = vmatpush1.bf16.msra.mxu0 %v1699
      %1763 = vmatprep.subr.bf16.mxu0 0
      %1764 = vmatpush1.bf16.msra.mxu0 %v1700
      %1765 = vmatprep.mubr.bf16.mxu0 %v652
      %1766 = vmatmul.mubr.bf16.gmra.mrb[0].mxu0 %v874
      %v1767 = vpop.f32.mrb[0].mxu0
      %v1768 = vadd.f32 %v1447, %v1767
      %v1769 = vpop.f32.mrb[0].mxu0
      %v1770 = vpop.f32.mrb[0].mxu0
      %v1771 = vadd.f32 %v1450, %v1770
      %v1772 = vpop.f32.mrb[0].mxu0
      %1773 = vmatprep.mubr.bf16.mxu0 %v653
      %1774 = vmatmul.mubr.bf16.gmra.mrb[0].mxu0 %v689
      %v1775 = vpop.f32.mrb[0].mxu0
      %v1776 = vadd.f32 %v1455, %v1775
      %v1777 = vpop.f32.mrb[0].mxu0
      %v1778 = vpop.f32.mrb[0].mxu0
      %v1779 = vadd.f32 %v1458, %v1778
      %v1780 = vpop.f32.mrb[0].mxu0
      %1781 = vmatprep.mubr.bf16.mxu0 %v654
      %1782 = vmatmul.mubr.bf16.gmra.mrb[0].mxu0 %v697
      %v1783 = vpop.f32.mrb[0].mxu0
      %v1784 = vadd.f32 %v1463, %v1783
      %v1785 = vpop.f32.mrb[0].mxu0
      %v1786 = vpop.f32.mrb[0].mxu0
      %v1787 = vadd.f32 %v1466, %v1786
      %v1788 = vpop.f32.mrb[0].mxu0
      %1789 = vmatprep.mubr.bf16.mxu0 %v655
      %1790 = vmatmul.mubr.bf16.gmra.mrb[0].mxu0 %v705
      %v1791 = vpop.f32.mrb[0].mxu0
      %v1792 = vadd.f32 %v1471, %v1791
      %v1793 = vpop.f32.mrb[0].mxu0
      %v1794 = vpop.f32.mrb[0].mxu0
      %v1795 = vadd.f32 %v1474, %v1794
      %v1796 = vpop.f32.mrb[0].mxu0
      %1797 = vmatprep.mubr.bf16.mxu0 %v656
      %1798 = vmatmul.mubr.bf16.gmra.mrb[0].mxu0 %v713
      %v1799 = vpop.f32.mrb[0].mxu0
      %v1800 = vadd.f32 %v1479, %v1799
      %v1801 = vpop.f32.mrb[0].mxu0
      %v1802 = vpop.f32.mrb[0].mxu0
      %v1803 = vadd.f32 %v1482, %v1802
      %v1804 = vpop.f32.mrb[0].mxu0
      %1805 = vmatprep.mubr.bf16.mxu0 %v657
      %1806 = vmatmul.mubr.bf16.gmra.mrb[0].mxu0 %v721
      %v1807 = vpop.f32.mrb[0].mxu0
      %v1808 = vadd.f32 %v1487, %v1807
      %v1809 = vpop.f32.mrb[0].mxu0
      %v1810 = vpop.f32.mrb[0].mxu0
      %v1811 = vadd.f32 %v1490, %v1810
      %v1812 = vpop.f32.mrb[0].mxu0
      %1813 = vmatprep.mubr.bf16.mxu0 %v658
      %1814 = vmatmul.mubr.bf16.gmra.mrb[0].mxu0 %v729
      %v1815 = vpop.f32.mrb[0].mxu0
      %v1816 = vadd.f32 %v1495, %v1815
      %v1817 = vpop.f32.mrb[0].mxu0
      %v1818 = vpop.f32.mrb[0].mxu0
      %v1819 = vadd.f32 %v1498, %v1818
      %v1820 = vpop.f32.mrb[0].mxu0
      %1821 = vmatprep.mubr.bf16.mxu0 %v659
      %1822 = vmatmul.mubr.bf16.gmra.mrb[0].mxu0 %v737
      %v1823 = vpop.f32.mrb[0].mxu0
      %v1824 = vadd.f32 %v1503, %v1823
      %v1825 = vpop.f32.mrb[0].mxu0
      %v1826 = vpop.f32.mrb[0].mxu0
      %v1827 = vadd.f32 %v1506, %v1826
      %v1828 = vpop.f32.mrb[0].mxu0
      %1829 = vmatprep.mubr.bf16.mxu0 %v660
      %1830 = vmatmul.mubr.bf16.gmra.mrb[0].mxu0 %v745
      %v1831 = vpop.f32.mrb[0].mxu0
      %v1832 = vadd.f32 %v1511, %v1831
      %v1833 = vpop.f32.mrb[0].mxu0
      %v1834 = vpop.f32.mrb[0].mxu0
      %v1835 = vadd.f32 %v1514, %v1834
      %v1836 = vpop.f32.mrb[0].mxu0
      %1837 = vmatprep.mubr.bf16.mxu0 %v661
      %1838 = vmatmul.mubr.bf16.gmra.mrb[0].mxu0 %v753
      %v1839 = vpop.f32.mrb[0].mxu0
      %v1840 = vadd.f32 %v1519, %v1839
      %v1841 = vpop.f32.mrb[0].mxu0
      %v1842 = vpop.f32.mrb[0].mxu0
      %v1843 = vadd.f32 %v1522, %v1842
      %v1844 = vpop.f32.mrb[0].mxu0
      %1845 = vmatprep.mubr.bf16.mxu0 %v662
      %1846 = vmatmul.mubr.bf16.gmra.mrb[0].mxu0 %v761
      %v1847 = vpop.f32.mrb[0].mxu0
      %v1848 = vadd.f32 %v1527, %v1847
      %v1849 = vpop.f32.mrb[0].mxu0
      %v1850 = vpop.f32.mrb[0].mxu0
      %v1851 = vadd.f32 %v1530, %v1850
      %v1852 = vpop.f32.mrb[0].mxu0
      %1853 = vmatprep.mubr.bf16.mxu0 %v663
      %1854 = vmatmul.mubr.bf16.gmra.mrb[0].mxu0 %v769
      %v1855 = vpop.f32.mrb[0].mxu0
      %v1856 = vadd.f32 %v1535, %v1855
      %v1857 = vpop.f32.mrb[0].mxu0
      %v1858 = vpop.f32.mrb[0].mxu0
      %v1859 = vadd.f32 %v1538, %v1858
      %v1860 = vpop.f32.mrb[0].mxu0
      %1861 = vmatprep.mubr.bf16.mxu0 %v664
      %1862 = vmatmul.mubr.bf16.gmra.mrb[0].mxu0 %v777
      %v1863 = vpop.f32.mrb[0].mxu0
      %v1864 = vadd.f32 %v1543, %v1863
      %v1865 = vpop.f32.mrb[0].mxu0
      %v1866 = vpop.f32.mrb[0].mxu0
      %v1867 = vadd.f32 %v1546, %v1866
      %v1868 = vpop.f32.mrb[0].mxu0
      %1869 = vmatprep.mubr.bf16.mxu0 %v665
      %1870 = vmatmul.mubr.bf16.gmra.mrb[0].mxu0 %v785
      %v1871 = vpop.f32.mrb[0].mxu0
      %v1872 = vadd.f32 %v1551, %v1871
      %v1873 = vpop.f32.mrb[0].mxu0
      %v1874 = vpop.f32.mrb[0].mxu0
      %v1875 = vadd.f32 %v1554, %v1874
      %v1876 = vpop.f32.mrb[0].mxu0
      %1877 = vmatprep.mubr.bf16.mxu0 %v666
      %1878 = vmatmul.mubr.bf16.gmra.mrb[0].mxu0 %v793
      %v1879 = vpop.f32.mrb[0].mxu0
      %v1880 = vadd.f32 %v1559, %v1879
      %v1881 = vpop.f32.mrb[0].mxu0
      %v1882 = vpop.f32.mrb[0].mxu0
      %v1883 = vadd.f32 %v1562, %v1882
      %v1884 = vpop.f32.mrb[0].mxu0
      %1885 = vmatprep.mubr.bf16.mxu0 %v667
      %1886 = vmatmul.mubr.bf16.gmra.mrb[0].mxu0 %v801
      %v1887 = vpop.f32.mrb[0].mxu0
      %v1888 = vadd.f32 %v1567, %v1887
      %v1889 = vpop.f32.mrb[0].mxu0
      %v1890 = vpop.f32.mrb[0].mxu0
      %v1891 = vadd.f32 %v1570, %v1890
      %v1892 = vpop.f32.mrb[0].mxu0
      %1893 = vmatprep.mubr.bf16.mxu0 %v668
      %1894 = vmatmul.mubr.bf16.gmra.mrb[0].mxu0 %v809
      %v1895 = vpop.f32.mrb[0].mxu0
      %v1896 = vadd.f32 %v1575, %v1895
      %v1897 = vpop.f32.mrb[0].mxu0
      %v1898 = vpop.f32.mrb[0].mxu0
      %v1899 = vadd.f32 %v1578, %v1898
      %v1900 = vpop.f32.mrb[0].mxu0
      %1901 = vmatprep.mubr.bf16.mxu0 %v669
      %1902 = vmatmul.mubr.bf16.gmra.mrb[0].mxu0 %v817
      %v1903 = vpop.f32.mrb[0].mxu0
      %v1904 = vadd.f32 %v1583, %v1903
      %v1905 = vpop.f32.mrb[0].mxu0
      %v1906 = vpop.f32.mrb[0].mxu0
      %v1907 = vadd.f32 %v1586, %v1906
      %v1908 = vpop.f32.mrb[0].mxu0
      %1909 = vdwg.mxu0
      %1910 = vmatprep.subr.bf16.mxu0 0
      %1911 = vmatpush1.bf16.msra.mxu0 %v1701
      %1912 = vmatprep.subr.bf16.mxu0 0
      %1913 = vmatpush1.bf16.msra.mxu0 %v1702
      %1914 = vmatprep.subr.bf16.mxu0 0
      %1915 = vmatpush1.bf16.msra.mxu0 %v1703
      %1916 = vmatprep.subr.bf16.mxu0 0
      %1917 = vmatpush1.bf16.msra.mxu0 %v1704
      %1918 = vmatprep.subr.bf16.mxu0 0
      %1919 = vmatpush1.bf16.msra.mxu0 %v1705
      %1920 = vmatprep.subr.bf16.mxu0 0
      %1921 = vmatpush1.bf16.msra.mxu0 %v1706
      %1922 = vmatprep.subr.bf16.mxu0 0
      %1923 = vmatpush1.bf16.msra.mxu0 %v1707
      %1924 = vmatprep.subr.bf16.mxu0 0
      %1925 = vmatpush1.bf16.msra.mxu0 %v1708
      %1926 = vmatprep.subr.bf16.mxu0 0
      %1927 = vmatpush1.bf16.msra.mxu0 0
      %1928 = vmatprep.subr.bf16.mxu0 0
      %1929 = vmatpush1.bf16.msra.mxu0 0
      %1930 = vmatprep.subr.bf16.mxu0 0
      %1931 = vmatpush1.bf16.msra.mxu0 0
      %1932 = vmatprep.subr.bf16.mxu0 0
      %1933 = vmatpush1.bf16.msra.mxu0 0
      %1934 = vmatprep.subr.bf16.mxu0 0
      %1935 = vmatpush1.bf16.msra.mxu0 0
      %1936 = vmatprep.subr.bf16.mxu0 0
      %1937 = vmatpush1.bf16.msra.mxu0 0
      %1938 = vmatprep.subr.bf16.mxu0 0
      %1939 = vmatpush1.bf16.msra.mxu0 0
      %1940 = vmatprep.subr.bf16.mxu0 0
      %1941 = vmatpush1.bf16.msra.mxu0 0
      %1942 = vmatprep.mubr.bf16.mxu0 0
      %1943 = vmatmul.mubr.bf16.gmra.mrb[0].mxu0 %v879
      %v1944 = vpop.f32.mrb[0].mxu0
      %v1945 = vadd.f32 %v1768, %v1944
      %v1946 = vpop.f32.mrb[0].mxu0
      %v1947 = vpop.f32.mrb[0].mxu0
      %v1948 = vadd.f32 %v1771, %v1947
      %v1949 = vpop.f32.mrb[0].mxu0
      %1950 = vmatprep.mubr.bf16.mxu0 0
      %1951 = vmatmul.mubr.bf16.gmra.mrb[0].mxu0 %v882
      %v1952 = vpop.f32.mrb[0].mxu0
      %v1953 = vadd.f32 %v1776, %v1952
      %v1954 = vpop.f32.mrb[0].mxu0
      %v1955 = vpop.f32.mrb[0].mxu0
      %v1956 = vadd.f32 %v1779, %v1955
      %v1957 = vpop.f32.mrb[0].mxu0
      %1958 = vmatprep.mubr.bf16.mxu0 0
      %1959 = vmatmul.mubr.bf16.gmra.mrb[0].mxu0 %v885
      %v1960 = vpop.f32.mrb[0].mxu0
      %v1961 = vadd.f32 %v1784, %v1960
      %v1962 = vpop.f32.mrb[0].mxu0
      %v1963 = vpop.f32.mrb[0].mxu0
      %v1964 = vadd.f32 %v1787, %v1963
      %v1965 = vpop.f32.mrb[0].mxu0
      %1966 = vmatprep.mubr.bf16.mxu0 0
      %1967 = vmatmul.mubr.bf16.gmra.mrb[0].mxu0 %v888
      %v1968 = vpop.f32.mrb[0].mxu0
      %v1969 = vadd.f32 %v1792, %v1968
      %v1970 = vpop.f32.mrb[0].mxu0
      %v1971 = vpop.f32.mrb[0].mxu0
      %v1972 = vadd.f32 %v1795, %v1971
      %v1973 = vpop.f32.mrb[0].mxu0
      %1974 = vmatprep.mubr.bf16.mxu0 0
      %1975 = vmatmul.mubr.bf16.gmra.mrb[0].mxu0 %v891
      %v1976 = vpop.f32.mrb[0].mxu0
      %v1977 = vadd.f32 %v1800, %v1976
      %v1978 = vpop.f32.mrb[0].mxu0
      %v1979 = vpop.f32.mrb[0].mxu0
      %v1980 = vadd.f32 %v1803, %v1979
      %v1981 = vpop.f32.mrb[0].mxu0
      %1982 = vmatprep.mubr.bf16.mxu0 0
      %1983 = vmatmul.mubr.bf16.gmra.mrb[0].mxu0 %v894
      %v1984 = vpop.f32.mrb[0].mxu0
      %v1985 = vadd.f32 %v1808, %v1984
      %v1986 = vpop.f32.mrb[0].mxu0
      %v1987 = vpop.f32.mrb[0].mxu0
      %v1988 = vadd.f32 %v1811, %v1987
      %v1989 = vpop.f32.mrb[0].mxu0
      %1990 = vmatprep.mubr.bf16.mxu0 0
      %1991 = vmatmul.mubr.bf16.gmra.mrb[0].mxu0 %v897
      %v1992 = vpop.f32.mrb[0].mxu0
      %v1993 = vadd.f32 %v1816, %v1992
      %v1994 = vpop.f32.mrb[0].mxu0
      %v1995 = vpop.f32.mrb[0].mxu0
      %v1996 = vadd.f32 %v1819, %v1995
      %v1997 = vpop.f32.mrb[0].mxu0
      %1998 = vmatprep.mubr.bf16.mxu0 0
      %1999 = vmatmul.mubr.bf16.gmra.mrb[0].mxu0 %v900
      %v2000 = vpop.f32.mrb[0].mxu0
      %v2001 = vadd.f32 %v1824, %v2000
      %v2002 = vpop.f32.mrb[0].mxu0
      %v2003 = vpop.f32.mrb[0].mxu0
      %v2004 = vadd.f32 %v1827, %v2003
      %v2005 = vpop.f32.mrb[0].mxu0
      %2006 = vmatprep.mubr.bf16.mxu0 0
      %2007 = vmatmul.mubr.bf16.gmra.mrb[0].mxu0 %v903
      %v2008 = vpop.f32.mrb[0].mxu0
      %v2009 = vadd.f32 %v1832, %v2008
      %v2010 = vpop.f32.mrb[0].mxu0
      %v2011 = vpop.f32.mrb[0].mxu0
      %v2012 = vadd.f32 %v1835, %v2011
      %v2013 = vpop.f32.mrb[0].mxu0
      %2014 = vmatprep.mubr.bf16.mxu0 0
      %2015 = vmatmul.mubr.bf16.gmra.mrb[0].mxu0 %v906
      %v2016 = vpop.f32.mrb[0].mxu0
      %v2017 = vadd.f32 %v1840, %v2016
      %v2018 = vpop.f32.mrb[0].mxu0
      %v2019 = vpop.f32.mrb[0].mxu0
      %v2020 = vadd.f32 %v1843, %v2019
      %v2021 = vpop.f32.mrb[0].mxu0
      %2022 = vmatprep.mubr.bf16.mxu0 0
      %2023 = vmatmul.mubr.bf16.gmra.mrb[0].mxu0 %v909
      %v2024 = vpop.f32.mrb[0].mxu0
      %v2025 = vadd.f32 %v1848, %v2024
      %v2026 = vpop.f32.mrb[0].mxu0
      %v2027 = vpop.f32.mrb[0].mxu0
      %v2028 = vadd.f32 %v1851, %v2027
      %v2029 = vpop.f32.mrb[0].mxu0
      %2030 = vmatprep.mubr.bf16.mxu0 0
      %2031 = vmatmul.mubr.bf16.gmra.mrb[0].mxu0 %v912
      %v2032 = vpop.f32.mrb[0].mxu0
      %v2033 = vadd.f32 %v1856, %v2032
      %v2034 = vpop.f32.mrb[0].mxu0
      %v2035 = vpop.f32.mrb[0].mxu0
      %v2036 = vadd.f32 %v1859, %v2035
      %v2037 = vpop.f32.mrb[0].mxu0
      %2038 = vmatprep.mubr.bf16.mxu0 0
      %2039 = vmatmul.mubr.bf16.gmra.mrb[0].mxu0 %v915
      %v2040 = vpop.f32.mrb[0].mxu0
      %v2041 = vadd.f32 %v1864, %v2040
      %v2042 = vpop.f32.mrb[0].mxu0
      %v2043 = vpop.f32.mrb[0].mxu0
      %v2044 = vadd.f32 %v1867, %v2043
      %v2045 = vpop.f32.mrb[0].mxu0
      %2046 = vmatprep.mubr.bf16.mxu0 0
      %2047 = vmatmul.mubr.bf16.gmra.mrb[0].mxu0 %v918
      %v2048 = vpop.f32.mrb[0].mxu0
      %v2049 = vadd.f32 %v1872, %v2048
      %v2050 = vpop.f32.mrb[0].mxu0
      %v2051 = vpop.f32.mrb[0].mxu0
      %v2052 = vadd.f32 %v1875, %v2051
      %v2053 = vpop.f32.mrb[0].mxu0
      %2054 = vmatprep.mubr.bf16.mxu0 0
      %2055 = vmatmul.mubr.bf16.gmra.mrb[0].mxu0 %v921
      %v2056 = vpop.f32.mrb[0].mxu0
      %v2057 = vadd.f32 %v1880, %v2056
      %v2058 = vpop.f32.mrb[0].mxu0
      %v2059 = vpop.f32.mrb[0].mxu0
      %v2060 = vadd.f32 %v1883, %v2059
      %v2061 = vpop.f32.mrb[0].mxu0
      %2062 = vmatprep.mubr.bf16.mxu0 0
      %2063 = vmatmul.mubr.bf16.gmra.mrb[0].mxu0 %v924
      %v2064 = vpop.f32.mrb[0].mxu0
      %v2065 = vadd.f32 %v1888, %v2064
      %v2066 = vpop.f32.mrb[0].mxu0
      %v2067 = vpop.f32.mrb[0].mxu0
      %v2068 = vadd.f32 %v1891, %v2067
      %v2069 = vpop.f32.mrb[0].mxu0
      %2070 = vmatprep.mubr.bf16.mxu0 0
      %2071 = vmatmul.mubr.bf16.gmra.mrb[0].mxu0 %v927
      %v2072 = vpop.f32.mrb[0].mxu0
      %v2073 = vadd.f32 %v1896, %v2072
      %v2074 = vpop.f32.mrb[0].mxu0
      %v2075 = vpop.f32.mrb[0].mxu0
      %v2076 = vadd.f32 %v1899, %v2075
      %v2077 = vpop.f32.mrb[0].mxu0
      %2078 = vmatprep.mubr.bf16.mxu0 0
      %2079 = vmatmul.mubr.bf16.gmra.mrb[0].mxu0 %v930
      %v2080 = vpop.f32.mrb[0].mxu0
      %v2081 = vadd.f32 %v1904, %v2080
      %v2082 = vpop.f32.mrb[0].mxu0
      %v2083 = vpop.f32.mrb[0].mxu0
      %v2084 = vadd.f32 %v1907, %v2083
      %v2085 = vpop.f32.mrb[0].mxu0
      %2086 = vdwg.mxu0
      %s2087 = scalar_lea.vmem %s3, 384
      %v2088 = vld [vmem:[%s2087] sm:$0xf]
      %v2089 = vld [vmem:[%s2087 + $0x4] sm:$0xf]
      %v2090 = vld [vmem:[%s2087 + $0x8] sm:$0xf]
      %v2091 = vld [vmem:[%s2087 + $0xc] sm:$0xf]
      %v2092 = vld [vmem:[%s2087 + $0x10] sm:$0xf]
      %v2093 = vld [vmem:[%s2087 + $0x14] sm:$0xf]
      %v2094 = vld [vmem:[%s2087 + $0x18] sm:$0xf]
      %v2095 = vld [vmem:[%s2087 + $0x1c] sm:$0xf]
      %v2096 = vld [vmem:[%s2087 + $0x20] sm:$0xf]
      %v2097 = vld [vmem:[%s2087 + $0x24] sm:$0xf]
      %v2098 = vld [vmem:[%s2087 + $0x28] sm:$0xf]
      %v2099 = vld [vmem:[%s2087 + $0x2c] sm:$0xf]
      %v2100 = vld [vmem:[%s2087 + $0x30] sm:$0xf]
      %v2101 = vld [vmem:[%s2087 + $0x34] sm:$0xf]
      %v2102 = vld [vmem:[%s2087 + $0x38] sm:$0xf]
      %v2103 = vld [vmem:[%s2087 + $0x3c] sm:$0xf]
      %v2104 = vld [vmem:[%s2087 + $0x40] sm:$0xf]
      %v2105 = vld [vmem:[%s2087 + $0x44] sm:$0xf]
      %v2106 = vld [vmem:[%s2087 + $0x48] sm:$0xf]
      %v2107 = vld [vmem:[%s2087 + $0x4c] sm:$0xf]
      %v2108 = vld [vmem:[%s2087 + $0x50] sm:$0xf]
      %v2109 = vld [vmem:[%s2087 + $0x54] sm:$0xf]
      %v2110 = vld [vmem:[%s2087 + $0x58] sm:$0xf]
      %v2111 = vld [vmem:[%s2087 + $0x5c] sm:$0xf]
      %v2112 = vld [vmem:[%s2087 + $0x60] sm:$0xf]
      %v2113 = vld [vmem:[%s2087 + $0x64] sm:$0xf]
      %v2114 = vld [vmem:[%s2087 + $0x68] sm:$0xf]
      %v2115 = vld [vmem:[%s2087 + $0x6c] sm:$0xf]
      %v2116 = vld [vmem:[%s2087 + $0x70] sm:$0xf]
      %v2117 = vld [vmem:[%s2087 + $0x74] sm:$0xf]
      %v2118 = vld [vmem:[%s2087 + $0x78] sm:$0xf]
      %v2119 = vld [vmem:[%s2087 + $0x7c] sm:$0xf]
      %v2120 = vld [vmem:[%s2087 + $0x80] sm:$0xf]
      %v2121 = vld [vmem:[%s2087 + $0x84] sm:$0xf]
      %v2122 = vld [vmem:[%s2087 + $0x88] sm:$0xf]
      %v2123 = vld [vmem:[%s2087 + $0x8c] sm:$0xf]
      %v2124 = vld [vmem:[%s2087 + $0x90] sm:$0xf]
      %v2125 = vld [vmem:[%s2087 + $0x94] sm:$0xf]
      %v2126 = vld [vmem:[%s2087 + $0x98] sm:$0xf]
      %v2127 = vld [vmem:[%s2087 + $0x9c] sm:$0xf]
      %v2128 = vld [vmem:[%s2087 + $0xa0] sm:$0xf]
      %v2129 = vld [vmem:[%s2087 + $0xa4] sm:$0xf]
      %v2130 = vld [vmem:[%s2087 + $0xa8] sm:$0xf]
      %v2131 = vld [vmem:[%s2087 + $0xac] sm:$0xf]
      %v2132 = vld [vmem:[%s2087 + $0xb0] sm:$0xf]
      %v2133 = vld [vmem:[%s2087 + $0xb4] sm:$0xf]
      %v2134 = vld [vmem:[%s2087 + $0xb8] sm:$0xf]
      %v2135 = vld [vmem:[%s2087 + $0xbc] sm:$0xf]
      %v2184 = vunpack.c.l.b16 %v2088
      %v2185 = vunpack.c.l.b16 %v2089
      %v2186 = vunpack.c.l.b16 %v2090
      %v2187 = vunpack.c.l.b16 %v2091
      %v2188 = vunpack.c.l.b16 %v2092
      %v2189 = vunpack.c.l.b16 %v2093
      %v2190 = vunpack.c.l.b16 %v2094
      %v2191 = vunpack.c.l.b16 %v2095
      %v2192 = vunpack.c.l.b16 %v2096
      %v2193 = vunpack.c.l.b16 %v2097
      %v2194 = vunpack.c.l.b16 %v2098
      %v2195 = vunpack.c.l.b16 %v2099
      %v2196 = vunpack.c.l.b16 %v2100
      %v2197 = vunpack.c.l.b16 %v2101
      %v2198 = vunpack.c.l.b16 %v2102
      %v2199 = vunpack.c.l.b16 %v2103
      %v2200 = vunpack.c.l.b16 %v2104
      %v2201 = vunpack.c.l.b16 %v2105
      %v2202 = vunpack.c.l.b16 %v2106
      %v2203 = vunpack.c.l.b16 %v2107
      %v2204 = vunpack.c.l.b16 %v2108
      %v2205 = vunpack.c.l.b16 %v2109
      %v2206 = vunpack.c.l.b16 %v2110
      %v2207 = vunpack.c.l.b16 %v2111
      %v2208 = vunpack.c.l.b16 %v2112
      %v2209 = vunpack.c.l.b16 %v2113
      %v2210 = vunpack.c.l.b16 %v2114
      %v2211 = vunpack.c.l.b16 %v2115
      %v2212 = vunpack.c.l.b16 %v2116
      %v2213 = vunpack.c.l.b16 %v2117
      %v2214 = vunpack.c.l.b16 %v2118
      %v2215 = vunpack.c.l.b16 %v2119
      %v2216 = vunpack.c.l.b16 %v2120
      %v2217 = vunpack.c.l.b16 %v2121
      %v2218 = vunpack.c.l.b16 %v2122
      %v2219 = vunpack.c.l.b16 %v2123
      %v2220 = vunpack.c.l.b16 %v2124
      %v2221 = vunpack.c.l.b16 %v2125
      %v2222 = vunpack.c.l.b16 %v2126
      %v2223 = vunpack.c.l.b16 %v2127
      %v2224 = vunpack.c.l.b16 %v2128
      %v2225 = vunpack.c.l.b16 %v2129
      %v2226 = vunpack.c.l.b16 %v2130
      %v2227 = vunpack.c.l.b16 %v2131
      %v2228 = vunpack.c.l.b16 %v2132
      %v2229 = vunpack.c.l.b16 %v2133
      %v2230 = vunpack.c.l.b16 %v2134
      %v2231 = vunpack.c.l.b16 %v2135
      %v2232 = vpack.c.b16 %v2185, %v2184
      %v2233 = vpack.c.b16 %v2187, %v2186
      %v2234 = vpack.c.b16 %v2189, %v2188
      %v2235 = vpack.c.b16 %v2191, %v2190
      %v2236 = vpack.c.b16 %v2193, %v2192
      %v2237 = vpack.c.b16 %v2195, %v2194
      %v2238 = vpack.c.b16 %v2197, %v2196
      %v2239 = vpack.c.b16 %v2199, %v2198
      %v2240 = vpack.c.b16 %v2201, %v2200
      %v2241 = vpack.c.b16 %v2203, %v2202
      %v2242 = vpack.c.b16 %v2205, %v2204
      %v2243 = vpack.c.b16 %v2207, %v2206
      %v2244 = vpack.c.b16 %v2209, %v2208
      %v2245 = vpack.c.b16 %v2211, %v2210
      %v2246 = vpack.c.b16 %v2213, %v2212
      %v2247 = vpack.c.b16 %v2215, %v2214
      %v2248 = vpack.c.b16 %v2217, %v2216
      %v2249 = vpack.c.b16 %v2219, %v2218
      %v2250 = vpack.c.b16 %v2221, %v2220
      %v2251 = vpack.c.b16 %v2223, %v2222
      %v2252 = vpack.c.b16 %v2225, %v2224
      %v2253 = vpack.c.b16 %v2227, %v2226
      %v2254 = vpack.c.b16 %v2229, %v2228
      %v2255 = vpack.c.b16 %v2231, %v2230
      %2280 = vmatprep.subr.bf16.mxu0 0
      %2281 = vmatpush1.bf16.msra.mxu0 %v2232
      %2282 = vmatprep.subr.bf16.mxu0 0
      %2283 = vmatpush1.bf16.msra.mxu0 %v2233
      %2284 = vmatprep.subr.bf16.mxu0 0
      %2285 = vmatpush1.bf16.msra.mxu0 %v2234
      %2286 = vmatprep.subr.bf16.mxu0 0
      %2287 = vmatpush1.bf16.msra.mxu0 %v2235
      %2288 = vmatprep.subr.bf16.mxu0 0
      %2289 = vmatpush1.bf16.msra.mxu0 %v2236
      %2290 = vmatprep.subr.bf16.mxu0 0
      %2291 = vmatpush1.bf16.msra.mxu0 %v2237
      %2292 = vmatprep.subr.bf16.mxu0 0
      %2293 = vmatpush1.bf16.msra.mxu0 %v2238
      %2294 = vmatprep.subr.bf16.mxu0 0
      %2295 = vmatpush1.bf16.msra.mxu0 %v2239
      %2296 = vmatprep.subr.bf16.mxu0 0
      %2297 = vmatpush1.bf16.msra.mxu0 %v2240
      %2298 = vmatprep.subr.bf16.mxu0 0
      %2299 = vmatpush1.bf16.msra.mxu0 %v2241
      %2300 = vmatprep.subr.bf16.mxu0 0
      %2301 = vmatpush1.bf16.msra.mxu0 %v2242
      %2302 = vmatprep.subr.bf16.mxu0 0
      %2303 = vmatpush1.bf16.msra.mxu0 %v2243
      %2304 = vmatprep.subr.bf16.mxu0 0
      %2305 = vmatpush1.bf16.msra.mxu0 %v2244
      %2306 = vmatprep.subr.bf16.mxu0 0
      %2307 = vmatpush1.bf16.msra.mxu0 %v2245
      %2308 = vmatprep.subr.bf16.mxu0 0
      %2309 = vmatpush1.bf16.msra.mxu0 %v2246
      %2310 = vmatprep.subr.bf16.mxu0 0
      %2311 = vmatpush1.bf16.msra.mxu0 %v2247
      %2312 = vmatprep.mubr.bf16.mxu0 %v656
      %2313 = vmatmul.mubr.bf16.gmra.mrb[0].mxu0 %v713
      %v2314 = vpop.f32.mrb[0].mxu0
      %v2315 = vadd.f32 0.0, %v2314
      %v2316 = vpop.f32.mrb[0].mxu0
      %v2317 = vpop.f32.mrb[0].mxu0
      %v2318 = vadd.f32 0.0, %v2317
      %v2319 = vpop.f32.mrb[0].mxu0
      %2320 = vmatprep.mubr.bf16.mxu0 %v657
      %2321 = vmatmul.mubr.bf16.gmra.mrb[0].mxu0 %v721
      %v2322 = vpop.f32.mrb[0].mxu0
      %v2323 = vadd.f32 0.0, %v2322
      %v2324 = vpop.f32.mrb[0].mxu0
      %v2325 = vpop.f32.mrb[0].mxu0
      %v2326 = vadd.f32 0.0, %v2325
      %v2327 = vpop.f32.mrb[0].mxu0
      %2328 = vmatprep.mubr.bf16.mxu0 %v658
      %2329 = vmatmul.mubr.bf16.gmra.mrb[0].mxu0 %v729
      %v2330 = vpop.f32.mrb[0].mxu0
      %v2331 = vadd.f32 0.0, %v2330
      %v2332 = vpop.f32.mrb[0].mxu0
      %v2333 = vpop.f32.mrb[0].mxu0
      %v2334 = vadd.f32 0.0, %v2333
      %v2335 = vpop.f32.mrb[0].mxu0
      %2336 = vmatprep.mubr.bf16.mxu0 %v659
      %2337 = vmatmul.mubr.bf16.gmra.mrb[0].mxu0 %v737
      %v2338 = vpop.f32.mrb[0].mxu0
      %v2339 = vadd.f32 0.0, %v2338
      %v2340 = vpop.f32.mrb[0].mxu0
      %v2341 = vpop.f32.mrb[0].mxu0
      %v2342 = vadd.f32 0.0, %v2341
      %v2343 = vpop.f32.mrb[0].mxu0
      %2344 = vmatprep.mubr.bf16.mxu0 %v660
      %2345 = vmatmul.mubr.bf16.gmra.mrb[0].mxu0 %v745
      %v2346 = vpop.f32.mrb[0].mxu0
      %v2347 = vadd.f32 0.0, %v2346
      %v2348 = vpop.f32.mrb[0].mxu0
      %v2349 = vpop.f32.mrb[0].mxu0
      %v2350 = vadd.f32 0.0, %v2349
      %v2351 = vpop.f32.mrb[0].mxu0
      %2352 = vmatprep.mubr.bf16.mxu0 %v661
      %2353 = vmatmul.mubr.bf16.gmra.mrb[0].mxu0 %v753
      %v2354 = vpop.f32.mrb[0].mxu0
      %v2355 = vadd.f32 0.0, %v2354
      %v2356 = vpop.f32.mrb[0].mxu0
      %v2357 = vpop.f32.mrb[0].mxu0
      %v2358 = vadd.f32 0.0, %v2357
      %v2359 = vpop.f32.mrb[0].mxu0
      %2360 = vmatprep.mubr.bf16.mxu0 %v662
      %2361 = vmatmul.mubr.bf16.gmra.mrb[0].mxu0 %v761
      %v2362 = vpop.f32.mrb[0].mxu0
      %v2363 = vadd.f32 0.0, %v2362
      %v2364 = vpop.f32.mrb[0].mxu0
      %v2365 = vpop.f32.mrb[0].mxu0
      %v2366 = vadd.f32 0.0, %v2365
      %v2367 = vpop.f32.mrb[0].mxu0
      %2368 = vmatprep.mubr.bf16.mxu0 %v663
      %2369 = vmatmul.mubr.bf16.gmra.mrb[0].mxu0 %v769
      %v2370 = vpop.f32.mrb[0].mxu0
      %v2371 = vadd.f32 0.0, %v2370
      %v2372 = vpop.f32.mrb[0].mxu0
      %v2373 = vpop.f32.mrb[0].mxu0
      %v2374 = vadd.f32 0.0, %v2373
      %v2375 = vpop.f32.mrb[0].mxu0
      %2376 = vmatprep.mubr.bf16.mxu0 %v664
      %2377 = vmatmul.mubr.bf16.gmra.mrb[0].mxu0 %v777
      %v2378 = vpop.f32.mrb[0].mxu0
      %v2379 = vadd.f32 0.0, %v2378
      %v2380 = vpop.f32.mrb[0].mxu0
      %v2381 = vpop.f32.mrb[0].mxu0
      %v2382 = vadd.f32 0.0, %v2381
      %v2383 = vpop.f32.mrb[0].mxu0
      %2384 = vmatprep.mubr.bf16.mxu0 %v665
      %2385 = vmatmul.mubr.bf16.gmra.mrb[0].mxu0 %v785
      %v2386 = vpop.f32.mrb[0].mxu0
      %v2387 = vadd.f32 0.0, %v2386
      %v2388 = vpop.f32.mrb[0].mxu0
      %v2389 = vpop.f32.mrb[0].mxu0
      %v2390 = vadd.f32 0.0, %v2389
      %v2391 = vpop.f32.mrb[0].mxu0
      %2392 = vmatprep.mubr.bf16.mxu0 %v666
      %2393 = vmatmul.mubr.bf16.gmra.mrb[0].mxu0 %v793
      %v2394 = vpop.f32.mrb[0].mxu0
      %v2395 = vadd.f32 0.0, %v2394
      %v2396 = vpop.f32.mrb[0].mxu0
      %v2397 = vpop.f32.mrb[0].mxu0
      %v2398 = vadd.f32 0.0, %v2397
      %v2399 = vpop.f32.mrb[0].mxu0
      %2400 = vmatprep.mubr.bf16.mxu0 %v667
      %2401 = vmatmul.mubr.bf16.gmra.mrb[0].mxu0 %v801
      %v2402 = vpop.f32.mrb[0].mxu0
      %v2403 = vadd.f32 0.0, %v2402
      %v2404 = vpop.f32.mrb[0].mxu0
      %v2405 = vpop.f32.mrb[0].mxu0
      %v2406 = vadd.f32 0.0, %v2405
      %v2407 = vpop.f32.mrb[0].mxu0
      %2408 = vmatprep.mubr.bf16.mxu0 %v668
      %2409 = vmatmul.mubr.bf16.gmra.mrb[0].mxu0 %v809
      %v2410 = vpop.f32.mrb[0].mxu0
      %v2411 = vadd.f32 0.0, %v2410
      %v2412 = vpop.f32.mrb[0].mxu0
      %v2413 = vpop.f32.mrb[0].mxu0
      %v2414 = vadd.f32 0.0, %v2413
      %v2415 = vpop.f32.mrb[0].mxu0
      %2416 = vmatprep.mubr.bf16.mxu0 %v669
      %2417 = vmatmul.mubr.bf16.gmra.mrb[0].mxu0 %v817
      %v2418 = vpop.f32.mrb[0].mxu0
      %v2419 = vadd.f32 0.0, %v2418
      %v2420 = vpop.f32.mrb[0].mxu0
      %v2421 = vpop.f32.mrb[0].mxu0
      %v2422 = vadd.f32 0.0, %v2421
      %v2423 = vpop.f32.mrb[0].mxu0
      %2424 = vmatprep.mubr.bf16.mxu0 %v670
      %2425 = vmatmul.mubr.bf16.gmra.mrb[0].mxu0 %v825
      %v2426 = vpop.f32.mrb[0].mxu0
      %v2427 = vadd.f32 0.0, %v2426
      %v2428 = vpop.f32.mrb[0].mxu0
      %v2429 = vpop.f32.mrb[0].mxu0
      %v2430 = vadd.f32 0.0, %v2429
      %v2431 = vpop.f32.mrb[0].mxu0
      %2432 = vmatprep.mubr.bf16.mxu0 %v671
      %2433 = vmatmul.mubr.bf16.gmra.mrb[0].mxu0 %v833
      %v2434 = vpop.f32.mrb[0].mxu0
      %v2435 = vadd.f32 0.0, %v2434
      %v2436 = vpop.f32.mrb[0].mxu0
      %v2437 = vpop.f32.mrb[0].mxu0
      %v2438 = vadd.f32 0.0, %v2437
      %v2439 = vpop.f32.mrb[0].mxu0
      %2440 = vmatprep.mubr.bf16.mxu0 %v672
      %2441 = vmatmul.mubr.bf16.gmra.mrb[0].mxu0 %v841
      %v2442 = vpop.f32.mrb[0].mxu0
      %v2443 = vadd.f32 0.0, %v2442
      %v2444 = vpop.f32.mrb[0].mxu0
      %v2445 = vpop.f32.mrb[0].mxu0
      %v2446 = vadd.f32 0.0, %v2445
      %v2447 = vpop.f32.mrb[0].mxu0
      %2448 = vmatprep.mubr.bf16.mxu0 %v673
      %2449 = vmatmul.mubr.bf16.gmra.mrb[0].mxu0 %v849
      %v2450 = vpop.f32.mrb[0].mxu0
      %v2451 = vadd.f32 0.0, %v2450
      %v2452 = vpop.f32.mrb[0].mxu0
      %v2453 = vpop.f32.mrb[0].mxu0
      %v2454 = vadd.f32 0.0, %v2453
      %v2455 = vpop.f32.mrb[0].mxu0
      %2456 = vdwg.mxu0
      %2457 = vmatprep.subr.bf16.mxu0 0
      %2458 = vmatpush1.bf16.msra.mxu0 %v2248
      %2459 = vmatprep.subr.bf16.mxu0 0
      %2460 = vmatpush1.bf16.msra.mxu0 %v2249
      %2461 = vmatprep.subr.bf16.mxu0 0
      %2462 = vmatpush1.bf16.msra.mxu0 %v2250
      %2463 = vmatprep.subr.bf16.mxu0 0
      %2464 = vmatpush1.bf16.msra.mxu0 %v2251
      %2465 = vmatprep.subr.bf16.mxu0 0
      %2466 = vmatpush1.bf16.msra.mxu0 %v2252
      %2467 = vmatprep.subr.bf16.mxu0 0
      %2468 = vmatpush1.bf16.msra.mxu0 %v2253
      %2469 = vmatprep.subr.bf16.mxu0 0
      %2470 = vmatpush1.bf16.msra.mxu0 %v2254
      %2471 = vmatprep.subr.bf16.mxu0 0
      %2472 = vmatpush1.bf16.msra.mxu0 %v2255
      %2473 = vmatprep.subr.bf16.mxu0 0
      %2474 = vmatpush1.bf16.msra.mxu0 0
      %2475 = vmatprep.subr.bf16.mxu0 0
      %2476 = vmatpush1.bf16.msra.mxu0 0
      %2477 = vmatprep.subr.bf16.mxu0 0
      %2478 = vmatpush1.bf16.msra.mxu0 0
      %2479 = vmatprep.subr.bf16.mxu0 0
      %2480 = vmatpush1.bf16.msra.mxu0 0
      %2481 = vmatprep.subr.bf16.mxu0 0
      %2482 = vmatpush1.bf16.msra.mxu0 0
      %2483 = vmatprep.subr.bf16.mxu0 0
      %2484 = vmatpush1.bf16.msra.mxu0 0
      %2485 = vmatprep.subr.bf16.mxu0 0
      %2486 = vmatpush1.bf16.msra.mxu0 0
      %2487 = vmatprep.subr.bf16.mxu0 0
      %2488 = vmatpush1.bf16.msra.mxu0 0
      %2489 = vmatprep.mubr.bf16.mxu0 0
      %2490 = vmatmul.mubr.bf16.gmra.mrb[0].mxu0 %v891
      %v2491 = vpop.f32.mrb[0].mxu0
      %v2492 = vadd.f32 %v2315, %v2491
      %v2493 = vpop.f32.mrb[0].mxu0
      %v2494 = vpop.f32.mrb[0].mxu0
      %v2495 = vadd.f32 %v2318, %v2494
      %v2496 = vpop.f32.mrb[0].mxu0
      %2497 = vmatprep.mubr.bf16.mxu0 0
      %2498 = vmatmul.mubr.bf16.gmra.mrb[0].mxu0 %v894
      %v2499 = vpop.f32.mrb[0].mxu0
      %v2500 = vadd.f32 %v2323, %v2499
      %v2501 = vpop.f32.mrb[0].mxu0
      %v2502 = vpop.f32.mrb[0].mxu0
      %v2503 = vadd.f32 %v2326, %v2502
      %v2504 = vpop.f32.mrb[0].mxu0
      %2505 = vmatprep.mubr.bf16.mxu0 0
      %2506 = vmatmul.mubr.bf16.gmra.mrb[0].mxu0 %v897
      %v2507 = vpop.f32.mrb[0].mxu0
      %v2508 = vadd.f32 %v2331, %v2507
      %v2509 = vpop.f32.mrb[0].mxu0
      %v2510 = vpop.f32.mrb[0].mxu0
      %v2511 = vadd.f32 %v2334, %v2510
      %v2512 = vpop.f32.mrb[0].mxu0
      %2513 = vmatprep.mubr.bf16.mxu0 0
      %2514 = vmatmul.mubr.bf16.gmra.mrb[0].mxu0 %v900
      %v2515 = vpop.f32.mrb[0].mxu0
      %v2516 = vadd.f32 %v2339, %v2515
      %v2517 = vpop.f32.mrb[0].mxu0
      %v2518 = vpop.f32.mrb[0].mxu0
      %v2519 = vadd.f32 %v2342, %v2518
      %v2520 = vpop.f32.mrb[0].mxu0
      %2521 = vmatprep.mubr.bf16.mxu0 0
      %2522 = vmatmul.mubr.bf16.gmra.mrb[0].mxu0 %v903
      %v2523 = vpop.f32.mrb[0].mxu0
      %v2524 = vadd.f32 %v2347, %v2523
      %v2525 = vpop.f32.mrb[0].mxu0
      %v2526 = vpop.f32.mrb[0].mxu0
      %v2527 = vadd.f32 %v2350, %v2526
      %v2528 = vpop.f32.mrb[0].mxu0
      %2529 = vmatprep.mubr.bf16.mxu0 0
      %2530 = vmatmul.mubr.bf16.gmra.mrb[0].mxu0 %v906
      %v2531 = vpop.f32.mrb[0].mxu0
      %v2532 = vadd.f32 %v2355, %v2531
      %v2533 = vpop.f32.mrb[0].mxu0
      %v2534 = vpop.f32.mrb[0].mxu0
      %v2535 = vadd.f32 %v2358, %v2534
      %v2536 = vpop.f32.mrb[0].mxu0
      %2537 = vmatprep.mubr.bf16.mxu0 0
      %2538 = vmatmul.mubr.bf16.gmra.mrb[0].mxu0 %v909
      %v2539 = vpop.f32.mrb[0].mxu0
      %v2540 = vadd.f32 %v2363, %v2539
      %v2541 = vpop.f32.mrb[0].mxu0
      %v2542 = vpop.f32.mrb[0].mxu0
      %v2543 = vadd.f32 %v2366, %v2542
      %v2544 = vpop.f32.mrb[0].mxu0
      %2545 = vmatprep.mubr.bf16.mxu0 0
      %2546 = vmatmul.mubr.bf16.gmra.mrb[0].mxu0 %v912
      %v2547 = vpop.f32.mrb[0].mxu0
      %v2548 = vadd.f32 %v2371, %v2547
      %v2549 = vpop.f32.mrb[0].mxu0
      %v2550 = vpop.f32.mrb[0].mxu0
      %v2551 = vadd.f32 %v2374, %v2550
      %v2552 = vpop.f32.mrb[0].mxu0
      %2553 = vmatprep.mubr.bf16.mxu0 0
      %2554 = vmatmul.mubr.bf16.gmra.mrb[0].mxu0 %v915
      %v2555 = vpop.f32.mrb[0].mxu0
      %v2556 = vadd.f32 %v2379, %v2555
      %v2557 = vpop.f32.mrb[0].mxu0
      %v2558 = vpop.f32.mrb[0].mxu0
      %v2559 = vadd.f32 %v2382, %v2558
      %v2560 = vpop.f32.mrb[0].mxu0
      %2561 = vmatprep.mubr.bf16.mxu0 0
      %2562 = vmatmul.mubr.bf16.gmra.mrb[0].mxu0 %v918
      %v2563 = vpop.f32.mrb[0].mxu0
      %v2564 = vadd.f32 %v2387, %v2563
      %v2565 = vpop.f32.mrb[0].mxu0
      %v2566 = vpop.f32.mrb[0].mxu0
      %v2567 = vadd.f32 %v2390, %v2566
      %v2568 = vpop.f32.mrb[0].mxu0
      %2569 = vmatprep.mubr.bf16.mxu0 0
      %2570 = vmatmul.mubr.bf16.gmra.mrb[0].mxu0 %v921
      %v2571 = vpop.f32.mrb[0].mxu0
      %v2572 = vadd.f32 %v2395, %v2571
      %v2573 = vpop.f32.mrb[0].mxu0
      %v2574 = vpop.f32.mrb[0].mxu0
      %v2575 = vadd.f32 %v2398, %v2574
      %v2576 = vpop.f32.mrb[0].mxu0
      %2577 = vmatprep.mubr.bf16.mxu0 0
      %2578 = vmatmul.mubr.bf16.gmra.mrb[0].mxu0 %v924
      %v2579 = vpop.f32.mrb[0].mxu0
      %v2580 = vadd.f32 %v2403, %v2579
      %v2581 = vpop.f32.mrb[0].mxu0
      %v2582 = vpop.f32.mrb[0].mxu0
      %v2583 = vadd.f32 %v2406, %v2582
      %v2584 = vpop.f32.mrb[0].mxu0
      %2585 = vmatprep.mubr.bf16.mxu0 0
      %2586 = vmatmul.mubr.bf16.gmra.mrb[0].mxu0 %v927
      %v2587 = vpop.f32.mrb[0].mxu0
      %v2588 = vadd.f32 %v2411, %v2587
      %v2589 = vpop.f32.mrb[0].mxu0
      %v2590 = vpop.f32.mrb[0].mxu0
      %v2591 = vadd.f32 %v2414, %v2590
      %v2592 = vpop.f32.mrb[0].mxu0
      %2593 = vmatprep.mubr.bf16.mxu0 0
      %2594 = vmatmul.mubr.bf16.gmra.mrb[0].mxu0 %v930
      %v2595 = vpop.f32.mrb[0].mxu0
      %v2596 = vadd.f32 %v2419, %v2595
      %v2597 = vpop.f32.mrb[0].mxu0
      %v2598 = vpop.f32.mrb[0].mxu0
      %v2599 = vadd.f32 %v2422, %v2598
      %v2600 = vpop.f32.mrb[0].mxu0
      %2601 = vmatprep.mubr.bf16.mxu0 0
      %2602 = vmatmul.mubr.bf16.gmra.mrb[0].mxu0 %v933
      %v2603 = vpop.f32.mrb[0].mxu0
      %v2604 = vadd.f32 %v2427, %v2603
      %v2605 = vpop.f32.mrb[0].mxu0
      %v2606 = vpop.f32.mrb[0].mxu0
      %v2607 = vadd.f32 %v2430, %v2606
      %v2608 = vpop.f32.mrb[0].mxu0
      %2609 = vmatprep.mubr.bf16.mxu0 0
      %2610 = vmatmul.mubr.bf16.gmra.mrb[0].mxu0 %v936
      %v2611 = vpop.f32.mrb[0].mxu0
      %v2612 = vadd.f32 %v2435, %v2611
      %v2613 = vpop.f32.mrb[0].mxu0
      %v2614 = vpop.f32.mrb[0].mxu0
      %v2615 = vadd.f32 %v2438, %v2614
      %v2616 = vpop.f32.mrb[0].mxu0
      %2617 = vmatprep.mubr.bf16.mxu0 0
      %2618 = vmatmul.mubr.bf16.gmra.mrb[0].mxu0 %v939
      %v2619 = vpop.f32.mrb[0].mxu0
      %v2620 = vadd.f32 %v2443, %v2619
      %v2621 = vpop.f32.mrb[0].mxu0
      %v2622 = vpop.f32.mrb[0].mxu0
      %v2623 = vadd.f32 %v2446, %v2622
      %v2624 = vpop.f32.mrb[0].mxu0
      %2625 = vmatprep.mubr.bf16.mxu0 0
      %2626 = vmatmul.mubr.bf16.gmra.mrb[0].mxu0 %v971
      %v2627 = vpop.f32.mrb[0].mxu0
      %v2628 = vadd.f32 %v2451, %v2627
      %v2629 = vpop.f32.mrb[0].mxu0
      %v2630 = vpop.f32.mrb[0].mxu0
      %v2631 = vadd.f32 %v2454, %v2630
      %v2632 = vpop.f32.mrb[0].mxu0
      %2633 = vdwg.mxu0
      %v2634 = vadd.f32 %v1945, %v2492
      %v2635 = vadd.f32 %v1948, %v2495
      %v2636 = vadd.f32 %v1953, %v2500
      %v2637 = vadd.f32 %v1956, %v2503
      %v2638 = vadd.f32 %v1961, %v2508
      %v2639 = vadd.f32 %v1964, %v2511
      %v2640 = vadd.f32 %v1969, %v2516
      %v2641 = vadd.f32 %v1972, %v2519
      %v2642 = vadd.f32 %v1977, %v2524
      %v2643 = vadd.f32 %v1980, %v2527
      %v2644 = vadd.f32 %v1985, %v2532
      %v2645 = vadd.f32 %v1988, %v2535
      %v2646 = vadd.f32 %v1993, %v2540
      %v2647 = vadd.f32 %v1996, %v2543
      %v2648 = vadd.f32 %v2001, %v2548
      %v2649 = vadd.f32 %v2004, %v2551
      %v2650 = vadd.f32 %v2009, %v2556
      %v2651 = vadd.f32 %v2012, %v2559
      %v2652 = vadd.f32 %v2017, %v2564
      %v2653 = vadd.f32 %v2020, %v2567
      %v2654 = vadd.f32 %v2025, %v2572
      %v2655 = vadd.f32 %v2028, %v2575
      %v2656 = vadd.f32 %v2033, %v2580
      %v2657 = vadd.f32 %v2036, %v2583
      %v2658 = vadd.f32 %v2041, %v2588
      %v2659 = vadd.f32 %v2044, %v2591
      %v2660 = vadd.f32 %v2049, %v2596
      %v2661 = vadd.f32 %v2052, %v2599
      %v2662 = vadd.f32 %v2057, %v2604
      %v2663 = vadd.f32 %v2060, %v2607
      %v2664 = vadd.f32 %v2065, %v2612
      %v2665 = vadd.f32 %v2068, %v2615
      %v2666 = vadd.f32 %v2073, %v2620
      %v2667 = vadd.f32 %v2076, %v2623
      %v2668 = vadd.f32 %v2081, %v2628
      %v2669 = vadd.f32 %v2084, %v2631
      %v2670 = vld [vmem:[%s4] sm:$0x1]
      %v2672 = vlaneseq
      %v2673 = vshrl.u32 %v2672, 7
      %v2674 = vsub.s32 0, %v2673
      %v2675 = vrot.slane %v2670, %v2674
      %v2677 = vadd.f32 %v2634, %v2675
      %v2678 = vadd.f32 %v2635, %v2675
      %v2679 = vadd.f32 %v2636, %v2675
      %v2680 = vadd.f32 %v2637, %v2675
      %v2681 = vadd.f32 %v2638, %v2675
      %v2682 = vadd.f32 %v2639, %v2675
      %v2683 = vadd.f32 %v2640, %v2675
      %v2684 = vadd.f32 %v2641, %v2675
      %v2685 = vadd.f32 %v2642, %v2675
      %v2686 = vadd.f32 %v2643, %v2675
      %v2687 = vadd.f32 %v2644, %v2675
      %v2688 = vadd.f32 %v2645, %v2675
      %v2689 = vadd.f32 %v2646, %v2675
      %v2690 = vadd.f32 %v2647, %v2675
      %v2691 = vadd.f32 %v2648, %v2675
      %v2692 = vadd.f32 %v2649, %v2675
      %v2693 = vadd.f32 %v2650, %v2675
      %v2694 = vadd.f32 %v2651, %v2675
      %v2695 = vadd.f32 %v2652, %v2675
      %v2696 = vadd.f32 %v2653, %v2675
      %v2697 = vadd.f32 %v2654, %v2675
      %v2698 = vadd.f32 %v2655, %v2675
      %v2699 = vadd.f32 %v2656, %v2675
      %v2700 = vadd.f32 %v2657, %v2675
      %v2701 = vadd.f32 %v2658, %v2675
      %v2702 = vadd.f32 %v2659, %v2675
      %v2703 = vadd.f32 %v2660, %v2675
      %v2704 = vadd.f32 %v2661, %v2675
      %v2705 = vadd.f32 %v2662, %v2675
      %v2706 = vadd.f32 %v2663, %v2675
      %v2707 = vadd.f32 %v2664, %v2675
      %v2708 = vadd.f32 %v2665, %v2675
      %v2709 = vadd.f32 %v2666, %v2675
      %v2710 = vadd.f32 %v2667, %v2675
      %v2711 = vadd.f32 %v2668, %v2675
      %v2712 = vadd.f32 %v2669, %v2675
      %v2713 = vld [vmem:[%s500] sm:$0xf]
      %v2714 = vld [vmem:[%s500 + $0x4] sm:$0xf]
      %v2715 = vld [vmem:[%s500 + $0x8] sm:$0xf]
      %v2716 = vld [vmem:[%s500 + $0xc] sm:$0xf]
      %v2717 = vld [vmem:[%s500 + $0x10] sm:$0xf]
      %v2718 = vld [vmem:[%s500 + $0x14] sm:$0xf]
      %v2719 = vld [vmem:[%s500 + $0x18] sm:$0xf]
      %v2720 = vld [vmem:[%s500 + $0x1c] sm:$0xf]
      %v2721 = vld [vmem:[%s500 + $0x20] sm:$0xf]
      %v2722 = vld [vmem:[%s500 + $0x24] sm:$0xf]
      %v2723 = vld [vmem:[%s500 + $0x28] sm:$0xf]
      %v2724 = vld [vmem:[%s500 + $0x2c] sm:$0xf]
      %v2725 = vld [vmem:[%s500 + $0x30] sm:$0xf]
      %v2726 = vld [vmem:[%s500 + $0x34] sm:$0xf]
      %v2727 = vld [vmem:[%s500 + $0x38] sm:$0xf]
      %v2728 = vld [vmem:[%s500 + $0x3c] sm:$0xf]
      %v2729 = vld [vmem:[%s500 + $0x40] sm:$0xf]
      %v2730 = vld [vmem:[%s500 + $0x44] sm:$0xf]
      %v2731 = vld [vmem:[%s500 + $0x48] sm:$0xf]
      %v2732 = vld [vmem:[%s500 + $0x4c] sm:$0xf]
      %v2733 = vld [vmem:[%s500 + $0x50] sm:$0xf]
      %v2734 = vld [vmem:[%s500 + $0x54] sm:$0xf]
      %v2735 = vld [vmem:[%s500 + $0x58] sm:$0xf]
      %v2736 = vld [vmem:[%s500 + $0x5c] sm:$0xf]
      %v2737 = vld [vmem:[%s500 + $0x60] sm:$0xf]
      %v2738 = vld [vmem:[%s500 + $0x64] sm:$0xf]
      %v2739 = vld [vmem:[%s500 + $0x68] sm:$0xf]
      %v2740 = vld [vmem:[%s500 + $0x6c] sm:$0xf]
      %v2741 = vld [vmem:[%s500 + $0x70] sm:$0xf]
      %v2742 = vld [vmem:[%s500 + $0x74] sm:$0xf]
      %v2743 = vld [vmem:[%s500 + $0x78] sm:$0xf]
      %v2744 = vld [vmem:[%s500 + $0x7c] sm:$0xf]
      %v2745 = vld [vmem:[%s500 + $0x80] sm:$0xf]
      %v2746 = vld [vmem:[%s500 + $0x84] sm:$0xf]
      %v2747 = vld [vmem:[%s500 + $0x88] sm:$0xf]
      %v2748 = vld [vmem:[%s500 + $0x8c] sm:$0xf]
      %v2749 = vld [vmem:[%s6] sm:$0xf]
      %v2750 = vld [vmem:[%s6 + $0x4] sm:$0xf]
      %v2751 = vld [vmem:[%s6 + $0x8] sm:$0xf]
      %v2752 = vld [vmem:[%s6 + $0xc] sm:$0xf]
      %v2753 = vld [vmem:[%s6 + $0x10] sm:$0xf]
      %v2754 = vld [vmem:[%s6 + $0x14] sm:$0xf]
      %v2755 = vld [vmem:[%s6 + $0x18] sm:$0xf]
      %v2756 = vld [vmem:[%s6 + $0x1c] sm:$0xf]
      %v2757 = vld [vmem:[%s6 + $0x20] sm:$0xf]
      %v2758 = vld [vmem:[%s6 + $0x24] sm:$0xf]
      %v2759 = vld [vmem:[%s6 + $0x28] sm:$0xf]
      %v2760 = vld [vmem:[%s6 + $0x2c] sm:$0xf]
      %v2761 = vld [vmem:[%s6 + $0x30] sm:$0xf]
      %v2762 = vld [vmem:[%s6 + $0x34] sm:$0xf]
      %v2763 = vld [vmem:[%s6 + $0x38] sm:$0xf]
      %v2764 = vld [vmem:[%s6 + $0x3c] sm:$0xf]
      %v2801 = vunpack.c.l.b16 %v2713
      %v2802 = vunpack.c.l.b16 %v2714
      %v2803 = vunpack.c.l.b16 %v2715
      %v2804 = vunpack.c.l.b16 %v2716
      %v2805 = vunpack.c.l.b16 %v2717
      %v2806 = vunpack.c.l.b16 %v2718
      %v2807 = vunpack.c.l.b16 %v2719
      %v2808 = vunpack.c.l.b16 %v2720
      %v2809 = vunpack.c.l.b16 %v2721
      %v2810 = vunpack.c.l.b16 %v2722
      %v2811 = vunpack.c.l.b16 %v2723
      %v2812 = vunpack.c.l.b16 %v2724
      %v2813 = vunpack.c.l.b16 %v2725
      %v2814 = vunpack.c.l.b16 %v2726
      %v2815 = vunpack.c.l.b16 %v2727
      %v2816 = vunpack.c.l.b16 %v2728
      %v2817 = vunpack.c.l.b16 %v2729
      %v2818 = vunpack.c.l.b16 %v2730
      %v2819 = vunpack.c.l.b16 %v2731
      %v2820 = vunpack.c.l.b16 %v2732
      %v2821 = vunpack.c.l.b16 %v2733
      %v2822 = vunpack.c.l.b16 %v2734
      %v2823 = vunpack.c.l.b16 %v2735
      %v2824 = vunpack.c.l.b16 %v2736
      %v2825 = vunpack.c.l.b16 %v2737
      %v2826 = vunpack.c.l.b16 %v2738
      %v2827 = vunpack.c.l.b16 %v2739
      %v2828 = vunpack.c.l.b16 %v2740
      %v2829 = vunpack.c.l.b16 %v2741
      %v2830 = vunpack.c.l.b16 %v2742
      %v2831 = vunpack.c.l.b16 %v2743
      %v2832 = vunpack.c.l.b16 %v2744
      %v2833 = vunpack.c.l.b16 %v2745
      %v2834 = vunpack.c.l.b16 %v2746
      %v2835 = vunpack.c.l.b16 %v2747
      %v2836 = vunpack.c.l.b16 %v2748
      %v2837 = vpack.c.b16 %v2802, %v2801
      %v2838 = vpack.c.b16 %v2804, %v2803
      %v2839 = vpack.c.b16 %v2806, %v2805
      %v2840 = vpack.c.b16 %v2808, %v2807
      %v2841 = vpack.c.b16 %v2810, %v2809
      %v2842 = vpack.c.b16 %v2812, %v2811
      %v2843 = vpack.c.b16 %v2814, %v2813
      %v2844 = vpack.c.b16 %v2816, %v2815
      %v2845 = vpack.c.b16 %v2818, %v2817
      %v2846 = vpack.c.b16 %v2820, %v2819
      %v2847 = vpack.c.b16 %v2822, %v2821
      %v2848 = vpack.c.b16 %v2824, %v2823
      %v2849 = vpack.c.b16 %v2826, %v2825
      %v2850 = vpack.c.b16 %v2828, %v2827
      %v2851 = vpack.c.b16 %v2830, %v2829
      %v2852 = vpack.c.b16 %v2832, %v2831
      %v2853 = vpack.c.b16 %v2834, %v2833
      %v2854 = vpack.c.b16 %v2836, %v2835
      %v2889 = vunpack.c.l.b16 %v2749
      %v2890 = vunpack.c.l.b16 %v2750
      %v2891 = vunpack.c.l.b16 %v2751
      %v2892 = vunpack.c.l.b16 %v2752
      %v2893 = vunpack.c.l.b16 %v2753
      %v2894 = vunpack.c.l.b16 %v2754
      %v2895 = vunpack.c.l.b16 %v2755
      %v2896 = vunpack.c.l.b16 %v2756
      %v2897 = vunpack.c.l.b16 %v2757
      %v2898 = vunpack.c.l.b16 %v2758
      %v2899 = vunpack.c.l.b16 %v2759
      %v2900 = vunpack.c.l.b16 %v2760
      %v2901 = vunpack.c.l.b16 %v2761
      %v2902 = vunpack.c.l.b16 %v2762
      %v2903 = vunpack.c.l.b16 %v2763
      %v2904 = vunpack.c.l.b16 %v2764
      %v2905 = vpack.c.b16 %v2890, %v2889
      %v2906 = vpack.c.b16 %v2892, %v2891
      %v2907 = vpack.c.b16 %v2894, %v2893
      %v2908 = vpack.c.b16 %v2896, %v2895
      %v2909 = vpack.c.b16 %v2898, %v2897
      %v2910 = vpack.c.b16 %v2900, %v2899
      %v2911 = vpack.c.b16 %v2902, %v2901
      %v2912 = vpack.c.b16 %v2904, %v2903
      %2921 = vmatprep.subr.bf16.mxu0 0
      %2922 = vmatpush1.bf16.msra.mxu0 %v2905
      %2923 = vmatprep.subr.bf16.mxu0 0
      %2924 = vmatpush1.bf16.msra.mxu0 %v2906
      %2925 = vmatprep.subr.bf16.mxu0 0
      %2926 = vmatpush1.bf16.msra.mxu0 %v2907
      %2927 = vmatprep.subr.bf16.mxu0 0
      %2928 = vmatpush1.bf16.msra.mxu0 %v2908
      %2929 = vmatprep.subr.bf16.mxu0 0
      %2930 = vmatpush1.bf16.msra.mxu0 %v2909
      %2931 = vmatprep.subr.bf16.mxu0 0
      %2932 = vmatpush1.bf16.msra.mxu0 %v2910
      %2933 = vmatprep.subr.bf16.mxu0 0
      %2934 = vmatpush1.bf16.msra.mxu0 %v2911
      %2935 = vmatprep.subr.bf16.mxu0 0
      %2936 = vmatpush1.bf16.msra.mxu0 %v2912
      %2937 = vmatprep.subr.bf16.mxu0 0
      %2938 = vmatpush1.bf16.msra.mxu0 0
      %2939 = vmatprep.subr.bf16.mxu0 0
      %2940 = vmatpush1.bf16.msra.mxu0 0
      %2941 = vmatprep.subr.bf16.mxu0 0
      %2942 = vmatpush1.bf16.msra.mxu0 0
      %2943 = vmatprep.subr.bf16.mxu0 0
      %2944 = vmatpush1.bf16.msra.mxu0 0
      %2945 = vmatprep.subr.bf16.mxu0 0
      %2946 = vmatpush1.bf16.msra.mxu0 0
      %2947 = vmatprep.subr.bf16.mxu0 0
      %2948 = vmatpush1.bf16.msra.mxu0 0
      %2949 = vmatprep.subr.bf16.mxu0 0
      %2950 = vmatpush1.bf16.msra.mxu0 0
      %2951 = vmatprep.subr.bf16.mxu0 0
      %2952 = vmatpush1.bf16.msra.mxu0 0
      %2953 = vmatprep.mubr.bf16.mxu0 0
      %2954 = vmatmul.mubr.bf16.gmra.mrb[0].mxu0 %v2837
      %v2955 = vpop.f32.mrb[0].mxu0
      %v2956 = vadd.f32 0.0, %v2955
      %v2957 = vpop.f32.mrb[0].mxu0
      %v2958 = vpop.f32.mrb[0].mxu0
      %v2959 = vadd.f32 0.0, %v2958
      %v2960 = vpop.f32.mrb[0].mxu0
      %2961 = vmatprep.mubr.bf16.mxu0 0
      %2962 = vmatmul.mubr.bf16.gmra.mrb[0].mxu0 %v2838
      %v2963 = vpop.f32.mrb[0].mxu0
      %v2964 = vadd.f32 0.0, %v2963
      %v2965 = vpop.f32.mrb[0].mxu0
      %v2966 = vpop.f32.mrb[0].mxu0
      %v2967 = vadd.f32 0.0, %v2966
      %v2968 = vpop.f32.mrb[0].mxu0
      %2969 = vmatprep.mubr.bf16.mxu0 0
      %2970 = vmatmul.mubr.bf16.gmra.mrb[0].mxu0 %v2839
      %v2971 = vpop.f32.mrb[0].mxu0
      %v2972 = vadd.f32 0.0, %v2971
      %v2973 = vpop.f32.mrb[0].mxu0
      %v2974 = vpop.f32.mrb[0].mxu0
      %v2975 = vadd.f32 0.0, %v2974
      %v2976 = vpop.f32.mrb[0].mxu0
      %2977 = vmatprep.mubr.bf16.mxu0 0
      %2978 = vmatmul.mubr.bf16.gmra.mrb[0].mxu0 %v2840
      %v2979 = vpop.f32.mrb[0].mxu0
      %v2980 = vadd.f32 0.0, %v2979
      %v2981 = vpop.f32.mrb[0].mxu0
      %v2982 = vpop.f32.mrb[0].mxu0
      %v2983 = vadd.f32 0.0, %v2982
      %v2984 = vpop.f32.mrb[0].mxu0
      %2985 = vmatprep.mubr.bf16.mxu0 0
      %2986 = vmatmul.mubr.bf16.gmra.mrb[0].mxu0 %v2841
      %v2987 = vpop.f32.mrb[0].mxu0
      %v2988 = vadd.f32 0.0, %v2987
      %v2989 = vpop.f32.mrb[0].mxu0
      %v2990 = vpop.f32.mrb[0].mxu0
      %v2991 = vadd.f32 0.0, %v2990
      %v2992 = vpop.f32.mrb[0].mxu0
      %2993 = vmatprep.mubr.bf16.mxu0 0
      %2994 = vmatmul.mubr.bf16.gmra.mrb[0].mxu0 %v2842
      %v2995 = vpop.f32.mrb[0].mxu0
      %v2996 = vadd.f32 0.0, %v2995
      %v2997 = vpop.f32.mrb[0].mxu0
      %v2998 = vpop.f32.mrb[0].mxu0
      %v2999 = vadd.f32 0.0, %v2998
      %v3000 = vpop.f32.mrb[0].mxu0
      %3001 = vmatprep.mubr.bf16.mxu0 0
      %3002 = vmatmul.mubr.bf16.gmra.mrb[0].mxu0 %v2843
      %v3003 = vpop.f32.mrb[0].mxu0
      %v3004 = vadd.f32 0.0, %v3003
      %v3005 = vpop.f32.mrb[0].mxu0
      %v3006 = vpop.f32.mrb[0].mxu0
      %v3007 = vadd.f32 0.0, %v3006
      %v3008 = vpop.f32.mrb[0].mxu0
      %3009 = vmatprep.mubr.bf16.mxu0 0
      %3010 = vmatmul.mubr.bf16.gmra.mrb[0].mxu0 %v2844
      %v3011 = vpop.f32.mrb[0].mxu0
      %v3012 = vadd.f32 0.0, %v3011
      %v3013 = vpop.f32.mrb[0].mxu0
      %v3014 = vpop.f32.mrb[0].mxu0
      %v3015 = vadd.f32 0.0, %v3014
      %v3016 = vpop.f32.mrb[0].mxu0
      %3017 = vmatprep.mubr.bf16.mxu0 0
      %3018 = vmatmul.mubr.bf16.gmra.mrb[0].mxu0 %v2845
      %v3019 = vpop.f32.mrb[0].mxu0
      %v3020 = vadd.f32 0.0, %v3019
      %v3021 = vpop.f32.mrb[0].mxu0
      %v3022 = vpop.f32.mrb[0].mxu0
      %v3023 = vadd.f32 0.0, %v3022
      %v3024 = vpop.f32.mrb[0].mxu0
      %3025 = vmatprep.mubr.bf16.mxu0 0
      %3026 = vmatmul.mubr.bf16.gmra.mrb[0].mxu0 %v2846
      %v3027 = vpop.f32.mrb[0].mxu0
      %v3028 = vadd.f32 0.0, %v3027
      %v3029 = vpop.f32.mrb[0].mxu0
      %v3030 = vpop.f32.mrb[0].mxu0
      %v3031 = vadd.f32 0.0, %v3030
      %v3032 = vpop.f32.mrb[0].mxu0
      %3033 = vmatprep.mubr.bf16.mxu0 0
      %3034 = vmatmul.mubr.bf16.gmra.mrb[0].mxu0 %v2847
      %v3035 = vpop.f32.mrb[0].mxu0
      %v3036 = vadd.f32 0.0, %v3035
      %v3037 = vpop.f32.mrb[0].mxu0
      %v3038 = vpop.f32.mrb[0].mxu0
      %v3039 = vadd.f32 0.0, %v3038
      %v3040 = vpop.f32.mrb[0].mxu0
      %3041 = vmatprep.mubr.bf16.mxu0 0
      %3042 = vmatmul.mubr.bf16.gmra.mrb[0].mxu0 %v2848
      %v3043 = vpop.f32.mrb[0].mxu0
      %v3044 = vadd.f32 0.0, %v3043
      %v3045 = vpop.f32.mrb[0].mxu0
      %v3046 = vpop.f32.mrb[0].mxu0
      %v3047 = vadd.f32 0.0, %v3046
      %v3048 = vpop.f32.mrb[0].mxu0
      %3049 = vmatprep.mubr.bf16.mxu0 0
      %3050 = vmatmul.mubr.bf16.gmra.mrb[0].mxu0 %v2849
      %v3051 = vpop.f32.mrb[0].mxu0
      %v3052 = vadd.f32 0.0, %v3051
      %v3053 = vpop.f32.mrb[0].mxu0
      %v3054 = vpop.f32.mrb[0].mxu0
      %v3055 = vadd.f32 0.0, %v3054
      %v3056 = vpop.f32.mrb[0].mxu0
      %3057 = vmatprep.mubr.bf16.mxu0 0
      %3058 = vmatmul.mubr.bf16.gmra.mrb[0].mxu0 %v2850
      %v3059 = vpop.f32.mrb[0].mxu0
      %v3060 = vadd.f32 0.0, %v3059
      %v3061 = vpop.f32.mrb[0].mxu0
      %v3062 = vpop.f32.mrb[0].mxu0
      %v3063 = vadd.f32 0.0, %v3062
      %v3064 = vpop.f32.mrb[0].mxu0
      %3065 = vmatprep.mubr.bf16.mxu0 0
      %3066 = vmatmul.mubr.bf16.gmra.mrb[0].mxu0 %v2851
      %v3067 = vpop.f32.mrb[0].mxu0
      %v3068 = vadd.f32 0.0, %v3067
      %v3069 = vpop.f32.mrb[0].mxu0
      %v3070 = vpop.f32.mrb[0].mxu0
      %v3071 = vadd.f32 0.0, %v3070
      %v3072 = vpop.f32.mrb[0].mxu0
      %3073 = vmatprep.mubr.bf16.mxu0 0
      %3074 = vmatmul.mubr.bf16.gmra.mrb[0].mxu0 %v2852
      %v3075 = vpop.f32.mrb[0].mxu0
      %v3076 = vadd.f32 0.0, %v3075
      %v3077 = vpop.f32.mrb[0].mxu0
      %v3078 = vpop.f32.mrb[0].mxu0
      %v3079 = vadd.f32 0.0, %v3078
      %v3080 = vpop.f32.mrb[0].mxu0
      %3081 = vmatprep.mubr.bf16.mxu0 0
      %3082 = vmatmul.mubr.bf16.gmra.mrb[0].mxu0 %v2853
      %v3083 = vpop.f32.mrb[0].mxu0
      %v3084 = vadd.f32 0.0, %v3083
      %v3085 = vpop.f32.mrb[0].mxu0
      %v3086 = vpop.f32.mrb[0].mxu0
      %v3087 = vadd.f32 0.0, %v3086
      %v3088 = vpop.f32.mrb[0].mxu0
      %3089 = vmatprep.mubr.bf16.mxu0 0
      %3090 = vmatmul.mubr.bf16.gmra.mrb[0].mxu0 %v2854
      %v3091 = vpop.f32.mrb[0].mxu0
      %v3092 = vadd.f32 0.0, %v3091
      %v3093 = vpop.f32.mrb[0].mxu0
      %v3094 = vpop.f32.mrb[0].mxu0
      %v3095 = vadd.f32 0.0, %v3094
      %v3096 = vpop.f32.mrb[0].mxu0
      %3097 = vdwg.mxu0
      %v3098 = vadd.f32 %v2677, %v2956
      %v3099 = vadd.f32 %v2678, %v2959
      %v3100 = vadd.f32 %v2679, %v2964
      %v3101 = vadd.f32 %v2680, %v2967
      %v3102 = vadd.f32 %v2681, %v2972
      %v3103 = vadd.f32 %v2682, %v2975
      %v3104 = vadd.f32 %v2683, %v2980
      %v3105 = vadd.f32 %v2684, %v2983
      %v3106 = vadd.f32 %v2685, %v2988
      %v3107 = vadd.f32 %v2686, %v2991
      %v3108 = vadd.f32 %v2687, %v2996
      %v3109 = vadd.f32 %v2688, %v2999
      %v3110 = vadd.f32 %v2689, %v3004
      %v3111 = vadd.f32 %v2690, %v3007
      %v3112 = vadd.f32 %v2691, %v3012
      %v3113 = vadd.f32 %v2692, %v3015
      %v3114 = vadd.f32 %v2693, %v3020
      %v3115 = vadd.f32 %v2694, %v3023
      %v3116 = vadd.f32 %v2695, %v3028
      %v3117 = vadd.f32 %v2696, %v3031
      %v3118 = vadd.f32 %v2697, %v3036
      %v3119 = vadd.f32 %v2698, %v3039
      %v3120 = vadd.f32 %v2699, %v3044
      %v3121 = vadd.f32 %v2700, %v3047
      %v3122 = vadd.f32 %v2701, %v3052
      %v3123 = vadd.f32 %v2702, %v3055
      %v3124 = vadd.f32 %v2703, %v3060
      %v3125 = vadd.f32 %v2704, %v3063
      %v3126 = vadd.f32 %v2705, %v3068
      %v3127 = vadd.f32 %v2706, %v3071
      %v3128 = vadd.f32 %v2707, %v3076
      %v3129 = vadd.f32 %v2708, %v3079
      %v3130 = vadd.f32 %v2709, %v3084
      %v3131 = vadd.f32 %v2710, %v3087
      %v3132 = vadd.f32 %v2711, %v3092
      %v3133 = vadd.f32 %v2712, %v3095
      %v3134 = vld [vmem:[%s7] sm:$0x1]
      %v3136 = vlaneseq
      %v3137 = vshrl.u32 %v3136, 7
      %v3138 = vsub.s32 0, %v3137
      %v3139 = vrot.slane %v3134, %v3138
      %v3141 = vadd.f32 %v3098, %v3139
      %v3142 = vadd.f32 %v3099, %v3139
      %v3143 = vadd.f32 %v3100, %v3139
      %v3144 = vadd.f32 %v3101, %v3139
      %v3145 = vadd.f32 %v3102, %v3139
      %v3146 = vadd.f32 %v3103, %v3139
      %v3147 = vadd.f32 %v3104, %v3139
      %v3148 = vadd.f32 %v3105, %v3139
      %v3149 = vadd.f32 %v3106, %v3139
      %v3150 = vadd.f32 %v3107, %v3139
      %v3151 = vadd.f32 %v3108, %v3139
      %v3152 = vadd.f32 %v3109, %v3139
      %v3153 = vadd.f32 %v3110, %v3139
      %v3154 = vadd.f32 %v3111, %v3139
      %v3155 = vadd.f32 %v3112, %v3139
      %v3156 = vadd.f32 %v3113, %v3139
      %v3157 = vadd.f32 %v3114, %v3139
      %v3158 = vadd.f32 %v3115, %v3139
      %v3159 = vadd.f32 %v3116, %v3139
      %v3160 = vadd.f32 %v3117, %v3139
      %v3161 = vadd.f32 %v3118, %v3139
      %v3162 = vadd.f32 %v3119, %v3139
      %v3163 = vadd.f32 %v3120, %v3139
      %v3164 = vadd.f32 %v3121, %v3139
      %v3165 = vadd.f32 %v3122, %v3139
      %v3166 = vadd.f32 %v3123, %v3139
      %v3167 = vadd.f32 %v3124, %v3139
      %v3168 = vadd.f32 %v3125, %v3139
      %v3169 = vadd.f32 %v3126, %v3139
      %v3170 = vadd.f32 %v3127, %v3139
      %v3171 = vadd.f32 %v3128, %v3139
      %v3172 = vadd.f32 %v3129, %v3139
      %v3173 = vadd.f32 %v3130, %v3139
      %v3174 = vadd.f32 %v3131, %v3139
      %v3175 = vadd.f32 %v3132, %v3139
      %v3176 = vadd.f32 %v3133, %v3139
      %v3177 = vmax.f32 %v3141, 0.0
      %v3178 = vmax.f32 %v3142, 0.0
      %v3179 = vmax.f32 %v3143, 0.0
      %v3180 = vmax.f32 %v3144, 0.0
      %v3181 = vmax.f32 %v3145, 0.0
      %v3182 = vmax.f32 %v3146, 0.0
      %v3183 = vmax.f32 %v3147, 0.0
      %v3184 = vmax.f32 %v3148, 0.0
      %v3185 = vmax.f32 %v3149, 0.0
      %v3186 = vmax.f32 %v3150, 0.0
      %v3187 = vmax.f32 %v3151, 0.0
      %v3188 = vmax.f32 %v3152, 0.0
      %v3189 = vmax.f32 %v3153, 0.0
      %v3190 = vmax.f32 %v3154, 0.0
      %v3191 = vmax.f32 %v3155, 0.0
      %v3192 = vmax.f32 %v3156, 0.0
      %v3193 = vmax.f32 %v3157, 0.0
      %v3194 = vmax.f32 %v3158, 0.0
      %v3195 = vmax.f32 %v3159, 0.0
      %v3196 = vmax.f32 %v3160, 0.0
      %v3197 = vmax.f32 %v3161, 0.0
      %v3198 = vmax.f32 %v3162, 0.0
      %v3199 = vmax.f32 %v3163, 0.0
      %v3200 = vmax.f32 %v3164, 0.0
      %v3201 = vmax.f32 %v3165, 0.0
      %v3202 = vmax.f32 %v3166, 0.0
      %v3203 = vmax.f32 %v3167, 0.0
      %v3204 = vmax.f32 %v3168, 0.0
      %v3205 = vmax.f32 %v3169, 0.0
      %v3206 = vmax.f32 %v3170, 0.0
      %v3207 = vmax.f32 %v3171, 0.0
      %v3208 = vmax.f32 %v3172, 0.0
      %v3209 = vmax.f32 %v3173, 0.0
      %v3210 = vmax.f32 %v3174, 0.0
      %v3211 = vmax.f32 %v3175, 0.0
      %v3212 = vmax.f32 %v3176, 0.0
      %s3213 = smul.u32 %s24, 9
      %v3214 = vstv %s3213
      %v3215 = vadd.s32 %v3214, 1
      %v3216 = vadd.s32 %v3214, 2
      %v3217 = vadd.s32 %v3214, 3
      %v3218 = vadd.s32 %v3214, 4
      %v3219 = vadd.s32 %v3214, 5
      %v3220 = vadd.s32 %v3214, 6
      %v3221 = vadd.s32 %v3214, 7
      %v3222 = vadd.s32 %v3214, 8
      %v3223 = vlaneseq
      %v3224 = vshrl.u32 %v3223, 7
      %v3225 = vadd.s32 %v3224, 8
      %v3226 = vadd.s32 %v3224, 16
      %v3227 = vadd.s32 %v3224, 24
      %vm3228 = vcmp.ge.s32.totalorder %v3214, 1
      %vm3229 = vcmp.ge.s32.totalorder %v3215, 1
      %vm3230 = vcmp.ge.s32.totalorder %v3216, 1
      %vm3231 = vcmp.ge.s32.totalorder %v3217, 1
      %vm3232 = vcmp.ge.s32.totalorder %v3218, 1
      %vm3233 = vcmp.ge.s32.totalorder %v3219, 1
      %vm3234 = vcmp.ge.s32.totalorder %v3220, 1
      %vm3235 = vcmp.ge.s32.totalorder %v3221, 1
      %vm3236 = vcmp.ge.s32.totalorder %v3222, 1
      %vm3237 = vcmp.lt.s32.totalorder %v3214, 17
      %vm3238 = vcmp.lt.s32.totalorder %v3215, 17
      %vm3239 = vcmp.lt.s32.totalorder %v3216, 17
      %vm3240 = vcmp.lt.s32.totalorder %v3217, 17
      %vm3241 = vcmp.lt.s32.totalorder %v3218, 17
      %vm3242 = vcmp.lt.s32.totalorder %v3219, 17
      %vm3243 = vcmp.lt.s32.totalorder %v3220, 17
      %vm3244 = vcmp.lt.s32.totalorder %v3221, 17
      %vm3245 = vcmp.lt.s32.totalorder %v3222, 17
      %vm3246 = vmand %vm3228, %vm3237
      %vm3247 = vmand %vm3229, %vm3238
      %vm3248 = vmand %vm3230, %vm3239
      %vm3249 = vmand %vm3231, %vm3240
      %vm3250 = vmand %vm3232, %vm3241
      %vm3251 = vmand %vm3233, %vm3242
      %vm3252 = vmand %vm3234, %vm3243
      %vm3253 = vmand %vm3235, %vm3244
      %vm3254 = vmand %vm3236, %vm3245
      %vm3255 = vcmp.ge.s32.totalorder %v3224, 1
      %vm3256 = vcmp.ge.s32.totalorder %v3225, 1
      %vm3257 = vcmp.ge.s32.totalorder %v3226, 1
      %vm3258 = vcmp.ge.s32.totalorder %v3227, 1
      %vm3259 = vmand %vm3246, %vm3255
      %vm3260 = vmand %vm3246, %vm3256
      %vm3261 = vmand %vm3246, %vm3257
      %vm3262 = vmand %vm3246, %vm3258
      %vm3263 = vmand %vm3247, %vm3255
      %vm3264 = vmand %vm3247, %vm3256
      %vm3265 = vmand %vm3247, %vm3257
      %vm3266 = vmand %vm3247, %vm3258
      %vm3267 = vmand %vm3248, %vm3255
      %vm3268 = vmand %vm3248, %vm3256
      %vm3269 = vmand %vm3248, %vm3257
      %vm3270 = vmand %vm3248, %vm3258
      %vm3271 = vmand %vm3249, %vm3255
      %vm3272 = vmand %vm3249, %vm3256
      %vm3273 = vmand %vm3249, %vm3257
      %vm3274 = vmand %vm3249, %vm3258
      %vm3275 = vmand %vm3250, %vm3255
      %vm3276 = vmand %vm3250, %vm3256
      %vm3277 = vmand %vm3250, %vm3257
      %vm3278 = vmand %vm3250, %vm3258
      %vm3279 = vmand %vm3251, %vm3255
      %vm3280 = vmand %vm3251, %vm3256
      %vm3281 = vmand %vm3251, %vm3257
      %vm3282 = vmand %vm3251, %vm3258
      %vm3283 = vmand %vm3252, %vm3255
      %vm3284 = vmand %vm3252, %vm3256
      %vm3285 = vmand %vm3252, %vm3257
      %vm3286 = vmand %vm3252, %vm3258
      %vm3287 = vmand %vm3253, %vm3255
      %vm3288 = vmand %vm3253, %vm3256
      %vm3289 = vmand %vm3253, %vm3257
      %vm3290 = vmand %vm3253, %vm3258
      %vm3291 = vmand %vm3254, %vm3255
      %vm3292 = vmand %vm3254, %vm3256
      %vm3293 = vmand %vm3254, %vm3257
      %vm3294 = vmand %vm3254, %vm3258
      %vm3295 = vcmp.lt.s32.totalorder %v3224, 17
      %vm3296 = vcmp.lt.s32.totalorder %v3225, 17
      %vm3297 = vcmp.lt.s32.totalorder %v3226, 17
      %vm3298 = vcmp.lt.s32.totalorder %v3227, 17
      %vm3299 = vmand %vm3259, %vm3295
      %vm3300 = vmand %vm3260, %vm3296
      %vm3301 = vmand %vm3261, %vm3297
      %vm3302 = vmand %vm3262, %vm3298
      %vm3303 = vmand %vm3263, %vm3295
      %vm3304 = vmand %vm3264, %vm3296
      %vm3305 = vmand %vm3265, %vm3297
      %vm3306 = vmand %vm3266, %vm3298
      %vm3307 = vmand %vm3267, %vm3295
      %vm3308 = vmand %vm3268, %vm3296
      %vm3309 = vmand %vm3269, %vm3297
      %vm3310 = vmand %vm3270, %vm3298
      %vm3311 = vmand %vm3271, %vm3295
      %vm3312 = vmand %vm3272, %vm3296
      %vm3313 = vmand %vm3273, %vm3297
      %vm3314 = vmand %vm3274, %vm3298
      %vm3315 = vmand %vm3275, %vm3295
      %vm3316 = vmand %vm3276, %vm3296
      %vm3317 = vmand %vm3277, %vm3297
      %vm3318 = vmand %vm3278, %vm3298
      %vm3319 = vmand %vm3279, %vm3295
      %vm3320 = vmand %vm3280, %vm3296
      %vm3321 = vmand %vm3281, %vm3297
      %vm3322 = vmand %vm3282, %vm3298
      %vm3323 = vmand %vm3283, %vm3295
      %vm3324 = vmand %vm3284, %vm3296
      %vm3325 = vmand %vm3285, %vm3297
      %vm3326 = vmand %vm3286, %vm3298
      %vm3327 = vmand %vm3287, %vm3295
      %vm3328 = vmand %vm3288, %vm3296
      %vm3329 = vmand %vm3289, %vm3297
      %vm3330 = vmand %vm3290, %vm3298
      %vm3331 = vmand %vm3291, %vm3295
      %vm3332 = vmand %vm3292, %vm3296
      %vm3333 = vmand %vm3293, %vm3297
      %vm3334 = vmand %vm3294, %vm3298
      %v3335 = vsel %vm3299, %v3177, 0.0
      %v3336 = vsel %vm3300, %v3178, 0.0
      %v3337 = vsel %vm3301, %v3179, 0.0
      %v3338 = vsel %vm3302, %v3180, 0.0
      %v3339 = vsel %vm3303, %v3181, 0.0
      %v3340 = vsel %vm3304, %v3182, 0.0
      %v3341 = vsel %vm3305, %v3183, 0.0
      %v3342 = vsel %vm3306, %v3184, 0.0
      %v3343 = vsel %vm3307, %v3185, 0.0
      %v3344 = vsel %vm3308, %v3186, 0.0
      %v3345 = vsel %vm3309, %v3187, 0.0
      %v3346 = vsel %vm3310, %v3188, 0.0
      %v3347 = vsel %vm3311, %v3189, 0.0
      %v3348 = vsel %vm3312, %v3190, 0.0
      %v3349 = vsel %vm3313, %v3191, 0.0
      %v3350 = vsel %vm3314, %v3192, 0.0
      %v3351 = vsel %vm3315, %v3193, 0.0
      %v3352 = vsel %vm3316, %v3194, 0.0
      %v3353 = vsel %vm3317, %v3195, 0.0
      %v3354 = vsel %vm3318, %v3196, 0.0
      %v3355 = vsel %vm3319, %v3197, 0.0
      %v3356 = vsel %vm3320, %v3198, 0.0
      %v3357 = vsel %vm3321, %v3199, 0.0
      %v3358 = vsel %vm3322, %v3200, 0.0
      %v3359 = vsel %vm3323, %v3201, 0.0
      %v3360 = vsel %vm3324, %v3202, 0.0
      %v3361 = vsel %vm3325, %v3203, 0.0
      %v3362 = vsel %vm3326, %v3204, 0.0
      %v3363 = vsel %vm3327, %v3205, 0.0
      %v3364 = vsel %vm3328, %v3206, 0.0
      %v3365 = vsel %vm3329, %v3207, 0.0
      %v3366 = vsel %vm3330, %v3208, 0.0
      %v3367 = vsel %vm3331, %v3209, 0.0
      %v3368 = vsel %vm3332, %v3210, 0.0
      %v3369 = vsel %vm3333, %v3211, 0.0
      %v3370 = vsel %vm3334, %v3212, 0.0
      %v3371 = vpack.c.bf16 %v3336, %v3335
      %v3372 = vpack.c.bf16 %v3338, %v3337
      %v3373 = vpack.c.bf16 %v3340, %v3339
      %v3374 = vpack.c.bf16 %v3342, %v3341
      %v3375 = vpack.c.bf16 %v3344, %v3343
      %v3376 = vpack.c.bf16 %v3346, %v3345
      %v3377 = vpack.c.bf16 %v3348, %v3347
      %v3378 = vpack.c.bf16 %v3350, %v3349
      %v3379 = vpack.c.bf16 %v3352, %v3351
      %v3380 = vpack.c.bf16 %v3354, %v3353
      %v3381 = vpack.c.bf16 %v3356, %v3355
      %v3382 = vpack.c.bf16 %v3358, %v3357
      %v3383 = vpack.c.bf16 %v3360, %v3359
      %v3384 = vpack.c.bf16 %v3362, %v3361
      %v3385 = vpack.c.bf16 %v3364, %v3363
      %v3386 = vpack.c.bf16 %v3366, %v3365
      %v3387 = vpack.c.bf16 %v3368, %v3367
      %v3388 = vpack.c.bf16 %v3370, %v3369
      %v3407 = vunpack.c.l.b16 %v3371
      %v3408 = vunpack.c.h.b16 %v3371
      %v3409 = vunpack.c.l.b16 %v3372
      %v3410 = vunpack.c.h.b16 %v3372
      %v3411 = vunpack.c.l.b16 %v3373
      %v3412 = vunpack.c.h.b16 %v3373
      %v3413 = vunpack.c.l.b16 %v3374
      %v3414 = vunpack.c.h.b16 %v3374
      %v3415 = vunpack.c.l.b16 %v3375
      %v3416 = vunpack.c.h.b16 %v3375
      %v3417 = vunpack.c.l.b16 %v3376
      %v3418 = vunpack.c.h.b16 %v3376
      %v3419 = vunpack.c.l.b16 %v3377
      %v3420 = vunpack.c.h.b16 %v3377
      %v3421 = vunpack.c.l.b16 %v3378
      %v3422 = vunpack.c.h.b16 %v3378
      %v3423 = vunpack.c.l.b16 %v3379
      %v3424 = vunpack.c.h.b16 %v3379
      %v3425 = vunpack.c.l.b16 %v3380
      %v3426 = vunpack.c.h.b16 %v3380
      %v3427 = vunpack.c.l.b16 %v3381
      %v3428 = vunpack.c.h.b16 %v3381
      %v3429 = vunpack.c.l.b16 %v3382
      %v3430 = vunpack.c.h.b16 %v3382
      %v3431 = vunpack.c.l.b16 %v3383
      %v3432 = vunpack.c.h.b16 %v3383
      %v3433 = vunpack.c.l.b16 %v3384
      %v3434 = vunpack.c.h.b16 %v3384
      %v3435 = vunpack.c.l.b16 %v3385
      %v3436 = vunpack.c.h.b16 %v3385
      %v3437 = vunpack.c.l.b16 %v3386
      %v3438 = vunpack.c.h.b16 %v3386
      %v3439 = vunpack.c.l.b16 %v3387
      %v3440 = vunpack.c.h.b16 %v3387
      %v3441 = vunpack.c.l.b16 %v3388
      %v3442 = vunpack.c.h.b16 %v3388
      %v3443 = vpack.c.b16 %v3407, %v3407
      %v3444 = vpack.c.b16 %v3408, %v3408
      %v3445 = vpack.c.b16 %v3409, %v3409
      %v3446 = vpack.c.b16 %v3410, %v3410
      %v3447 = vpack.c.b16 %v3411, %v3411
      %v3448 = vpack.c.b16 %v3412, %v3412
      %v3449 = vpack.c.b16 %v3413, %v3413
      %v3450 = vpack.c.b16 %v3414, %v3414
      %v3451 = vpack.c.b16 %v3415, %v3415
      %v3452 = vpack.c.b16 %v3416, %v3416
      %v3453 = vpack.c.b16 %v3417, %v3417
      %v3454 = vpack.c.b16 %v3418, %v3418
      %v3455 = vpack.c.b16 %v3419, %v3419
      %v3456 = vpack.c.b16 %v3420, %v3420
      %v3457 = vpack.c.b16 %v3421, %v3421
      %v3458 = vpack.c.b16 %v3422, %v3422
      %v3459 = vpack.c.b16 %v3423, %v3423
      %v3460 = vpack.c.b16 %v3424, %v3424
      %v3461 = vpack.c.b16 %v3425, %v3425
      %v3462 = vpack.c.b16 %v3426, %v3426
      %v3463 = vpack.c.b16 %v3427, %v3427
      %v3464 = vpack.c.b16 %v3428, %v3428
      %v3465 = vpack.c.b16 %v3429, %v3429
      %v3466 = vpack.c.b16 %v3430, %v3430
      %v3467 = vpack.c.b16 %v3431, %v3431
      %v3468 = vpack.c.b16 %v3432, %v3432
      %v3469 = vpack.c.b16 %v3433, %v3433
      %v3470 = vpack.c.b16 %v3434, %v3434
      %v3471 = vpack.c.b16 %v3435, %v3435
      %v3472 = vpack.c.b16 %v3436, %v3436
      %v3473 = vpack.c.b16 %v3437, %v3437
      %v3474 = vpack.c.b16 %v3438, %v3438
      %v3475 = vpack.c.b16 %v3439, %v3439
      %v3476 = vpack.c.b16 %v3440, %v3440
      %v3477 = vpack.c.b16 %v3441, %v3441
      %v3478 = vpack.c.b16 %v3442, %v3442
      %3515 = vst [vmem:[%s511] sm:$0xf] %v3443
      %3516 = vst [vmem:[%s511 + $0x4] sm:$0xf] %v3444
      %3517 = vst [vmem:[%s511 + $0x8] sm:$0xf] %v3445
      %3518 = vst [vmem:[%s511 + $0xc] sm:$0xf] %v3446
      %3519 = vst [vmem:[%s511 + $0x10] sm:$0xf] %v3447
      %3520 = vst [vmem:[%s511 + $0x14] sm:$0xf] %v3448
      %3521 = vst [vmem:[%s511 + $0x18] sm:$0xf] %v3449
      %3522 = vst [vmem:[%s511 + $0x1c] sm:$0xf] %v3450
      %3523 = vst [vmem:[%s511 + $0x20] sm:$0xf] %v3451
      %3524 = vst [vmem:[%s511 + $0x24] sm:$0xf] %v3452
      %3525 = vst [vmem:[%s511 + $0x28] sm:$0xf] %v3453
      %3526 = vst [vmem:[%s511 + $0x2c] sm:$0xf] %v3454
      %3527 = vst [vmem:[%s511 + $0x30] sm:$0xf] %v3455
      %3528 = vst [vmem:[%s511 + $0x34] sm:$0xf] %v3456
      %3529 = vst [vmem:[%s511 + $0x38] sm:$0xf] %v3457
      %3530 = vst [vmem:[%s511 + $0x3c] sm:$0xf] %v3458
      %3531 = vst [vmem:[%s511 + $0x40] sm:$0xf] %v3459
      %3532 = vst [vmem:[%s511 + $0x44] sm:$0xf] %v3460
      %3533 = vst [vmem:[%s511 + $0x48] sm:$0xf] %v3461
      %3534 = vst [vmem:[%s511 + $0x4c] sm:$0xf] %v3462
      %3535 = vst [vmem:[%s511 + $0x50] sm:$0xf] %v3463
      %3536 = vst [vmem:[%s511 + $0x54] sm:$0xf] %v3464
      %3537 = vst [vmem:[%s511 + $0x58] sm:$0xf] %v3465
      %3538 = vst [vmem:[%s511 + $0x5c] sm:$0xf] %v3466
      %3539 = vst [vmem:[%s511 + $0x60] sm:$0xf] %v3467
      %3540 = vst [vmem:[%s511 + $0x64] sm:$0xf] %v3468
      %3541 = vst [vmem:[%s511 + $0x68] sm:$0xf] %v3469
      %3542 = vst [vmem:[%s511 + $0x6c] sm:$0xf] %v3470
      %3543 = vst [vmem:[%s511 + $0x70] sm:$0xf] %v3471
      %3544 = vst [vmem:[%s511 + $0x74] sm:$0xf] %v3472
      %3545 = vst [vmem:[%s511 + $0x78] sm:$0xf] %v3473
      %3546 = vst [vmem:[%s511 + $0x7c] sm:$0xf] %v3474
      %3547 = vst [vmem:[%s511 + $0x80] sm:$0xf] %v3475
      %3548 = vst [vmem:[%s511 + $0x84] sm:$0xf] %v3476
      %3549 = vst [vmem:[%s511 + $0x88] sm:$0xf] %v3477
      %3550 = vst [vmem:[%s511 + $0x8c] sm:$0xf] %v3478
      %s3551 = smul.u32 9, %s24
      %p3552 = scmp.lt.s32.totalorder %s23, 1
      %s3553 = scalar_select %p3552, %s23, 1
      %p3554 = scmp.lt.s32.totalorder %s3551, 17
      %s3555 = scalar_select %p3554, %s3551, 17
      %s3556 = smul.addr %s3555, 4
      %s3557 = smul.addr %s3553, 72
      %s3558 = sadd.s32 %s3556, %s3557
      %s3559 = smul.addr %s3558, 4
      %s3560 = scalar_lea.vmem %s8, %s3559
      // Predicated region
      $region53: #{res_unet_2d_encoder.7} parent=51 // pred_check
        %p3561 = pneg %p263
      $region54: #{res_unet_2d_encoder.7} parent=51 // pred_check_branch
        %3563 = sbr.rel (%p3561) target = $region56
      $region55: #{res_unet_2d_encoder.7} parent=51 // pred_region
        %s3564 = smul.u32 9, %s24
      $region56: #{res_unet_2d_encoder.7} parent=51 // pred_fallthru
        _
    $region52: #{res_unet_2d_encoder.7} parent=5 // pred_fallthru
      _
    %p3565 = scmp.le.s32.totalorder 2, %s14
    // Predicated region
    $region57: #{res_unet_2d_encoder.7} parent=5 // pred_check
      %p3566 = pneg %p3565
    $region58: #{res_unet_2d_encoder.7} parent=5 // pred_check_branch
      %3568 = sbr.rel (%p3566) target = $region60
    $region59: #{res_unet_2d_encoder.7} parent=5 // pred_region
      %s3569 = ssub.s32 %s14, 2
      // Predicated region
      $region61: #{res_unet_2d_encoder.7} parent=59 // pred_check
        %p3570 = pneg %p269
      $region62: #{res_unet_2d_encoder.7} parent=59 // pred_check_branch
        %3572 = sbr.rel (%p3570) target = $region64
      $region63: #{res_unet_2d_encoder.7} parent=59 // pred_region
        %s3573 = smul.u32 9, %s26
        %p3574 = scmp.lt.s32.totalorder %s25, 1
        %s3575 = scalar_select %p3574, %s25, 1
        %p3576 = scmp.lt.s32.totalorder %s3573, 17
        %s3577 = scalar_select %p3576, %s3573, 17
        %s3578 = smul.addr %s3577, 4
        %s3579 = smul.addr %s3575, 72
        %s3580 = sadd.s32 %s3578, %s3579
        %s3581 = smul.addr %s3580, 4
        %s3582 = scalar_lea.vmem %s8, %s3581
      $region64: #{res_unet_2d_encoder.7} parent=59 // pred_fallthru
        _
    $region60: #{res_unet_2d_encoder.7} parent=5 // pred_fallthru
      _
  $region6: #{res_unet_2d_encoder.7} parent=0 // loop_footer
    %s18 = sadd.s32 1, %s14
  $region7: #{res_unet_2d_encoder.7} parent=0 // loop_footer_branch
    %13 = sbr.rel target = $region3
  $region8: #{res_unet_2d_encoder.7} parent=0 // loop_exit
    _

</llo_original>
